<compile_context>
chip_gen: v5e
topology: v5e:2x2
jax: 0.10.0
libtpu: 0.0.40
codegen_flags: <defaults>
</compile_context>

<pallas_src>
import functools

import jax
import jax.numpy as jnp
import numpy as np
from jax.experimental import pallas as pl
from jax.experimental.pallas import tpu as pltpu


# ----------------------------------------------------------------------------
# Network geometry (hardwired by nn.Linear(3136, 512) == 64*7*7 -> 84x84 input)
# ----------------------------------------------------------------------------
_IN_C, _IN_HW = 4, 84
_S2D = 4                       # conv1 stride == space-to-depth block size
_S2D_HW = _IN_HW // _S2D       # 21
_S2D_C = _IN_C * _S2D * _S2D   # 64
_C1_HW, _C1_C = 20, 32         # conv1 output (20x20x32), stored (420, 32)
_C2_HW, _C2_C = 9, 64          # conv2 output (9x9x64),  stored (81, 64)
_C3_HW, _C3_C = 7, 64          # conv3 output (7x7x64)
_A1_ROWS = _C1_HW * _S2D_HW    # 420  (row stride 21, cols >=20 are junk)
_A2_ROWS = 88                  # >= 83 rows needed by conv3's kn2row reads
_FC_K = _C3_HW * _C3_HW * _C3_C   # 3136
_FC_KP = 3200                  # padded to a multiple of 128
_HID = 512
_NP = 128                      # padded action dim (lane-dense output)


# ----------------------------------------------------------------------------
# The fused kernel: one grid step == one batch item, everything in VMEM.
# ----------------------------------------------------------------------------
def _dqn_kernel(x_ref, w1_ref, b1_ref, w2_ref, b2_ref, w3_ref, b3_ref,
                wf1_ref, bf1_ref, wf2_ref, bf2_ref, out_ref,
                act1_ref, act2_ref, flat_ref):
    # -------- conv1: space-to-depth input (448>=441, 64), 2x2 kernel, stride 1
    # kn2row: concatenate the 4 row-shifted slabs along lanes -> one matmul.
    # Stored conv1 rows r = oh*21 + ow; columns ow==20 / pad rows are junk and
    # are never consumed by conv2.
    lhs1 = jnp.concatenate(
        [x_ref[0, pl.ds(dh * _S2D_HW + dw, _A1_ROWS), :]
         for dh in range(2) for dw in range(2)],
        axis=1)                                                   # (420, 256) bf16
    y1 = jnp.dot(lhs1, w1_ref[...], preferred_element_type=jnp.float32)
    act1_ref[...] = jnp.maximum(y1 + b1_ref[...], 0.0)            # (420, 32) f32

    # -------- conv2: 4x4 kernel, stride 2 -> (9, 9, 64), per-output-row matmuls
    act2_ref[...] = jnp.zeros_like(act2_ref)   # rows >= 81 stay zero (junk reads)
    w2 = w2_ref[...]
    b2 = b2_ref[...]
    for oh in range(_C2_HW):
        pieces = []
        for kh in range(4):
            base = (2 * oh + kh) * _S2D_HW
            for kw in range(4):
                # rows (2*oh+kh)*21 + kw + 2*ow  for ow in [0, 9)
                pieces.append(act1_ref[pl.ds(base + kw, _C2_HW, stride=2), :])
        lhs2 = jnp.concatenate(pieces, axis=1).astype(jnp.bfloat16)   # (9, 512)
        y2 = jnp.dot(lhs2, w2, preferred_element_type=jnp.float32)
        act2_ref[pl.ds(oh * _C2_HW, _C2_HW), :] = jnp.maximum(y2 + b2, 0.0)

    # -------- conv3: 3x3 kernel, stride 1 -> (7, 7, 64), kn2row single matmul
    lhs3 = jnp.concatenate(
        [act2_ref[pl.ds(kh * _C2_HW + kw, _C3_HW * _C2_HW), :]
         for kh in range(3) for kw in range(3)],
        axis=1).astype(jnp.bfloat16)                               # (63, 576)
    y3 = jnp.maximum(
        jnp.dot(lhs3, w3_ref[...], preferred_element_type=jnp.float32)
        + b3_ref[...], 0.0)                                        # (63, 64) f32
    # valid rows are r = h*9 + w with w < 7; the rest is junk.

    # -------- flatten valid conv3 outputs in (h, w, c) order into (1, 3200)
    flat_ref[...] = jnp.zeros_like(flat_ref)
    for h in range(_C3_HW):
        for w in range(_C3_HW):
            off = (h * _C3_HW + w) * _C3_C
            r = h * _C2_HW + w
            flat_ref[:, off:off + _C3_C] = y3[r:r + 1, :]

    # -------- fc1 + ReLU + fc2 (weights VMEM-resident)
    xf = flat_ref[...].astype(jnp.bfloat16)                        # (1, 3200)
    h1 = jnp.maximum(
        jnp.dot(xf, wf1_ref[...], preferred_element_type=jnp.float32)
        + bf1_ref[...], 0.0)                                       # (1, 512)
    o = jnp.dot(h1.astype(jnp.bfloat16), wf2_ref[...],
                preferred_element_type=jnp.float32) + bf2_ref[...]  # (1, 128)
    out_ref[0] = o


# ----------------------------------------------------------------------------
# One-time parameter packing (run OUTSIDE the jitted forward).
# ----------------------------------------------------------------------------
def pack_params(params, num_actions):
    # conv1: OIHW (32,4,8,8) -> K-order (bkh, bkw, dh, dw, c), 1/255 folded in.
    w1 = params["conv1_w"].astype(jnp.float32) * (1.0 / 255.0)
    w1p = (w1.reshape(32, 4, 2, 4, 2, 4)          # o, c, bkh, dh, bkw, dw
             .transpose(2, 4, 3, 5, 1, 0)          # bkh, bkw, dh, dw, c, o
             .reshape(4 * _S2D_C, _C1_C)
             .astype(jnp.bfloat16))                                # (256, 32)
    # conv2 / conv3: OIHW -> (kh, kw, c, o)
    w2p = (params["conv2_w"].transpose(2, 3, 1, 0)
           .reshape(16 * _C1_C, _C2_C).astype(jnp.bfloat16))       # (512, 64)
    w3p = (params["conv3_w"].transpose(2, 3, 1, 0)
           .reshape(9 * _C2_C, _C3_C).astype(jnp.bfloat16))        # (576, 64)
    # fc1: permute K rows from torch's (c, h, w) flatten to our (h, w, c) order.
    wf1 = (params["fc1_w"].reshape(_HID, _C3_C, _C3_HW, _C3_HW)
           .transpose(2, 3, 1, 0)                 # h, w, c, j
           .reshape(_FC_K, _HID))
    wf1p = jnp.pad(wf1, ((0, _FC_KP - _FC_K), (0, 0))).astype(jnp.bfloat16)
    wf2p = jnp.pad(params["fc2_w"].T,
                   ((0, 0), (0, _NP - num_actions))).astype(jnp.bfloat16)
    bf2p = jnp.pad(params["fc2_b"], (0, _NP - num_actions))
    return {
        "w1": w1p, "b1": params["conv1_b"].reshape(1, _C1_C).astype(jnp.float32),
        "w2": w2p, "b2": params["conv2_b"].reshape(1, _C2_C).astype(jnp.float32),
        "w3": w3p, "b3": params["conv3_b"].reshape(1, _C3_C).astype(jnp.float32),
        "wf1": wf1p, "bf1": params["fc1_b"].reshape(1, _HID).astype(jnp.float32),
        "wf2": wf2p, "bf2": bf2p.reshape(1, _NP).astype(jnp.float32),
    }


# ----------------------------------------------------------------------------
# Forward wrapper
# ----------------------------------------------------------------------------
def _space_to_depth(x):
    """(B, 4, 84, 84) -> (B, 448, 64) bf16, channel order (dh, dw, c)."""
    B = x.shape[0]
    xs = (x.transpose(0, 2, 3, 1)                                    # NHWC
            .reshape(B, _S2D_HW, _S2D, _S2D_HW, _S2D, _IN_C)
            .transpose(0, 1, 3, 2, 4, 5)                             # b,bh,bw,dh,dw,c
            .reshape(B, _S2D_HW * _S2D_HW, _S2D_C)
            .astype(jnp.bfloat16))
    # pad 441 -> 448 rows so the kn2row slabs stay in bounds (pad rows unused)
    return jnp.pad(xs, ((0, 0), (0, 448 - _S2D_HW * _S2D_HW), (0, 0)))


def dqn_forward(packed, x, num_actions):
    assert x.shape[1:] == (_IN_C, _IN_HW, _IN_HW), x.shape
    B = x.shape[0]
    xs = _space_to_depth(x)

    def _const_spec(arr):
        n = arr.ndim
        return pl.BlockSpec(arr.shape, lambda b, _n=n: (0,) * _n)

    grid_spec = pltpu.PrefetchScalarGridSpec(
        num_scalar_prefetch=0,
        grid=(B,),
        in_specs=[
            pl.BlockSpec((1, xs.shape[1], xs.shape[2]), lambda b: (b, 0, 0)),
            _const_spec(packed["w1"]), _const_spec(packed["b1"]),
            _const_spec(packed["w2"]), _const_spec(packed["b2"]),
            _const_spec(packed["w3"]), _const_spec(packed["b3"]),
            _const_spec(packed["wf1"]), _const_spec(packed["bf1"]),
            _const_spec(packed["wf2"]), _const_spec(packed["bf2"]),
        ],
        out_specs=pl.BlockSpec((1, 1, _NP), lambda b: (b, 0, 0)),
        scratch_shapes=[
            pltpu.VMEM((_A1_ROWS, _C1_C), jnp.float32),   # conv1 activation
            pltpu.VMEM((_A2_ROWS, _C2_C), jnp.float32),   # conv2 activation
            pltpu.VMEM((1, _FC_KP), jnp.float32),         # flattened features
        ],
    )
    out = pl.pallas_call(
        _dqn_kernel,
        out_shape=jax.ShapeDtypeStruct((B, 1, _NP), jnp.float32),
        grid_spec=grid_spec,
        compiler_params=pltpu.CompilerParams(
            dimension_semantics=("parallel",),   # batch split -> both v7x TCs
        ),
    )(xs, packed["w1"], packed["b1"], packed["w2"], packed["b2"],
      packed["w3"], packed["b3"], packed["wf1"], packed["bf1"],
      packed["wf2"], packed["bf2"])
    return out[:, 0, :num_actions]


# ----------------------------------------------------------------------------
# Pure-JAX reference (lax.conv, f32) for correctness checking
# ----------------------------------------------------------------------------
def dqn_reference(params, x):
    dn = ("NCHW", "OIHW", "NCHW")
    x = x.astype(jnp.float32) / 255.0
    x = jax.lax.conv_general_dilated(x, params["conv1_w"], (4, 4), "VALID",
                                     dimension_numbers=dn)
    x = jax.nn.relu(x + params["conv1_b"][None, :, None, None])
    x = jax.lax.conv_general_dilated(x, params["conv2_w"], (2, 2), "VALID",
                                     dimension_numbers=dn)
    x = jax.nn.relu(x + params["conv2_b"][None, :, None, None])
    x = jax.lax.conv_general_dilated(x, params["conv3_w"], (1, 1), "VALID",
                                     dimension_numbers=dn)
    x = jax.nn.relu(x + params["conv3_b"][None, :, None, None])
    x = x.reshape(x.shape[0], -1)
    x = jax.nn.relu(x @ params["fc1_w"].T + params["fc1_b"])
    return x @ params["fc2_w"].T + params["fc2_b"]


def init_params(key, num_actions):
    def uni(k, shape, fan_in):
        bound = 1.0 / np.sqrt(fan_in)
        return jax.random.uniform(k, shape, jnp.float32, -bound, bound)

    ks = jax.random.split(key, 10)
    return {
        "conv1_w": uni(ks[0], (32, 4, 8, 8), 4 * 8 * 8),
        "conv1_b": uni(ks[1], (32,), 4 * 8 * 8),
        "conv2_w": uni(ks[2], (64, 32, 4, 4), 32 * 4 * 4),
        "conv2_b": uni(ks[3], (64,), 32 * 4 * 4),
        "conv3_w": uni(ks[4], (64, 64, 3, 3), 64 * 3 * 3),
        "conv3_b": uni(ks[5], (64,), 64 * 3 * 3),
        "fc1_w": uni(ks[6], (512, 3136), 3136),
        "fc1_b": uni(ks[7], (512,), 3136),
        "fc2_w": uni(ks[8], (num_actions, 512), 512),
        "fc2_b": uni(ks[9], (num_actions,), 512),
    }


if __name__ == "__main__":
    num_actions = 6
    key = jax.random.PRNGKey(0)
    k_param, k_x = jax.random.split(key)
    params = init_params(k_param, num_actions)
    packed = pack_params(params, num_actions)      # one-time packing, outside jit

    # Atari-style frames: (B, 4, 84, 84) in [0, 255).
    # (84x84 is forced by nn.Linear(3136, 512) == 64*7*7.)
    x = jax.random.uniform(k_x, (2, 4, 84, 84), jnp.float32, 0.0, 255.0)

    fwd = jax.jit(functools.partial(dqn_forward, num_actions=num_actions))
    out = jax.block_until_ready(fwd(packed, x))
    assert out.shape == (2, num_actions) and out.dtype == jnp.float32

    ref = jax.block_until_ready(jax.jit(dqn_reference)(params, x))
    rel_err = float(jnp.max(jnp.abs(out - ref)) / (jnp.max(jnp.abs(ref)) + 1e-6))
    assert rel_err < 5e-2, f"mismatch vs reference: rel_err={rel_err}"

    print("KERNEL_OK")
</pallas_src>

<mosaic_0001>
module attributes {stable_mosaic.version = 11 : i64} {
  func.func @_dqn_kernel(%arg0: i32, %arg1: memref<1x448x64xbf16, #tpu.memory_space<vmem>>, %arg2: memref<256x32xbf16, #tpu.memory_space<vmem>>, %arg3: memref<1x32xf32, #tpu.memory_space<vmem>>, %arg4: memref<512x64xbf16, #tpu.memory_space<vmem>>, %arg5: memref<1x64xf32, #tpu.memory_space<vmem>>, %arg6: memref<576x64xbf16, #tpu.memory_space<vmem>>, %arg7: memref<1x64xf32, #tpu.memory_space<vmem>>, %arg8: memref<3200x512xbf16, #tpu.memory_space<vmem>>, %arg9: memref<1x512xf32, #tpu.memory_space<vmem>>, %arg10: memref<512x128xbf16, #tpu.memory_space<vmem>>, %arg11: memref<1x128xf32, #tpu.memory_space<vmem>>, %arg12: memref<1x1x128xf32, #tpu.memory_space<vmem>>, %arg13: memref<420x32xf32, #tpu.memory_space<vmem>>, %arg14: memref<88x64xf32, #tpu.memory_space<vmem>>, %arg15: memref<1x3200xf32, #tpu.memory_space<vmem>>) attributes {dimension_semantics = [#tpu.dimension_semantics<parallel>], iteration_bounds = array<i64: 2>, scalar_prefetch = 0 : i64, scratch_operands = 3 : i64, tpu.core_type = #tpu.core_type<tc>, window_params = [{transform_indices = @transform_0, window_bounds = array<i64: 1, 448, 64>}, {pipeline_mode = #tpu.pipeline_mode<synchronous>, transform_indices = @transform_1, window_bounds = array<i64: 256, 32>}, {pipeline_mode = #tpu.pipeline_mode<synchronous>, transform_indices = @transform_2, window_bounds = array<i64: 1, 32>}, {pipeline_mode = #tpu.pipeline_mode<synchronous>, transform_indices = @transform_3, window_bounds = array<i64: 512, 64>}, {pipeline_mode = #tpu.pipeline_mode<synchronous>, transform_indices = @transform_4, window_bounds = array<i64: 1, 64>}, {pipeline_mode = #tpu.pipeline_mode<synchronous>, transform_indices = @transform_5, window_bounds = array<i64: 576, 64>}, {pipeline_mode = #tpu.pipeline_mode<synchronous>, transform_indices = @transform_6, window_bounds = array<i64: 1, 64>}, {pipeline_mode = #tpu.pipeline_mode<synchronous>, transform_indices = @transform_7, window_bounds = array<i64: 3200, 512>}, {pipeline_mode = #tpu.pipeline_mode<synchronous>, transform_indices = @transform_8, window_bounds = array<i64: 1, 512>}, {pipeline_mode = #tpu.pipeline_mode<synchronous>, transform_indices = @transform_9, window_bounds = array<i64: 512, 128>}, {pipeline_mode = #tpu.pipeline_mode<synchronous>, transform_indices = @transform_10, window_bounds = array<i64: 1, 128>}, {transform_indices = @transform_11, window_bounds = array<i64: 1, 1, 128>}]} {
    %c0 = arith.constant 0 : index
    %c0_0 = arith.constant 0 : index
    %c0_1 = arith.constant 0 : index
    %0 = vector.load %arg1[%c0, %c0_0, %c0_1] : memref<1x448x64xbf16, #tpu.memory_space<vmem>>, vector<1x420x64xbf16>
    %1 = vector.shape_cast %0 : vector<1x420x64xbf16> to vector<420x64xbf16>
    %c0_2 = arith.constant 0 : index
    %c1 = arith.constant 1 : index
    %c0_3 = arith.constant 0 : index
    %2 = vector.load %arg1[%c0_2, %c1, %c0_3] : memref<1x448x64xbf16, #tpu.memory_space<vmem>>, vector<1x420x64xbf16>
    %3 = vector.shape_cast %2 : vector<1x420x64xbf16> to vector<420x64xbf16>
    %c0_4 = arith.constant 0 : index
    %c21 = arith.constant 21 : index
    %c0_5 = arith.constant 0 : index
    %4 = vector.load %arg1[%c0_4, %c21, %c0_5] : memref<1x448x64xbf16, #tpu.memory_space<vmem>>, vector<1x420x64xbf16>
    %5 = vector.shape_cast %4 : vector<1x420x64xbf16> to vector<420x64xbf16>
    %c0_6 = arith.constant 0 : index
    %c22 = arith.constant 22 : index
    %c0_7 = arith.constant 0 : index
    %6 = vector.load %arg1[%c0_6, %c22, %c0_7] : memref<1x448x64xbf16, #tpu.memory_space<vmem>>, vector<1x420x64xbf16>
    %7 = vector.shape_cast %6 : vector<1x420x64xbf16> to vector<420x64xbf16>
    %8 = tpu.concatenate %1, %3, %5, %7 in 1 : vector<420x64xbf16>, vector<420x64xbf16>, vector<420x64xbf16>, vector<420x64xbf16> -> vector<420x256xbf16>
    %c0_8 = arith.constant 0 : index
    %c0_9 = arith.constant 0 : index
    %9 = vector.load %arg2[%c0_8, %c0_9] : memref<256x32xbf16, #tpu.memory_space<vmem>>, vector<256x32xbf16>
    %cst = arith.constant dense<0.000000e+00> : vector<420x32xf32>
    %10 = tpu.matmul %8, %9, %cst {dimension_numbers = #tpu.dot_dimension_numbers<[1], [0], [0], [1], [0, 0, 1, 1], [], []>} : vector<420x256xbf16>, vector<256x32xbf16>, vector<420x32xf32> -> vector<420x32xf32>
    %c0_10 = arith.constant 0 : index
    %c0_11 = arith.constant 0 : index
    %11 = vector.load %arg3[%c0_10, %c0_11] : memref<1x32xf32, #tpu.memory_space<vmem>>, vector<1x32xf32>
    %12 = vector.broadcast %11 : vector<1x32xf32> to vector<420x32xf32>
    %13 = arith.addf %10, %12 : vector<420x32xf32>
    %cst_12 = arith.constant 0.000000e+00 : f32
    %14 = vector.broadcast %cst_12 : f32 to vector<420x32xf32>
    %15 = arith.maximumf %13, %14 : vector<420x32xf32>
    %c0_13 = arith.constant 0 : index
    %c0_14 = arith.constant 0 : index
    %16 = vector.load %arg13[%c0_13, %c0_14] : memref<420x32xf32, #tpu.memory_space<vmem>>, vector<420x32xf32>
    tpu.vector_store %arg13[%c0_13, %c0_14], %15 {strides = array<i32>} : memref<420x32xf32, #tpu.memory_space<vmem>>, vector<420x32xf32>,
    %cst_15 = arith.constant 0.000000e+00 : f32
    %17 = vector.broadcast %cst_15 : f32 to vector<88x64xf32>
    %c0_16 = arith.constant 0 : index
    %c0_17 = arith.constant 0 : index
    %18 = vector.load %arg14[%c0_16, %c0_17] : memref<88x64xf32, #tpu.memory_space<vmem>>, vector<88x64xf32>
    tpu.vector_store %arg14[%c0_16, %c0_17], %17 {strides = array<i32>} : memref<88x64xf32, #tpu.memory_space<vmem>>, vector<88x64xf32>,
    %c0_18 = arith.constant 0 : index
    %c0_19 = arith.constant 0 : index
    %19 = vector.load %arg4[%c0_18, %c0_19] : memref<512x64xbf16, #tpu.memory_space<vmem>>, vector<512x64xbf16>
    %c0_20 = arith.constant 0 : index
    %c0_21 = arith.constant 0 : index
    %20 = vector.load %arg5[%c0_20, %c0_21] : memref<1x64xf32, #tpu.memory_space<vmem>>, vector<1x64xf32>
    %c0_22 = arith.constant 0 : index
    %c0_23 = arith.constant 0 : index
    %21 = tpu.strided_load %arg13[%c0_22, %c0_23] {strides = array<i32: 2, 1>} : memref<420x32xf32, #tpu.memory_space<vmem>>, vector<9x32xf32>
    %c1_24 = arith.constant 1 : index
    %c0_25 = arith.constant 0 : index
    %22 = tpu.strided_load %arg13[%c1_24, %c0_25] {strides = array<i32: 2, 1>} : memref<420x32xf32, #tpu.memory_space<vmem>>, vector<9x32xf32>
    %c2 = arith.constant 2 : index
    %c0_26 = arith.constant 0 : index
    %23 = tpu.strided_load %arg13[%c2, %c0_26] {strides = array<i32: 2, 1>} : memref<420x32xf32, #tpu.memory_space<vmem>>, vector<9x32xf32>
    %c3 = arith.constant 3 : index
    %c0_27 = arith.constant 0 : index
    %24 = tpu.strided_load %arg13[%c3, %c0_27] {strides = array<i32: 2, 1>} : memref<420x32xf32, #tpu.memory_space<vmem>>, vector<9x32xf32>
    %c21_28 = arith.constant 21 : index
    %c0_29 = arith.constant 0 : index
    %25 = tpu.strided_load %arg13[%c21_28, %c0_29] {strides = array<i32: 2, 1>} : memref<420x32xf32, #tpu.memory_space<vmem>>, vector<9x32xf32>
    %c22_30 = arith.constant 22 : index
    %c0_31 = arith.constant 0 : index
    %26 = tpu.strided_load %arg13[%c22_30, %c0_31] {strides = array<i32: 2, 1>} : memref<420x32xf32, #tpu.memory_space<vmem>>, vector<9x32xf32>
    %c23 = arith.constant 23 : index
    %c0_32 = arith.constant 0 : index
    %27 = tpu.strided_load %arg13[%c23, %c0_32] {strides = array<i32: 2, 1>} : memref<420x32xf32, #tpu.memory_space<vmem>>, vector<9x32xf32>
    %c24 = arith.constant 24 : index
    %c0_33 = arith.constant 0 : index
    %28 = tpu.strided_load %arg13[%c24, %c0_33] {strides = array<i32: 2, 1>} : memref<420x32xf32, #tpu.memory_space<vmem>>, vector<9x32xf32>
    %c42 = arith.constant 42 : index
    %c0_34 = arith.constant 0 : index
    %29 = tpu.strided_load %arg13[%c42, %c0_34] {strides = array<i32: 2, 1>} : memref<420x32xf32, #tpu.memory_space<vmem>>, vector<9x32xf32>
    %c43 = arith.constant 43 : index
    %c0_35 = arith.constant 0 : index
    %30 = tpu.strided_load %arg13[%c43, %c0_35] {strides = array<i32: 2, 1>} : memref<420x32xf32, #tpu.memory_space<vmem>>, vector<9x32xf32>
    %c44 = arith.constant 44 : index
    %c0_36 = arith.constant 0 : index
    %31 = tpu.strided_load %arg13[%c44, %c0_36] {strides = array<i32: 2, 1>} : memref<420x32xf32, #tpu.memory_space<vmem>>, vector<9x32xf32>
    %c45 = arith.constant 45 : index
    %c0_37 = arith.constant 0 : index
    %32 = tpu.strided_load %arg13[%c45, %c0_37] {strides = array<i32: 2, 1>} : memref<420x32xf32, #tpu.memory_space<vmem>>, vector<9x32xf32>
    %c63 = arith.constant 63 : index
    %c0_38 = arith.constant 0 : index
    %33 = tpu.strided_load %arg13[%c63, %c0_38] {strides = array<i32: 2, 1>} : memref<420x32xf32, #tpu.memory_space<vmem>>, vector<9x32xf32>
    %c64 = arith.constant 64 : index
    %c0_39 = arith.constant 0 : index
    %34 = tpu.strided_load %arg13[%c64, %c0_39] {strides = array<i32: 2, 1>} : memref<420x32xf32, #tpu.memory_space<vmem>>, vector<9x32xf32>
    %c65 = arith.constant 65 : index
    %c0_40 = arith.constant 0 : index
    %35 = tpu.strided_load %arg13[%c65, %c0_40] {strides = array<i32: 2, 1>} : memref<420x32xf32, #tpu.memory_space<vmem>>, vector<9x32xf32>
    %c66 = arith.constant 66 : index
    %c0_41 = arith.constant 0 : index
    %36 = tpu.strided_load %arg13[%c66, %c0_41] {strides = array<i32: 2, 1>} : memref<420x32xf32, #tpu.memory_space<vmem>>, vector<9x32xf32>
    %37 = tpu.concatenate %21, %22, %23, %24, %25, %26, %27, %28, %29, %30, %31, %32, %33, %34, %35, %36 in 1 : vector<9x32xf32>, vector<9x32xf32>, vector<9x32xf32>, vector<9x32xf32>, vector<9x32xf32>, vector<9x32xf32>, vector<9x32xf32>, vector<9x32xf32>, vector<9x32xf32>, vector<9x32xf32>, vector<9x32xf32>, vector<9x32xf32>, vector<9x32xf32>, vector<9x32xf32>, vector<9x32xf32>, vector<9x32xf32> -> vector<9x512xf32>
    %38 = arith.truncf %37 : vector<9x512xf32> to vector<9x512xbf16>
    %cst_42 = arith.constant dense<0.000000e+00> : vector<9x64xf32>
    %39 = tpu.matmul %38, %19, %cst_42 {dimension_numbers = #tpu.dot_dimension_numbers<[1], [0], [0], [1], [0, 0, 1, 1], [], []>} : vector<9x512xbf16>, vector<512x64xbf16>, vector<9x64xf32> -> vector<9x64xf32>
    %40 = vector.broadcast %20 : vector<1x64xf32> to vector<9x64xf32>
    %41 = arith.addf %39, %40 : vector<9x64xf32>
    %cst_43 = arith.constant 0.000000e+00 : f32
    %42 = vector.broadcast %cst_43 : f32 to vector<9x64xf32>
    %43 = arith.maximumf %41, %42 : vector<9x64xf32>
    %c0_44 = arith.constant 0 : index
    %c0_45 = arith.constant 0 : index
    %44 = vector.load %arg14[%c0_44, %c0_45] : memref<88x64xf32, #tpu.memory_space<vmem>>, vector<9x64xf32>
    tpu.vector_store %arg14[%c0_44, %c0_45], %43 {strides = array<i32>} : memref<88x64xf32, #tpu.memory_space<vmem>>, vector<9x64xf32>,
    %c42_46 = arith.constant 42 : index
    %c0_47 = arith.constant 0 : index
    %45 = tpu.strided_load %arg13[%c42_46, %c0_47] {strides = array<i32: 2, 1>} : memref<420x32xf32, #tpu.memory_space<vmem>>, vector<9x32xf32>
    %c43_48 = arith.constant 43 : index
    %c0_49 = arith.constant 0 : index
    %46 = tpu.strided_load %arg13[%c43_48, %c0_49] {strides = array<i32: 2, 1>} : memref<420x32xf32, #tpu.memory_space<vmem>>, vector<9x32xf32>
    %c44_50 = arith.constant 44 : index
    %c0_51 = arith.constant 0 : index
    %47 = tpu.strided_load %arg13[%c44_50, %c0_51] {strides = array<i32: 2, 1>} : memref<420x32xf32, #tpu.memory_space<vmem>>, vector<9x32xf32>
    %c45_52 = arith.constant 45 : index
    %c0_53 = arith.constant 0 : index
    %48 = tpu.strided_load %arg13[%c45_52, %c0_53] {strides = array<i32: 2, 1>} : memref<420x32xf32, #tpu.memory_space<vmem>>, vector<9x32xf32>
    %c63_54 = arith.constant 63 : index
    %c0_55 = arith.constant 0 : index
    %49 = tpu.strided_load %arg13[%c63_54, %c0_55] {strides = array<i32: 2, 1>} : memref<420x32xf32, #tpu.memory_space<vmem>>, vector<9x32xf32>
    %c64_56 = arith.constant 64 : index
    %c0_57 = arith.constant 0 : index
    %50 = tpu.strided_load %arg13[%c64_56, %c0_57] {strides = array<i32: 2, 1>} : memref<420x32xf32, #tpu.memory_space<vmem>>, vector<9x32xf32>
    %c65_58 = arith.constant 65 : index
    %c0_59 = arith.constant 0 : index
    %51 = tpu.strided_load %arg13[%c65_58, %c0_59] {strides = array<i32: 2, 1>} : memref<420x32xf32, #tpu.memory_space<vmem>>, vector<9x32xf32>
    %c66_60 = arith.constant 66 : index
    %c0_61 = arith.constant 0 : index
    %52 = tpu.strided_load %arg13[%c66_60, %c0_61] {strides = array<i32: 2, 1>} : memref<420x32xf32, #tpu.memory_space<vmem>>, vector<9x32xf32>
    %c84 = arith.constant 84 : index
    %c0_62 = arith.constant 0 : index
    %53 = tpu.strided_load %arg13[%c84, %c0_62] {strides = array<i32: 2, 1>} : memref<420x32xf32, #tpu.memory_space<vmem>>, vector<9x32xf32>
    %c85 = arith.constant 85 : index
    %c0_63 = arith.constant 0 : index
    %54 = tpu.strided_load %arg13[%c85, %c0_63] {strides = array<i32: 2, 1>} : memref<420x32xf32, #tpu.memory_space<vmem>>, vector<9x32xf32>
    %c86 = arith.constant 86 : index
    %c0_64 = arith.constant 0 : index
    %55 = tpu.strided_load %arg13[%c86, %c0_64] {strides = array<i32: 2, 1>} : memref<420x32xf32, #tpu.memory_space<vmem>>, vector<9x32xf32>
    %c87 = arith.constant 87 : index
    %c0_65 = arith.constant 0 : index
    %56 = tpu.strided_load %arg13[%c87, %c0_65] {strides = array<i32: 2, 1>} : memref<420x32xf32, #tpu.memory_space<vmem>>, vector<9x32xf32>
    %c105 = arith.constant 105 : index
    %c0_66 = arith.constant 0 : index
    %57 = tpu.strided_load %arg13[%c105, %c0_66] {strides = array<i32: 2, 1>} : memref<420x32xf32, #tpu.memory_space<vmem>>, vector<9x32xf32>
    %c106 = arith.constant 106 : index
    %c0_67 = arith.constant 0 : index
    %58 = tpu.strided_load %arg13[%c106, %c0_67] {strides = array<i32: 2, 1>} : memref<420x32xf32, #tpu.memory_space<vmem>>, vector<9x32xf32>
    %c107 = arith.constant 107 : index
    %c0_68 = arith.constant 0 : index
    %59 = tpu.strided_load %arg13[%c107, %c0_68] {strides = array<i32: 2, 1>} : memref<420x32xf32, #tpu.memory_space<vmem>>, vector<9x32xf32>
    %c108 = arith.constant 108 : index
    %c0_69 = arith.constant 0 : index
    %60 = tpu.strided_load %arg13[%c108, %c0_69] {strides = array<i32: 2, 1>} : memref<420x32xf32, #tpu.memory_space<vmem>>, vector<9x32xf32>
    %61 = tpu.concatenate %45, %46, %47, %48, %49, %50, %51, %52, %53, %54, %55, %56, %57, %58, %59, %60 in 1 : vector<9x32xf32>, vector<9x32xf32>, vector<9x32xf32>, vector<9x32xf32>, vector<9x32xf32>, vector<9x32xf32>, vector<9x32xf32>, vector<9x32xf32>, vector<9x32xf32>, vector<9x32xf32>, vector<9x32xf32>, vector<9x32xf32>, vector<9x32xf32>, vector<9x32xf32>, vector<9x32xf32>, vector<9x32xf32> -> vector<9x512xf32>
    %62 = arith.truncf %61 : vector<9x512xf32> to vector<9x512xbf16>
    %cst_70 = arith.constant dense<0.000000e+00> : vector<9x64xf32>
    %63 = tpu.matmul %62, %19, %cst_70 {dimension_numbers = #tpu.dot_dimension_numbers<[1], [0], [0], [1], [0, 0, 1, 1], [], []>} : vector<9x512xbf16>, vector<512x64xbf16>, vector<9x64xf32> -> vector<9x64xf32>
    %64 = vector.broadcast %20 : vector<1x64xf32> to vector<9x64xf32>
    %65 = arith.addf %63, %64 : vector<9x64xf32>
    %cst_71 = arith.constant 0.000000e+00 : f32
    %66 = vector.broadcast %cst_71 : f32 to vector<9x64xf32>
    %67 = arith.maximumf %65, %66 : vector<9x64xf32>
    %c9 = arith.constant 9 : index
    %c0_72 = arith.constant 0 : index
    %68 = vector.load %arg14[%c9, %c0_72] : memref<88x64xf32, #tpu.memory_space<vmem>>, vector<9x64xf32>
    tpu.vector_store %arg14[%c9, %c0_72], %67 {strides = array<i32>} : memref<88x64xf32, #tpu.memory_space<vmem>>, vector<9x64xf32>,
    %c84_73 = arith.constant 84 : index
    %c0_74 = arith.constant 0 : index
    %69 = tpu.strided_load %arg13[%c84_73, %c0_74] {strides = array<i32: 2, 1>} : memref<420x32xf32, #tpu.memory_space<vmem>>, vector<9x32xf32>
    %c85_75 = arith.constant 85 : index
    %c0_76 = arith.constant 0 : index
    %70 = tpu.strided_load %arg13[%c85_75, %c0_76] {strides = array<i32: 2, 1>} : memref<420x32xf32, #tpu.memory_space<vmem>>, vector<9x32xf32>
    %c86_77 = arith.constant 86 : index
    %c0_78 = arith.constant 0 : index
    %71 = tpu.strided_load %arg13[%c86_77, %c0_78] {strides = array<i32: 2, 1>} : memref<420x32xf32, #tpu.memory_space<vmem>>, vector<9x32xf32>
    %c87_79 = arith.constant 87 : index
    %c0_80 = arith.constant 0 : index
    %72 = tpu.strided_load %arg13[%c87_79, %c0_80] {strides = array<i32: 2, 1>} : memref<420x32xf32, #tpu.memory_space<vmem>>, vector<9x32xf32>
    %c105_81 = arith.constant 105 : index
    %c0_82 = arith.constant 0 : index
    %73 = tpu.strided_load %arg13[%c105_81, %c0_82] {strides = array<i32: 2, 1>} : memref<420x32xf32, #tpu.memory_space<vmem>>, vector<9x32xf32>
    %c106_83 = arith.constant 106 : index
    %c0_84 = arith.constant 0 : index
    %74 = tpu.strided_load %arg13[%c106_83, %c0_84] {strides = array<i32: 2, 1>} : memref<420x32xf32, #tpu.memory_space<vmem>>, vector<9x32xf32>
    %c107_85 = arith.constant 107 : index
    %c0_86 = arith.constant 0 : index
    %75 = tpu.strided_load %arg13[%c107_85, %c0_86] {strides = array<i32: 2, 1>} : memref<420x32xf32, #tpu.memory_space<vmem>>, vector<9x32xf32>
    %c108_87 = arith.constant 108 : index
    %c0_88 = arith.constant 0 : index
    %76 = tpu.strided_load %arg13[%c108_87, %c0_88] {strides = array<i32: 2, 1>} : memref<420x32xf32, #tpu.memory_space<vmem>>, vector<9x32xf32>
    %c126 = arith.constant 126 : index
    %c0_89 = arith.constant 0 : index
    %77 = tpu.strided_load %arg13[%c126, %c0_89] {strides = array<i32: 2, 1>} : memref<420x32xf32, #tpu.memory_space<vmem>>, vector<9x32xf32>
    %c127 = arith.constant 127 : index
    %c0_90 = arith.constant 0 : index
    %78 = tpu.strided_load %arg13[%c127, %c0_90] {strides = array<i32: 2, 1>} : memref<420x32xf32, #tpu.memory_space<vmem>>, vector<9x32xf32>
    %c128 = arith.constant 128 : index
    %c0_91 = arith.constant 0 : index
    %79 = tpu.strided_load %arg13[%c128, %c0_91] {strides = array<i32: 2, 1>} : memref<420x32xf32, #tpu.memory_space<vmem>>, vector<9x32xf32>
    %c129 = arith.constant 129 : index
    %c0_92 = arith.constant 0 : index
    %80 = tpu.strided_load %arg13[%c129, %c0_92] {strides = array<i32: 2, 1>} : memref<420x32xf32, #tpu.memory_space<vmem>>, vector<9x32xf32>
    %c147 = arith.constant 147 : index
    %c0_93 = arith.constant 0 : index
    %81 = tpu.strided_load %arg13[%c147, %c0_93] {strides = array<i32: 2, 1>} : memref<420x32xf32, #tpu.memory_space<vmem>>, vector<9x32xf32>
    %c148 = arith.constant 148 : index
    %c0_94 = arith.constant 0 : index
    %82 = tpu.strided_load %arg13[%c148, %c0_94] {strides = array<i32: 2, 1>} : memref<420x32xf32, #tpu.memory_space<vmem>>, vector<9x32xf32>
    %c149 = arith.constant 149 : index
    %c0_95 = arith.constant 0 : index
    %83 = tpu.strided_load %arg13[%c149, %c0_95] {strides = array<i32: 2, 1>} : memref<420x32xf32, #tpu.memory_space<vmem>>, vector<9x32xf32>
    %c150 = arith.constant 150 : index
    %c0_96 = arith.constant 0 : index
    %84 = tpu.strided_load %arg13[%c150, %c0_96] {strides = array<i32: 2, 1>} : memref<420x32xf32, #tpu.memory_space<vmem>>, vector<9x32xf32>
    %85 = tpu.concatenate %69, %70, %71, %72, %73, %74, %75, %76, %77, %78, %79, %80, %81, %82, %83, %84 in 1 : vector<9x32xf32>, vector<9x32xf32>, vector<9x32xf32>, vector<9x32xf32>, vector<9x32xf32>, vector<9x32xf32>, vector<9x32xf32>, vector<9x32xf32>, vector<9x32xf32>, vector<9x32xf32>, vector<9x32xf32>, vector<9x32xf32>, vector<9x32xf32>, vector<9x32xf32>, vector<9x32xf32>, vector<9x32xf32> -> vector<9x512xf32>
    %86 = arith.truncf %85 : vector<9x512xf32> to vector<9x512xbf16>
    %cst_97 = arith.constant dense<0.000000e+00> : vector<9x64xf32>
    %87 = tpu.matmul %86, %19, %cst_97 {dimension_numbers = #tpu.dot_dimension_numbers<[1], [0], [0], [1], [0, 0, 1, 1], [], []>} : vector<9x512xbf16>, vector<512x64xbf16>, vector<9x64xf32> -> vector<9x64xf32>
    %88 = vector.broadcast %20 : vector<1x64xf32> to vector<9x64xf32>
    %89 = arith.addf %87, %88 : vector<9x64xf32>
    %cst_98 = arith.constant 0.000000e+00 : f32
    %90 = vector.broadcast %cst_98 : f32 to vector<9x64xf32>
    %91 = arith.maximumf %89, %90 : vector<9x64xf32>
    %c18 = arith.constant 18 : index
    %c0_99 = arith.constant 0 : index
    %92 = vector.load %arg14[%c18, %c0_99] : memref<88x64xf32, #tpu.memory_space<vmem>>, vector<9x64xf32>
    tpu.vector_store %arg14[%c18, %c0_99], %91 {strides = array<i32>} : memref<88x64xf32, #tpu.memory_space<vmem>>, vector<9x64xf32>,
    %c126_100 = arith.constant 126 : index
    %c0_101 = arith.constant 0 : index
    %93 = tpu.strided_load %arg13[%c126_100, %c0_101] {strides = array<i32: 2, 1>} : memref<420x32xf32, #tpu.memory_space<vmem>>, vector<9x32xf32>
    %c127_102 = arith.constant 127 : index
    %c0_103 = arith.constant 0 : index
    %94 = tpu.strided_load %arg13[%c127_102, %c0_103] {strides = array<i32: 2, 1>} : memref<420x32xf32, #tpu.memory_space<vmem>>, vector<9x32xf32>
    %c128_104 = arith.constant 128 : index
    %c0_105 = arith.constant 0 : index
    %95 = tpu.strided_load %arg13[%c128_104, %c0_105] {strides = array<i32: 2, 1>} : memref<420x32xf32, #tpu.memory_space<vmem>>, vector<9x32xf32>
    %c129_106 = arith.constant 129 : index
    %c0_107 = arith.constant 0 : index
    %96 = tpu.strided_load %arg13[%c129_106, %c0_107] {strides = array<i32: 2, 1>} : memref<420x32xf32, #tpu.memory_space<vmem>>, vector<9x32xf32>
    %c147_108 = arith.constant 147 : index
    %c0_109 = arith.constant 0 : index
    %97 = tpu.strided_load %arg13[%c147_108, %c0_109] {strides = array<i32: 2, 1>} : memref<420x32xf32, #tpu.memory_space<vmem>>, vector<9x32xf32>
    %c148_110 = arith.constant 148 : index
    %c0_111 = arith.constant 0 : index
    %98 = tpu.strided_load %arg13[%c148_110, %c0_111] {strides = array<i32: 2, 1>} : memref<420x32xf32, #tpu.memory_space<vmem>>, vector<9x32xf32>
    %c149_112 = arith.constant 149 : index
    %c0_113 = arith.constant 0 : index
    %99 = tpu.strided_load %arg13[%c149_112, %c0_113] {strides = array<i32: 2, 1>} : memref<420x32xf32, #tpu.memory_space<vmem>>, vector<9x32xf32>
    %c150_114 = arith.constant 150 : index
    %c0_115 = arith.constant 0 : index
    %100 = tpu.strided_load %arg13[%c150_114, %c0_115] {strides = array<i32: 2, 1>} : memref<420x32xf32, #tpu.memory_space<vmem>>, vector<9x32xf32>
    %c168 = arith.constant 168 : index
    %c0_116 = arith.constant 0 : index
    %101 = tpu.strided_load %arg13[%c168, %c0_116] {strides = array<i32: 2, 1>} : memref<420x32xf32, #tpu.memory_space<vmem>>, vector<9x32xf32>
    %c169 = arith.constant 169 : index
    %c0_117 = arith.constant 0 : index
    %102 = tpu.strided_load %arg13[%c169, %c0_117] {strides = array<i32: 2, 1>} : memref<420x32xf32, #tpu.memory_space<vmem>>, vector<9x32xf32>
    %c170 = arith.constant 170 : index
    %c0_118 = arith.constant 0 : index
    %103 = tpu.strided_load %arg13[%c170, %c0_118] {strides = array<i32: 2, 1>} : memref<420x32xf32, #tpu.memory_space<vmem>>, vector<9x32xf32>
    %c171 = arith.constant 171 : index
    %c0_119 = arith.constant 0 : index
    %104 = tpu.strided_load %arg13[%c171, %c0_119] {strides = array<i32: 2, 1>} : memref<420x32xf32, #tpu.memory_space<vmem>>, vector<9x32xf32>
    %c189 = arith.constant 189 : index
    %c0_120 = arith.constant 0 : index
    %105 = tpu.strided_load %arg13[%c189, %c0_120] {strides = array<i32: 2, 1>} : memref<420x32xf32, #tpu.memory_space<vmem>>, vector<9x32xf32>
    %c190 = arith.constant 190 : index
    %c0_121 = arith.constant 0 : index
    %106 = tpu.strided_load %arg13[%c190, %c0_121] {strides = array<i32: 2, 1>} : memref<420x32xf32, #tpu.memory_space<vmem>>, vector<9x32xf32>
    %c191 = arith.constant 191 : index
    %c0_122 = arith.constant 0 : index
    %107 = tpu.strided_load %arg13[%c191, %c0_122] {strides = array<i32: 2, 1>} : memref<420x32xf32, #tpu.memory_space<vmem>>, vector<9x32xf32>
    %c192 = arith.constant 192 : index
    %c0_123 = arith.constant 0 : index
    %108 = tpu.strided_load %arg13[%c192, %c0_123] {strides = array<i32: 2, 1>} : memref<420x32xf32, #tpu.memory_space<vmem>>, vector<9x32xf32>
    %109 = tpu.concatenate %93, %94, %95, %96, %97, %98, %99, %100, %101, %102, %103, %104, %105, %106, %107, %108 in 1 : vector<9x32xf32>, vector<9x32xf32>, vector<9x32xf32>, vector<9x32xf32>, vector<9x32xf32>, vector<9x32xf32>, vector<9x32xf32>, vector<9x32xf32>, vector<9x32xf32>, vector<9x32xf32>, vector<9x32xf32>, vector<9x32xf32>, vector<9x32xf32>, vector<9x32xf32>, vector<9x32xf32>, vector<9x32xf32> -> vector<9x512xf32>
    %110 = arith.truncf %109 : vector<9x512xf32> to vector<9x512xbf16>
    %cst_124 = arith.constant dense<0.000000e+00> : vector<9x64xf32>
    %111 = tpu.matmul %110, %19, %cst_124 {dimension_numbers = #tpu.dot_dimension_numbers<[1], [0], [0], [1], [0, 0, 1, 1], [], []>} : vector<9x512xbf16>, vector<512x64xbf16>, vector<9x64xf32> -> vector<9x64xf32>
    %112 = vector.broadcast %20 : vector<1x64xf32> to vector<9x64xf32>
    %113 = arith.addf %111, %112 : vector<9x64xf32>
    %cst_125 = arith.constant 0.000000e+00 : f32
    %114 = vector.broadcast %cst_125 : f32 to vector<9x64xf32>
    %115 = arith.maximumf %113, %114 : vector<9x64xf32>
    %c27 = arith.constant 27 : index
    %c0_126 = arith.constant 0 : index
    %116 = vector.load %arg14[%c27, %c0_126] : memref<88x64xf32, #tpu.memory_space<vmem>>, vector<9x64xf32>
    tpu.vector_store %arg14[%c27, %c0_126], %115 {strides = array<i32>} : memref<88x64xf32, #tpu.memory_space<vmem>>, vector<9x64xf32>,
    %c168_127 = arith.constant 168 : index
    %c0_128 = arith.constant 0 : index
    %117 = tpu.strided_load %arg13[%c168_127, %c0_128] {strides = array<i32: 2, 1>} : memref<420x32xf32, #tpu.memory_space<vmem>>, vector<9x32xf32>
    %c169_129 = arith.constant 169 : index
    %c0_130 = arith.constant 0 : index
    %118 = tpu.strided_load %arg13[%c169_129, %c0_130] {strides = array<i32: 2, 1>} : memref<420x32xf32, #tpu.memory_space<vmem>>, vector<9x32xf32>
    %c170_131 = arith.constant 170 : index
    %c0_132 = arith.constant 0 : index
    %119 = tpu.strided_load %arg13[%c170_131, %c0_132] {strides = array<i32: 2, 1>} : memref<420x32xf32, #tpu.memory_space<vmem>>, vector<9x32xf32>
    %c171_133 = arith.constant 171 : index
    %c0_134 = arith.constant 0 : index
    %120 = tpu.strided_load %arg13[%c171_133, %c0_134] {strides = array<i32: 2, 1>} : memref<420x32xf32, #tpu.memory_space<vmem>>, vector<9x32xf32>
    %c189_135 = arith.constant 189 : index
    %c0_136 = arith.constant 0 : index
    %121 = tpu.strided_load %arg13[%c189_135, %c0_136] {strides = array<i32: 2, 1>} : memref<420x32xf32, #tpu.memory_space<vmem>>, vector<9x32xf32>
    %c190_137 = arith.constant 190 : index
    %c0_138 = arith.constant 0 : index
    %122 = tpu.strided_load %arg13[%c190_137, %c0_138] {strides = array<i32: 2, 1>} : memref<420x32xf32, #tpu.memory_space<vmem>>, vector<9x32xf32>
    %c191_139 = arith.constant 191 : index
    %c0_140 = arith.constant 0 : index
    %123 = tpu.strided_load %arg13[%c191_139, %c0_140] {strides = array<i32: 2, 1>} : memref<420x32xf32, #tpu.memory_space<vmem>>, vector<9x32xf32>
    %c192_141 = arith.constant 192 : index
    %c0_142 = arith.constant 0 : index
    %124 = tpu.strided_load %arg13[%c192_141, %c0_142] {strides = array<i32: 2, 1>} : memref<420x32xf32, #tpu.memory_space<vmem>>, vector<9x32xf32>
    %c210 = arith.constant 210 : index
    %c0_143 = arith.constant 0 : index
    %125 = tpu.strided_load %arg13[%c210, %c0_143] {strides = array<i32: 2, 1>} : memref<420x32xf32, #tpu.memory_space<vmem>>, vector<9x32xf32>
    %c211 = arith.constant 211 : index
    %c0_144 = arith.constant 0 : index
    %126 = tpu.strided_load %arg13[%c211, %c0_144] {strides = array<i32: 2, 1>} : memref<420x32xf32, #tpu.memory_space<vmem>>, vector<9x32xf32>
    %c212 = arith.constant 212 : index
    %c0_145 = arith.constant 0 : index
    %127 = tpu.strided_load %arg13[%c212, %c0_145] {strides = array<i32: 2, 1>} : memref<420x32xf32, #tpu.memory_space<vmem>>, vector<9x32xf32>
    %c213 = arith.constant 213 : index
    %c0_146 = arith.constant 0 : index
    %128 = tpu.strided_load %arg13[%c213, %c0_146] {strides = array<i32: 2, 1>} : memref<420x32xf32, #tpu.memory_space<vmem>>, vector<9x32xf32>
    %c231 = arith.constant 231 : index
    %c0_147 = arith.constant 0 : index
    %129 = tpu.strided_load %arg13[%c231, %c0_147] {strides = array<i32: 2, 1>} : memref<420x32xf32, #tpu.memory_space<vmem>>, vector<9x32xf32>
    %c232 = arith.constant 232 : index
    %c0_148 = arith.constant 0 : index
    %130 = tpu.strided_load %arg13[%c232, %c0_148] {strides = array<i32: 2, 1>} : memref<420x32xf32, #tpu.memory_space<vmem>>, vector<9x32xf32>
    %c233 = arith.constant 233 : index
    %c0_149 = arith.constant 0 : index
    %131 = tpu.strided_load %arg13[%c233, %c0_149] {strides = array<i32: 2, 1>} : memref<420x32xf32, #tpu.memory_space<vmem>>, vector<9x32xf32>
    %c234 = arith.constant 234 : index
    %c0_150 = arith.constant 0 : index
    %132 = tpu.strided_load %arg13[%c234, %c0_150] {strides = array<i32: 2, 1>} : memref<420x32xf32, #tpu.memory_space<vmem>>, vector<9x32xf32>
    %133 = tpu.concatenate %117, %118, %119, %120, %121, %122, %123, %124, %125, %126, %127, %128, %129, %130, %131, %132 in 1 : vector<9x32xf32>, vector<9x32xf32>, vector<9x32xf32>, vector<9x32xf32>, vector<9x32xf32>, vector<9x32xf32>, vector<9x32xf32>, vector<9x32xf32>, vector<9x32xf32>, vector<9x32xf32>, vector<9x32xf32>, vector<9x32xf32>, vector<9x32xf32>, vector<9x32xf32>, vector<9x32xf32>, vector<9x32xf32> -> vector<9x512xf32>
    %134 = arith.truncf %133 : vector<9x512xf32> to vector<9x512xbf16>
    %cst_151 = arith.constant dense<0.000000e+00> : vector<9x64xf32>
    %135 = tpu.matmul %134, %19, %cst_151 {dimension_numbers = #tpu.dot_dimension_numbers<[1], [0], [0], [1], [0, 0, 1, 1], [], []>} : vector<9x512xbf16>, vector<512x64xbf16>, vector<9x64xf32> -> vector<9x64xf32>
    %136 = vector.broadcast %20 : vector<1x64xf32> to vector<9x64xf32>
    %137 = arith.addf %135, %136 : vector<9x64xf32>
    %cst_152 = arith.constant 0.000000e+00 : f32
    %138 = vector.broadcast %cst_152 : f32 to vector<9x64xf32>
    %139 = arith.maximumf %137, %138 : vector<9x64xf32>
    %c36 = arith.constant 36 : index
    %c0_153 = arith.constant 0 : index
    %140 = vector.load %arg14[%c36, %c0_153] : memref<88x64xf32, #tpu.memory_space<vmem>>, vector<9x64xf32>
    tpu.vector_store %arg14[%c36, %c0_153], %139 {strides = array<i32>} : memref<88x64xf32, #tpu.memory_space<vmem>>, vector<9x64xf32>,
    %c210_154 = arith.constant 210 : index
    %c0_155 = arith.constant 0 : index
    %141 = tpu.strided_load %arg13[%c210_154, %c0_155] {strides = array<i32: 2, 1>} : memref<420x32xf32, #tpu.memory_space<vmem>>, vector<9x32xf32>
    %c211_156 = arith.constant 211 : index
    %c0_157 = arith.constant 0 : index
    %142 = tpu.strided_load %arg13[%c211_156, %c0_157] {strides = array<i32: 2, 1>} : memref<420x32xf32, #tpu.memory_space<vmem>>, vector<9x32xf32>
    %c212_158 = arith.constant 212 : index
    %c0_159 = arith.constant 0 : index
    %143 = tpu.strided_load %arg13[%c212_158, %c0_159] {strides = array<i32: 2, 1>} : memref<420x32xf32, #tpu.memory_space<vmem>>, vector<9x32xf32>
    %c213_160 = arith.constant 213 : index
    %c0_161 = arith.constant 0 : index
    %144 = tpu.strided_load %arg13[%c213_160, %c0_161] {strides = array<i32: 2, 1>} : memref<420x32xf32, #tpu.memory_space<vmem>>, vector<9x32xf32>
    %c231_162 = arith.constant 231 : index
    %c0_163 = arith.constant 0 : index
    %145 = tpu.strided_load %arg13[%c231_162, %c0_163] {strides = array<i32: 2, 1>} : memref<420x32xf32, #tpu.memory_space<vmem>>, vector<9x32xf32>
    %c232_164 = arith.constant 232 : index
    %c0_165 = arith.constant 0 : index
    %146 = tpu.strided_load %arg13[%c232_164, %c0_165] {strides = array<i32: 2, 1>} : memref<420x32xf32, #tpu.memory_space<vmem>>, vector<9x32xf32>
    %c233_166 = arith.constant 233 : index
    %c0_167 = arith.constant 0 : index
    %147 = tpu.strided_load %arg13[%c233_166, %c0_167] {strides = array<i32: 2, 1>} : memref<420x32xf32, #tpu.memory_space<vmem>>, vector<9x32xf32>
    %c234_168 = arith.constant 234 : index
    %c0_169 = arith.constant 0 : index
    %148 = tpu.strided_load %arg13[%c234_168, %c0_169] {strides = array<i32: 2, 1>} : memref<420x32xf32, #tpu.memory_space<vmem>>, vector<9x32xf32>
    %c252 = arith.constant 252 : index
    %c0_170 = arith.constant 0 : index
    %149 = tpu.strided_load %arg13[%c252, %c0_170] {strides = array<i32: 2, 1>} : memref<420x32xf32, #tpu.memory_space<vmem>>, vector<9x32xf32>
    %c253 = arith.constant 253 : index
    %c0_171 = arith.constant 0 : index
    %150 = tpu.strided_load %arg13[%c253, %c0_171] {strides = array<i32: 2, 1>} : memref<420x32xf32, #tpu.memory_space<vmem>>, vector<9x32xf32>
    %c254 = arith.constant 254 : index
    %c0_172 = arith.constant 0 : index
    %151 = tpu.strided_load %arg13[%c254, %c0_172] {strides = array<i32: 2, 1>} : memref<420x32xf32, #tpu.memory_space<vmem>>, vector<9x32xf32>
    %c255 = arith.constant 255 : index
    %c0_173 = arith.constant 0 : index
    %152 = tpu.strided_load %arg13[%c255, %c0_173] {strides = array<i32: 2, 1>} : memref<420x32xf32, #tpu.memory_space<vmem>>, vector<9x32xf32>
    %c273 = arith.constant 273 : index
    %c0_174 = arith.constant 0 : index
    %153 = tpu.strided_load %arg13[%c273, %c0_174] {strides = array<i32: 2, 1>} : memref<420x32xf32, #tpu.memory_space<vmem>>, vector<9x32xf32>
    %c274 = arith.constant 274 : index
    %c0_175 = arith.constant 0 : index
    %154 = tpu.strided_load %arg13[%c274, %c0_175] {strides = array<i32: 2, 1>} : memref<420x32xf32, #tpu.memory_space<vmem>>, vector<9x32xf32>
    %c275 = arith.constant 275 : index
    %c0_176 = arith.constant 0 : index
    %155 = tpu.strided_load %arg13[%c275, %c0_176] {strides = array<i32: 2, 1>} : memref<420x32xf32, #tpu.memory_space<vmem>>, vector<9x32xf32>
    %c276 = arith.constant 276 : index
    %c0_177 = arith.constant 0 : index
    %156 = tpu.strided_load %arg13[%c276, %c0_177] {strides = array<i32: 2, 1>} : memref<420x32xf32, #tpu.memory_space<vmem>>, vector<9x32xf32>
    %157 = tpu.concatenate %141, %142, %143, %144, %145, %146, %147, %148, %149, %150, %151, %152, %153, %154, %155, %156 in 1 : vector<9x32xf32>, vector<9x32xf32>, vector<9x32xf32>, vector<9x32xf32>, vector<9x32xf32>, vector<9x32xf32>, vector<9x32xf32>, vector<9x32xf32>, vector<9x32xf32>, vector<9x32xf32>, vector<9x32xf32>, vector<9x32xf32>, vector<9x32xf32>, vector<9x32xf32>, vector<9x32xf32>, vector<9x32xf32> -> vector<9x512xf32>
    %158 = arith.truncf %157 : vector<9x512xf32> to vector<9x512xbf16>
    %cst_178 = arith.constant dense<0.000000e+00> : vector<9x64xf32>
    %159 = tpu.matmul %158, %19, %cst_178 {dimension_numbers = #tpu.dot_dimension_numbers<[1], [0], [0], [1], [0, 0, 1, 1], [], []>} : vector<9x512xbf16>, vector<512x64xbf16>, vector<9x64xf32> -> vector<9x64xf32>
    %160 = vector.broadcast %20 : vector<1x64xf32> to vector<9x64xf32>
    %161 = arith.addf %159, %160 : vector<9x64xf32>
    %cst_179 = arith.constant 0.000000e+00 : f32
    %162 = vector.broadcast %cst_179 : f32 to vector<9x64xf32>
    %163 = arith.maximumf %161, %162 : vector<9x64xf32>
    %c45_180 = arith.constant 45 : index
    %c0_181 = arith.constant 0 : index
    %164 = vector.load %arg14[%c45_180, %c0_181] : memref<88x64xf32, #tpu.memory_space<vmem>>, vector<9x64xf32>
    tpu.vector_store %arg14[%c45_180, %c0_181], %163 {strides = array<i32>} : memref<88x64xf32, #tpu.memory_space<vmem>>, vector<9x64xf32>,
    %c252_182 = arith.constant 252 : index
    %c0_183 = arith.constant 0 : index
    %165 = tpu.strided_load %arg13[%c252_182, %c0_183] {strides = array<i32: 2, 1>} : memref<420x32xf32, #tpu.memory_space<vmem>>, vector<9x32xf32>
    %c253_184 = arith.constant 253 : index
    %c0_185 = arith.constant 0 : index
    %166 = tpu.strided_load %arg13[%c253_184, %c0_185] {strides = array<i32: 2, 1>} : memref<420x32xf32, #tpu.memory_space<vmem>>, vector<9x32xf32>
    %c254_186 = arith.constant 254 : index
    %c0_187 = arith.constant 0 : index
    %167 = tpu.strided_load %arg13[%c254_186, %c0_187] {strides = array<i32: 2, 1>} : memref<420x32xf32, #tpu.memory_space<vmem>>, vector<9x32xf32>
    %c255_188 = arith.constant 255 : index
    %c0_189 = arith.constant 0 : index
    %168 = tpu.strided_load %arg13[%c255_188, %c0_189] {strides = array<i32: 2, 1>} : memref<420x32xf32, #tpu.memory_space<vmem>>, vector<9x32xf32>
    %c273_190 = arith.constant 273 : index
    %c0_191 = arith.constant 0 : index
    %169 = tpu.strided_load %arg13[%c273_190, %c0_191] {strides = array<i32: 2, 1>} : memref<420x32xf32, #tpu.memory_space<vmem>>, vector<9x32xf32>
    %c274_192 = arith.constant 274 : index
    %c0_193 = arith.constant 0 : index
    %170 = tpu.strided_load %arg13[%c274_192, %c0_193] {strides = array<i32: 2, 1>} : memref<420x32xf32, #tpu.memory_space<vmem>>, vector<9x32xf32>
    %c275_194 = arith.constant 275 : index
    %c0_195 = arith.constant 0 : index
    %171 = tpu.strided_load %arg13[%c275_194, %c0_195] {strides = array<i32: 2, 1>} : memref<420x32xf32, #tpu.memory_space<vmem>>, vector<9x32xf32>
    %c276_196 = arith.constant 276 : index
    %c0_197 = arith.constant 0 : index
    %172 = tpu.strided_load %arg13[%c276_196, %c0_197] {strides = array<i32: 2, 1>} : memref<420x32xf32, #tpu.memory_space<vmem>>, vector<9x32xf32>
    %c294 = arith.constant 294 : index
    %c0_198 = arith.constant 0 : index
    %173 = tpu.strided_load %arg13[%c294, %c0_198] {strides = array<i32: 2, 1>} : memref<420x32xf32, #tpu.memory_space<vmem>>, vector<9x32xf32>
    %c295 = arith.constant 295 : index
    %c0_199 = arith.constant 0 : index
    %174 = tpu.strided_load %arg13[%c295, %c0_199] {strides = array<i32: 2, 1>} : memref<420x32xf32, #tpu.memory_space<vmem>>, vector<9x32xf32>
    %c296 = arith.constant 296 : index
    %c0_200 = arith.constant 0 : index
    %175 = tpu.strided_load %arg13[%c296, %c0_200] {strides = array<i32: 2, 1>} : memref<420x32xf32, #tpu.memory_space<vmem>>, vector<9x32xf32>
    %c297 = arith.constant 297 : index
    %c0_201 = arith.constant 0 : index
    %176 = tpu.strided_load %arg13[%c297, %c0_201] {strides = array<i32: 2, 1>} : memref<420x32xf32, #tpu.memory_space<vmem>>, vector<9x32xf32>
    %c315 = arith.constant 315 : index
    %c0_202 = arith.constant 0 : index
    %177 = tpu.strided_load %arg13[%c315, %c0_202] {strides = array<i32: 2, 1>} : memref<420x32xf32, #tpu.memory_space<vmem>>, vector<9x32xf32>
    %c316 = arith.constant 316 : index
    %c0_203 = arith.constant 0 : index
    %178 = tpu.strided_load %arg13[%c316, %c0_203] {strides = array<i32: 2, 1>} : memref<420x32xf32, #tpu.memory_space<vmem>>, vector<9x32xf32>
    %c317 = arith.constant 317 : index
    %c0_204 = arith.constant 0 : index
    %179 = tpu.strided_load %arg13[%c317, %c0_204] {strides = array<i32: 2, 1>} : memref<420x32xf32, #tpu.memory_space<vmem>>, vector<9x32xf32>
    %c318 = arith.constant 318 : index
    %c0_205 = arith.constant 0 : index
    %180 = tpu.strided_load %arg13[%c318, %c0_205] {strides = array<i32: 2, 1>} : memref<420x32xf32, #tpu.memory_space<vmem>>, vector<9x32xf32>
    %181 = tpu.concatenate %165, %166, %167, %168, %169, %170, %171, %172, %173, %174, %175, %176, %177, %178, %179, %180 in 1 : vector<9x32xf32>, vector<9x32xf32>, vector<9x32xf32>, vector<9x32xf32>, vector<9x32xf32>, vector<9x32xf32>, vector<9x32xf32>, vector<9x32xf32>, vector<9x32xf32>, vector<9x32xf32>, vector<9x32xf32>, vector<9x32xf32>, vector<9x32xf32>, vector<9x32xf32>, vector<9x32xf32>, vector<9x32xf32> -> vector<9x512xf32>
    %182 = arith.truncf %181 : vector<9x512xf32> to vector<9x512xbf16>
    %cst_206 = arith.constant dense<0.000000e+00> : vector<9x64xf32>
    %183 = tpu.matmul %182, %19, %cst_206 {dimension_numbers = #tpu.dot_dimension_numbers<[1], [0], [0], [1], [0, 0, 1, 1], [], []>} : vector<9x512xbf16>, vector<512x64xbf16>, vector<9x64xf32> -> vector<9x64xf32>
    %184 = vector.broadcast %20 : vector<1x64xf32> to vector<9x64xf32>
    %185 = arith.addf %183, %184 : vector<9x64xf32>
    %cst_207 = arith.constant 0.000000e+00 : f32
    %186 = vector.broadcast %cst_207 : f32 to vector<9x64xf32>
    %187 = arith.maximumf %185, %186 : vector<9x64xf32>
    %c54 = arith.constant 54 : index
    %c0_208 = arith.constant 0 : index
    %188 = vector.load %arg14[%c54, %c0_208] : memref<88x64xf32, #tpu.memory_space<vmem>>, vector<9x64xf32>
    tpu.vector_store %arg14[%c54, %c0_208], %187 {strides = array<i32>} : memref<88x64xf32, #tpu.memory_space<vmem>>, vector<9x64xf32>,
    %c294_209 = arith.constant 294 : index
    %c0_210 = arith.constant 0 : index
    %189 = tpu.strided_load %arg13[%c294_209, %c0_210] {strides = array<i32: 2, 1>} : memref<420x32xf32, #tpu.memory_space<vmem>>, vector<9x32xf32>
    %c295_211 = arith.constant 295 : index
    %c0_212 = arith.constant 0 : index
    %190 = tpu.strided_load %arg13[%c295_211, %c0_212] {strides = array<i32: 2, 1>} : memref<420x32xf32, #tpu.memory_space<vmem>>, vector<9x32xf32>
    %c296_213 = arith.constant 296 : index
    %c0_214 = arith.constant 0 : index
    %191 = tpu.strided_load %arg13[%c296_213, %c0_214] {strides = array<i32: 2, 1>} : memref<420x32xf32, #tpu.memory_space<vmem>>, vector<9x32xf32>
    %c297_215 = arith.constant 297 : index
    %c0_216 = arith.constant 0 : index
    %192 = tpu.strided_load %arg13[%c297_215, %c0_216] {strides = array<i32: 2, 1>} : memref<420x32xf32, #tpu.memory_space<vmem>>, vector<9x32xf32>
    %c315_217 = arith.constant 315 : index
    %c0_218 = arith.constant 0 : index
    %193 = tpu.strided_load %arg13[%c315_217, %c0_218] {strides = array<i32: 2, 1>} : memref<420x32xf32, #tpu.memory_space<vmem>>, vector<9x32xf32>
    %c316_219 = arith.constant 316 : index
    %c0_220 = arith.constant 0 : index
    %194 = tpu.strided_load %arg13[%c316_219, %c0_220] {strides = array<i32: 2, 1>} : memref<420x32xf32, #tpu.memory_space<vmem>>, vector<9x32xf32>
    %c317_221 = arith.constant 317 : index
    %c0_222 = arith.constant 0 : index
    %195 = tpu.strided_load %arg13[%c317_221, %c0_222] {strides = array<i32: 2, 1>} : memref<420x32xf32, #tpu.memory_space<vmem>>, vector<9x32xf32>
    %c318_223 = arith.constant 318 : index
    %c0_224 = arith.constant 0 : index
    %196 = tpu.strided_load %arg13[%c318_223, %c0_224] {strides = array<i32: 2, 1>} : memref<420x32xf32, #tpu.memory_space<vmem>>, vector<9x32xf32>
    %c336 = arith.constant 336 : index
    %c0_225 = arith.constant 0 : index
    %197 = tpu.strided_load %arg13[%c336, %c0_225] {strides = array<i32: 2, 1>} : memref<420x32xf32, #tpu.memory_space<vmem>>, vector<9x32xf32>
    %c337 = arith.constant 337 : index
    %c0_226 = arith.constant 0 : index
    %198 = tpu.strided_load %arg13[%c337, %c0_226] {strides = array<i32: 2, 1>} : memref<420x32xf32, #tpu.memory_space<vmem>>, vector<9x32xf32>
    %c338 = arith.constant 338 : index
    %c0_227 = arith.constant 0 : index
    %199 = tpu.strided_load %arg13[%c338, %c0_227] {strides = array<i32: 2, 1>} : memref<420x32xf32, #tpu.memory_space<vmem>>, vector<9x32xf32>
    %c339 = arith.constant 339 : index
    %c0_228 = arith.constant 0 : index
    %200 = tpu.strided_load %arg13[%c339, %c0_228] {strides = array<i32: 2, 1>} : memref<420x32xf32, #tpu.memory_space<vmem>>, vector<9x32xf32>
    %c357 = arith.constant 357 : index
    %c0_229 = arith.constant 0 : index
    %201 = tpu.strided_load %arg13[%c357, %c0_229] {strides = array<i32: 2, 1>} : memref<420x32xf32, #tpu.memory_space<vmem>>, vector<9x32xf32>
    %c358 = arith.constant 358 : index
    %c0_230 = arith.constant 0 : index
    %202 = tpu.strided_load %arg13[%c358, %c0_230] {strides = array<i32: 2, 1>} : memref<420x32xf32, #tpu.memory_space<vmem>>, vector<9x32xf32>
    %c359 = arith.constant 359 : index
    %c0_231 = arith.constant 0 : index
    %203 = tpu.strided_load %arg13[%c359, %c0_231] {strides = array<i32: 2, 1>} : memref<420x32xf32, #tpu.memory_space<vmem>>, vector<9x32xf32>
    %c360 = arith.constant 360 : index
    %c0_232 = arith.constant 0 : index
    %204 = tpu.strided_load %arg13[%c360, %c0_232] {strides = array<i32: 2, 1>} : memref<420x32xf32, #tpu.memory_space<vmem>>, vector<9x32xf32>
    %205 = tpu.concatenate %189, %190, %191, %192, %193, %194, %195, %196, %197, %198, %199, %200, %201, %202, %203, %204 in 1 : vector<9x32xf32>, vector<9x32xf32>, vector<9x32xf32>, vector<9x32xf32>, vector<9x32xf32>, vector<9x32xf32>, vector<9x32xf32>, vector<9x32xf32>, vector<9x32xf32>, vector<9x32xf32>, vector<9x32xf32>, vector<9x32xf32>, vector<9x32xf32>, vector<9x32xf32>, vector<9x32xf32>, vector<9x32xf32> -> vector<9x512xf32>
    %206 = arith.truncf %205 : vector<9x512xf32> to vector<9x512xbf16>
    %cst_233 = arith.constant dense<0.000000e+00> : vector<9x64xf32>
    %207 = tpu.matmul %206, %19, %cst_233 {dimension_numbers = #tpu.dot_dimension_numbers<[1], [0], [0], [1], [0, 0, 1, 1], [], []>} : vector<9x512xbf16>, vector<512x64xbf16>, vector<9x64xf32> -> vector<9x64xf32>
    %208 = vector.broadcast %20 : vector<1x64xf32> to vector<9x64xf32>
    %209 = arith.addf %207, %208 : vector<9x64xf32>
    %cst_234 = arith.constant 0.000000e+00 : f32
    %210 = vector.broadcast %cst_234 : f32 to vector<9x64xf32>
    %211 = arith.maximumf %209, %210 : vector<9x64xf32>
    %c63_235 = arith.constant 63 : index
    %c0_236 = arith.constant 0 : index
    %212 = vector.load %arg14[%c63_235, %c0_236] : memref<88x64xf32, #tpu.memory_space<vmem>>, vector<9x64xf32>
    tpu.vector_store %arg14[%c63_235, %c0_236], %211 {strides = array<i32>} : memref<88x64xf32, #tpu.memory_space<vmem>>, vector<9x64xf32>,
    %c336_237 = arith.constant 336 : index
    %c0_238 = arith.constant 0 : index
    %213 = tpu.strided_load %arg13[%c336_237, %c0_238] {strides = array<i32: 2, 1>} : memref<420x32xf32, #tpu.memory_space<vmem>>, vector<9x32xf32>
    %c337_239 = arith.constant 337 : index
    %c0_240 = arith.constant 0 : index
    %214 = tpu.strided_load %arg13[%c337_239, %c0_240] {strides = array<i32: 2, 1>} : memref<420x32xf32, #tpu.memory_space<vmem>>, vector<9x32xf32>
    %c338_241 = arith.constant 338 : index
    %c0_242 = arith.constant 0 : index
    %215 = tpu.strided_load %arg13[%c338_241, %c0_242] {strides = array<i32: 2, 1>} : memref<420x32xf32, #tpu.memory_space<vmem>>, vector<9x32xf32>
    %c339_243 = arith.constant 339 : index
    %c0_244 = arith.constant 0 : index
    %216 = tpu.strided_load %arg13[%c339_243, %c0_244] {strides = array<i32: 2, 1>} : memref<420x32xf32, #tpu.memory_space<vmem>>, vector<9x32xf32>
    %c357_245 = arith.constant 357 : index
    %c0_246 = arith.constant 0 : index
    %217 = tpu.strided_load %arg13[%c357_245, %c0_246] {strides = array<i32: 2, 1>} : memref<420x32xf32, #tpu.memory_space<vmem>>, vector<9x32xf32>
    %c358_247 = arith.constant 358 : index
    %c0_248 = arith.constant 0 : index
    %218 = tpu.strided_load %arg13[%c358_247, %c0_248] {strides = array<i32: 2, 1>} : memref<420x32xf32, #tpu.memory_space<vmem>>, vector<9x32xf32>
    %c359_249 = arith.constant 359 : index
    %c0_250 = arith.constant 0 : index
    %219 = tpu.strided_load %arg13[%c359_249, %c0_250] {strides = array<i32: 2, 1>} : memref<420x32xf32, #tpu.memory_space<vmem>>, vector<9x32xf32>
    %c360_251 = arith.constant 360 : index
    %c0_252 = arith.constant 0 : index
    %220 = tpu.strided_load %arg13[%c360_251, %c0_252] {strides = array<i32: 2, 1>} : memref<420x32xf32, #tpu.memory_space<vmem>>, vector<9x32xf32>
    %c378 = arith.constant 378 : index
    %c0_253 = arith.constant 0 : index
    %221 = tpu.strided_load %arg13[%c378, %c0_253] {strides = array<i32: 2, 1>} : memref<420x32xf32, #tpu.memory_space<vmem>>, vector<9x32xf32>
    %c379 = arith.constant 379 : index
    %c0_254 = arith.constant 0 : index
    %222 = tpu.strided_load %arg13[%c379, %c0_254] {strides = array<i32: 2, 1>} : memref<420x32xf32, #tpu.memory_space<vmem>>, vector<9x32xf32>
    %c380 = arith.constant 380 : index
    %c0_255 = arith.constant 0 : index
    %223 = tpu.strided_load %arg13[%c380, %c0_255] {strides = array<i32: 2, 1>} : memref<420x32xf32, #tpu.memory_space<vmem>>, vector<9x32xf32>
    %c381 = arith.constant 381 : index
    %c0_256 = arith.constant 0 : index
    %224 = tpu.strided_load %arg13[%c381, %c0_256] {strides = array<i32: 2, 1>} : memref<420x32xf32, #tpu.memory_space<vmem>>, vector<9x32xf32>
    %c399 = arith.constant 399 : index
    %c0_257 = arith.constant 0 : index
    %225 = tpu.strided_load %arg13[%c399, %c0_257] {strides = array<i32: 2, 1>} : memref<420x32xf32, #tpu.memory_space<vmem>>, vector<9x32xf32>
    %c400 = arith.constant 400 : index
    %c0_258 = arith.constant 0 : index
    %226 = tpu.strided_load %arg13[%c400, %c0_258] {strides = array<i32: 2, 1>} : memref<420x32xf32, #tpu.memory_space<vmem>>, vector<9x32xf32>
    %c401 = arith.constant 401 : index
    %c0_259 = arith.constant 0 : index
    %227 = tpu.strided_load %arg13[%c401, %c0_259] {strides = array<i32: 2, 1>} : memref<420x32xf32, #tpu.memory_space<vmem>>, vector<9x32xf32>
    %c402 = arith.constant 402 : index
    %c0_260 = arith.constant 0 : index
    %228 = tpu.strided_load %arg13[%c402, %c0_260] {strides = array<i32: 2, 1>} : memref<420x32xf32, #tpu.memory_space<vmem>>, vector<9x32xf32>
    %229 = tpu.concatenate %213, %214, %215, %216, %217, %218, %219, %220, %221, %222, %223, %224, %225, %226, %227, %228 in 1 : vector<9x32xf32>, vector<9x32xf32>, vector<9x32xf32>, vector<9x32xf32>, vector<9x32xf32>, vector<9x32xf32>, vector<9x32xf32>, vector<9x32xf32>, vector<9x32xf32>, vector<9x32xf32>, vector<9x32xf32>, vector<9x32xf32>, vector<9x32xf32>, vector<9x32xf32>, vector<9x32xf32>, vector<9x32xf32> -> vector<9x512xf32>
    %230 = arith.truncf %229 : vector<9x512xf32> to vector<9x512xbf16>
    %cst_261 = arith.constant dense<0.000000e+00> : vector<9x64xf32>
    %231 = tpu.matmul %230, %19, %cst_261 {dimension_numbers = #tpu.dot_dimension_numbers<[1], [0], [0], [1], [0, 0, 1, 1], [], []>} : vector<9x512xbf16>, vector<512x64xbf16>, vector<9x64xf32> -> vector<9x64xf32>
    %232 = vector.broadcast %20 : vector<1x64xf32> to vector<9x64xf32>
    %233 = arith.addf %231, %232 : vector<9x64xf32>
    %cst_262 = arith.constant 0.000000e+00 : f32
    %234 = vector.broadcast %cst_262 : f32 to vector<9x64xf32>
    %235 = arith.maximumf %233, %234 : vector<9x64xf32>
    %c72 = arith.constant 72 : index
    %c0_263 = arith.constant 0 : index
    %236 = vector.load %arg14[%c72, %c0_263] : memref<88x64xf32, #tpu.memory_space<vmem>>, vector<9x64xf32>
    tpu.vector_store %arg14[%c72, %c0_263], %235 {strides = array<i32>} : memref<88x64xf32, #tpu.memory_space<vmem>>, vector<9x64xf32>,
    %c0_264 = arith.constant 0 : index
    %c0_265 = arith.constant 0 : index
    %237 = vector.load %arg14[%c0_264, %c0_265] : memref<88x64xf32, #tpu.memory_space<vmem>>, vector<63x64xf32>
    %c1_266 = arith.constant 1 : index
    %c0_267 = arith.constant 0 : index
    %238 = vector.load %arg14[%c1_266, %c0_267] : memref<88x64xf32, #tpu.memory_space<vmem>>, vector<63x64xf32>
    %c2_268 = arith.constant 2 : index
    %c0_269 = arith.constant 0 : index
    %239 = vector.load %arg14[%c2_268, %c0_269] : memref<88x64xf32, #tpu.memory_space<vmem>>, vector<63x64xf32>
    %c9_270 = arith.constant 9 : index
    %c0_271 = arith.constant 0 : index
    %240 = vector.load %arg14[%c9_270, %c0_271] : memref<88x64xf32, #tpu.memory_space<vmem>>, vector<63x64xf32>
    %c10 = arith.constant 10 : index
    %c0_272 = arith.constant 0 : index
    %241 = vector.load %arg14[%c10, %c0_272] : memref<88x64xf32, #tpu.memory_space<vmem>>, vector<63x64xf32>
    %c11 = arith.constant 11 : index
    %c0_273 = arith.constant 0 : index
    %242 = vector.load %arg14[%c11, %c0_273] : memref<88x64xf32, #tpu.memory_space<vmem>>, vector<63x64xf32>
    %c18_274 = arith.constant 18 : index
    %c0_275 = arith.constant 0 : index
    %243 = vector.load %arg14[%c18_274, %c0_275] : memref<88x64xf32, #tpu.memory_space<vmem>>, vector<63x64xf32>
    %c19 = arith.constant 19 : index
    %c0_276 = arith.constant 0 : index
    %244 = vector.load %arg14[%c19, %c0_276] : memref<88x64xf32, #tpu.memory_space<vmem>>, vector<63x64xf32>
    %c20 = arith.constant 20 : index
    %c0_277 = arith.constant 0 : index
    %245 = vector.load %arg14[%c20, %c0_277] : memref<88x64xf32, #tpu.memory_space<vmem>>, vector<63x64xf32>
    %246 = tpu.concatenate %237, %238, %239, %240, %241, %242, %243, %244, %245 in 1 : vector<63x64xf32>, vector<63x64xf32>, vector<63x64xf32>, vector<63x64xf32>, vector<63x64xf32>, vector<63x64xf32>, vector<63x64xf32>, vector<63x64xf32>, vector<63x64xf32> -> vector<63x576xf32>
    %247 = arith.truncf %246 : vector<63x576xf32> to vector<63x576xbf16>
    %c0_278 = arith.constant 0 : index
    %c0_279 = arith.constant 0 : index
    %248 = vector.load %arg6[%c0_278, %c0_279] : memref<576x64xbf16, #tpu.memory_space<vmem>>, vector<576x64xbf16>
    %cst_280 = arith.constant dense<0.000000e+00> : vector<63x64xf32>
    %249 = tpu.matmul %247, %248, %cst_280 {dimension_numbers = #tpu.dot_dimension_numbers<[1], [0], [0], [1], [0, 0, 1, 1], [], []>} : vector<63x576xbf16>, vector<576x64xbf16>, vector<63x64xf32> -> vector<63x64xf32>
    %c0_281 = arith.constant 0 : index
    %c0_282 = arith.constant 0 : index
    %250 = vector.load %arg7[%c0_281, %c0_282] : memref<1x64xf32, #tpu.memory_space<vmem>>, vector<1x64xf32>
    %251 = vector.broadcast %250 : vector<1x64xf32> to vector<63x64xf32>
    %252 = arith.addf %249, %251 : vector<63x64xf32>
    %cst_283 = arith.constant 0.000000e+00 : f32
    %253 = vector.broadcast %cst_283 : f32 to vector<63x64xf32>
    %254 = arith.maximumf %252, %253 : vector<63x64xf32>
    %cst_284 = arith.constant 0.000000e+00 : f32
    %255 = vector.broadcast %cst_284 : f32 to vector<1x3200xf32>
    %c0_285 = arith.constant 0 : index
    %c0_286 = arith.constant 0 : index
    %256 = vector.load %arg15[%c0_285, %c0_286] : memref<1x3200xf32, #tpu.memory_space<vmem>>, vector<1x3200xf32>
    tpu.vector_store %arg15[%c0_285, %c0_286], %255 {strides = array<i32>} : memref<1x3200xf32, #tpu.memory_space<vmem>>, vector<1x3200xf32>,
    %257 = vector.extract_strided_slice %254 {offsets = [0, 0], sizes = [1, 64], strides = [1, 1]} : vector<63x64xf32> to vector<1x64xf32>
    %c0_287 = arith.constant 0 : index
    %c0_288 = arith.constant 0 : index
    %258 = vector.load %arg15[%c0_287, %c0_288] : memref<1x3200xf32, #tpu.memory_space<vmem>>, vector<1x64xf32>
    tpu.vector_store %arg15[%c0_287, %c0_288], %257 {strides = array<i32>} : memref<1x3200xf32, #tpu.memory_space<vmem>>, vector<1x64xf32>,
    %259 = vector.extract_strided_slice %254 {offsets = [1, 0], sizes = [1, 64], strides = [1, 1]} : vector<63x64xf32> to vector<1x64xf32>
    %c0_289 = arith.constant 0 : index
    %c64_290 = arith.constant 64 : index
    %260 = vector.load %arg15[%c0_289, %c64_290] : memref<1x3200xf32, #tpu.memory_space<vmem>>, vector<1x64xf32>
    tpu.vector_store %arg15[%c0_289, %c64_290], %259 {strides = array<i32>} : memref<1x3200xf32, #tpu.memory_space<vmem>>, vector<1x64xf32>,
    %261 = vector.extract_strided_slice %254 {offsets = [2, 0], sizes = [1, 64], strides = [1, 1]} : vector<63x64xf32> to vector<1x64xf32>
    %c0_291 = arith.constant 0 : index
    %c128_292 = arith.constant 128 : index
    %262 = vector.load %arg15[%c0_291, %c128_292] : memref<1x3200xf32, #tpu.memory_space<vmem>>, vector<1x64xf32>
    tpu.vector_store %arg15[%c0_291, %c128_292], %261 {strides = array<i32>} : memref<1x3200xf32, #tpu.memory_space<vmem>>, vector<1x64xf32>,
    %263 = vector.extract_strided_slice %254 {offsets = [3, 0], sizes = [1, 64], strides = [1, 1]} : vector<63x64xf32> to vector<1x64xf32>
    %c0_293 = arith.constant 0 : index
    %c192_294 = arith.constant 192 : index
    %264 = vector.load %arg15[%c0_293, %c192_294] : memref<1x3200xf32, #tpu.memory_space<vmem>>, vector<1x64xf32>
    tpu.vector_store %arg15[%c0_293, %c192_294], %263 {strides = array<i32>} : memref<1x3200xf32, #tpu.memory_space<vmem>>, vector<1x64xf32>,
    %265 = vector.extract_strided_slice %254 {offsets = [4, 0], sizes = [1, 64], strides = [1, 1]} : vector<63x64xf32> to vector<1x64xf32>
    %c0_295 = arith.constant 0 : index
    %c256 = arith.constant 256 : index
    %266 = vector.load %arg15[%c0_295, %c256] : memref<1x3200xf32, #tpu.memory_space<vmem>>, vector<1x64xf32>
    tpu.vector_store %arg15[%c0_295, %c256], %265 {strides = array<i32>} : memref<1x3200xf32, #tpu.memory_space<vmem>>, vector<1x64xf32>,
    %267 = vector.extract_strided_slice %254 {offsets = [5, 0], sizes = [1, 64], strides = [1, 1]} : vector<63x64xf32> to vector<1x64xf32>
    %c0_296 = arith.constant 0 : index
    %c320 = arith.constant 320 : index
    %268 = vector.load %arg15[%c0_296, %c320] : memref<1x3200xf32, #tpu.memory_space<vmem>>, vector<1x64xf32>
    tpu.vector_store %arg15[%c0_296, %c320], %267 {strides = array<i32>} : memref<1x3200xf32, #tpu.memory_space<vmem>>, vector<1x64xf32>,
    %269 = vector.extract_strided_slice %254 {offsets = [6, 0], sizes = [1, 64], strides = [1, 1]} : vector<63x64xf32> to vector<1x64xf32>
    %c0_297 = arith.constant 0 : index
    %c384 = arith.constant 384 : index
    %270 = vector.load %arg15[%c0_297, %c384] : memref<1x3200xf32, #tpu.memory_space<vmem>>, vector<1x64xf32>
    tpu.vector_store %arg15[%c0_297, %c384], %269 {strides = array<i32>} : memref<1x3200xf32, #tpu.memory_space<vmem>>, vector<1x64xf32>,
    %271 = vector.extract_strided_slice %254 {offsets = [9, 0], sizes = [1, 64], strides = [1, 1]} : vector<63x64xf32> to vector<1x64xf32>
    %c0_298 = arith.constant 0 : index
    %c448 = arith.constant 448 : index
    %272 = vector.load %arg15[%c0_298, %c448] : memref<1x3200xf32, #tpu.memory_space<vmem>>, vector<1x64xf32>
    tpu.vector_store %arg15[%c0_298, %c448], %271 {strides = array<i32>} : memref<1x3200xf32, #tpu.memory_space<vmem>>, vector<1x64xf32>,
    %273 = vector.extract_strided_slice %254 {offsets = [10, 0], sizes = [1, 64], strides = [1, 1]} : vector<63x64xf32> to vector<1x64xf32>
    %c0_299 = arith.constant 0 : index
    %c512 = arith.constant 512 : index
    %274 = vector.load %arg15[%c0_299, %c512] : memref<1x3200xf32, #tpu.memory_space<vmem>>, vector<1x64xf32>
    tpu.vector_store %arg15[%c0_299, %c512], %273 {strides = array<i32>} : memref<1x3200xf32, #tpu.memory_space<vmem>>, vector<1x64xf32>,
    %275 = vector.extract_strided_slice %254 {offsets = [11, 0], sizes = [1, 64], strides = [1, 1]} : vector<63x64xf32> to vector<1x64xf32>
    %c0_300 = arith.constant 0 : index
    %c576 = arith.constant 576 : index
    %276 = vector.load %arg15[%c0_300, %c576] : memref<1x3200xf32, #tpu.memory_space<vmem>>, vector<1x64xf32>
    tpu.vector_store %arg15[%c0_300, %c576], %275 {strides = array<i32>} : memref<1x3200xf32, #tpu.memory_space<vmem>>, vector<1x64xf32>,
    %277 = vector.extract_strided_slice %254 {offsets = [12, 0], sizes = [1, 64], strides = [1, 1]} : vector<63x64xf32> to vector<1x64xf32>
    %c0_301 = arith.constant 0 : index
    %c640 = arith.constant 640 : index
    %278 = vector.load %arg15[%c0_301, %c640] : memref<1x3200xf32, #tpu.memory_space<vmem>>, vector<1x64xf32>
    tpu.vector_store %arg15[%c0_301, %c640], %277 {strides = array<i32>} : memref<1x3200xf32, #tpu.memory_space<vmem>>, vector<1x64xf32>,
    %279 = vector.extract_strided_slice %254 {offsets = [13, 0], sizes = [1, 64], strides = [1, 1]} : vector<63x64xf32> to vector<1x64xf32>
    %c0_302 = arith.constant 0 : index
    %c704 = arith.constant 704 : index
    %280 = vector.load %arg15[%c0_302, %c704] : memref<1x3200xf32, #tpu.memory_space<vmem>>, vector<1x64xf32>
    tpu.vector_store %arg15[%c0_302, %c704], %279 {strides = array<i32>} : memref<1x3200xf32, #tpu.memory_space<vmem>>, vector<1x64xf32>,
    %281 = vector.extract_strided_slice %254 {offsets = [14, 0], sizes = [1, 64], strides = [1, 1]} : vector<63x64xf32> to vector<1x64xf32>
    %c0_303 = arith.constant 0 : index
    %c768 = arith.constant 768 : index
    %282 = vector.load %arg15[%c0_303, %c768] : memref<1x3200xf32, #tpu.memory_space<vmem>>, vector<1x64xf32>
    tpu.vector_store %arg15[%c0_303, %c768], %281 {strides = array<i32>} : memref<1x3200xf32, #tpu.memory_space<vmem>>, vector<1x64xf32>,
    %283 = vector.extract_strided_slice %254 {offsets = [15, 0], sizes = [1, 64], strides = [1, 1]} : vector<63x64xf32> to vector<1x64xf32>
    %c0_304 = arith.constant 0 : index
    %c832 = arith.constant 832 : index
    %284 = vector.load %arg15[%c0_304, %c832] : memref<1x3200xf32, #tpu.memory_space<vmem>>, vector<1x64xf32>
    tpu.vector_store %arg15[%c0_304, %c832], %283 {strides = array<i32>} : memref<1x3200xf32, #tpu.memory_space<vmem>>, vector<1x64xf32>,
    %285 = vector.extract_strided_slice %254 {offsets = [18, 0], sizes = [1, 64], strides = [1, 1]} : vector<63x64xf32> to vector<1x64xf32>
    %c0_305 = arith.constant 0 : index
    %c896 = arith.constant 896 : index
    %286 = vector.load %arg15[%c0_305, %c896] : memref<1x3200xf32, #tpu.memory_space<vmem>>, vector<1x64xf32>
    tpu.vector_store %arg15[%c0_305, %c896], %285 {strides = array<i32>} : memref<1x3200xf32, #tpu.memory_space<vmem>>, vector<1x64xf32>,
    %287 = vector.extract_strided_slice %254 {offsets = [19, 0], sizes = [1, 64], strides = [1, 1]} : vector<63x64xf32> to vector<1x64xf32>
    %c0_306 = arith.constant 0 : index
    %c960 = arith.constant 960 : index
    %288 = vector.load %arg15[%c0_306, %c960] : memref<1x3200xf32, #tpu.memory_space<vmem>>, vector<1x64xf32>
    tpu.vector_store %arg15[%c0_306, %c960], %287 {strides = array<i32>} : memref<1x3200xf32, #tpu.memory_space<vmem>>, vector<1x64xf32>,
    %289 = vector.extract_strided_slice %254 {offsets = [20, 0], sizes = [1, 64], strides = [1, 1]} : vector<63x64xf32> to vector<1x64xf32>
    %c0_307 = arith.constant 0 : index
    %c1024 = arith.constant 1024 : index
    %290 = vector.load %arg15[%c0_307, %c1024] : memref<1x3200xf32, #tpu.memory_space<vmem>>, vector<1x64xf32>
    tpu.vector_store %arg15[%c0_307, %c1024], %289 {strides = array<i32>} : memref<1x3200xf32, #tpu.memory_space<vmem>>, vector<1x64xf32>,
    %291 = vector.extract_strided_slice %254 {offsets = [21, 0], sizes = [1, 64], strides = [1, 1]} : vector<63x64xf32> to vector<1x64xf32>
    %c0_308 = arith.constant 0 : index
    %c1088 = arith.constant 1088 : index
    %292 = vector.load %arg15[%c0_308, %c1088] : memref<1x3200xf32, #tpu.memory_space<vmem>>, vector<1x64xf32>
    tpu.vector_store %arg15[%c0_308, %c1088], %291 {strides = array<i32>} : memref<1x3200xf32, #tpu.memory_space<vmem>>, vector<1x64xf32>,
    %293 = vector.extract_strided_slice %254 {offsets = [22, 0], sizes = [1, 64], strides = [1, 1]} : vector<63x64xf32> to vector<1x64xf32>
    %c0_309 = arith.constant 0 : index
    %c1152 = arith.constant 1152 : index
    %294 = vector.load %arg15[%c0_309, %c1152] : memref<1x3200xf32, #tpu.memory_space<vmem>>, vector<1x64xf32>
    tpu.vector_store %arg15[%c0_309, %c1152], %293 {strides = array<i32>} : memref<1x3200xf32, #tpu.memory_space<vmem>>, vector<1x64xf32>,
    %295 = vector.extract_strided_slice %254 {offsets = [23, 0], sizes = [1, 64], strides = [1, 1]} : vector<63x64xf32> to vector<1x64xf32>
    %c0_310 = arith.constant 0 : index
    %c1216 = arith.constant 1216 : index
    %296 = vector.load %arg15[%c0_310, %c1216] : memref<1x3200xf32, #tpu.memory_space<vmem>>, vector<1x64xf32>
    tpu.vector_store %arg15[%c0_310, %c1216], %295 {strides = array<i32>} : memref<1x3200xf32, #tpu.memory_space<vmem>>, vector<1x64xf32>,
    %297 = vector.extract_strided_slice %254 {offsets = [24, 0], sizes = [1, 64], strides = [1, 1]} : vector<63x64xf32> to vector<1x64xf32>
    %c0_311 = arith.constant 0 : index
    %c1280 = arith.constant 1280 : index
    %298 = vector.load %arg15[%c0_311, %c1280] : memref<1x3200xf32, #tpu.memory_space<vmem>>, vector<1x64xf32>
    tpu.vector_store %arg15[%c0_311, %c1280], %297 {strides = array<i32>} : memref<1x3200xf32, #tpu.memory_space<vmem>>, vector<1x64xf32>,
    %299 = vector.extract_strided_slice %254 {offsets = [27, 0], sizes = [1, 64], strides = [1, 1]} : vector<63x64xf32> to vector<1x64xf32>
    %c0_312 = arith.constant 0 : index
    %c1344 = arith.constant 1344 : index
    %300 = vector.load %arg15[%c0_312, %c1344] : memref<1x3200xf32, #tpu.memory_space<vmem>>, vector<1x64xf32>
    tpu.vector_store %arg15[%c0_312, %c1344], %299 {strides = array<i32>} : memref<1x3200xf32, #tpu.memory_space<vmem>>, vector<1x64xf32>,
    %301 = vector.extract_strided_slice %254 {offsets = [28, 0], sizes = [1, 64], strides = [1, 1]} : vector<63x64xf32> to vector<1x64xf32>
    %c0_313 = arith.constant 0 : index
    %c1408 = arith.constant 1408 : index
    %302 = vector.load %arg15[%c0_313, %c1408] : memref<1x3200xf32, #tpu.memory_space<vmem>>, vector<1x64xf32>
    tpu.vector_store %arg15[%c0_313, %c1408], %301 {strides = array<i32>} : memref<1x3200xf32, #tpu.memory_space<vmem>>, vector<1x64xf32>,
    %303 = vector.extract_strided_slice %254 {offsets = [29, 0], sizes = [1, 64], strides = [1, 1]} : vector<63x64xf32> to vector<1x64xf32>
    %c0_314 = arith.constant 0 : index
    %c1472 = arith.constant 1472 : index
    %304 = vector.load %arg15[%c0_314, %c1472] : memref<1x3200xf32, #tpu.memory_space<vmem>>, vector<1x64xf32>
    tpu.vector_store %arg15[%c0_314, %c1472], %303 {strides = array<i32>} : memref<1x3200xf32, #tpu.memory_space<vmem>>, vector<1x64xf32>,
    %305 = vector.extract_strided_slice %254 {offsets = [30, 0], sizes = [1, 64], strides = [1, 1]} : vector<63x64xf32> to vector<1x64xf32>
    %c0_315 = arith.constant 0 : index
    %c1536 = arith.constant 1536 : index
    %306 = vector.load %arg15[%c0_315, %c1536] : memref<1x3200xf32, #tpu.memory_space<vmem>>, vector<1x64xf32>
    tpu.vector_store %arg15[%c0_315, %c1536], %305 {strides = array<i32>} : memref<1x3200xf32, #tpu.memory_space<vmem>>, vector<1x64xf32>,
    %307 = vector.extract_strided_slice %254 {offsets = [31, 0], sizes = [1, 64], strides = [1, 1]} : vector<63x64xf32> to vector<1x64xf32>
    %c0_316 = arith.constant 0 : index
    %c1600 = arith.constant 1600 : index
    %308 = vector.load %arg15[%c0_316, %c1600] : memref<1x3200xf32, #tpu.memory_space<vmem>>, vector<1x64xf32>
    tpu.vector_store %arg15[%c0_316, %c1600], %307 {strides = array<i32>} : memref<1x3200xf32, #tpu.memory_space<vmem>>, vector<1x64xf32>,
    %309 = vector.extract_strided_slice %254 {offsets = [32, 0], sizes = [1, 64], strides = [1, 1]} : vector<63x64xf32> to vector<1x64xf32>
    %c0_317 = arith.constant 0 : index
    %c1664 = arith.constant 1664 : index
    %310 = vector.load %arg15[%c0_317, %c1664] : memref<1x3200xf32, #tpu.memory_space<vmem>>, vector<1x64xf32>
    tpu.vector_store %arg15[%c0_317, %c1664], %309 {strides = array<i32>} : memref<1x3200xf32, #tpu.memory_space<vmem>>, vector<1x64xf32>,
    %311 = vector.extract_strided_slice %254 {offsets = [33, 0], sizes = [1, 64], strides = [1, 1]} : vector<63x64xf32> to vector<1x64xf32>
    %c0_318 = arith.constant 0 : index
    %c1728 = arith.constant 1728 : index
    %312 = vector.load %arg15[%c0_318, %c1728] : memref<1x3200xf32, #tpu.memory_space<vmem>>, vector<1x64xf32>
    tpu.vector_store %arg15[%c0_318, %c1728], %311 {strides = array<i32>} : memref<1x3200xf32, #tpu.memory_space<vmem>>, vector<1x64xf32>,
    %313 = vector.extract_strided_slice %254 {offsets = [36, 0], sizes = [1, 64], strides = [1, 1]} : vector<63x64xf32> to vector<1x64xf32>
    %c0_319 = arith.constant 0 : index
    %c1792 = arith.constant 1792 : index
    %314 = vector.load %arg15[%c0_319, %c1792] : memref<1x3200xf32, #tpu.memory_space<vmem>>, vector<1x64xf32>
    tpu.vector_store %arg15[%c0_319, %c1792], %313 {strides = array<i32>} : memref<1x3200xf32, #tpu.memory_space<vmem>>, vector<1x64xf32>,
    %315 = vector.extract_strided_slice %254 {offsets = [37, 0], sizes = [1, 64], strides = [1, 1]} : vector<63x64xf32> to vector<1x64xf32>
    %c0_320 = arith.constant 0 : index
    %c1856 = arith.constant 1856 : index
    %316 = vector.load %arg15[%c0_320, %c1856] : memref<1x3200xf32, #tpu.memory_space<vmem>>, vector<1x64xf32>
    tpu.vector_store %arg15[%c0_320, %c1856], %315 {strides = array<i32>} : memref<1x3200xf32, #tpu.memory_space<vmem>>, vector<1x64xf32>,
    %317 = vector.extract_strided_slice %254 {offsets = [38, 0], sizes = [1, 64], strides = [1, 1]} : vector<63x64xf32> to vector<1x64xf32>
    %c0_321 = arith.constant 0 : index
    %c1920 = arith.constant 1920 : index
    %318 = vector.load %arg15[%c0_321, %c1920] : memref<1x3200xf32, #tpu.memory_space<vmem>>, vector<1x64xf32>
    tpu.vector_store %arg15[%c0_321, %c1920], %317 {strides = array<i32>} : memref<1x3200xf32, #tpu.memory_space<vmem>>, vector<1x64xf32>,
    %319 = vector.extract_strided_slice %254 {offsets = [39, 0], sizes = [1, 64], strides = [1, 1]} : vector<63x64xf32> to vector<1x64xf32>
    %c0_322 = arith.constant 0 : index
    %c1984 = arith.constant 1984 : index
    %320 = vector.load %arg15[%c0_322, %c1984] : memref<1x3200xf32, #tpu.memory_space<vmem>>, vector<1x64xf32>
    tpu.vector_store %arg15[%c0_322, %c1984], %319 {strides = array<i32>} : memref<1x3200xf32, #tpu.memory_space<vmem>>, vector<1x64xf32>,
    %321 = vector.extract_strided_slice %254 {offsets = [40, 0], sizes = [1, 64], strides = [1, 1]} : vector<63x64xf32> to vector<1x64xf32>
    %c0_323 = arith.constant 0 : index
    %c2048 = arith.constant 2048 : index
    %322 = vector.load %arg15[%c0_323, %c2048] : memref<1x3200xf32, #tpu.memory_space<vmem>>, vector<1x64xf32>
    tpu.vector_store %arg15[%c0_323, %c2048], %321 {strides = array<i32>} : memref<1x3200xf32, #tpu.memory_space<vmem>>, vector<1x64xf32>,
    %323 = vector.extract_strided_slice %254 {offsets = [41, 0], sizes = [1, 64], strides = [1, 1]} : vector<63x64xf32> to vector<1x64xf32>
    %c0_324 = arith.constant 0 : index
    %c2112 = arith.constant 2112 : index
    %324 = vector.load %arg15[%c0_324, %c2112] : memref<1x3200xf32, #tpu.memory_space<vmem>>, vector<1x64xf32>
    tpu.vector_store %arg15[%c0_324, %c2112], %323 {strides = array<i32>} : memref<1x3200xf32, #tpu.memory_space<vmem>>, vector<1x64xf32>,
    %325 = vector.extract_strided_slice %254 {offsets = [42, 0], sizes = [1, 64], strides = [1, 1]} : vector<63x64xf32> to vector<1x64xf32>
    %c0_325 = arith.constant 0 : index
    %c2176 = arith.constant 2176 : index
    %326 = vector.load %arg15[%c0_325, %c2176] : memref<1x3200xf32, #tpu.memory_space<vmem>>, vector<1x64xf32>
    tpu.vector_store %arg15[%c0_325, %c2176], %325 {strides = array<i32>} : memref<1x3200xf32, #tpu.memory_space<vmem>>, vector<1x64xf32>,
    %327 = vector.extract_strided_slice %254 {offsets = [45, 0], sizes = [1, 64], strides = [1, 1]} : vector<63x64xf32> to vector<1x64xf32>
    %c0_326 = arith.constant 0 : index
    %c2240 = arith.constant 2240 : index
    %328 = vector.load %arg15[%c0_326, %c2240] : memref<1x3200xf32, #tpu.memory_space<vmem>>, vector<1x64xf32>
    tpu.vector_store %arg15[%c0_326, %c2240], %327 {strides = array<i32>} : memref<1x3200xf32, #tpu.memory_space<vmem>>, vector<1x64xf32>,
    %329 = vector.extract_strided_slice %254 {offsets = [46, 0], sizes = [1, 64], strides = [1, 1]} : vector<63x64xf32> to vector<1x64xf32>
    %c0_327 = arith.constant 0 : index
    %c2304 = arith.constant 2304 : index
    %330 = vector.load %arg15[%c0_327, %c2304] : memref<1x3200xf32, #tpu.memory_space<vmem>>, vector<1x64xf32>
    tpu.vector_store %arg15[%c0_327, %c2304], %329 {strides = array<i32>} : memref<1x3200xf32, #tpu.memory_space<vmem>>, vector<1x64xf32>,
    %331 = vector.extract_strided_slice %254 {offsets = [47, 0], sizes = [1, 64], strides = [1, 1]} : vector<63x64xf32> to vector<1x64xf32>
    %c0_328 = arith.constant 0 : index
    %c2368 = arith.constant 2368 : index
    %332 = vector.load %arg15[%c0_328, %c2368] : memref<1x3200xf32, #tpu.memory_space<vmem>>, vector<1x64xf32>
    tpu.vector_store %arg15[%c0_328, %c2368], %331 {strides = array<i32>} : memref<1x3200xf32, #tpu.memory_space<vmem>>, vector<1x64xf32>,
    %333 = vector.extract_strided_slice %254 {offsets = [48, 0], sizes = [1, 64], strides = [1, 1]} : vector<63x64xf32> to vector<1x64xf32>
    %c0_329 = arith.constant 0 : index
    %c2432 = arith.constant 2432 : index
    %334 = vector.load %arg15[%c0_329, %c2432] : memref<1x3200xf32, #tpu.memory_space<vmem>>, vector<1x64xf32>
    tpu.vector_store %arg15[%c0_329, %c2432], %333 {strides = array<i32>} : memref<1x3200xf32, #tpu.memory_space<vmem>>, vector<1x64xf32>,
    %335 = vector.extract_strided_slice %254 {offsets = [49, 0], sizes = [1, 64], strides = [1, 1]} : vector<63x64xf32> to vector<1x64xf32>
    %c0_330 = arith.constant 0 : index
    %c2496 = arith.constant 2496 : index
    %336 = vector.load %arg15[%c0_330, %c2496] : memref<1x3200xf32, #tpu.memory_space<vmem>>, vector<1x64xf32>
    tpu.vector_store %arg15[%c0_330, %c2496], %335 {strides = array<i32>} : memref<1x3200xf32, #tpu.memory_space<vmem>>, vector<1x64xf32>,
    %337 = vector.extract_strided_slice %254 {offsets = [50, 0], sizes = [1, 64], strides = [1, 1]} : vector<63x64xf32> to vector<1x64xf32>
    %c0_331 = arith.constant 0 : index
    %c2560 = arith.constant 2560 : index
    %338 = vector.load %arg15[%c0_331, %c2560] : memref<1x3200xf32, #tpu.memory_space<vmem>>, vector<1x64xf32>
    tpu.vector_store %arg15[%c0_331, %c2560], %337 {strides = array<i32>} : memref<1x3200xf32, #tpu.memory_space<vmem>>, vector<1x64xf32>,
    %339 = vector.extract_strided_slice %254 {offsets = [51, 0], sizes = [1, 64], strides = [1, 1]} : vector<63x64xf32> to vector<1x64xf32>
    %c0_332 = arith.constant 0 : index
    %c2624 = arith.constant 2624 : index
    %340 = vector.load %arg15[%c0_332, %c2624] : memref<1x3200xf32, #tpu.memory_space<vmem>>, vector<1x64xf32>
    tpu.vector_store %arg15[%c0_332, %c2624], %339 {strides = array<i32>} : memref<1x3200xf32, #tpu.memory_space<vmem>>, vector<1x64xf32>,
    %341 = vector.extract_strided_slice %254 {offsets = [54, 0], sizes = [1, 64], strides = [1, 1]} : vector<63x64xf32> to vector<1x64xf32>
    %c0_333 = arith.constant 0 : index
    %c2688 = arith.constant 2688 : index
    %342 = vector.load %arg15[%c0_333, %c2688] : memref<1x3200xf32, #tpu.memory_space<vmem>>, vector<1x64xf32>
    tpu.vector_store %arg15[%c0_333, %c2688], %341 {strides = array<i32>} : memref<1x3200xf32, #tpu.memory_space<vmem>>, vector<1x64xf32>,
    %343 = vector.extract_strided_slice %254 {offsets = [55, 0], sizes = [1, 64], strides = [1, 1]} : vector<63x64xf32> to vector<1x64xf32>
    %c0_334 = arith.constant 0 : index
    %c2752 = arith.constant 2752 : index
    %344 = vector.load %arg15[%c0_334, %c2752] : memref<1x3200xf32, #tpu.memory_space<vmem>>, vector<1x64xf32>
    tpu.vector_store %arg15[%c0_334, %c2752], %343 {strides = array<i32>} : memref<1x3200xf32, #tpu.memory_space<vmem>>, vector<1x64xf32>,
    %345 = vector.extract_strided_slice %254 {offsets = [56, 0], sizes = [1, 64], strides = [1, 1]} : vector<63x64xf32> to vector<1x64xf32>
    %c0_335 = arith.constant 0 : index
    %c2816 = arith.constant 2816 : index
    %346 = vector.load %arg15[%c0_335, %c2816] : memref<1x3200xf32, #tpu.memory_space<vmem>>, vector<1x64xf32>
    tpu.vector_store %arg15[%c0_335, %c2816], %345 {strides = array<i32>} : memref<1x3200xf32, #tpu.memory_space<vmem>>, vector<1x64xf32>,
    %347 = vector.extract_strided_slice %254 {offsets = [57, 0], sizes = [1, 64], strides = [1, 1]} : vector<63x64xf32> to vector<1x64xf32>
    %c0_336 = arith.constant 0 : index
    %c2880 = arith.constant 2880 : index
    %348 = vector.load %arg15[%c0_336, %c2880] : memref<1x3200xf32, #tpu.memory_space<vmem>>, vector<1x64xf32>
    tpu.vector_store %arg15[%c0_336, %c2880], %347 {strides = array<i32>} : memref<1x3200xf32, #tpu.memory_space<vmem>>, vector<1x64xf32>,
    %349 = vector.extract_strided_slice %254 {offsets = [58, 0], sizes = [1, 64], strides = [1, 1]} : vector<63x64xf32> to vector<1x64xf32>
    %c0_337 = arith.constant 0 : index
    %c2944 = arith.constant 2944 : index
    %350 = vector.load %arg15[%c0_337, %c2944] : memref<1x3200xf32, #tpu.memory_space<vmem>>, vector<1x64xf32>
    tpu.vector_store %arg15[%c0_337, %c2944], %349 {strides = array<i32>} : memref<1x3200xf32, #tpu.memory_space<vmem>>, vector<1x64xf32>,
    %351 = vector.extract_strided_slice %254 {offsets = [59, 0], sizes = [1, 64], strides = [1, 1]} : vector<63x64xf32> to vector<1x64xf32>
    %c0_338 = arith.constant 0 : index
    %c3008 = arith.constant 3008 : index
    %352 = vector.load %arg15[%c0_338, %c3008] : memref<1x3200xf32, #tpu.memory_space<vmem>>, vector<1x64xf32>
    tpu.vector_store %arg15[%c0_338, %c3008], %351 {strides = array<i32>} : memref<1x3200xf32, #tpu.memory_space<vmem>>, vector<1x64xf32>,
    %353 = vector.extract_strided_slice %254 {offsets = [60, 0], sizes = [1, 64], strides = [1, 1]} : vector<63x64xf32> to vector<1x64xf32>
    %c0_339 = arith.constant 0 : index
    %c3072 = arith.constant 3072 : index
    %354 = vector.load %arg15[%c0_339, %c3072] : memref<1x3200xf32, #tpu.memory_space<vmem>>, vector<1x64xf32>
    tpu.vector_store %arg15[%c0_339, %c3072], %353 {strides = array<i32>} : memref<1x3200xf32, #tpu.memory_space<vmem>>, vector<1x64xf32>,
    %c0_340 = arith.constant 0 : index
    %c0_341 = arith.constant 0 : index
    %355 = vector.load %arg15[%c0_340, %c0_341] : memref<1x3200xf32, #tpu.memory_space<vmem>>, vector<1x3200xf32>
    %356 = arith.truncf %355 : vector<1x3200xf32> to vector<1x3200xbf16>
    %c0_342 = arith.constant 0 : index
    %c0_343 = arith.constant 0 : index
    %357 = vector.load %arg8[%c0_342, %c0_343] : memref<3200x512xbf16, #tpu.memory_space<vmem>>, vector<3200x512xbf16>
    %cst_344 = arith.constant dense<0.000000e+00> : vector<1x512xf32>
    %358 = tpu.matmul %356, %357, %cst_344 {dimension_numbers = #tpu.dot_dimension_numbers<[1], [0], [0], [1], [0, 0, 1, 1], [], []>} : vector<1x3200xbf16>, vector<3200x512xbf16>, vector<1x512xf32> -> vector<1x512xf32>
    %c0_345 = arith.constant 0 : index
    %c0_346 = arith.constant 0 : index
    %359 = vector.load %arg9[%c0_345, %c0_346] : memref<1x512xf32, #tpu.memory_space<vmem>>, vector<1x512xf32>
    %360 = arith.addf %358, %359 : vector<1x512xf32>
    %cst_347 = arith.constant 0.000000e+00 : f32
    %361 = vector.broadcast %cst_347 : f32 to vector<1x512xf32>
    %362 = arith.maximumf %360, %361 : vector<1x512xf32>
    %363 = arith.truncf %362 : vector<1x512xf32> to vector<1x512xbf16>
    %c0_348 = arith.constant 0 : index
    %c0_349 = arith.constant 0 : index
    %364 = vector.load %arg10[%c0_348, %c0_349] : memref<512x128xbf16, #tpu.memory_space<vmem>>, vector<512x128xbf16>
    %cst_350 = arith.constant dense<0.000000e+00> : vector<1x128xf32>
    %365 = tpu.matmul %363, %364, %cst_350 {dimension_numbers = #tpu.dot_dimension_numbers<[1], [0], [0], [1], [0, 0, 1, 1], [], []>} : vector<1x512xbf16>, vector<512x128xbf16>, vector<1x128xf32> -> vector<1x128xf32>
    %c0_351 = arith.constant 0 : index
    %c0_352 = arith.constant 0 : index
    %366 = vector.load %arg11[%c0_351, %c0_352] : memref<1x128xf32, #tpu.memory_space<vmem>>, vector<1x128xf32>
    %367 = arith.addf %365, %366 : vector<1x128xf32>
    %c0_353 = arith.constant 0 : index
    %c0_354 = arith.constant 0 : index
    %c0_355 = arith.constant 0 : index
    %368 = vector.load %arg12[%c0_353, %c0_354, %c0_355] : memref<1x1x128xf32, #tpu.memory_space<vmem>>, vector<1x1x128xf32>
    %369 = vector.shape_cast %368 : vector<1x1x128xf32> to vector<1x128xf32>
    %370 = vector.shape_cast %367 : vector<1x128xf32> to vector<1x1x128xf32>
    tpu.vector_store %arg12[%c0_353, %c0_354, %c0_355], %370 {strides = array<i32>} : memref<1x1x128xf32, #tpu.memory_space<vmem>>, vector<1x1x128xf32>,
    return
  }
  func.func @transform_0(%arg0: i32) -> (i32, i32, i32) {
    %c0_i32 = arith.constant 0 : i32
    %c0_i32_0 = arith.constant 0 : i32
    %c0_i32_1 = arith.constant 0 : i32
    return %arg0, %c0_i32, %c0_i32_0 : i32, i32, i32
  }
  func.func @transform_1(%arg0: i32) -> (i32, i32) {
    %c0_i32 = arith.constant 0 : i32
    %c0_i32_0 = arith.constant 0 : i32
    %c0_i32_1 = arith.constant 0 : i32
    return %c0_i32, %c0_i32_0 : i32, i32
  }
  func.func @transform_2(%arg0: i32) -> (i32, i32) {
    %c0_i32 = arith.constant 0 : i32
    %c0_i32_0 = arith.constant 0 : i32
    %c0_i32_1 = arith.constant 0 : i32
    return %c0_i32, %c0_i32_0 : i32, i32
  }
  func.func @transform_3(%arg0: i32) -> (i32, i32) {
    %c0_i32 = arith.constant 0 : i32
    %c0_i32_0 = arith.constant 0 : i32
    %c0_i32_1 = arith.constant 0 : i32
    return %c0_i32, %c0_i32_0 : i32, i32
  }
  func.func @transform_4(%arg0: i32) -> (i32, i32) {
    %c0_i32 = arith.constant 0 : i32
    %c0_i32_0 = arith.constant 0 : i32
    %c0_i32_1 = arith.constant 0 : i32
    return %c0_i32, %c0_i32_0 : i32, i32
  }
  func.func @transform_5(%arg0: i32) -> (i32, i32) {
    %c0_i32 = arith.constant 0 : i32
    %c0_i32_0 = arith.constant 0 : i32
    %c0_i32_1 = arith.constant 0 : i32
    return %c0_i32, %c0_i32_0 : i32, i32
  }
  func.func @transform_6(%arg0: i32) -> (i32, i32) {
    %c0_i32 = arith.constant 0 : i32
    %c0_i32_0 = arith.constant 0 : i32
    %c0_i32_1 = arith.constant 0 : i32
    return %c0_i32, %c0_i32_0 : i32, i32
  }
  func.func @transform_7(%arg0: i32) -> (i32, i32) {
    %c0_i32 = arith.constant 0 : i32
    %c0_i32_0 = arith.constant 0 : i32
    %c0_i32_1 = arith.constant 0 : i32
    return %c0_i32, %c0_i32_0 : i32, i32
  }
  func.func @transform_8(%arg0: i32) -> (i32, i32) {
    %c0_i32 = arith.constant 0 : i32
    %c0_i32_0 = arith.constant 0 : i32
    %c0_i32_1 = arith.constant 0 : i32
    return %c0_i32, %c0_i32_0 : i32, i32
  }
  func.func @transform_9(%arg0: i32) -> (i32, i32) {
    %c0_i32 = arith.constant 0 : i32
    %c0_i32_0 = arith.constant 0 : i32
    %c0_i32_1 = arith.constant 0 : i32
    return %c0_i32, %c0_i32_0 : i32, i32
  }
  func.func @transform_10(%arg0: i32) -> (i32, i32) {
    %c0_i32 = arith.constant 0 : i32
    %c0_i32_0 = arith.constant 0 : i32
    %c0_i32_1 = arith.constant 0 : i32
    return %c0_i32, %c0_i32_0 : i32, i32
  }
  func.func @transform_11(%arg0: i32) -> (i32, i32, i32) {
    %c0_i32 = arith.constant 0 : i32
    %c0_i32_0 = arith.constant 0 : i32
    %c0_i32_1 = arith.constant 0 : i32
    return %arg0, %c0_i32, %c0_i32_0 : i32, i32, i32
  }
}

</mosaic_0001>

<llo_original>
// kernel: dqn_forward.1
$region0: #{dqn_forward.1}
  #allocation0 [shape = 'u32[]', space=smem, size = 0x4, offset = 0x4, fixed_abs, tag = 'smem constant byte address 0x4 - core index']
  #allocation1 [shape = 'u32[72,128]{1,0:T(1,128)}', space=vmem, size = 0x9000, scoped, tag = 'internal scratch']
  #allocation2 [shape = 'f32[420,32]{1,0:T(8,128)}', space=vmem, size = 0x35000, scoped, tag = 'scratch operand']
  #allocation3 [shape = 'f32[88,64]{1,0:T(8,128)}', space=vmem, size = 0xb000, scoped, tag = 'scratch operand']
  #allocation4 [shape = 'f32[1,3200]{1,0:T(1,128)}', space=vmem, size = 0x3200, scoped, tag = 'scratch operand']
  %s0 = inlined_call_operand.vmem [shape: bf16[2,448,64], index: 0, kind: input, shape index: {}]
  %s1 = inlined_call_operand.vmem [shape: bf16[256,32], index: 1, kind: input, shape index: {}]
  %s2 = inlined_call_operand.vmem [shape: f32[1,32], index: 2, kind: input, shape index: {}]
  %s3 = inlined_call_operand.vmem [shape: bf16[512,64], index: 3, kind: input, shape index: {}]
  %s4 = inlined_call_operand.vmem [shape: f32[1,64], index: 4, kind: input, shape index: {}]
  %s5 = inlined_call_operand.vmem [shape: bf16[576,64], index: 5, kind: input, shape index: {}]
  %s6 = inlined_call_operand.vmem [shape: f32[1,64], index: 6, kind: input, shape index: {}]
  %s7 = inlined_call_operand.vmem [shape: bf16[3200,512], index: 7, kind: input, shape index: {}]
  %s8 = inlined_call_operand.vmem [shape: f32[1,512], index: 8, kind: input, shape index: {}]
  %s9 = inlined_call_operand.vmem [shape: bf16[512,128], index: 9, kind: input, shape index: {}]
  %s10 = inlined_call_operand.vmem [shape: f32[1,128], index: 10, kind: input, shape index: {}]
  %s11 = inlined_call_operand.hbm [shape: f32[2,1,128], index: 11, kind: output, shape index: {}]
  %s12 = sld [smem:[#allocation0]]
  $region77: #{dqn_forward.1} parent=0
    _
  %s14 = ssub.s32 1, %s12
  %s15 = scalar_select 0, %s14, %s12
  $region1: #{dqn_forward.1} parent=0
    #allocation5 [shape = 'u8[1024]{0}', space=vmem, size = 0x400, scoped, tag = 'output window, operand 0']
    #allocation6 [shape = 's32[2]{0}', space=sflag, size = 0x8, scoped, tag = 'scoped memory for dqn_forward.1']
    %16 = vsyncpa [#allocation6], 0
    %s17 = scalar_lea.sflag [#allocation6], 1
    %18 = vsyncpa %s17, 0
    loop: start=0, step=1, limit=4
    $region2: #{dqn_forward.1} parent=1 // loop_pre_header
      _
    $region3: #{dqn_forward.1} parent=1 // loop_header
      %s20 = sphi 0, %s24
      %p21 = scmp.ge.s32.totalorder %s20, 4
      %s30 = sphi 0, %s32
      %s33 = sphi 0, %s30
      %s34 = sphi 0, %s33
      %s50 = sphi 0, %s34
      %s54 = sphi 0, %s54
      %s56 = sphi 0, %s54
      %s57 = sphi 0, %s56
      %s71 = sphi 0, %s57
      %s75 = sphi 0, %s75
      %s77 = sphi 0, %s75
      %s78 = sphi 0, %s77
      %s92 = sphi 0, %s78
      %s96 = sphi 0, %s96
      %s98 = sphi 0, %s96
      %s99 = sphi 0, %s98
      %s113 = sphi 0, %s99
      %s117 = sphi 0, %s117
      %s119 = sphi 0, %s117
      %s120 = sphi 0, %s119
      %s134 = sphi 0, %s120
      %s138 = sphi 0, %s138
      %s140 = sphi 0, %s138
      %s141 = sphi 0, %s140
      %s155 = sphi 0, %s141
      %s159 = sphi 0, %s159
      %s161 = sphi 0, %s159
      %s162 = sphi 0, %s161
      %s176 = sphi 0, %s162
      %s180 = sphi 0, %s180
      %s182 = sphi 0, %s180
      %s183 = sphi 0, %s182
      %s197 = sphi 0, %s183
      %s201 = sphi 0, %s201
      %s203 = sphi 0, %s201
      %s204 = sphi 0, %s203
      %s218 = sphi 0, %s204
      %s222 = sphi 0, %s222
      %s224 = sphi 0, %s222
      %s225 = sphi 0, %s224
      %s239 = sphi 0, %s225
      %s243 = sphi 0, %s243
      %s245 = sphi 0, %s243
      %s246 = sphi 0, %s245
      %s260 = sphi 0, %s246
      %s266 = sphi 0, %s268
      %s269 = sphi 0, %s266
      %s270 = sphi 0, %s269
      %s286 = sphi 0, %s270
    $region4: #{dqn_forward.1} parent=1 // loop_header_branch
      %23 = sbr.rel (%p21) target = $region8
    $region5: #{dqn_forward.1} parent=1 // loop_body
      %s25 = ssub.s32 %s20, 1
      %s26 = ssub.s32 %s20, 2
      %s27 = sadd.s32 %s20, 1
      %s28 = ssub.s32 %s20, %s27
      %p29 = scmp.eq.s32.totalorder %s28, 0
      %s31 = sadd.s32 %s30, 1
      %s32 = scalar_select %p29, %s30, %s31
      %p35 = pneg %p29
      %p36 = scmp.eq.s32.totalorder %s20, 1
      %p37 = por %p35, %p36
      %p38 = scmp.ne.s32.totalorder %s30, %s33
      %p39 = scmp.eq.s32.totalorder %s20, 0
      %p40 = por %p38, %p39
      %p41 = scmp.ne.s32.totalorder %s30, %s33
      %p42 = scmp.eq.s32.totalorder %s25, 1
      %p43 = por %p41, %p42
      %p44 = scmp.ne.s32.totalorder %s33, %s34
      %p45 = scmp.eq.s32.totalorder %s25, 0
      %p46 = por %p44, %p45
      %p47 = scmp.ne.s32.totalorder %s33, %s34
      %p48 = scmp.eq.s32.totalorder %s26, 1
      %p49 = por %p47, %p48
      %p51 = scmp.ne.s32.totalorder %s34, %s50
      %p52 = scmp.eq.s32.totalorder %s26, 0
      %p53 = por %p51, %p52
      %s55 = sadd.s32 %s54, 1
      %p58 = scmp.eq.s32.totalorder %s20, 1
      %p59 = scmp.ne.s32.totalorder %s54, %s56
      %p60 = scmp.eq.s32.totalorder %s20, 0
      %p61 = por %p59, %p60
      %p62 = scmp.ne.s32.totalorder %s54, %s56
      %p63 = scmp.eq.s32.totalorder %s25, 1
      %p64 = por %p62, %p63
      %p65 = scmp.ne.s32.totalorder %s56, %s57
      %p66 = scmp.eq.s32.totalorder %s25, 0
      %p67 = por %p65, %p66
      %p68 = scmp.ne.s32.totalorder %s56, %s57
      %p69 = scmp.eq.s32.totalorder %s26, 1
      %p70 = por %p68, %p69
      %p72 = scmp.ne.s32.totalorder %s57, %s71
      %p73 = scmp.eq.s32.totalorder %s26, 0
      %p74 = por %p72, %p73
      %s76 = sadd.s32 %s75, 1
      %p79 = scmp.eq.s32.totalorder %s20, 1
      %p80 = scmp.ne.s32.totalorder %s75, %s77
      %p81 = scmp.eq.s32.totalorder %s20, 0
      %p82 = por %p80, %p81
      %p83 = scmp.ne.s32.totalorder %s75, %s77
      %p84 = scmp.eq.s32.totalorder %s25, 1
      %p85 = por %p83, %p84
      %p86 = scmp.ne.s32.totalorder %s77, %s78
      %p87 = scmp.eq.s32.totalorder %s25, 0
      %p88 = por %p86, %p87
      %p89 = scmp.ne.s32.totalorder %s77, %s78
      %p90 = scmp.eq.s32.totalorder %s26, 1
      %p91 = por %p89, %p90
      %p93 = scmp.ne.s32.totalorder %s78, %s92
      %p94 = scmp.eq.s32.totalorder %s26, 0
      %p95 = por %p93, %p94
      %s97 = sadd.s32 %s96, 1
      %p100 = scmp.eq.s32.totalorder %s20, 1
      %p101 = scmp.ne.s32.totalorder %s96, %s98
      %p102 = scmp.eq.s32.totalorder %s20, 0
      %p103 = por %p101, %p102
      %p104 = scmp.ne.s32.totalorder %s96, %s98
      %p105 = scmp.eq.s32.totalorder %s25, 1
      %p106 = por %p104, %p105
      %p107 = scmp.ne.s32.totalorder %s98, %s99
      %p108 = scmp.eq.s32.totalorder %s25, 0
      %p109 = por %p107, %p108
      %p110 = scmp.ne.s32.totalorder %s98, %s99
      %p111 = scmp.eq.s32.totalorder %s26, 1
      %p112 = por %p110, %p111
      %p114 = scmp.ne.s32.totalorder %s99, %s113
      %p115 = scmp.eq.s32.totalorder %s26, 0
      %p116 = por %p114, %p115
      %s118 = sadd.s32 %s117, 1
      %p121 = scmp.eq.s32.totalorder %s20, 1
      %p122 = scmp.ne.s32.totalorder %s117, %s119
      %p123 = scmp.eq.s32.totalorder %s20, 0
      %p124 = por %p122, %p123
      %p125 = scmp.ne.s32.totalorder %s117, %s119
      %p126 = scmp.eq.s32.totalorder %s25, 1
      %p127 = por %p125, %p126
      %p128 = scmp.ne.s32.totalorder %s119, %s120
      %p129 = scmp.eq.s32.totalorder %s25, 0
      %p130 = por %p128, %p129
      %p131 = scmp.ne.s32.totalorder %s119, %s120
      %p132 = scmp.eq.s32.totalorder %s26, 1
      %p133 = por %p131, %p132
      %p135 = scmp.ne.s32.totalorder %s120, %s134
      %p136 = scmp.eq.s32.totalorder %s26, 0
      %p137 = por %p135, %p136
      %s139 = sadd.s32 %s138, 1
      %p142 = scmp.eq.s32.totalorder %s20, 1
      %p143 = scmp.ne.s32.totalorder %s138, %s140
      %p144 = scmp.eq.s32.totalorder %s20, 0
      %p145 = por %p143, %p144
      %p146 = scmp.ne.s32.totalorder %s138, %s140
      %p147 = scmp.eq.s32.totalorder %s25, 1
      %p148 = por %p146, %p147
      %p149 = scmp.ne.s32.totalorder %s140, %s141
      %p150 = scmp.eq.s32.totalorder %s25, 0
      %p151 = por %p149, %p150
      %p152 = scmp.ne.s32.totalorder %s140, %s141
      %p153 = scmp.eq.s32.totalorder %s26, 1
      %p154 = por %p152, %p153
      %p156 = scmp.ne.s32.totalorder %s141, %s155
      %p157 = scmp.eq.s32.totalorder %s26, 0
      %p158 = por %p156, %p157
      %s160 = sadd.s32 %s159, 1
      %p163 = scmp.eq.s32.totalorder %s20, 1
      %p164 = scmp.ne.s32.totalorder %s159, %s161
      %p165 = scmp.eq.s32.totalorder %s20, 0
      %p166 = por %p164, %p165
      %p167 = scmp.ne.s32.totalorder %s159, %s161
      %p168 = scmp.eq.s32.totalorder %s25, 1
      %p169 = por %p167, %p168
      %p170 = scmp.ne.s32.totalorder %s161, %s162
      %p171 = scmp.eq.s32.totalorder %s25, 0
      %p172 = por %p170, %p171
      %p173 = scmp.ne.s32.totalorder %s161, %s162
      %p174 = scmp.eq.s32.totalorder %s26, 1
      %p175 = por %p173, %p174
      %p177 = scmp.ne.s32.totalorder %s162, %s176
      %p178 = scmp.eq.s32.totalorder %s26, 0
      %p179 = por %p177, %p178
      %s181 = sadd.s32 %s180, 1
      %p184 = scmp.eq.s32.totalorder %s20, 1
      %p185 = scmp.ne.s32.totalorder %s180, %s182
      %p186 = scmp.eq.s32.totalorder %s20, 0
      %p187 = por %p185, %p186
      %p188 = scmp.ne.s32.totalorder %s180, %s182
      %p189 = scmp.eq.s32.totalorder %s25, 1
      %p190 = por %p188, %p189
      %p191 = scmp.ne.s32.totalorder %s182, %s183
      %p192 = scmp.eq.s32.totalorder %s25, 0
      %p193 = por %p191, %p192
      %p194 = scmp.ne.s32.totalorder %s182, %s183
      %p195 = scmp.eq.s32.totalorder %s26, 1
      %p196 = por %p194, %p195
      %p198 = scmp.ne.s32.totalorder %s183, %s197
      %p199 = scmp.eq.s32.totalorder %s26, 0
      %p200 = por %p198, %p199
      %s202 = sadd.s32 %s201, 1
      %p205 = scmp.eq.s32.totalorder %s20, 1
      %p206 = scmp.ne.s32.totalorder %s201, %s203
      %p207 = scmp.eq.s32.totalorder %s20, 0
      %p208 = por %p206, %p207
      %p209 = scmp.ne.s32.totalorder %s201, %s203
      %p210 = scmp.eq.s32.totalorder %s25, 1
      %p211 = por %p209, %p210
      %p212 = scmp.ne.s32.totalorder %s203, %s204
      %p213 = scmp.eq.s32.totalorder %s25, 0
      %p214 = por %p212, %p213
      %p215 = scmp.ne.s32.totalorder %s203, %s204
      %p216 = scmp.eq.s32.totalorder %s26, 1
      %p217 = por %p215, %p216
      %p219 = scmp.ne.s32.totalorder %s204, %s218
      %p220 = scmp.eq.s32.totalorder %s26, 0
      %p221 = por %p219, %p220
      %s223 = sadd.s32 %s222, 1
      %p226 = scmp.eq.s32.totalorder %s20, 1
      %p227 = scmp.ne.s32.totalorder %s222, %s224
      %p228 = scmp.eq.s32.totalorder %s20, 0
      %p229 = por %p227, %p228
      %p230 = scmp.ne.s32.totalorder %s222, %s224
      %p231 = scmp.eq.s32.totalorder %s25, 1
      %p232 = por %p230, %p231
      %p233 = scmp.ne.s32.totalorder %s224, %s225
      %p234 = scmp.eq.s32.totalorder %s25, 0
      %p235 = por %p233, %p234
      %p236 = scmp.ne.s32.totalorder %s224, %s225
      %p237 = scmp.eq.s32.totalorder %s26, 1
      %p238 = por %p236, %p237
      %p240 = scmp.ne.s32.totalorder %s225, %s239
      %p241 = scmp.eq.s32.totalorder %s26, 0
      %p242 = por %p240, %p241
      %s244 = sadd.s32 %s243, 1
      %p247 = scmp.eq.s32.totalorder %s20, 1
      %p248 = scmp.ne.s32.totalorder %s243, %s245
      %p249 = scmp.eq.s32.totalorder %s20, 0
      %p250 = por %p248, %p249
      %p251 = scmp.ne.s32.totalorder %s243, %s245
      %p252 = scmp.eq.s32.totalorder %s25, 1
      %p253 = por %p251, %p252
      %p254 = scmp.ne.s32.totalorder %s245, %s246
      %p255 = scmp.eq.s32.totalorder %s25, 0
      %p256 = por %p254, %p255
      %p257 = scmp.ne.s32.totalorder %s245, %s246
      %p258 = scmp.eq.s32.totalorder %s26, 1
      %p259 = por %p257, %p258
      %p261 = scmp.ne.s32.totalorder %s246, %s260
      %p262 = scmp.eq.s32.totalorder %s26, 0
      %p263 = por %p261, %p262
      %s264 = ssub.s32 %s20, %s27
      %p265 = scmp.eq.s32.totalorder %s264, 0
      %s267 = sadd.s32 %s266, 1
      %s268 = scalar_select %p265, %s266, %s267
      %p271 = pneg %p265
      %p272 = scmp.eq.s32.totalorder %s20, 1
      %p273 = por %p271, %p272
      %p274 = scmp.ne.s32.totalorder %s266, %s269
      %p275 = scmp.eq.s32.totalorder %s20, 0
      %p276 = por %p274, %p275
      %p277 = scmp.ne.s32.totalorder %s266, %s269
      %p278 = scmp.eq.s32.totalorder %s25, 1
      %p279 = por %p277, %p278
      %p280 = scmp.ne.s32.totalorder %s269, %s270
      %p281 = scmp.eq.s32.totalorder %s25, 0
      %p282 = por %p280, %p281
      %p283 = scmp.ne.s32.totalorder %s269, %s270
      %p284 = scmp.eq.s32.totalorder %s26, 1
      %p285 = por %p283, %p284
      %p287 = scmp.ne.s32.totalorder %s270, %s286
      %p288 = scmp.eq.s32.totalorder %s26, 0
      %p289 = por %p287, %p288
      %p290 = scmp.le.s32.totalorder 1, %s20
      %p291 = scmp.lt.s32.totalorder %s20, 3
      %p292 = pnand %p290, %p291
      %p293 = pneg %p292
      // Predicated region
      $region9: #{dqn_forward.1} parent=5 // pred_check
        _
      $region10: #{dqn_forward.1} parent=5 // pred_check_branch
        %295 = sbr.rel (%p292) target = $region12
      $region11: #{dqn_forward.1} parent=5 // pred_region
        %s296 = ssub.s32 %s20, 1
        // Predicated region
        $region13: #{dqn_forward.1} parent=11 // pred_check
          %p297 = pneg %p67
        $region14: #{dqn_forward.1} parent=11 // pred_check_branch
          %299 = sbr.rel (%p297) target = $region16
        $region15: #{dqn_forward.1} parent=11 // pred_region
          _
        $region16: #{dqn_forward.1} parent=11 // pred_fallthru
          _
        // Predicated region
        $region17: #{dqn_forward.1} parent=11 // pred_check
          %p300 = pneg %p88
        $region18: #{dqn_forward.1} parent=11 // pred_check_branch
          %302 = sbr.rel (%p300) target = $region20
        $region19: #{dqn_forward.1} parent=11 // pred_region
          _
        $region20: #{dqn_forward.1} parent=11 // pred_fallthru
          _
        // Predicated region
        $region21: #{dqn_forward.1} parent=11 // pred_check
          %p303 = pneg %p109
        $region22: #{dqn_forward.1} parent=11 // pred_check_branch
          %305 = sbr.rel (%p303) target = $region24
        $region23: #{dqn_forward.1} parent=11 // pred_region
          _
        $region24: #{dqn_forward.1} parent=11 // pred_fallthru
          _
        // Predicated region
        $region25: #{dqn_forward.1} parent=11 // pred_check
          %p306 = pneg %p130
        $region26: #{dqn_forward.1} parent=11 // pred_check_branch
          %308 = sbr.rel (%p306) target = $region28
        $region27: #{dqn_forward.1} parent=11 // pred_region
          _
        $region28: #{dqn_forward.1} parent=11 // pred_fallthru
          _
        // Predicated region
        $region29: #{dqn_forward.1} parent=11 // pred_check
          %p309 = pneg %p151
        $region30: #{dqn_forward.1} parent=11 // pred_check_branch
          %311 = sbr.rel (%p309) target = $region32
        $region31: #{dqn_forward.1} parent=11 // pred_region
          _
        $region32: #{dqn_forward.1} parent=11 // pred_fallthru
          _
        // Predicated region
        $region33: #{dqn_forward.1} parent=11 // pred_check
          %p312 = pneg %p172
        $region34: #{dqn_forward.1} parent=11 // pred_check_branch
          %314 = sbr.rel (%p312) target = $region36
        $region35: #{dqn_forward.1} parent=11 // pred_region
          _
        $region36: #{dqn_forward.1} parent=11 // pred_fallthru
          _
        // Predicated region
        $region37: #{dqn_forward.1} parent=11 // pred_check
          %p315 = pneg %p193
        $region38: #{dqn_forward.1} parent=11 // pred_check_branch
          %317 = sbr.rel (%p315) target = $region40
        $region39: #{dqn_forward.1} parent=11 // pred_region
          _
        $region40: #{dqn_forward.1} parent=11 // pred_fallthru
          _
        // Predicated region
        $region41: #{dqn_forward.1} parent=11 // pred_check
          %p318 = pneg %p214
        $region42: #{dqn_forward.1} parent=11 // pred_check_branch
          %320 = sbr.rel (%p318) target = $region44
        $region43: #{dqn_forward.1} parent=11 // pred_region
          _
        $region44: #{dqn_forward.1} parent=11 // pred_fallthru
          _
        // Predicated region
        $region45: #{dqn_forward.1} parent=11 // pred_check
          %p321 = pneg %p235
        $region46: #{dqn_forward.1} parent=11 // pred_check_branch
          %323 = sbr.rel (%p321) target = $region48
        $region47: #{dqn_forward.1} parent=11 // pred_region
          _
        $region48: #{dqn_forward.1} parent=11 // pred_fallthru
          _
        // Predicated region
        $region49: #{dqn_forward.1} parent=11 // pred_check
          %p324 = pneg %p256
        $region50: #{dqn_forward.1} parent=11 // pred_check_branch
          %326 = sbr.rel (%p324) target = $region52
        $region51: #{dqn_forward.1} parent=11 // pred_region
          _
        $region52: #{dqn_forward.1} parent=11 // pred_fallthru
          _
      $region12: #{dqn_forward.1} parent=5 // pred_fallthru
        _
      %p327 = scmp.lt.s32.totalorder %s20, 2
      // Predicated region
      $region53: #{dqn_forward.1} parent=5 // pred_check
        %p328 = pneg %p327
      $region54: #{dqn_forward.1} parent=5 // pred_check_branch
        %330 = sbr.rel (%p328) target = $region56
      $region55: #{dqn_forward.1} parent=5 // pred_region
        // Predicated region
        $region57: #{dqn_forward.1} parent=55 // pred_check
          %p331 = pneg %p40
        $region58: #{dqn_forward.1} parent=55 // pred_check_branch
          %333 = sbr.rel (%p331) target = $region60
        $region59: #{dqn_forward.1} parent=55 // pred_region
          %p334 = scmp.lt.s32.totalorder %s20, 1
          %s335 = scalar_select %p334, %s20, 1
          %s336 = smul.addr %s335, 56
          %s337 = smul.addr %s336, 4
          %s338 = scalar_lea.vmem %s0, %s337
        $region60: #{dqn_forward.1} parent=55 // pred_fallthru
          _
      $region56: #{dqn_forward.1} parent=5 // pred_fallthru
        _
      %p339 = scmp.le.s32.totalorder 1, %s20
      %p340 = scmp.lt.s32.totalorder %s20, 3
      %p341 = pnand %p339, %p340
      %p342 = pneg %p341
      // Predicated region
      $region61: #{dqn_forward.1} parent=5 // pred_check
        _
      $region62: #{dqn_forward.1} parent=5 // pred_check_branch
        %344 = sbr.rel (%p341) target = $region64
      $region63: #{dqn_forward.1} parent=5 // pred_region
        %s345 = ssub.s32 %s20, 1
        %p346 = scmp.lt.s32.totalorder %s25, 1
        %s347 = scalar_select %p346, %s25, 1
        %s348 = smul.addr %s347, 56
        %s349 = smul.addr %s348, 4
        %s350 = scalar_lea.vmem %s0, %s349
        %p351 = pneg %p46
        %p352 = pneg %p43
        %p353 = pneg %p67
        %p354 = pneg %p64
        %p355 = pneg %p88
        %p356 = pneg %p85
        %p357 = pneg %p109
        %p358 = pneg %p106
        %p359 = pneg %p130
        %p360 = pneg %p127
        %p361 = pneg %p151
        %p362 = pneg %p148
        %p363 = pneg %p172
        %p364 = pneg %p169
        %p365 = pneg %p193
        %p366 = pneg %p190
        %p367 = pneg %p214
        %p368 = pneg %p211
        %p369 = pneg %p235
        %p370 = pneg %p232
        %p371 = pneg %p256
        %p372 = pneg %p253
        %p373 = pneg %p282
        %p374 = pneg %p279
        %s375 = sand.u32 %s269, 1
        %s376 = scalar_lea.sflag [#allocation6], %s375
        %s377 = sand.u32 %s269, 1
        %s378 = scalar_lea.vmem [#allocation5], %s377
        %p379 = scmp.lt.s32.totalorder %s25, 1
        %s380 = scalar_select %p379, %s25, 1
        %s381 = smul.addr %s380, 56
        %s382 = smul.addr %s381, 4
        %s383 = scalar_lea.vmem %s0, %s382
        %v385 = vld [vmem:[%s383] sm:$0xf]
        %v386 = vld [vmem:[%s383 + $0x4] sm:$0xf]
        %v387 = vld [vmem:[%s383 + $0x8] sm:$0xf]
        %v388 = vld [vmem:[%s383 + $0xc] sm:$0xf]
        %v389 = vld [vmem:[%s383 + $0x10] sm:$0xf]
        %v390 = vld [vmem:[%s383 + $0x14] sm:$0xf]
        %v391 = vld [vmem:[%s383 + $0x18] sm:$0xf]
        %v392 = vld [vmem:[%s383 + $0x1c] sm:$0xf]
        %v393 = vld [vmem:[%s383 + $0x20] sm:$0xf]
        %v394 = vld [vmem:[%s383 + $0x24] sm:$0xf]
        %v395 = vld [vmem:[%s383 + $0x28] sm:$0xf]
        %v396 = vld [vmem:[%s383 + $0x2c] sm:$0xf]
        %v397 = vld [vmem:[%s383 + $0x30] sm:$0xf]
        %v398 = vld [vmem:[%s383 + $0x34] sm:$0xf]
        %v399 = vld [vmem:[%s383 + $0x38] sm:$0xf]
        %v400 = vld [vmem:[%s383 + $0x3c] sm:$0xf]
        %v401 = vld [vmem:[%s383 + $0x40] sm:$0xf]
        %v402 = vld [vmem:[%s383 + $0x44] sm:$0xf]
        %v403 = vld [vmem:[%s383 + $0x48] sm:$0xf]
        %v404 = vld [vmem:[%s383 + $0x4c] sm:$0xf]
        %v405 = vld [vmem:[%s383 + $0x50] sm:$0xf]
        %v406 = vld [vmem:[%s383 + $0x54] sm:$0xf]
        %v407 = vld [vmem:[%s383 + $0x58] sm:$0xf]
        %v408 = vld [vmem:[%s383 + $0x5c] sm:$0xf]
        %v409 = vld [vmem:[%s383 + $0x60] sm:$0xf]
        %v410 = vld [vmem:[%s383 + $0x64] sm:$0xf]
        %v411 = vld [vmem:[%s383 + $0x68] sm:$0xf]
        %v412 = vld [vmem:[%s383 + $0x6c] sm:$0xf]
        %v413 = vld [vmem:[%s383 + $0x70] sm:$0xf]
        %v414 = vld [vmem:[%s383 + $0x74] sm:$0xf]
        %v415 = vld [vmem:[%s383 + $0x78] sm:$0xf]
        %v416 = vld [vmem:[%s383 + $0x7c] sm:$0xf]
        %v417 = vld [vmem:[%s383 + $0x80] sm:$0xf]
        %v418 = vld [vmem:[%s383 + $0x84] sm:$0xf]
        %v419 = vld [vmem:[%s383 + $0x88] sm:$0xf]
        %v420 = vld [vmem:[%s383 + $0x8c] sm:$0xf]
        %v421 = vld [vmem:[%s383 + $0x90] sm:$0xf]
        %v422 = vld [vmem:[%s383 + $0x94] sm:$0xf]
        %v423 = vld [vmem:[%s383 + $0x98] sm:$0xf]
        %v424 = vld [vmem:[%s383 + $0x9c] sm:$0xf]
        %v425 = vld [vmem:[%s383 + $0xa0] sm:$0xf]
        %v426 = vld [vmem:[%s383 + $0xa4] sm:$0xf]
        %v427 = vld [vmem:[%s383 + $0xa8] sm:$0xf]
        %v428 = vld [vmem:[%s383 + $0xac] sm:$0xf]
        %v429 = vld [vmem:[%s383 + $0xb0] sm:$0xf]
        %v430 = vld [vmem:[%s383 + $0xb4] sm:$0xf]
        %v431 = vld [vmem:[%s383 + $0xb8] sm:$0xf]
        %v432 = vld [vmem:[%s383 + $0xbc] sm:$0xf]
        %v433 = vld [vmem:[%s383 + $0xc0] sm:$0xf]
        %v434 = vld [vmem:[%s383 + $0xc4] sm:$0xf]
        %v435 = vld [vmem:[%s383 + $0xc8] sm:$0xf]
        %v436 = vld [vmem:[%s383 + $0xcc] sm:$0xf]
        %v437 = vld [vmem:[%s383 + $0xd0] sm:$0x3]
        %v438 = vld [vmem:[%s383 + $0xd0] sm:$0x7]
        %v439 = vld [vmem:[%s383 + $0x8] sm:$0xc]
        %v440 = vld [vmem:[%s383 + $0xd0] sm:$0xf]
        %v441 = vld [vmem:[%s383 + $0xd4] sm:$0xf]
        %v442 = vld [vmem:[%s383 + $0xd8] sm:$0xf]
        %v443 = vld [vmem:[%s383 + $0xdc] sm:$0x1]
        %v444 = vld [vmem:[%s383 + $0x8] sm:$0x8]
        %v498 = vunpack.c.l.b16 %v385
        %v499 = vunpack.c.l.b16 %v386
        %v500 = vunpack.c.l.b16 %v387
        %v501 = vunpack.c.l.b16 %v388
        %v502 = vunpack.c.l.b16 %v389
        %v503 = vunpack.c.l.b16 %v390
        %v504 = vunpack.c.l.b16 %v391
        %v505 = vunpack.c.l.b16 %v392
        %v506 = vunpack.c.l.b16 %v393
        %v507 = vunpack.c.l.b16 %v394
        %v508 = vunpack.c.l.b16 %v395
        %v509 = vunpack.c.l.b16 %v396
        %v510 = vunpack.c.l.b16 %v397
        %v511 = vunpack.c.l.b16 %v398
        %v512 = vunpack.c.l.b16 %v399
        %v513 = vunpack.c.l.b16 %v400
        %v514 = vunpack.c.l.b16 %v401
        %v515 = vunpack.c.l.b16 %v402
        %v516 = vunpack.c.l.b16 %v403
        %v517 = vunpack.c.l.b16 %v404
        %v518 = vunpack.c.l.b16 %v405
        %v519 = vunpack.c.l.b16 %v406
        %v520 = vunpack.c.l.b16 %v407
        %v521 = vunpack.c.l.b16 %v408
        %v522 = vunpack.c.l.b16 %v409
        %v523 = vunpack.c.l.b16 %v410
        %v524 = vunpack.c.l.b16 %v411
        %v525 = vunpack.c.l.b16 %v412
        %v526 = vunpack.c.l.b16 %v413
        %v527 = vunpack.c.l.b16 %v414
        %v528 = vunpack.c.l.b16 %v415
        %v529 = vunpack.c.l.b16 %v416
        %v530 = vunpack.c.l.b16 %v417
        %v531 = vunpack.c.l.b16 %v418
        %v532 = vunpack.c.l.b16 %v419
        %v533 = vunpack.c.l.b16 %v420
        %v534 = vunpack.c.l.b16 %v421
        %v535 = vunpack.c.l.b16 %v422
        %v536 = vunpack.c.l.b16 %v423
        %v537 = vunpack.c.l.b16 %v424
        %v538 = vunpack.c.l.b16 %v425
        %v539 = vunpack.c.l.b16 %v426
        %v540 = vunpack.c.l.b16 %v427
        %v541 = vunpack.c.l.b16 %v428
        %v542 = vunpack.c.l.b16 %v429
        %v543 = vunpack.c.l.b16 %v430
        %v544 = vunpack.c.l.b16 %v431
        %v545 = vunpack.c.l.b16 %v432
        %v546 = vunpack.c.l.b16 %v433
        %v547 = vunpack.c.l.b16 %v434
        %v548 = vunpack.c.l.b16 %v435
        %v549 = vunpack.c.l.b16 %v436
        %v550 = vunpack.c.l.b16 %v437
        %v551 = vpack.c.b16 %v499, %v498
        %v552 = vpack.c.b16 %v501, %v500
        %v553 = vpack.c.b16 %v503, %v502
        %v554 = vpack.c.b16 %v505, %v504
        %v555 = vpack.c.b16 %v507, %v506
        %v556 = vpack.c.b16 %v509, %v508
        %v557 = vpack.c.b16 %v511, %v510
        %v558 = vpack.c.b16 %v513, %v512
        %v559 = vpack.c.b16 %v515, %v514
        %v560 = vpack.c.b16 %v517, %v516
        %v561 = vpack.c.b16 %v519, %v518
        %v562 = vpack.c.b16 %v521, %v520
        %v563 = vpack.c.b16 %v523, %v522
        %v564 = vpack.c.b16 %v525, %v524
        %v565 = vpack.c.b16 %v527, %v526
        %v566 = vpack.c.b16 %v529, %v528
        %v567 = vpack.c.b16 %v531, %v530
        %v568 = vpack.c.b16 %v533, %v532
        %v569 = vpack.c.b16 %v535, %v534
        %v570 = vpack.c.b16 %v537, %v536
        %v571 = vpack.c.b16 %v539, %v538
        %v572 = vpack.c.b16 %v541, %v540
        %v573 = vpack.c.b16 %v543, %v542
        %v574 = vpack.c.b16 %v545, %v544
        %v575 = vpack.c.b16 %v547, %v546
        %v576 = vpack.c.b16 %v549, %v548
        %v577 = vpack.c.b16 %v550, %v550
        %v579 = vunpack.c.l.b16 %v438
        %v580 = vpack.c.b16 %v579, %v579
        %vm581 = vsmask.f32 7424
        %v583 = vshrl.u32 %v551, 16
        %v585 = vshll.u32 %v551, 16
        %v587 = vrot.slane %v585, 1
        %v588 = vor.u32 %v583, %v587
        %v590 = vshll.u32 %v552, 16
        %v592 = vrot.slane %v590, 1
        %v593 = vsel %vm581, %v588, %v592
        %v594 = vshrl.u32 %v552, 16
        %v596 = vor.u32 %v594, %v592
        %v598 = vshll.u32 %v553, 16
        %v600 = vrot.slane %v598, 1
        %v601 = vsel %vm581, %v596, %v600
        %v602 = vshrl.u32 %v553, 16
        %v604 = vor.u32 %v602, %v600
        %v606 = vshll.u32 %v554, 16
        %v608 = vrot.slane %v606, 1
        %v609 = vsel %vm581, %v604, %v608
        %v610 = vshrl.u32 %v554, 16
        %v612 = vor.u32 %v610, %v608
        %v614 = vshll.u32 %v555, 16
        %v616 = vrot.slane %v614, 1
        %v617 = vsel %vm581, %v612, %v616
        %v618 = vshrl.u32 %v555, 16
        %v620 = vor.u32 %v618, %v616
        %v622 = vshll.u32 %v556, 16
        %v624 = vrot.slane %v622, 1
        %v625 = vsel %vm581, %v620, %v624
        %v626 = vshrl.u32 %v556, 16
        %v628 = vor.u32 %v626, %v624
        %v630 = vshll.u32 %v557, 16
        %v632 = vrot.slane %v630, 1
        %v633 = vsel %vm581, %v628, %v632
        %v634 = vshrl.u32 %v557, 16
        %v636 = vor.u32 %v634, %v632
        %v638 = vshll.u32 %v558, 16
        %v640 = vrot.slane %v638, 1
        %v641 = vsel %vm581, %v636, %v640
        %v642 = vshrl.u32 %v558, 16
        %v644 = vor.u32 %v642, %v640
        %v646 = vshll.u32 %v559, 16
        %v648 = vrot.slane %v646, 1
        %v649 = vsel %vm581, %v644, %v648
        %v650 = vshrl.u32 %v559, 16
        %v652 = vor.u32 %v650, %v648
        %v654 = vshll.u32 %v560, 16
        %v656 = vrot.slane %v654, 1
        %v657 = vsel %vm581, %v652, %v656
        %v658 = vshrl.u32 %v560, 16
        %v660 = vor.u32 %v658, %v656
        %v662 = vshll.u32 %v561, 16
        %v664 = vrot.slane %v662, 1
        %v665 = vsel %vm581, %v660, %v664
        %v666 = vshrl.u32 %v561, 16
        %v668 = vor.u32 %v666, %v664
        %v670 = vshll.u32 %v562, 16
        %v672 = vrot.slane %v670, 1
        %v673 = vsel %vm581, %v668, %v672
        %v674 = vshrl.u32 %v562, 16
        %v676 = vor.u32 %v674, %v672
        %v678 = vshll.u32 %v563, 16
        %v680 = vrot.slane %v678, 1
        %v681 = vsel %vm581, %v676, %v680
        %v682 = vshrl.u32 %v563, 16
        %v684 = vor.u32 %v682, %v680
        %v686 = vshll.u32 %v564, 16
        %v688 = vrot.slane %v686, 1
        %v689 = vsel %vm581, %v684, %v688
        %v690 = vshrl.u32 %v564, 16
        %v692 = vor.u32 %v690, %v688
        %v694 = vshll.u32 %v565, 16
        %v696 = vrot.slane %v694, 1
        %v697 = vsel %vm581, %v692, %v696
        %v698 = vshrl.u32 %v565, 16
        %v700 = vor.u32 %v698, %v696
        %v702 = vshll.u32 %v566, 16
        %v704 = vrot.slane %v702, 1
        %v705 = vsel %vm581, %v700, %v704
        %v706 = vshrl.u32 %v566, 16
        %v708 = vor.u32 %v706, %v704
        %v710 = vshll.u32 %v567, 16
        %v712 = vrot.slane %v710, 1
        %v713 = vsel %vm581, %v708, %v712
        %v714 = vshrl.u32 %v567, 16
        %v716 = vor.u32 %v714, %v712
        %v718 = vshll.u32 %v568, 16
        %v720 = vrot.slane %v718, 1
        %v721 = vsel %vm581, %v716, %v720
        %v722 = vshrl.u32 %v568, 16
        %v724 = vor.u32 %v722, %v720
        %v726 = vshll.u32 %v569, 16
        %v728 = vrot.slane %v726, 1
        %v729 = vsel %vm581, %v724, %v728
        %v730 = vshrl.u32 %v569, 16
        %v732 = vor.u32 %v730, %v728
        %v734 = vshll.u32 %v570, 16
        %v736 = vrot.slane %v734, 1
        %v737 = vsel %vm581, %v732, %v736
        %v738 = vshrl.u32 %v570, 16
        %v740 = vor.u32 %v738, %v736
        %v742 = vshll.u32 %v571, 16
        %v744 = vrot.slane %v742, 1
        %v745 = vsel %vm581, %v740, %v744
        %v746 = vshrl.u32 %v571, 16
        %v748 = vor.u32 %v746, %v744
        %v750 = vshll.u32 %v572, 16
        %v752 = vrot.slane %v750, 1
        %v753 = vsel %vm581, %v748, %v752
        %v754 = vshrl.u32 %v572, 16
        %v756 = vor.u32 %v754, %v752
        %v758 = vshll.u32 %v573, 16
        %v760 = vrot.slane %v758, 1
        %v761 = vsel %vm581, %v756, %v760
        %v762 = vshrl.u32 %v573, 16
        %v764 = vor.u32 %v762, %v760
        %v766 = vshll.u32 %v574, 16
        %v768 = vrot.slane %v766, 1
        %v769 = vsel %vm581, %v764, %v768
        %v770 = vshrl.u32 %v574, 16
        %v772 = vor.u32 %v770, %v768
        %v774 = vshll.u32 %v575, 16
        %v776 = vrot.slane %v774, 1
        %v777 = vsel %vm581, %v772, %v776
        %v778 = vshrl.u32 %v575, 16
        %v780 = vor.u32 %v778, %v776
        %v782 = vshll.u32 %v576, 16
        %v784 = vrot.slane %v782, 1
        %v785 = vsel %vm581, %v780, %v784
        %v786 = vshrl.u32 %v576, 16
        %v788 = vor.u32 %v786, %v784
        %v790 = vshll.u32 %v580, 16
        %v792 = vrot.slane %v790, 1
        %v793 = vsel %vm581, %v788, %v792
        %v794 = vshrl.u32 %v580, 16
        %v796 = vor.u32 %v794, %v792
        %797 = vrot.lane.b32.xlu0 %v593, 64
        %v798 = vpop.permute.xlu0 %797
        %799 = vrot.lane.b32.xlu0 %v601, 64
        %v800 = vpop.permute.xlu0 %799
        %801 = vrot.lane.b32.xlu0 %v609, 64
        %v802 = vpop.permute.xlu0 %801
        %803 = vrot.lane.b32.xlu0 %v617, 64
        %v804 = vpop.permute.xlu0 %803
        %805 = vrot.lane.b32.xlu0 %v625, 64
        %v806 = vpop.permute.xlu0 %805
        %807 = vrot.lane.b32.xlu0 %v633, 64
        %v808 = vpop.permute.xlu0 %807
        %809 = vrot.lane.b32.xlu0 %v641, 64
        %v810 = vpop.permute.xlu0 %809
        %811 = vrot.lane.b32.xlu0 %v649, 64
        %v812 = vpop.permute.xlu0 %811
        %813 = vrot.lane.b32.xlu0 %v657, 64
        %v814 = vpop.permute.xlu0 %813
        %815 = vrot.lane.b32.xlu0 %v665, 64
        %v816 = vpop.permute.xlu0 %815
        %817 = vrot.lane.b32.xlu0 %v673, 64
        %v818 = vpop.permute.xlu0 %817
        %819 = vrot.lane.b32.xlu0 %v681, 64
        %v820 = vpop.permute.xlu0 %819
        %821 = vrot.lane.b32.xlu0 %v689, 64
        %v822 = vpop.permute.xlu0 %821
        %823 = vrot.lane.b32.xlu0 %v697, 64
        %v824 = vpop.permute.xlu0 %823
        %825 = vrot.lane.b32.xlu0 %v705, 64
        %v826 = vpop.permute.xlu0 %825
        %827 = vrot.lane.b32.xlu0 %v713, 64
        %v828 = vpop.permute.xlu0 %827
        %829 = vrot.lane.b32.xlu0 %v721, 64
        %v830 = vpop.permute.xlu0 %829
        %831 = vrot.lane.b32.xlu0 %v729, 64
        %v832 = vpop.permute.xlu0 %831
        %833 = vrot.lane.b32.xlu0 %v737, 64
        %v834 = vpop.permute.xlu0 %833
        %835 = vrot.lane.b32.xlu0 %v745, 64
        %v836 = vpop.permute.xlu0 %835
        %837 = vrot.lane.b32.xlu0 %v753, 64
        %v838 = vpop.permute.xlu0 %837
        %839 = vrot.lane.b32.xlu0 %v761, 64
        %v840 = vpop.permute.xlu0 %839
        %841 = vrot.lane.b32.xlu0 %v769, 64
        %v842 = vpop.permute.xlu0 %841
        %843 = vrot.lane.b32.xlu0 %v777, 64
        %v844 = vpop.permute.xlu0 %843
        %845 = vrot.lane.b32.xlu0 %v785, 64
        %v846 = vpop.permute.xlu0 %845
        %847 = vrot.lane.b32.xlu0 %v793, 64
        %v848 = vpop.permute.xlu0 %847
        %849 = vrot.lane.b32.xlu0 %v796, 64
        %v850 = vpop.permute.xlu0 %849
        %v856 = vunpack.c.l.b16 %v439
        %v857 = vunpack.c.l.b16 %v440
        %v858 = vunpack.c.l.b16 %v441
        %v859 = vunpack.c.l.b16 %v442
        %v860 = vunpack.c.l.b16 %v443
        %v861 = vpack.c.b16 %v501, %v856
        %v862 = vpack.c.b16 %v858, %v857
        %v863 = vpack.c.b16 %v860, %v859
        %vm864 = vsmask.f32 5376
        %v866 = vshrl.u32 %v861, 16
        %v868 = vrot.slane %v866, 2
        %v869 = vshll.u32 %v861, 16
        %v871 = vrot.slane %v869, 3
        %v872 = vor.u32 %v868, %v871
        %v873 = vrot.slane %v602, 2
        %v874 = vrot.slane %v598, 3
        %v875 = vor.u32 %v873, %v874
        %v876 = vsel %vm864, %v872, %v875
        %v877 = vrot.slane %v610, 2
        %v878 = vrot.slane %v606, 3
        %v879 = vor.u32 %v877, %v878
        %v880 = vsel %vm864, %v875, %v879
        %v881 = vrot.slane %v618, 2
        %v882 = vrot.slane %v614, 3
        %v883 = vor.u32 %v881, %v882
        %v884 = vsel %vm864, %v879, %v883
        %v885 = vrot.slane %v626, 2
        %v886 = vrot.slane %v622, 3
        %v887 = vor.u32 %v885, %v886
        %v888 = vsel %vm864, %v883, %v887
        %v889 = vrot.slane %v634, 2
        %v890 = vrot.slane %v630, 3
        %v891 = vor.u32 %v889, %v890
        %v892 = vsel %vm864, %v887, %v891
        %v893 = vrot.slane %v642, 2
        %v894 = vrot.slane %v638, 3
        %v895 = vor.u32 %v893, %v894
        %v896 = vsel %vm864, %v891, %v895
        %v897 = vrot.slane %v650, 2
        %v898 = vrot.slane %v646, 3
        %v899 = vor.u32 %v897, %v898
        %v900 = vsel %vm864, %v895, %v899
        %v901 = vrot.slane %v658, 2
        %v902 = vrot.slane %v654, 3
        %v903 = vor.u32 %v901, %v902
        %v904 = vsel %vm864, %v899, %v903
        %v905 = vrot.slane %v666, 2
        %v906 = vrot.slane %v662, 3
        %v907 = vor.u32 %v905, %v906
        %v908 = vsel %vm864, %v903, %v907
        %v909 = vrot.slane %v674, 2
        %v910 = vrot.slane %v670, 3
        %v911 = vor.u32 %v909, %v910
        %v912 = vsel %vm864, %v907, %v911
        %v913 = vrot.slane %v682, 2
        %v914 = vrot.slane %v678, 3
        %v915 = vor.u32 %v913, %v914
        %v916 = vsel %vm864, %v911, %v915
        %v917 = vrot.slane %v690, 2
        %v918 = vrot.slane %v686, 3
        %v919 = vor.u32 %v917, %v918
        %v920 = vsel %vm864, %v915, %v919
        %v921 = vrot.slane %v698, 2
        %v922 = vrot.slane %v694, 3
        %v923 = vor.u32 %v921, %v922
        %v924 = vsel %vm864, %v919, %v923
        %v925 = vrot.slane %v706, 2
        %v926 = vrot.slane %v702, 3
        %v927 = vor.u32 %v925, %v926
        %v928 = vsel %vm864, %v923, %v927
        %v929 = vrot.slane %v714, 2
        %v930 = vrot.slane %v710, 3
        %v931 = vor.u32 %v929, %v930
        %v932 = vsel %vm864, %v927, %v931
        %v933 = vrot.slane %v722, 2
        %v934 = vrot.slane %v718, 3
        %v935 = vor.u32 %v933, %v934
        %v936 = vsel %vm864, %v931, %v935
        %v937 = vrot.slane %v730, 2
        %v938 = vrot.slane %v726, 3
        %v939 = vor.u32 %v937, %v938
        %v940 = vsel %vm864, %v935, %v939
        %v941 = vrot.slane %v738, 2
        %v942 = vrot.slane %v734, 3
        %v943 = vor.u32 %v941, %v942
        %v944 = vsel %vm864, %v939, %v943
        %v945 = vrot.slane %v746, 2
        %v946 = vrot.slane %v742, 3
        %v947 = vor.u32 %v945, %v946
        %v948 = vsel %vm864, %v943, %v947
        %v949 = vrot.slane %v754, 2
        %v950 = vrot.slane %v750, 3
        %v951 = vor.u32 %v949, %v950
        %v952 = vsel %vm864, %v947, %v951
        %v953 = vrot.slane %v762, 2
        %v954 = vrot.slane %v758, 3
        %v955 = vor.u32 %v953, %v954
        %v956 = vsel %vm864, %v951, %v955
        %v957 = vrot.slane %v770, 2
        %v958 = vrot.slane %v766, 3
        %v959 = vor.u32 %v957, %v958
        %v960 = vsel %vm864, %v955, %v959
        %v961 = vrot.slane %v778, 2
        %v962 = vrot.slane %v774, 3
        %v963 = vor.u32 %v961, %v962
        %v964 = vsel %vm864, %v959, %v963
        %v965 = vrot.slane %v786, 2
        %v966 = vrot.slane %v782, 3
        %v967 = vor.u32 %v965, %v966
        %v968 = vsel %vm864, %v963, %v967
        %v970 = vshrl.u32 %v862, 16
        %v972 = vrot.slane %v970, 2
        %v973 = vshll.u32 %v862, 16
        %v975 = vrot.slane %v973, 3
        %v976 = vor.u32 %v972, %v975
        %v977 = vsel %vm864, %v967, %v976
        %v979 = vshrl.u32 %v863, 16
        %v981 = vrot.slane %v979, 2
        %v982 = vshll.u32 %v863, 16
        %v984 = vrot.slane %v982, 3
        %v985 = vor.u32 %v981, %v984
        %v986 = vsel %vm864, %v976, %v985
        %v988 = vunpack.c.l.b16 %v444
        %v989 = vpack.c.b16 %v501, %v988
        %vm990 = vcmask 1044480
        %v991 = vrot.slane %v989, 3
        %v992 = vrot.slane %v553, 3
        %v993 = vsel %vm990, %v991, %v992
        %v994 = vrot.slane %v554, 3
        %v995 = vsel %vm990, %v992, %v994
        %v996 = vrot.slane %v555, 3
        %v997 = vsel %vm990, %v994, %v996
        %v998 = vrot.slane %v556, 3
        %v999 = vsel %vm990, %v996, %v998
        %v1000 = vrot.slane %v557, 3
        %v1001 = vsel %vm990, %v998, %v1000
        %v1002 = vrot.slane %v558, 3
        %v1003 = vsel %vm990, %v1000, %v1002
        %v1004 = vrot.slane %v559, 3
        %v1005 = vsel %vm990, %v1002, %v1004
        %v1006 = vrot.slane %v560, 3
        %v1007 = vsel %vm990, %v1004, %v1006
        %v1008 = vrot.slane %v561, 3
        %v1009 = vsel %vm990, %v1006, %v1008
        %v1010 = vrot.slane %v562, 3
        %v1011 = vsel %vm990, %v1008, %v1010
        %v1012 = vrot.slane %v563, 3
        %v1013 = vsel %vm990, %v1010, %v1012
        %v1014 = vrot.slane %v564, 3
        %v1015 = vsel %vm990, %v1012, %v1014
        %v1016 = vrot.slane %v565, 3
        %v1017 = vsel %vm990, %v1014, %v1016
        %v1018 = vrot.slane %v566, 3
        %v1019 = vsel %vm990, %v1016, %v1018
        %v1020 = vrot.slane %v567, 3
        %v1021 = vsel %vm990, %v1018, %v1020
        %v1022 = vrot.slane %v568, 3
        %v1023 = vsel %vm990, %v1020, %v1022
        %v1024 = vrot.slane %v569, 3
        %v1025 = vsel %vm990, %v1022, %v1024
        %v1026 = vrot.slane %v570, 3
        %v1027 = vsel %vm990, %v1024, %v1026
        %v1028 = vrot.slane %v571, 3
        %v1029 = vsel %vm990, %v1026, %v1028
        %v1030 = vrot.slane %v572, 3
        %v1031 = vsel %vm990, %v1028, %v1030
        %v1032 = vrot.slane %v573, 3
        %v1033 = vsel %vm990, %v1030, %v1032
        %v1034 = vrot.slane %v574, 3
        %v1035 = vsel %vm990, %v1032, %v1034
        %v1036 = vrot.slane %v575, 3
        %v1037 = vsel %vm990, %v1034, %v1036
        %v1038 = vrot.slane %v576, 3
        %v1039 = vsel %vm990, %v1036, %v1038
        %v1040 = vrot.slane %v862, 3
        %v1041 = vsel %vm990, %v1038, %v1040
        %v1042 = vrot.slane %v863, 3
        %v1043 = vsel %vm990, %v1040, %v1042
        %1044 = vrot.lane.b32.xlu0 %v993, 64
        %v1045 = vpop.permute.xlu0 %1044
        %1046 = vrot.lane.b32.xlu0 %v995, 64
        %v1047 = vpop.permute.xlu0 %1046
        %1048 = vrot.lane.b32.xlu0 %v997, 64
        %v1049 = vpop.permute.xlu0 %1048
        %1050 = vrot.lane.b32.xlu0 %v999, 64
        %v1051 = vpop.permute.xlu0 %1050
        %1052 = vrot.lane.b32.xlu0 %v1001, 64
        %v1053 = vpop.permute.xlu0 %1052
        %1054 = vrot.lane.b32.xlu0 %v1003, 64
        %v1055 = vpop.permute.xlu0 %1054
        %1056 = vrot.lane.b32.xlu0 %v1005, 64
        %v1057 = vpop.permute.xlu0 %1056
        %1058 = vrot.lane.b32.xlu0 %v1007, 64
        %v1059 = vpop.permute.xlu0 %1058
        %1060 = vrot.lane.b32.xlu0 %v1009, 64
        %v1061 = vpop.permute.xlu0 %1060
        %1062 = vrot.lane.b32.xlu0 %v1011, 64
        %v1063 = vpop.permute.xlu0 %1062
        %1064 = vrot.lane.b32.xlu0 %v1013, 64
        %v1065 = vpop.permute.xlu0 %1064
        %1066 = vrot.lane.b32.xlu0 %v1015, 64
        %v1067 = vpop.permute.xlu0 %1066
        %1068 = vrot.lane.b32.xlu0 %v1017, 64
        %v1069 = vpop.permute.xlu0 %1068
        %1070 = vrot.lane.b32.xlu0 %v1019, 64
        %v1071 = vpop.permute.xlu0 %1070
        %1072 = vrot.lane.b32.xlu0 %v1021, 64
        %v1073 = vpop.permute.xlu0 %1072
        %1074 = vrot.lane.b32.xlu0 %v1023, 64
        %v1075 = vpop.permute.xlu0 %1074
        %1076 = vrot.lane.b32.xlu0 %v1025, 64
        %v1077 = vpop.permute.xlu0 %1076
        %1078 = vrot.lane.b32.xlu0 %v1027, 64
        %v1079 = vpop.permute.xlu0 %1078
        %1080 = vrot.lane.b32.xlu0 %v1029, 64
        %v1081 = vpop.permute.xlu0 %1080
        %1082 = vrot.lane.b32.xlu0 %v1031, 64
        %v1083 = vpop.permute.xlu0 %1082
        %1084 = vrot.lane.b32.xlu0 %v1033, 64
        %v1085 = vpop.permute.xlu0 %1084
        %1086 = vrot.lane.b32.xlu0 %v1035, 64
        %v1087 = vpop.permute.xlu0 %1086
        %1088 = vrot.lane.b32.xlu0 %v1037, 64
        %v1089 = vpop.permute.xlu0 %1088
        %1090 = vrot.lane.b32.xlu0 %v1039, 64
        %v1091 = vpop.permute.xlu0 %1090
        %1092 = vrot.lane.b32.xlu0 %v1041, 64
        %v1093 = vpop.permute.xlu0 %1092
        %1094 = vrot.lane.b32.xlu0 %v1043, 64
        %v1095 = vpop.permute.xlu0 %1094
        %1096 = vrot.lane.b32.xlu0 %v1042, 64
        %v1097 = vpop.permute.xlu0 %1096
        %vm1098 = vcmask 523264
        %v1100 = vsel %vm1098, %v551, %v798
        %v1103 = vsel %vm1098, %v552, %v800
        %v1106 = vsel %vm1098, %v553, %v802
        %v1109 = vsel %vm1098, %v554, %v804
        %v1112 = vsel %vm1098, %v555, %v806
        %v1115 = vsel %vm1098, %v556, %v808
        %v1118 = vsel %vm1098, %v557, %v810
        %v1121 = vsel %vm1098, %v558, %v812
        %v1124 = vsel %vm1098, %v559, %v814
        %v1127 = vsel %vm1098, %v560, %v816
        %v1130 = vsel %vm1098, %v561, %v818
        %v1133 = vsel %vm1098, %v562, %v820
        %v1136 = vsel %vm1098, %v563, %v822
        %v1139 = vsel %vm1098, %v564, %v824
        %v1142 = vsel %vm1098, %v565, %v826
        %v1145 = vsel %vm1098, %v566, %v828
        %v1148 = vsel %vm1098, %v567, %v830
        %v1151 = vsel %vm1098, %v568, %v832
        %v1154 = vsel %vm1098, %v569, %v834
        %v1157 = vsel %vm1098, %v570, %v836
        %v1160 = vsel %vm1098, %v571, %v838
        %v1163 = vsel %vm1098, %v572, %v840
        %v1166 = vsel %vm1098, %v573, %v842
        %v1169 = vsel %vm1098, %v574, %v844
        %v1172 = vsel %vm1098, %v575, %v846
        %v1175 = vsel %vm1098, %v576, %v848
        %v1179 = vsel %vm1098, %v577, %v850
        %v1183 = vsel %vm1098, %v876, %v1045
        %v1187 = vsel %vm1098, %v880, %v1047
        %v1191 = vsel %vm1098, %v884, %v1049
        %v1195 = vsel %vm1098, %v888, %v1051
        %v1199 = vsel %vm1098, %v892, %v1053
        %v1203 = vsel %vm1098, %v896, %v1055
        %v1207 = vsel %vm1098, %v900, %v1057
        %v1211 = vsel %vm1098, %v904, %v1059
        %v1215 = vsel %vm1098, %v908, %v1061
        %v1219 = vsel %vm1098, %v912, %v1063
        %v1223 = vsel %vm1098, %v916, %v1065
        %v1227 = vsel %vm1098, %v920, %v1067
        %v1231 = vsel %vm1098, %v924, %v1069
        %v1235 = vsel %vm1098, %v928, %v1071
        %v1239 = vsel %vm1098, %v932, %v1073
        %v1243 = vsel %vm1098, %v936, %v1075
        %v1247 = vsel %vm1098, %v940, %v1077
        %v1251 = vsel %vm1098, %v944, %v1079
        %v1255 = vsel %vm1098, %v948, %v1081
        %v1259 = vsel %vm1098, %v952, %v1083
        %v1263 = vsel %vm1098, %v956, %v1085
        %v1267 = vsel %vm1098, %v960, %v1087
        %v1271 = vsel %vm1098, %v964, %v1089
        %v1275 = vsel %vm1098, %v968, %v1091
        %v1279 = vsel %vm1098, %v977, %v1093
        %v1283 = vsel %vm1098, %v986, %v1095
        %v1287 = vsel %vm1098, %v985, %v1097
        %v1289 = vld [vmem:[%s1] sm:$0xf]
        %v1290 = vld [vmem:[%s1 + $0x4] sm:$0xf]
        %v1291 = vld [vmem:[%s1 + $0x8] sm:$0xf]
        %v1292 = vld [vmem:[%s1 + $0xc] sm:$0xf]
        %v1293 = vld [vmem:[%s1 + $0x10] sm:$0xf]
        %v1294 = vld [vmem:[%s1 + $0x14] sm:$0xf]
        %v1295 = vld [vmem:[%s1 + $0x18] sm:$0xf]
        %v1296 = vld [vmem:[%s1 + $0x1c] sm:$0xf]
        %v1297 = vld [vmem:[%s1 + $0x20] sm:$0xf]
        %v1298 = vld [vmem:[%s1 + $0x24] sm:$0xf]
        %v1299 = vld [vmem:[%s1 + $0x28] sm:$0xf]
        %v1300 = vld [vmem:[%s1 + $0x2c] sm:$0xf]
        %v1301 = vld [vmem:[%s1 + $0x30] sm:$0xf]
        %v1302 = vld [vmem:[%s1 + $0x34] sm:$0xf]
        %v1303 = vld [vmem:[%s1 + $0x38] sm:$0xf]
        %v1304 = vld [vmem:[%s1 + $0x3c] sm:$0xf]
        %v1305 = vld [vmem:[%s1 + $0x40] sm:$0xf]
        %v1306 = vld [vmem:[%s1 + $0x44] sm:$0xf]
        %v1307 = vld [vmem:[%s1 + $0x48] sm:$0xf]
        %v1308 = vld [vmem:[%s1 + $0x4c] sm:$0xf]
        %v1309 = vld [vmem:[%s1 + $0x50] sm:$0xf]
        %v1310 = vld [vmem:[%s1 + $0x54] sm:$0xf]
        %v1311 = vld [vmem:[%s1 + $0x58] sm:$0xf]
        %v1312 = vld [vmem:[%s1 + $0x5c] sm:$0xf]
        %v1313 = vld [vmem:[%s1 + $0x60] sm:$0xf]
        %v1314 = vld [vmem:[%s1 + $0x64] sm:$0xf]
        %v1315 = vld [vmem:[%s1 + $0x68] sm:$0xf]
        %v1316 = vld [vmem:[%s1 + $0x6c] sm:$0xf]
        %v1317 = vld [vmem:[%s1 + $0x70] sm:$0xf]
        %v1318 = vld [vmem:[%s1 + $0x74] sm:$0xf]
        %v1319 = vld [vmem:[%s1 + $0x78] sm:$0xf]
        %v1320 = vld [vmem:[%s1 + $0x7c] sm:$0xf]
        %v1321 = vld [vmem:[%s2] sm:$0x1]
        %v1323 = vperm.slane %v1321, 0
        %v1357 = vunpack.c.l.b16 %v1289
        %v1358 = vunpack.c.l.b16 %v1290
        %v1359 = vunpack.c.l.b16 %v1291
        %v1360 = vunpack.c.l.b16 %v1292
        %v1361 = vunpack.c.l.b16 %v1293
        %v1362 = vunpack.c.l.b16 %v1294
        %v1363 = vunpack.c.l.b16 %v1295
        %v1364 = vunpack.c.l.b16 %v1296
        %v1365 = vunpack.c.l.b16 %v1297
        %v1366 = vunpack.c.l.b16 %v1298
        %v1367 = vunpack.c.l.b16 %v1299
        %v1368 = vunpack.c.l.b16 %v1300
        %v1369 = vunpack.c.l.b16 %v1301
        %v1370 = vunpack.c.l.b16 %v1302
        %v1371 = vunpack.c.l.b16 %v1303
        %v1372 = vunpack.c.l.b16 %v1304
        %v1373 = vunpack.c.l.b16 %v1305
        %v1374 = vunpack.c.l.b16 %v1306
        %v1375 = vunpack.c.l.b16 %v1307
        %v1376 = vunpack.c.l.b16 %v1308
        %v1377 = vunpack.c.l.b16 %v1309
        %v1378 = vunpack.c.l.b16 %v1310
        %v1379 = vunpack.c.l.b16 %v1311
        %v1380 = vunpack.c.l.b16 %v1312
        %v1381 = vunpack.c.l.b16 %v1313
        %v1382 = vunpack.c.l.b16 %v1314
        %v1383 = vunpack.c.l.b16 %v1315
        %v1384 = vunpack.c.l.b16 %v1316
        %v1385 = vunpack.c.l.b16 %v1317
        %v1386 = vunpack.c.l.b16 %v1318
        %v1387 = vunpack.c.l.b16 %v1319
        %v1388 = vunpack.c.l.b16 %v1320
        %v1389 = vpack.c.b16 %v1358, %v1357
        %v1390 = vpack.c.b16 %v1360, %v1359
        %v1391 = vpack.c.b16 %v1362, %v1361
        %v1392 = vpack.c.b16 %v1364, %v1363
        %v1393 = vpack.c.b16 %v1366, %v1365
        %v1394 = vpack.c.b16 %v1368, %v1367
        %v1395 = vpack.c.b16 %v1370, %v1369
        %v1396 = vpack.c.b16 %v1372, %v1371
        %v1397 = vpack.c.b16 %v1374, %v1373
        %v1398 = vpack.c.b16 %v1376, %v1375
        %v1399 = vpack.c.b16 %v1378, %v1377
        %v1400 = vpack.c.b16 %v1380, %v1379
        %v1401 = vpack.c.b16 %v1382, %v1381
        %v1402 = vpack.c.b16 %v1384, %v1383
        %v1403 = vpack.c.b16 %v1386, %v1385
        %v1404 = vpack.c.b16 %v1388, %v1387
        %1421 = vmatpush.bf16.msra.mxu0 %v1396
        %1422 = vmatpush.bf16.msra.mxu0 %v1395
        %1423 = vmatpush.bf16.msra.mxu0 %v1394
        %1424 = vmatpush.bf16.msra.mxu0 %v1393
        %1425 = vmatpush.bf16.msra.mxu0 %v1392
        %1426 = vmatpush.bf16.msra.mxu0 %v1391
        %1427 = vmatpush.bf16.msra.mxu0 %v1390
        %1428 = vmatpush.bf16.msra.mxu0 %v1389
        %1429 = vmatmul.bf16.gmra.mxu0 %v1100
        %v1430 = vpop.f32.mrf.mxu0
        %v1431 = vadd.f32 %v1323, %v1430
        %v1432 = vpop.f32.mrf.mxu0
        %v1433 = vadd.f32 %v1323, %v1432
        %1434 = vmatmul.bf16.gmra.mxu0 %v1103
        %v1435 = vpop.f32.mrf.mxu0
        %v1436 = vadd.f32 %v1323, %v1435
        %v1437 = vpop.f32.mrf.mxu0
        %v1438 = vadd.f32 %v1323, %v1437
        %1439 = vmatmul.bf16.gmra.mxu0 %v1106
        %v1440 = vpop.f32.mrf.mxu0
        %v1441 = vadd.f32 %v1323, %v1440
        %v1442 = vpop.f32.mrf.mxu0
        %v1443 = vadd.f32 %v1323, %v1442
        %1444 = vmatmul.bf16.gmra.mxu0 %v1109
        %v1445 = vpop.f32.mrf.mxu0
        %v1446 = vadd.f32 %v1323, %v1445
        %v1447 = vpop.f32.mrf.mxu0
        %v1448 = vadd.f32 %v1323, %v1447
        %1449 = vmatmul.bf16.gmra.mxu0 %v1112
        %v1450 = vpop.f32.mrf.mxu0
        %v1451 = vadd.f32 %v1323, %v1450
        %v1452 = vpop.f32.mrf.mxu0
        %v1453 = vadd.f32 %v1323, %v1452
        %1454 = vmatmul.bf16.gmra.mxu0 %v1115
        %v1455 = vpop.f32.mrf.mxu0
        %v1456 = vadd.f32 %v1323, %v1455
        %v1457 = vpop.f32.mrf.mxu0
        %v1458 = vadd.f32 %v1323, %v1457
        %1459 = vmatmul.bf16.gmra.mxu0 %v1118
        %v1460 = vpop.f32.mrf.mxu0
        %v1461 = vadd.f32 %v1323, %v1460
        %v1462 = vpop.f32.mrf.mxu0
        %v1463 = vadd.f32 %v1323, %v1462
        %1464 = vmatmul.bf16.gmra.mxu0 %v1121
        %v1465 = vpop.f32.mrf.mxu0
        %v1466 = vadd.f32 %v1323, %v1465
        %v1467 = vpop.f32.mrf.mxu0
        %v1468 = vadd.f32 %v1323, %v1467
        %1469 = vmatmul.bf16.gmra.mxu0 %v1124
        %v1470 = vpop.f32.mrf.mxu0
        %v1471 = vadd.f32 %v1323, %v1470
        %v1472 = vpop.f32.mrf.mxu0
        %v1473 = vadd.f32 %v1323, %v1472
        %1474 = vmatmul.bf16.gmra.mxu0 %v1127
        %v1475 = vpop.f32.mrf.mxu0
        %v1476 = vadd.f32 %v1323, %v1475
        %v1477 = vpop.f32.mrf.mxu0
        %v1478 = vadd.f32 %v1323, %v1477
        %1479 = vmatmul.bf16.gmra.mxu0 %v1130
        %v1480 = vpop.f32.mrf.mxu0
        %v1481 = vadd.f32 %v1323, %v1480
        %v1482 = vpop.f32.mrf.mxu0
        %v1483 = vadd.f32 %v1323, %v1482
        %1484 = vmatmul.bf16.gmra.mxu0 %v1133
        %v1485 = vpop.f32.mrf.mxu0
        %v1486 = vadd.f32 %v1323, %v1485
        %v1487 = vpop.f32.mrf.mxu0
        %v1488 = vadd.f32 %v1323, %v1487
        %1489 = vmatmul.bf16.gmra.mxu0 %v1136
        %v1490 = vpop.f32.mrf.mxu0
        %v1491 = vadd.f32 %v1323, %v1490
        %v1492 = vpop.f32.mrf.mxu0
        %v1493 = vadd.f32 %v1323, %v1492
        %1494 = vmatmul.bf16.gmra.mxu0 %v1139
        %v1495 = vpop.f32.mrf.mxu0
        %v1496 = vadd.f32 %v1323, %v1495
        %v1497 = vpop.f32.mrf.mxu0
        %v1498 = vadd.f32 %v1323, %v1497
        %1499 = vmatmul.bf16.gmra.mxu0 %v1142
        %v1500 = vpop.f32.mrf.mxu0
        %v1501 = vadd.f32 %v1323, %v1500
        %v1502 = vpop.f32.mrf.mxu0
        %v1503 = vadd.f32 %v1323, %v1502
        %1504 = vmatmul.bf16.gmra.mxu0 %v1145
        %v1505 = vpop.f32.mrf.mxu0
        %v1506 = vadd.f32 %v1323, %v1505
        %v1507 = vpop.f32.mrf.mxu0
        %v1508 = vadd.f32 %v1323, %v1507
        %1509 = vmatmul.bf16.gmra.mxu0 %v1148
        %v1510 = vpop.f32.mrf.mxu0
        %v1511 = vadd.f32 %v1323, %v1510
        %v1512 = vpop.f32.mrf.mxu0
        %v1513 = vadd.f32 %v1323, %v1512
        %1514 = vmatmul.bf16.gmra.mxu0 %v1151
        %v1515 = vpop.f32.mrf.mxu0
        %v1516 = vadd.f32 %v1323, %v1515
        %v1517 = vpop.f32.mrf.mxu0
        %v1518 = vadd.f32 %v1323, %v1517
        %1519 = vmatmul.bf16.gmra.mxu0 %v1154
        %v1520 = vpop.f32.mrf.mxu0
        %v1521 = vadd.f32 %v1323, %v1520
        %v1522 = vpop.f32.mrf.mxu0
        %v1523 = vadd.f32 %v1323, %v1522
        %1524 = vmatmul.bf16.gmra.mxu0 %v1157
        %v1525 = vpop.f32.mrf.mxu0
        %v1526 = vadd.f32 %v1323, %v1525
        %v1527 = vpop.f32.mrf.mxu0
        %v1528 = vadd.f32 %v1323, %v1527
        %1529 = vmatmul.bf16.gmra.mxu0 %v1160
        %v1530 = vpop.f32.mrf.mxu0
        %v1531 = vadd.f32 %v1323, %v1530
        %v1532 = vpop.f32.mrf.mxu0
        %v1533 = vadd.f32 %v1323, %v1532
        %1534 = vmatmul.bf16.gmra.mxu0 %v1163
        %v1535 = vpop.f32.mrf.mxu0
        %v1536 = vadd.f32 %v1323, %v1535
        %v1537 = vpop.f32.mrf.mxu0
        %v1538 = vadd.f32 %v1323, %v1537
        %1539 = vmatmul.bf16.gmra.mxu0 %v1166
        %v1540 = vpop.f32.mrf.mxu0
        %v1541 = vadd.f32 %v1323, %v1540
        %v1542 = vpop.f32.mrf.mxu0
        %v1543 = vadd.f32 %v1323, %v1542
        %1544 = vmatmul.bf16.gmra.mxu0 %v1169
        %v1545 = vpop.f32.mrf.mxu0
        %v1546 = vadd.f32 %v1323, %v1545
        %v1547 = vpop.f32.mrf.mxu0
        %v1548 = vadd.f32 %v1323, %v1547
        %1549 = vmatmul.bf16.gmra.mxu0 %v1172
        %v1550 = vpop.f32.mrf.mxu0
        %v1551 = vadd.f32 %v1323, %v1550
        %v1552 = vpop.f32.mrf.mxu0
        %v1553 = vadd.f32 %v1323, %v1552
        %1554 = vmatmul.bf16.gmra.mxu0 %v1175
        %v1555 = vpop.f32.mrf.mxu0
        %v1556 = vadd.f32 %v1323, %v1555
        %v1557 = vpop.f32.mrf.mxu0
        %v1558 = vadd.f32 %v1323, %v1557
        %1559 = vmatmul.bf16.gmra.mxu0 %v1179
        %v1560 = vpop.f32.mrf.mxu0
        %v1561 = vadd.f32 %v1323, %v1560
        %v1562 = vpop.f32.mrf.mxu0
        %1563 = vdwg.mxu0
        %1564 = vmatpush.bf16.msra.mxu0 %v1404
        %1565 = vmatpush.bf16.msra.mxu0 %v1403
        %1566 = vmatpush.bf16.msra.mxu0 %v1402
        %1567 = vmatpush.bf16.msra.mxu0 %v1401
        %1568 = vmatpush.bf16.msra.mxu0 %v1400
        %1569 = vmatpush.bf16.msra.mxu0 %v1399
        %1570 = vmatpush.bf16.msra.mxu0 %v1398
        %1571 = vmatpush.bf16.msra.mxu0 %v1397
        %1572 = vmatmul.bf16.gmra.mxu0 %v1183
        %v1573 = vpop.f32.mrf.mxu0
        %v1574 = vadd.f32 %v1431, %v1573
        %v1575 = vpop.f32.mrf.mxu0
        %v1576 = vadd.f32 %v1433, %v1575
        %1577 = vmatmul.bf16.gmra.mxu0 %v1187
        %v1578 = vpop.f32.mrf.mxu0
        %v1579 = vadd.f32 %v1436, %v1578
        %v1580 = vpop.f32.mrf.mxu0
        %v1581 = vadd.f32 %v1438, %v1580
        %1582 = vmatmul.bf16.gmra.mxu0 %v1191
        %v1583 = vpop.f32.mrf.mxu0
        %v1584 = vadd.f32 %v1441, %v1583
        %v1585 = vpop.f32.mrf.mxu0
        %v1586 = vadd.f32 %v1443, %v1585
        %1587 = vmatmul.bf16.gmra.mxu0 %v1195
        %v1588 = vpop.f32.mrf.mxu0
        %v1589 = vadd.f32 %v1446, %v1588
        %v1590 = vpop.f32.mrf.mxu0
        %v1591 = vadd.f32 %v1448, %v1590
        %1592 = vmatmul.bf16.gmra.mxu0 %v1199
        %v1593 = vpop.f32.mrf.mxu0
        %v1594 = vadd.f32 %v1451, %v1593
        %v1595 = vpop.f32.mrf.mxu0
        %v1596 = vadd.f32 %v1453, %v1595
        %1597 = vmatmul.bf16.gmra.mxu0 %v1203
        %v1598 = vpop.f32.mrf.mxu0
        %v1599 = vadd.f32 %v1456, %v1598
        %v1600 = vpop.f32.mrf.mxu0
        %v1601 = vadd.f32 %v1458, %v1600
        %1602 = vmatmul.bf16.gmra.mxu0 %v1207
        %v1603 = vpop.f32.mrf.mxu0
        %v1604 = vadd.f32 %v1461, %v1603
        %v1605 = vpop.f32.mrf.mxu0
        %v1606 = vadd.f32 %v1463, %v1605
        %1607 = vmatmul.bf16.gmra.mxu0 %v1211
        %v1608 = vpop.f32.mrf.mxu0
        %v1609 = vadd.f32 %v1466, %v1608
        %v1610 = vpop.f32.mrf.mxu0
        %v1611 = vadd.f32 %v1468, %v1610
        %1612 = vmatmul.bf16.gmra.mxu0 %v1215
        %v1613 = vpop.f32.mrf.mxu0
        %v1614 = vadd.f32 %v1471, %v1613
        %v1615 = vpop.f32.mrf.mxu0
        %v1616 = vadd.f32 %v1473, %v1615
        %1617 = vmatmul.bf16.gmra.mxu0 %v1219
        %v1618 = vpop.f32.mrf.mxu0
        %v1619 = vadd.f32 %v1476, %v1618
        %v1620 = vpop.f32.mrf.mxu0
        %v1621 = vadd.f32 %v1478, %v1620
        %1622 = vmatmul.bf16.gmra.mxu0 %v1223
        %v1623 = vpop.f32.mrf.mxu0
        %v1624 = vadd.f32 %v1481, %v1623
        %v1625 = vpop.f32.mrf.mxu0
        %v1626 = vadd.f32 %v1483, %v1625
        %1627 = vmatmul.bf16.gmra.mxu0 %v1227
        %v1628 = vpop.f32.mrf.mxu0
        %v1629 = vadd.f32 %v1486, %v1628
        %v1630 = vpop.f32.mrf.mxu0
        %v1631 = vadd.f32 %v1488, %v1630
        %1632 = vmatmul.bf16.gmra.mxu0 %v1231
        %v1633 = vpop.f32.mrf.mxu0
        %v1634 = vadd.f32 %v1491, %v1633
        %v1635 = vpop.f32.mrf.mxu0
        %v1636 = vadd.f32 %v1493, %v1635
        %1637 = vmatmul.bf16.gmra.mxu0 %v1235
        %v1638 = vpop.f32.mrf.mxu0
        %v1639 = vadd.f32 %v1496, %v1638
        %v1640 = vpop.f32.mrf.mxu0
        %v1641 = vadd.f32 %v1498, %v1640
        %1642 = vmatmul.bf16.gmra.mxu0 %v1239
        %v1643 = vpop.f32.mrf.mxu0
        %v1644 = vadd.f32 %v1501, %v1643
        %v1645 = vpop.f32.mrf.mxu0
        %v1646 = vadd.f32 %v1503, %v1645
        %1647 = vmatmul.bf16.gmra.mxu0 %v1243
        %v1648 = vpop.f32.mrf.mxu0
        %v1649 = vadd.f32 %v1506, %v1648
        %v1650 = vpop.f32.mrf.mxu0
        %v1651 = vadd.f32 %v1508, %v1650
        %1652 = vmatmul.bf16.gmra.mxu0 %v1247
        %v1653 = vpop.f32.mrf.mxu0
        %v1654 = vadd.f32 %v1511, %v1653
        %v1655 = vpop.f32.mrf.mxu0
        %v1656 = vadd.f32 %v1513, %v1655
        %1657 = vmatmul.bf16.gmra.mxu0 %v1251
        %v1658 = vpop.f32.mrf.mxu0
        %v1659 = vadd.f32 %v1516, %v1658
        %v1660 = vpop.f32.mrf.mxu0
        %v1661 = vadd.f32 %v1518, %v1660
        %1662 = vmatmul.bf16.gmra.mxu0 %v1255
        %v1663 = vpop.f32.mrf.mxu0
        %v1664 = vadd.f32 %v1521, %v1663
        %v1665 = vpop.f32.mrf.mxu0
        %v1666 = vadd.f32 %v1523, %v1665
        %1667 = vmatmul.bf16.gmra.mxu0 %v1259
        %v1668 = vpop.f32.mrf.mxu0
        %v1669 = vadd.f32 %v1526, %v1668
        %v1670 = vpop.f32.mrf.mxu0
        %v1671 = vadd.f32 %v1528, %v1670
        %1672 = vmatmul.bf16.gmra.mxu0 %v1263
        %v1673 = vpop.f32.mrf.mxu0
        %v1674 = vadd.f32 %v1531, %v1673
        %v1675 = vpop.f32.mrf.mxu0
        %v1676 = vadd.f32 %v1533, %v1675
        %1677 = vmatmul.bf16.gmra.mxu0 %v1267
        %v1678 = vpop.f32.mrf.mxu0
        %v1679 = vadd.f32 %v1536, %v1678
        %v1680 = vpop.f32.mrf.mxu0
        %v1681 = vadd.f32 %v1538, %v1680
        %1682 = vmatmul.bf16.gmra.mxu0 %v1271
        %v1683 = vpop.f32.mrf.mxu0
        %v1684 = vadd.f32 %v1541, %v1683
        %v1685 = vpop.f32.mrf.mxu0
        %v1686 = vadd.f32 %v1543, %v1685
        %1687 = vmatmul.bf16.gmra.mxu0 %v1275
        %v1688 = vpop.f32.mrf.mxu0
        %v1689 = vadd.f32 %v1546, %v1688
        %v1690 = vpop.f32.mrf.mxu0
        %v1691 = vadd.f32 %v1548, %v1690
        %1692 = vmatmul.bf16.gmra.mxu0 %v1279
        %v1693 = vpop.f32.mrf.mxu0
        %v1694 = vadd.f32 %v1551, %v1693
        %v1695 = vpop.f32.mrf.mxu0
        %v1696 = vadd.f32 %v1553, %v1695
        %1697 = vmatmul.bf16.gmra.mxu0 %v1283
        %v1698 = vpop.f32.mrf.mxu0
        %v1699 = vadd.f32 %v1556, %v1698
        %v1700 = vpop.f32.mrf.mxu0
        %v1701 = vadd.f32 %v1558, %v1700
        %1702 = vmatmul.bf16.gmra.mxu0 %v1287
        %v1703 = vpop.f32.mrf.mxu0
        %v1704 = vadd.f32 %v1561, %v1703
        %v1705 = vpop.f32.mrf.mxu0
        %1706 = vdwg.mxu0
        %v1707 = vmax.f32 %v1574, 0.0
        %v1708 = vmax.f32 %v1576, 0.0
        %v1709 = vmax.f32 %v1579, 0.0
        %v1710 = vmax.f32 %v1581, 0.0
        %v1711 = vmax.f32 %v1584, 0.0
        %v1712 = vmax.f32 %v1586, 0.0
        %v1713 = vmax.f32 %v1589, 0.0
        %v1714 = vmax.f32 %v1591, 0.0
        %v1715 = vmax.f32 %v1594, 0.0
        %v1716 = vmax.f32 %v1596, 0.0
        %v1717 = vmax.f32 %v1599, 0.0
        %v1718 = vmax.f32 %v1601, 0.0
        %v1719 = vmax.f32 %v1604, 0.0
        %v1720 = vmax.f32 %v1606, 0.0
        %v1721 = vmax.f32 %v1609, 0.0
        %v1722 = vmax.f32 %v1611, 0.0
        %v1723 = vmax.f32 %v1614, 0.0
        %v1724 = vmax.f32 %v1616, 0.0
        %v1725 = vmax.f32 %v1619, 0.0
        %v1726 = vmax.f32 %v1621, 0.0
        %v1727 = vmax.f32 %v1624, 0.0
        %v1728 = vmax.f32 %v1626, 0.0
        %v1729 = vmax.f32 %v1629, 0.0
        %v1730 = vmax.f32 %v1631, 0.0
        %v1731 = vmax.f32 %v1634, 0.0
        %v1732 = vmax.f32 %v1636, 0.0
        %v1733 = vmax.f32 %v1639, 0.0
        %v1734 = vmax.f32 %v1641, 0.0
        %v1735 = vmax.f32 %v1644, 0.0
        %v1736 = vmax.f32 %v1646, 0.0
        %v1737 = vmax.f32 %v1649, 0.0
        %v1738 = vmax.f32 %v1651, 0.0
        %v1739 = vmax.f32 %v1654, 0.0
        %v1740 = vmax.f32 %v1656, 0.0
        %v1741 = vmax.f32 %v1659, 0.0
        %v1742 = vmax.f32 %v1661, 0.0
        %v1743 = vmax.f32 %v1664, 0.0
        %v1744 = vmax.f32 %v1666, 0.0
        %v1745 = vmax.f32 %v1669, 0.0
        %v1746 = vmax.f32 %v1671, 0.0
        %v1747 = vmax.f32 %v1674, 0.0
        %v1748 = vmax.f32 %v1676, 0.0
        %v1749 = vmax.f32 %v1679, 0.0
        %v1750 = vmax.f32 %v1681, 0.0
        %v1751 = vmax.f32 %v1684, 0.0
        %v1752 = vmax.f32 %v1686, 0.0
        %v1753 = vmax.f32 %v1689, 0.0
        %v1754 = vmax.f32 %v1691, 0.0
        %v1755 = vmax.f32 %v1694, 0.0
        %v1756 = vmax.f32 %v1696, 0.0
        %v1757 = vmax.f32 %v1699, 0.0
        %v1758 = vmax.f32 %v1701, 0.0
        %v1759 = vmax.f32 %v1704, 0.0
        %vm1760 = vcmask 261120
        %1761 = vst.msk [vmem:[#allocation2] sm:$0xff] %vm1760, %v1707
        %1762 = vst.msk [vmem:[#allocation2 + $0x8] sm:$0xff] %vm1760, %v1708
        %1763 = vst.msk [vmem:[#allocation2 + $0x10] sm:$0xff] %vm1760, %v1709
        %1764 = vst.msk [vmem:[#allocation2 + $0x18] sm:$0xff] %vm1760, %v1710
        %1765 = vst.msk [vmem:[#allocation2 + $0x20] sm:$0xff] %vm1760, %v1711
        %1766 = vst.msk [vmem:[#allocation2 + $0x28] sm:$0xff] %vm1760, %v1712
        %1767 = vst.msk [vmem:[#allocation2 + $0x30] sm:$0xff] %vm1760, %v1713
        %1768 = vst.msk [vmem:[#allocation2 + $0x38] sm:$0xff] %vm1760, %v1714
        %1769 = vst.msk [vmem:[#allocation2 + $0x40] sm:$0xff] %vm1760, %v1715
        %1770 = vst.msk [vmem:[#allocation2 + $0x48] sm:$0xff] %vm1760, %v1716
        %1771 = vst.msk [vmem:[#allocation2 + $0x50] sm:$0xff] %vm1760, %v1717
        %1772 = vst.msk [vmem:[#allocation2 + $0x58] sm:$0xff] %vm1760, %v1718
        %1773 = vst.msk [vmem:[#allocation2 + $0x60] sm:$0xff] %vm1760, %v1719
        %1774 = vst.msk [vmem:[#allocation2 + $0x68] sm:$0xff] %vm1760, %v1720
        %1775 = vst.msk [vmem:[#allocation2 + $0x70] sm:$0xff] %vm1760, %v1721
        %1776 = vst.msk [vmem:[#allocation2 + $0x78] sm:$0xff] %vm1760, %v1722
        %1777 = vst.msk [vmem:[#allocation2 + $0x80] sm:$0xff] %vm1760, %v1723
        %1778 = vst.msk [vmem:[#allocation2 + $0x88] sm:$0xff] %vm1760, %v1724
        %1779 = vst.msk [vmem:[#allocation2 + $0x90] sm:$0xff] %vm1760, %v1725
        %1780 = vst.msk [vmem:[#allocation2 + $0x98] sm:$0xff] %vm1760, %v1726
        %1781 = vst.msk [vmem:[#allocation2 + $0xa0] sm:$0xff] %vm1760, %v1727
        %1782 = vst.msk [vmem:[#allocation2 + $0xa8] sm:$0xff] %vm1760, %v1728
        %1783 = vst.msk [vmem:[#allocation2 + $0xb0] sm:$0xff] %vm1760, %v1729
        %1784 = vst.msk [vmem:[#allocation2 + $0xb8] sm:$0xff] %vm1760, %v1730
        %1785 = vst.msk [vmem:[#allocation2 + $0xc0] sm:$0xff] %vm1760, %v1731
        %1786 = vst.msk [vmem:[#allocation2 + $0xc8] sm:$0xff] %vm1760, %v1732
        %1787 = vst.msk [vmem:[#allocation2 + $0xd0] sm:$0xff] %vm1760, %v1733
        %1788 = vst.msk [vmem:[#allocation2 + $0xd8] sm:$0xff] %vm1760, %v1734
        %1789 = vst.msk [vmem:[#allocation2 + $0xe0] sm:$0xff] %vm1760, %v1735
        %1790 = vst.msk [vmem:[#allocation2 + $0xe8] sm:$0xff] %vm1760, %v1736
        %1791 = vst.msk [vmem:[#allocation2 + $0xf0] sm:$0xff] %vm1760, %v1737
        %1792 = vst.msk [vmem:[#allocation2 + $0xf8] sm:$0xff] %vm1760, %v1738
        %1793 = vst.msk [vmem:[#allocation2 + $0x100] sm:$0xff] %vm1760, %v1739
        %1794 = vst.msk [vmem:[#allocation2 + $0x108] sm:$0xff] %vm1760, %v1740
        %1795 = vst.msk [vmem:[#allocation2 + $0x110] sm:$0xff] %vm1760, %v1741
        %1796 = vst.msk [vmem:[#allocation2 + $0x118] sm:$0xff] %vm1760, %v1742
        %1797 = vst.msk [vmem:[#allocation2 + $0x120] sm:$0xff] %vm1760, %v1743
        %1798 = vst.msk [vmem:[#allocation2 + $0x128] sm:$0xff] %vm1760, %v1744
        %1799 = vst.msk [vmem:[#allocation2 + $0x130] sm:$0xff] %vm1760, %v1745
        %1800 = vst.msk [vmem:[#allocation2 + $0x138] sm:$0xff] %vm1760, %v1746
        %1801 = vst.msk [vmem:[#allocation2 + $0x140] sm:$0xff] %vm1760, %v1747
        %1802 = vst.msk [vmem:[#allocation2 + $0x148] sm:$0xff] %vm1760, %v1748
        %1803 = vst.msk [vmem:[#allocation2 + $0x150] sm:$0xff] %vm1760, %v1749
        %1804 = vst.msk [vmem:[#allocation2 + $0x158] sm:$0xff] %vm1760, %v1750
        %1805 = vst.msk [vmem:[#allocation2 + $0x160] sm:$0xff] %vm1760, %v1751
        %1806 = vst.msk [vmem:[#allocation2 + $0x168] sm:$0xff] %vm1760, %v1752
        %1807 = vst.msk [vmem:[#allocation2 + $0x170] sm:$0xff] %vm1760, %v1753
        %1808 = vst.msk [vmem:[#allocation2 + $0x178] sm:$0xff] %vm1760, %v1754
        %1809 = vst.msk [vmem:[#allocation2 + $0x180] sm:$0xff] %vm1760, %v1755
        %1810 = vst.msk [vmem:[#allocation2 + $0x188] sm:$0xff] %vm1760, %v1756
        %1811 = vst.msk [vmem:[#allocation2 + $0x190] sm:$0xff] %vm1760, %v1757
        %1812 = vst.msk [vmem:[#allocation2 + $0x198] sm:$0xff] %vm1760, %v1758
        %vm1813 = vcmask 257024
        %1814 = vst.msk [vmem:[#allocation2 + $0x1a0] sm:$0xf] %vm1813, %v1759
        %1815 = vst.msk [vmem:[#allocation3] sm:$0xff] %vm1098, 0.0
        %1816 = vst.msk [vmem:[#allocation3 + $0x8] sm:$0xff] %vm1098, 0.0
        %1817 = vst.msk [vmem:[#allocation3 + $0x10] sm:$0xff] %vm1098, 0.0
        %1818 = vst.msk [vmem:[#allocation3 + $0x18] sm:$0xff] %vm1098, 0.0
        %1819 = vst.msk [vmem:[#allocation3 + $0x20] sm:$0xff] %vm1098, 0.0
        %1820 = vst.msk [vmem:[#allocation3 + $0x28] sm:$0xff] %vm1098, 0.0
        %1821 = vst.msk [vmem:[#allocation3 + $0x30] sm:$0xff] %vm1098, 0.0
        %1822 = vst.msk [vmem:[#allocation3 + $0x38] sm:$0xff] %vm1098, 0.0
        %1823 = vst.msk [vmem:[#allocation3 + $0x40] sm:$0xff] %vm1098, 0.0
        %1824 = vst.msk [vmem:[#allocation3 + $0x48] sm:$0xff] %vm1098, 0.0
        %1825 = vst.msk [vmem:[#allocation3 + $0x50] sm:$0xff] %vm1098, 0.0
        %v1826 = vld [vmem:[%s3] sm:$0xf]
        %v1827 = vld [vmem:[%s3 + $0x4] sm:$0xf]
        %v1828 = vld [vmem:[%s3 + $0x8] sm:$0xf]
        %v1829 = vld [vmem:[%s3 + $0xc] sm:$0xf]
        %v1830 = vld [vmem:[%s3 + $0x10] sm:$0xf]
        %v1831 = vld [vmem:[%s3 + $0x14] sm:$0xf]
        %v1832 = vld [vmem:[%s3 + $0x18] sm:$0xf]
        %v1833 = vld [vmem:[%s3 + $0x1c] sm:$0xf]
        %v1834 = vld [vmem:[%s3 + $0x20] sm:$0xf]
        %v1835 = vld [vmem:[%s3 + $0x24] sm:$0xf]
        %v1836 = vld [vmem:[%s3 + $0x28] sm:$0xf]
        %v1837 = vld [vmem:[%s3 + $0x2c] sm:$0xf]
        %v1838 = vld [vmem:[%s3 + $0x30] sm:$0xf]
        %v1839 = vld [vmem:[%s3 + $0x34] sm:$0xf]
        %v1840 = vld [vmem:[%s3 + $0x38] sm:$0xf]
        %v1841 = vld [vmem:[%s3 + $0x3c] sm:$0xf]
        %v1842 = vld [vmem:[%s3 + $0x40] sm:$0xf]
        %v1843 = vld [vmem:[%s3 + $0x44] sm:$0xf]
        %v1844 = vld [vmem:[%s3 + $0x48] sm:$0xf]
        %v1845 = vld [vmem:[%s3 + $0x4c] sm:$0xf]
        %v1846 = vld [vmem:[%s3 + $0x50] sm:$0xf]
        %v1847 = vld [vmem:[%s3 + $0x54] sm:$0xf]
        %v1848 = vld [vmem:[%s3 + $0x58] sm:$0xf]
        %v1849 = vld [vmem:[%s3 + $0x5c] sm:$0xf]
        %v1850 = vld [vmem:[%s3 + $0x60] sm:$0xf]
        %v1851 = vld [vmem:[%s3 + $0x64] sm:$0xf]
        %v1852 = vld [vmem:[%s3 + $0x68] sm:$0xf]
        %v1853 = vld [vmem:[%s3 + $0x6c] sm:$0xf]
        %v1854 = vld [vmem:[%s3 + $0x70] sm:$0xf]
        %v1855 = vld [vmem:[%s3 + $0x74] sm:$0xf]
        %v1856 = vld [vmem:[%s3 + $0x78] sm:$0xf]
        %v1857 = vld [vmem:[%s3 + $0x7c] sm:$0xf]
        %v1858 = vld [vmem:[%s3 + $0x80] sm:$0xf]
        %v1859 = vld [vmem:[%s3 + $0x84] sm:$0xf]
        %v1860 = vld [vmem:[%s3 + $0x88] sm:$0xf]
        %v1861 = vld [vmem:[%s3 + $0x8c] sm:$0xf]
        %v1862 = vld [vmem:[%s3 + $0x90] sm:$0xf]
        %v1863 = vld [vmem:[%s3 + $0x94] sm:$0xf]
        %v1864 = vld [vmem:[%s3 + $0x98] sm:$0xf]
        %v1865 = vld [vmem:[%s3 + $0x9c] sm:$0xf]
        %v1866 = vld [vmem:[%s3 + $0xa0] sm:$0xf]
        %v1867 = vld [vmem:[%s3 + $0xa4] sm:$0xf]
        %v1868 = vld [vmem:[%s3 + $0xa8] sm:$0xf]
        %v1869 = vld [vmem:[%s3 + $0xac] sm:$0xf]
        %v1870 = vld [vmem:[%s3 + $0xb0] sm:$0xf]
        %v1871 = vld [vmem:[%s3 + $0xb4] sm:$0xf]
        %v1872 = vld [vmem:[%s3 + $0xb8] sm:$0xf]
        %v1873 = vld [vmem:[%s3 + $0xbc] sm:$0xf]
        %v1874 = vld [vmem:[%s3 + $0xc0] sm:$0xf]
        %v1875 = vld [vmem:[%s3 + $0xc4] sm:$0xf]
        %v1876 = vld [vmem:[%s3 + $0xc8] sm:$0xf]
        %v1877 = vld [vmem:[%s3 + $0xcc] sm:$0xf]
        %v1878 = vld [vmem:[%s3 + $0xd0] sm:$0xf]
        %v1879 = vld [vmem:[%s3 + $0xd4] sm:$0xf]
        %v1880 = vld [vmem:[%s3 + $0xd8] sm:$0xf]
        %v1881 = vld [vmem:[%s3 + $0xdc] sm:$0xf]
        %v1882 = vld [vmem:[%s3 + $0xe0] sm:$0xf]
        %v1883 = vld [vmem:[%s3 + $0xe4] sm:$0xf]
        %v1884 = vld [vmem:[%s3 + $0xe8] sm:$0xf]
        %v1885 = vld [vmem:[%s3 + $0xec] sm:$0xf]
        %v1886 = vld [vmem:[%s3 + $0xf0] sm:$0xf]
        %v1887 = vld [vmem:[%s3 + $0xf4] sm:$0xf]
        %v1888 = vld [vmem:[%s3 + $0xf8] sm:$0xf]
        %v1889 = vld [vmem:[%s3 + $0xfc] sm:$0xf]
        %v1890 = vld [vmem:[%s4] sm:$0x1]
        %v1891 = vld [vmem:[#allocation2] ss:$2 sm:$0xff]
        %s1892 = scalar_lea.vmem [#allocation2], 16
        %v1893 = vld [vmem:[%s1892] ss:$2 sm:$0x1]
        %s1894 = scalar_lea.vmem [#allocation2], 1
        %v1895 = vld [vmem:[%s1894] ss:$2 sm:$0xff]
        %s1896 = scalar_lea.vmem [#allocation2], 17
        %v1897 = vld [vmem:[%s1896] ss:$2 sm:$0x1]
        %s1898 = scalar_lea.vmem [#allocation2], 2
        %v1899 = vld [vmem:[%s1898] ss:$2 sm:$0xff]
        %s1900 = scalar_lea.vmem [#allocation2], 18
        %v1901 = vld [vmem:[%s1900] ss:$2 sm:$0x1]
        %s1902 = scalar_lea.vmem [#allocation2], 3
        %v1903 = vld [vmem:[%s1902] ss:$2 sm:$0xff]
        %s1904 = scalar_lea.vmem [#allocation2], 19
        %v1905 = vld [vmem:[%s1904] ss:$2 sm:$0x1]
        %s1906 = scalar_lea.vmem [#allocation2], 21
        %v1907 = vld [vmem:[%s1906] ss:$2 sm:$0xff]
        %s1908 = scalar_lea.vmem [#allocation2], 37
        %v1909 = vld [vmem:[%s1908] ss:$2 sm:$0x1]
        %s1910 = scalar_lea.vmem [#allocation2], 22
        %v1911 = vld [vmem:[%s1910] ss:$2 sm:$0xff]
        %s1912 = scalar_lea.vmem [#allocation2], 38
        %v1913 = vld [vmem:[%s1912] ss:$2 sm:$0x1]
        %s1914 = scalar_lea.vmem [#allocation2], 23
        %v1915 = vld [vmem:[%s1914] ss:$2 sm:$0xff]
        %s1916 = scalar_lea.vmem [#allocation2], 39
        %v1917 = vld [vmem:[%s1916] ss:$2 sm:$0x1]
        %s1918 = scalar_lea.vmem [#allocation2], 24
        %v1919 = vld [vmem:[%s1918] ss:$2 sm:$0xff]
        %s1920 = scalar_lea.vmem [#allocation2], 40
        %v1921 = vld [vmem:[%s1920] ss:$2 sm:$0x1]
        %s1922 = scalar_lea.vmem [#allocation2], 42
        %v1923 = vld [vmem:[%s1922] ss:$2 sm:$0xff]
        %s1924 = scalar_lea.vmem [#allocation2], 58
        %v1925 = vld [vmem:[%s1924] ss:$2 sm:$0x1]
        %s1926 = scalar_lea.vmem [#allocation2], 43
        %v1927 = vld [vmem:[%s1926] ss:$2 sm:$0xff]
        %s1928 = scalar_lea.vmem [#allocation2], 59
        %v1929 = vld [vmem:[%s1928] ss:$2 sm:$0x1]
        %s1930 = scalar_lea.vmem [#allocation2], 44
        %v1931 = vld [vmem:[%s1930] ss:$2 sm:$0xff]
        %s1932 = scalar_lea.vmem [#allocation2], 60
        %v1933 = vld [vmem:[%s1932] ss:$2 sm:$0x1]
        %s1934 = scalar_lea.vmem [#allocation2], 45
        %v1935 = vld [vmem:[%s1934] ss:$2 sm:$0xff]
        %s1936 = scalar_lea.vmem [#allocation2], 61
        %v1937 = vld [vmem:[%s1936] ss:$2 sm:$0x1]
        %s1938 = scalar_lea.vmem [#allocation2], 63
        %v1939 = vld [vmem:[%s1938] ss:$2 sm:$0xff]
        %s1940 = scalar_lea.vmem [#allocation2], 79
        %v1941 = vld [vmem:[%s1940] ss:$2 sm:$0x1]
        %s1942 = scalar_lea.vmem [#allocation2], 64
        %v1943 = vld [vmem:[%s1942] ss:$2 sm:$0xff]
        %s1944 = scalar_lea.vmem [#allocation2], 80
        %v1945 = vld [vmem:[%s1944] ss:$2 sm:$0x1]
        %s1946 = scalar_lea.vmem [#allocation2], 65
        %v1947 = vld [vmem:[%s1946] ss:$2 sm:$0xff]
        %s1948 = scalar_lea.vmem [#allocation2], 81
        %v1949 = vld [vmem:[%s1948] ss:$2 sm:$0x1]
        %s1950 = scalar_lea.vmem [#allocation2], 66
        %v1951 = vld [vmem:[%s1950] ss:$2 sm:$0xff]
        %s1952 = scalar_lea.vmem [#allocation2], 82
        %v1953 = vld [vmem:[%s1952] ss:$2 sm:$0x1]
        %1956 = vrot.lane.b32.xlu0 %v1895, 32
        %v1957 = vpop.permute.xlu0 %1956
        %1958 = vrot.lane.b32.xlu0 %v1897, 32
        %v1959 = vpop.permute.xlu0 %1958
        %1964 = vrot.lane.b32.xlu0 %v1899, 64
        %v1965 = vpop.permute.xlu0 %1964
        %1966 = vrot.lane.b32.xlu0 %v1901, 64
        %v1967 = vpop.permute.xlu0 %1966
        %1972 = vrot.lane.b32.xlu0 %v1903, 96
        %v1973 = vpop.permute.xlu0 %1972
        %1974 = vrot.lane.b32.xlu0 %v1905, 96
        %v1975 = vpop.permute.xlu0 %1974
        %1980 = vrot.lane.b32.xlu0 %v1911, 32
        %v1981 = vpop.permute.xlu0 %1980
        %1982 = vrot.lane.b32.xlu0 %v1913, 32
        %v1983 = vpop.permute.xlu0 %1982
        %1988 = vrot.lane.b32.xlu0 %v1915, 64
        %v1989 = vpop.permute.xlu0 %1988
        %1990 = vrot.lane.b32.xlu0 %v1917, 64
        %v1991 = vpop.permute.xlu0 %1990
        %1996 = vrot.lane.b32.xlu0 %v1919, 96
        %v1997 = vpop.permute.xlu0 %1996
        %1998 = vrot.lane.b32.xlu0 %v1921, 96
        %v1999 = vpop.permute.xlu0 %1998
        %2004 = vrot.lane.b32.xlu0 %v1927, 32
        %v2005 = vpop.permute.xlu0 %2004
        %2006 = vrot.lane.b32.xlu0 %v1929, 32
        %v2007 = vpop.permute.xlu0 %2006
        %2012 = vrot.lane.b32.xlu0 %v1931, 64
        %v2013 = vpop.permute.xlu0 %2012
        %2014 = vrot.lane.b32.xlu0 %v1933, 64
        %v2015 = vpop.permute.xlu0 %2014
        %2020 = vrot.lane.b32.xlu0 %v1935, 96
        %v2021 = vpop.permute.xlu0 %2020
        %2022 = vrot.lane.b32.xlu0 %v1937, 96
        %v2023 = vpop.permute.xlu0 %2022
        %2028 = vrot.lane.b32.xlu0 %v1943, 32
        %v2029 = vpop.permute.xlu0 %2028
        %2030 = vrot.lane.b32.xlu0 %v1945, 32
        %v2031 = vpop.permute.xlu0 %2030
        %2036 = vrot.lane.b32.xlu0 %v1947, 64
        %v2037 = vpop.permute.xlu0 %2036
        %2038 = vrot.lane.b32.xlu0 %v1949, 64
        %v2039 = vpop.permute.xlu0 %2038
        %2044 = vrot.lane.b32.xlu0 %v1951, 96
        %v2045 = vpop.permute.xlu0 %2044
        %2046 = vrot.lane.b32.xlu0 %v1953, 96
        %v2047 = vpop.permute.xlu0 %2046
        %v2050 = vsel %vm1760, %v1891, %v1957
        %v2051 = vsel %vm1760, %v1893, %v1959
        %v2052 = vsel %vm1098, %v2050, %v1965
        %v2053 = vsel %vm1098, %v2051, %v1967
        %vm2054 = vcmask 785408
        %v2055 = vsel %vm2054, %v2052, %v1973
        %v2056 = vsel %vm2054, %v2053, %v1975
        %v2057 = vsel %vm1760, %v1907, %v1981
        %v2058 = vsel %vm1760, %v1909, %v1983
        %v2059 = vsel %vm1098, %v2057, %v1989
        %v2060 = vsel %vm1098, %v2058, %v1991
        %v2061 = vsel %vm2054, %v2059, %v1997
        %v2062 = vsel %vm2054, %v2060, %v1999
        %v2063 = vsel %vm1760, %v1923, %v2005
        %v2064 = vsel %vm1760, %v1925, %v2007
        %v2065 = vsel %vm1098, %v2063, %v2013
        %v2066 = vsel %vm1098, %v2064, %v2015
        %v2067 = vsel %vm2054, %v2065, %v2021
        %v2068 = vsel %vm2054, %v2066, %v2023
        %v2069 = vsel %vm1760, %v1939, %v2029
        %v2070 = vsel %vm1760, %v1941, %v2031
        %v2071 = vsel %vm1098, %v2069, %v2037
        %v2072 = vsel %vm1098, %v2070, %v2039
        %v2073 = vsel %vm2054, %v2071, %v2045
        %v2074 = vsel %vm2054, %v2072, %v2047
        %v2075 = vpack.c.bf16 %v2056, %v2055
        %v2076 = vpack.c.bf16 %v2062, %v2061
        %v2077 = vpack.c.bf16 %v2068, %v2067
        %v2078 = vpack.c.bf16 %v2074, %v2073
        %v2080 = vperm.slane %v1890, 0
        %v2146 = vunpack.c.l.b16 %v1826
        %v2147 = vunpack.c.l.b16 %v1827
        %v2148 = vunpack.c.l.b16 %v1828
        %v2149 = vunpack.c.l.b16 %v1829
        %v2150 = vunpack.c.l.b16 %v1830
        %v2151 = vunpack.c.l.b16 %v1831
        %v2152 = vunpack.c.l.b16 %v1832
        %v2153 = vunpack.c.l.b16 %v1833
        %v2154 = vunpack.c.l.b16 %v1834
        %v2155 = vunpack.c.l.b16 %v1835
        %v2156 = vunpack.c.l.b16 %v1836
        %v2157 = vunpack.c.l.b16 %v1837
        %v2158 = vunpack.c.l.b16 %v1838
        %v2159 = vunpack.c.l.b16 %v1839
        %v2160 = vunpack.c.l.b16 %v1840
        %v2161 = vunpack.c.l.b16 %v1841
        %v2162 = vunpack.c.l.b16 %v1842
        %v2163 = vunpack.c.l.b16 %v1843
        %v2164 = vunpack.c.l.b16 %v1844
        %v2165 = vunpack.c.l.b16 %v1845
        %v2166 = vunpack.c.l.b16 %v1846
        %v2167 = vunpack.c.l.b16 %v1847
        %v2168 = vunpack.c.l.b16 %v1848
        %v2169 = vunpack.c.l.b16 %v1849
        %v2170 = vunpack.c.l.b16 %v1850
        %v2171 = vunpack.c.l.b16 %v1851
        %v2172 = vunpack.c.l.b16 %v1852
        %v2173 = vunpack.c.l.b16 %v1853
        %v2174 = vunpack.c.l.b16 %v1854
        %v2175 = vunpack.c.l.b16 %v1855
        %v2176 = vunpack.c.l.b16 %v1856
        %v2177 = vunpack.c.l.b16 %v1857
        %v2178 = vunpack.c.l.b16 %v1858
        %v2179 = vunpack.c.l.b16 %v1859
        %v2180 = vunpack.c.l.b16 %v1860
        %v2181 = vunpack.c.l.b16 %v1861
        %v2182 = vunpack.c.l.b16 %v1862
        %v2183 = vunpack.c.l.b16 %v1863
        %v2184 = vunpack.c.l.b16 %v1864
        %v2185 = vunpack.c.l.b16 %v1865
        %v2186 = vunpack.c.l.b16 %v1866
        %v2187 = vunpack.c.l.b16 %v1867
        %v2188 = vunpack.c.l.b16 %v1868
        %v2189 = vunpack.c.l.b16 %v1869
        %v2190 = vunpack.c.l.b16 %v1870
        %v2191 = vunpack.c.l.b16 %v1871
        %v2192 = vunpack.c.l.b16 %v1872
        %v2193 = vunpack.c.l.b16 %v1873
        %v2194 = vunpack.c.l.b16 %v1874
        %v2195 = vunpack.c.l.b16 %v1875
        %v2196 = vunpack.c.l.b16 %v1876
        %v2197 = vunpack.c.l.b16 %v1877
        %v2198 = vunpack.c.l.b16 %v1878
        %v2199 = vunpack.c.l.b16 %v1879
        %v2200 = vunpack.c.l.b16 %v1880
        %v2201 = vunpack.c.l.b16 %v1881
        %v2202 = vunpack.c.l.b16 %v1882
        %v2203 = vunpack.c.l.b16 %v1883
        %v2204 = vunpack.c.l.b16 %v1884
        %v2205 = vunpack.c.l.b16 %v1885
        %v2206 = vunpack.c.l.b16 %v1886
        %v2207 = vunpack.c.l.b16 %v1887
        %v2208 = vunpack.c.l.b16 %v1888
        %v2209 = vunpack.c.l.b16 %v1889
        %v2210 = vpack.c.b16 %v2147, %v2146
        %v2211 = vpack.c.b16 %v2149, %v2148
        %v2212 = vpack.c.b16 %v2151, %v2150
        %v2213 = vpack.c.b16 %v2153, %v2152
        %v2214 = vpack.c.b16 %v2155, %v2154
        %v2215 = vpack.c.b16 %v2157, %v2156
        %v2216 = vpack.c.b16 %v2159, %v2158
        %v2217 = vpack.c.b16 %v2161, %v2160
        %v2218 = vpack.c.b16 %v2163, %v2162
        %v2219 = vpack.c.b16 %v2165, %v2164
        %v2220 = vpack.c.b16 %v2167, %v2166
        %v2221 = vpack.c.b16 %v2169, %v2168
        %v2222 = vpack.c.b16 %v2171, %v2170
        %v2223 = vpack.c.b16 %v2173, %v2172
        %v2224 = vpack.c.b16 %v2175, %v2174
        %v2225 = vpack.c.b16 %v2177, %v2176
        %v2226 = vpack.c.b16 %v2179, %v2178
        %v2227 = vpack.c.b16 %v2181, %v2180
        %v2228 = vpack.c.b16 %v2183, %v2182
        %v2229 = vpack.c.b16 %v2185, %v2184
        %v2230 = vpack.c.b16 %v2187, %v2186
        %v2231 = vpack.c.b16 %v2189, %v2188
        %v2232 = vpack.c.b16 %v2191, %v2190
        %v2233 = vpack.c.b16 %v2193, %v2192
        %v2234 = vpack.c.b16 %v2195, %v2194
        %v2235 = vpack.c.b16 %v2197, %v2196
        %v2236 = vpack.c.b16 %v2199, %v2198
        %v2237 = vpack.c.b16 %v2201, %v2200
        %v2238 = vpack.c.b16 %v2203, %v2202
        %v2239 = vpack.c.b16 %v2205, %v2204
        %v2240 = vpack.c.b16 %v2207, %v2206
        %v2241 = vpack.c.b16 %v2209, %v2208
        %2274 = vmatpush.bf16.msra.mxu0 %v2217
        %2275 = vmatpush.bf16.msra.mxu0 %v2216
        %2276 = vmatpush.bf16.msra.mxu0 %v2215
        %2277 = vmatpush.bf16.msra.mxu0 %v2214
        %2278 = vmatpush.bf16.msra.mxu0 %v2213
        %2279 = vmatpush.bf16.msra.mxu0 %v2212
        %2280 = vmatpush.bf16.msra.mxu0 %v2211
        %2281 = vmatpush.bf16.msra.mxu0 %v2210
        %2282 = vmatmul.bf16.gmra.mxu0 %v2075
        %v2283 = vpop.f32.mrf.mxu0
        %v2284 = vadd.f32 %v2080, %v2283
        %v2285 = vpop.f32.mrf.mxu0
        %v2286 = vadd.f32 %v2080, %v2285
        %2287 = vdwg.mxu0
        %2288 = vmatpush.bf16.msra.mxu0 %v2225
        %2289 = vmatpush.bf16.msra.mxu0 %v2224
        %2290 = vmatpush.bf16.msra.mxu0 %v2223
        %2291 = vmatpush.bf16.msra.mxu0 %v2222
        %2292 = vmatpush.bf16.msra.mxu0 %v2221
        %2293 = vmatpush.bf16.msra.mxu0 %v2220
        %2294 = vmatpush.bf16.msra.mxu0 %v2219
        %2295 = vmatpush.bf16.msra.mxu0 %v2218
        %2296 = vmatmul.bf16.gmra.mxu0 %v2076
        %v2297 = vpop.f32.mrf.mxu0
        %v2298 = vadd.f32 %v2284, %v2297
        %v2299 = vpop.f32.mrf.mxu0
        %v2300 = vadd.f32 %v2286, %v2299
        %2301 = vdwg.mxu0
        %2302 = vmatpush.bf16.msra.mxu0 %v2233
        %2303 = vmatpush.bf16.msra.mxu0 %v2232
        %2304 = vmatpush.bf16.msra.mxu0 %v2231
        %2305 = vmatpush.bf16.msra.mxu0 %v2230
        %2306 = vmatpush.bf16.msra.mxu0 %v2229
        %2307 = vmatpush.bf16.msra.mxu0 %v2228
        %2308 = vmatpush.bf16.msra.mxu0 %v2227
        %2309 = vmatpush.bf16.msra.mxu0 %v2226
        %2310 = vmatmul.bf16.gmra.mxu0 %v2077
        %v2311 = vpop.f32.mrf.mxu0
        %v2312 = vadd.f32 %v2298, %v2311
        %v2313 = vpop.f32.mrf.mxu0
        %v2314 = vadd.f32 %v2300, %v2313
        %2315 = vdwg.mxu0
        %2316 = vmatpush.bf16.msra.mxu0 %v2241
        %2317 = vmatpush.bf16.msra.mxu0 %v2240
        %2318 = vmatpush.bf16.msra.mxu0 %v2239
        %2319 = vmatpush.bf16.msra.mxu0 %v2238
        %2320 = vmatpush.bf16.msra.mxu0 %v2237
        %2321 = vmatpush.bf16.msra.mxu0 %v2236
        %2322 = vmatpush.bf16.msra.mxu0 %v2235
        %2323 = vmatpush.bf16.msra.mxu0 %v2234
        %2324 = vmatmul.bf16.gmra.mxu0 %v2078
        %v2325 = vpop.f32.mrf.mxu0
        %v2326 = vadd.f32 %v2312, %v2325
        %v2327 = vpop.f32.mrf.mxu0
        %v2328 = vadd.f32 %v2314, %v2327
        %2329 = vdwg.mxu0
        %v2330 = vmax.f32 %v2326, 0.0
        %v2331 = vmax.f32 %v2328, 0.0
        %2332 = vst.msk [vmem:[#allocation3] sm:$0xff] %vm1098, %v2330
        %vm2333 = vcmask 516096
        %2334 = vst.msk [vmem:[#allocation3 + $0x8] sm:$0x1] %vm2333, %v2331
        %v2335 = vld [vmem:[%s1922] ss:$2 sm:$0xff]
        %v2336 = vld [vmem:[%s1924] ss:$2 sm:$0x1]
        %v2337 = vld [vmem:[%s1926] ss:$2 sm:$0xff]
        %v2338 = vld [vmem:[%s1928] ss:$2 sm:$0x1]
        %v2339 = vld [vmem:[%s1930] ss:$2 sm:$0xff]
        %v2340 = vld [vmem:[%s1932] ss:$2 sm:$0x1]
        %v2341 = vld [vmem:[%s1934] ss:$2 sm:$0xff]
        %v2342 = vld [vmem:[%s1936] ss:$2 sm:$0x1]
        %v2343 = vld [vmem:[%s1938] ss:$2 sm:$0xff]
        %v2344 = vld [vmem:[%s1940] ss:$2 sm:$0x1]
        %v2345 = vld [vmem:[%s1942] ss:$2 sm:$0xff]
        %v2346 = vld [vmem:[%s1944] ss:$2 sm:$0x1]
        %v2347 = vld [vmem:[%s1946] ss:$2 sm:$0xff]
        %v2348 = vld [vmem:[%s1948] ss:$2 sm:$0x1]
        %v2349 = vld [vmem:[%s1950] ss:$2 sm:$0xff]
        %v2350 = vld [vmem:[%s1952] ss:$2 sm:$0x1]
        %s2351 = scalar_lea.vmem [#allocation2], 84
        %v2352 = vld [vmem:[%s2351] ss:$2 sm:$0xff]
        %s2353 = scalar_lea.vmem [#allocation2], 100
        %v2354 = vld [vmem:[%s2353] ss:$2 sm:$0x1]
        %s2355 = scalar_lea.vmem [#allocation2], 85
        %v2356 = vld [vmem:[%s2355] ss:$2 sm:$0xff]
        %s2357 = scalar_lea.vmem [#allocation2], 101
        %v2358 = vld [vmem:[%s2357] ss:$2 sm:$0x1]
        %s2359 = scalar_lea.vmem [#allocation2], 86
        %v2360 = vld [vmem:[%s2359] ss:$2 sm:$0xff]
        %s2361 = scalar_lea.vmem [#allocation2], 102
        %v2362 = vld [vmem:[%s2361] ss:$2 sm:$0x1]
        %s2363 = scalar_lea.vmem [#allocation2], 87
        %v2364 = vld [vmem:[%s2363] ss:$2 sm:$0xff]
        %s2365 = scalar_lea.vmem [#allocation2], 103
        %v2366 = vld [vmem:[%s2365] ss:$2 sm:$0x1]
        %s2367 = scalar_lea.vmem [#allocation2], 105
        %v2368 = vld [vmem:[%s2367] ss:$2 sm:$0xff]
        %s2369 = scalar_lea.vmem [#allocation2], 121
        %v2370 = vld [vmem:[%s2369] ss:$2 sm:$0x1]
        %s2371 = scalar_lea.vmem [#allocation2], 106
        %v2372 = vld [vmem:[%s2371] ss:$2 sm:$0xff]
        %s2373 = scalar_lea.vmem [#allocation2], 122
        %v2374 = vld [vmem:[%s2373] ss:$2 sm:$0x1]
        %s2375 = scalar_lea.vmem [#allocation2], 107
        %v2376 = vld [vmem:[%s2375] ss:$2 sm:$0xff]
        %s2377 = scalar_lea.vmem [#allocation2], 123
        %v2378 = vld [vmem:[%s2377] ss:$2 sm:$0x1]
        %s2379 = scalar_lea.vmem [#allocation2], 108
        %v2380 = vld [vmem:[%s2379] ss:$2 sm:$0xff]
        %s2381 = scalar_lea.vmem [#allocation2], 124
        %v2382 = vld [vmem:[%s2381] ss:$2 sm:$0x1]
        %2385 = vrot.lane.b32.xlu0 %v2337, 32
        %v2386 = vpop.permute.xlu0 %2385
        %2387 = vrot.lane.b32.xlu0 %v2338, 32
        %v2388 = vpop.permute.xlu0 %2387
        %2393 = vrot.lane.b32.xlu0 %v2339, 64
        %v2394 = vpop.permute.xlu0 %2393
        %2395 = vrot.lane.b32.xlu0 %v2340, 64
        %v2396 = vpop.permute.xlu0 %2395
        %2401 = vrot.lane.b32.xlu0 %v2341, 96
        %v2402 = vpop.permute.xlu0 %2401
        %2403 = vrot.lane.b32.xlu0 %v2342, 96
        %v2404 = vpop.permute.xlu0 %2403
        %2409 = vrot.lane.b32.xlu0 %v2345, 32
        %v2410 = vpop.permute.xlu0 %2409
        %2411 = vrot.lane.b32.xlu0 %v2346, 32
        %v2412 = vpop.permute.xlu0 %2411
        %2417 = vrot.lane.b32.xlu0 %v2347, 64
        %v2418 = vpop.permute.xlu0 %2417
        %2419 = vrot.lane.b32.xlu0 %v2348, 64
        %v2420 = vpop.permute.xlu0 %2419
        %2425 = vrot.lane.b32.xlu0 %v2349, 96
        %v2426 = vpop.permute.xlu0 %2425
        %2427 = vrot.lane.b32.xlu0 %v2350, 96
        %v2428 = vpop.permute.xlu0 %2427
        %2433 = vrot.lane.b32.xlu0 %v2356, 32
        %v2434 = vpop.permute.xlu0 %2433
        %2435 = vrot.lane.b32.xlu0 %v2358, 32
        %v2436 = vpop.permute.xlu0 %2435
        %2441 = vrot.lane.b32.xlu0 %v2360, 64
        %v2442 = vpop.permute.xlu0 %2441
        %2443 = vrot.lane.b32.xlu0 %v2362, 64
        %v2444 = vpop.permute.xlu0 %2443
        %2449 = vrot.lane.b32.xlu0 %v2364, 96
        %v2450 = vpop.permute.xlu0 %2449
        %2451 = vrot.lane.b32.xlu0 %v2366, 96
        %v2452 = vpop.permute.xlu0 %2451
        %2457 = vrot.lane.b32.xlu0 %v2372, 32
        %v2458 = vpop.permute.xlu0 %2457
        %2459 = vrot.lane.b32.xlu0 %v2374, 32
        %v2460 = vpop.permute.xlu0 %2459
        %2465 = vrot.lane.b32.xlu0 %v2376, 64
        %v2466 = vpop.permute.xlu0 %2465
        %2467 = vrot.lane.b32.xlu0 %v2378, 64
        %v2468 = vpop.permute.xlu0 %2467
        %2473 = vrot.lane.b32.xlu0 %v2380, 96
        %v2474 = vpop.permute.xlu0 %2473
        %2475 = vrot.lane.b32.xlu0 %v2382, 96
        %v2476 = vpop.permute.xlu0 %2475
        %v2479 = vsel %vm1760, %v2335, %v2386
        %v2480 = vsel %vm1760, %v2336, %v2388
        %v2481 = vsel %vm1098, %v2479, %v2394
        %v2482 = vsel %vm1098, %v2480, %v2396
        %v2483 = vsel %vm2054, %v2481, %v2402
        %v2484 = vsel %vm2054, %v2482, %v2404
        %v2485 = vsel %vm1760, %v2343, %v2410
        %v2486 = vsel %vm1760, %v2344, %v2412
        %v2487 = vsel %vm1098, %v2485, %v2418
        %v2488 = vsel %vm1098, %v2486, %v2420
        %v2489 = vsel %vm2054, %v2487, %v2426
        %v2490 = vsel %vm2054, %v2488, %v2428
        %v2491 = vsel %vm1760, %v2352, %v2434
        %v2492 = vsel %vm1760, %v2354, %v2436
        %v2493 = vsel %vm1098, %v2491, %v2442
        %v2494 = vsel %vm1098, %v2492, %v2444
        %v2495 = vsel %vm2054, %v2493, %v2450
        %v2496 = vsel %vm2054, %v2494, %v2452
        %v2497 = vsel %vm1760, %v2368, %v2458
        %v2498 = vsel %vm1760, %v2370, %v2460
        %v2499 = vsel %vm1098, %v2497, %v2466
        %v2500 = vsel %vm1098, %v2498, %v2468
        %v2501 = vsel %vm2054, %v2499, %v2474
        %v2502 = vsel %vm2054, %v2500, %v2476
        %v2503 = vpack.c.bf16 %v2484, %v2483
        %v2504 = vpack.c.bf16 %v2490, %v2489
        %v2505 = vpack.c.bf16 %v2496, %v2495
        %v2506 = vpack.c.bf16 %v2502, %v2501
        %2507 = vmatpush.bf16.msra.mxu0 %v2217
        %2508 = vmatpush.bf16.msra.mxu0 %v2216
        %2509 = vmatpush.bf16.msra.mxu0 %v2215
        %2510 = vmatpush.bf16.msra.mxu0 %v2214
        %2511 = vmatpush.bf16.msra.mxu0 %v2213
        %2512 = vmatpush.bf16.msra.mxu0 %v2212
        %2513 = vmatpush.bf16.msra.mxu0 %v2211
        %2514 = vmatpush.bf16.msra.mxu0 %v2210
        %2515 = vmatmul.bf16.gmra.mxu0 %v2503
        %v2516 = vpop.f32.mrf.mxu0
        %v2517 = vadd.f32 %v2080, %v2516
        %v2518 = vpop.f32.mrf.mxu0
        %v2519 = vadd.f32 %v2080, %v2518
        %2520 = vdwg.mxu0
        %2521 = vmatpush.bf16.msra.mxu0 %v2225
        %2522 = vmatpush.bf16.msra.mxu0 %v2224
        %2523 = vmatpush.bf16.msra.mxu0 %v2223
        %2524 = vmatpush.bf16.msra.mxu0 %v2222
        %2525 = vmatpush.bf16.msra.mxu0 %v2221
        %2526 = vmatpush.bf16.msra.mxu0 %v2220
        %2527 = vmatpush.bf16.msra.mxu0 %v2219
        %2528 = vmatpush.bf16.msra.mxu0 %v2218
        %2529 = vmatmul.bf16.gmra.mxu0 %v2504
        %v2530 = vpop.f32.mrf.mxu0
        %v2531 = vadd.f32 %v2517, %v2530
        %v2532 = vpop.f32.mrf.mxu0
        %v2533 = vadd.f32 %v2519, %v2532
        %2534 = vdwg.mxu0
        %2535 = vmatpush.bf16.msra.mxu0 %v2233
        %2536 = vmatpush.bf16.msra.mxu0 %v2232
        %2537 = vmatpush.bf16.msra.mxu0 %v2231
        %2538 = vmatpush.bf16.msra.mxu0 %v2230
        %2539 = vmatpush.bf16.msra.mxu0 %v2229
        %2540 = vmatpush.bf16.msra.mxu0 %v2228
        %2541 = vmatpush.bf16.msra.mxu0 %v2227
        %2542 = vmatpush.bf16.msra.mxu0 %v2226
        %2543 = vmatmul.bf16.gmra.mxu0 %v2505
        %v2544 = vpop.f32.mrf.mxu0
        %v2545 = vadd.f32 %v2531, %v2544
        %v2546 = vpop.f32.mrf.mxu0
        %v2547 = vadd.f32 %v2533, %v2546
        %2548 = vdwg.mxu0
        %2549 = vmatpush.bf16.msra.mxu0 %v2241
        %2550 = vmatpush.bf16.msra.mxu0 %v2240
        %2551 = vmatpush.bf16.msra.mxu0 %v2239
        %2552 = vmatpush.bf16.msra.mxu0 %v2238
        %2553 = vmatpush.bf16.msra.mxu0 %v2237
        %2554 = vmatpush.bf16.msra.mxu0 %v2236
        %2555 = vmatpush.bf16.msra.mxu0 %v2235
        %2556 = vmatpush.bf16.msra.mxu0 %v2234
        %2557 = vmatmul.bf16.gmra.mxu0 %v2506
        %v2558 = vpop.f32.mrf.mxu0
        %v2559 = vadd.f32 %v2545, %v2558
        %v2560 = vpop.f32.mrf.mxu0
        %v2561 = vadd.f32 %v2547, %v2560
        %2562 = vdwg.mxu0
        %v2563 = vmax.f32 %v2559, 0.0
        %v2564 = vmax.f32 %v2561, 0.0
        %2565 = vst.msk [vmem:[#allocation3 + $0x9] sm:$0xff] %vm1098, %v2563
        %2566 = vst.msk [vmem:[#allocation3 + $0x11] sm:$0x1] %vm2333, %v2564
        %v2567 = vld [vmem:[%s2351] ss:$2 sm:$0xff]
        %v2568 = vld [vmem:[%s2353] ss:$2 sm:$0x1]
        %v2569 = vld [vmem:[%s2355] ss:$2 sm:$0xff]
        %v2570 = vld [vmem:[%s2357] ss:$2 sm:$0x1]
        %v2571 = vld [vmem:[%s2359] ss:$2 sm:$0xff]
        %v2572 = vld [vmem:[%s2361] ss:$2 sm:$0x1]
        %v2573 = vld [vmem:[%s2363] ss:$2 sm:$0xff]
        %v2574 = vld [vmem:[%s2365] ss:$2 sm:$0x1]
        %v2575 = vld [vmem:[%s2367] ss:$2 sm:$0xff]
        %v2576 = vld [vmem:[%s2369] ss:$2 sm:$0x1]
        %v2577 = vld [vmem:[%s2371] ss:$2 sm:$0xff]
        %v2578 = vld [vmem:[%s2373] ss:$2 sm:$0x1]
        %v2579 = vld [vmem:[%s2375] ss:$2 sm:$0xff]
        %v2580 = vld [vmem:[%s2377] ss:$2 sm:$0x1]
        %v2581 = vld [vmem:[%s2379] ss:$2 sm:$0xff]
        %v2582 = vld [vmem:[%s2381] ss:$2 sm:$0x1]
        %s2583 = scalar_lea.vmem [#allocation2], 126
        %v2584 = vld [vmem:[%s2583] ss:$2 sm:$0xff]
        %s2585 = scalar_lea.vmem [#allocation2], 142
        %v2586 = vld [vmem:[%s2585] ss:$2 sm:$0x1]
        %s2587 = scalar_lea.vmem [#allocation2], 127
        %v2588 = vld [vmem:[%s2587] ss:$2 sm:$0xff]
        %s2589 = scalar_lea.vmem [#allocation2], 143
        %v2590 = vld [vmem:[%s2589] ss:$2 sm:$0x1]
        %s2591 = scalar_lea.vmem [#allocation2], 128
        %v2592 = vld [vmem:[%s2591] ss:$2 sm:$0xff]
        %s2593 = scalar_lea.vmem [#allocation2], 144
        %v2594 = vld [vmem:[%s2593] ss:$2 sm:$0x1]
        %s2595 = scalar_lea.vmem [#allocation2], 129
        %v2596 = vld [vmem:[%s2595] ss:$2 sm:$0xff]
        %s2597 = scalar_lea.vmem [#allocation2], 145
        %v2598 = vld [vmem:[%s2597] ss:$2 sm:$0x1]
        %s2599 = scalar_lea.vmem [#allocation2], 147
        %v2600 = vld [vmem:[%s2599] ss:$2 sm:$0xff]
        %s2601 = scalar_lea.vmem [#allocation2], 163
        %v2602 = vld [vmem:[%s2601] ss:$2 sm:$0x1]
        %s2603 = scalar_lea.vmem [#allocation2], 148
        %v2604 = vld [vmem:[%s2603] ss:$2 sm:$0xff]
        %s2605 = scalar_lea.vmem [#allocation2], 164
        %v2606 = vld [vmem:[%s2605] ss:$2 sm:$0x1]
        %s2607 = scalar_lea.vmem [#allocation2], 149
        %v2608 = vld [vmem:[%s2607] ss:$2 sm:$0xff]
        %s2609 = scalar_lea.vmem [#allocation2], 165
        %v2610 = vld [vmem:[%s2609] ss:$2 sm:$0x1]
        %s2611 = scalar_lea.vmem [#allocation2], 150
        %v2612 = vld [vmem:[%s2611] ss:$2 sm:$0xff]
        %s2613 = scalar_lea.vmem [#allocation2], 166
        %v2614 = vld [vmem:[%s2613] ss:$2 sm:$0x1]
        %2617 = vrot.lane.b32.xlu0 %v2569, 32
        %v2618 = vpop.permute.xlu0 %2617
        %2619 = vrot.lane.b32.xlu0 %v2570, 32
        %v2620 = vpop.permute.xlu0 %2619
        %2625 = vrot.lane.b32.xlu0 %v2571, 64
        %v2626 = vpop.permute.xlu0 %2625
        %2627 = vrot.lane.b32.xlu0 %v2572, 64
        %v2628 = vpop.permute.xlu0 %2627
        %2633 = vrot.lane.b32.xlu0 %v2573, 96
        %v2634 = vpop.permute.xlu0 %2633
        %2635 = vrot.lane.b32.xlu0 %v2574, 96
        %v2636 = vpop.permute.xlu0 %2635
        %2641 = vrot.lane.b32.xlu0 %v2577, 32
        %v2642 = vpop.permute.xlu0 %2641
        %2643 = vrot.lane.b32.xlu0 %v2578, 32
        %v2644 = vpop.permute.xlu0 %2643
        %2649 = vrot.lane.b32.xlu0 %v2579, 64
        %v2650 = vpop.permute.xlu0 %2649
        %2651 = vrot.lane.b32.xlu0 %v2580, 64
        %v2652 = vpop.permute.xlu0 %2651
        %2657 = vrot.lane.b32.xlu0 %v2581, 96
        %v2658 = vpop.permute.xlu0 %2657
        %2659 = vrot.lane.b32.xlu0 %v2582, 96
        %v2660 = vpop.permute.xlu0 %2659
        %2665 = vrot.lane.b32.xlu0 %v2588, 32
        %v2666 = vpop.permute.xlu0 %2665
        %2667 = vrot.lane.b32.xlu0 %v2590, 32
        %v2668 = vpop.permute.xlu0 %2667
        %2673 = vrot.lane.b32.xlu0 %v2592, 64
        %v2674 = vpop.permute.xlu0 %2673
        %2675 = vrot.lane.b32.xlu0 %v2594, 64
        %v2676 = vpop.permute.xlu0 %2675
        %2681 = vrot.lane.b32.xlu0 %v2596, 96
        %v2682 = vpop.permute.xlu0 %2681
        %2683 = vrot.lane.b32.xlu0 %v2598, 96
        %v2684 = vpop.permute.xlu0 %2683
        %2689 = vrot.lane.b32.xlu0 %v2604, 32
        %v2690 = vpop.permute.xlu0 %2689
        %2691 = vrot.lane.b32.xlu0 %v2606, 32
        %v2692 = vpop.permute.xlu0 %2691
        %2697 = vrot.lane.b32.xlu0 %v2608, 64
        %v2698 = vpop.permute.xlu0 %2697
        %2699 = vrot.lane.b32.xlu0 %v2610, 64
        %v2700 = vpop.permute.xlu0 %2699
        %2705 = vrot.lane.b32.xlu0 %v2612, 96
        %v2706 = vpop.permute.xlu0 %2705
        %2707 = vrot.lane.b32.xlu0 %v2614, 96
        %v2708 = vpop.permute.xlu0 %2707
        %v2711 = vsel %vm1760, %v2567, %v2618
        %v2712 = vsel %vm1760, %v2568, %v2620
        %v2713 = vsel %vm1098, %v2711, %v2626
        %v2714 = vsel %vm1098, %v2712, %v2628
        %v2715 = vsel %vm2054, %v2713, %v2634
        %v2716 = vsel %vm2054, %v2714, %v2636
        %v2717 = vsel %vm1760, %v2575, %v2642
        %v2718 = vsel %vm1760, %v2576, %v2644
        %v2719 = vsel %vm1098, %v2717, %v2650
        %v2720 = vsel %vm1098, %v2718, %v2652
        %v2721 = vsel %vm2054, %v2719, %v2658
        %v2722 = vsel %vm2054, %v2720, %v2660
        %v2723 = vsel %vm1760, %v2584, %v2666
        %v2724 = vsel %vm1760, %v2586, %v2668
        %v2725 = vsel %vm1098, %v2723, %v2674
        %v2726 = vsel %vm1098, %v2724, %v2676
        %v2727 = vsel %vm2054, %v2725, %v2682
        %v2728 = vsel %vm2054, %v2726, %v2684
        %v2729 = vsel %vm1760, %v2600, %v2690
        %v2730 = vsel %vm1760, %v2602, %v2692
        %v2731 = vsel %vm1098, %v2729, %v2698
        %v2732 = vsel %vm1098, %v2730, %v2700
        %v2733 = vsel %vm2054, %v2731, %v2706
        %v2734 = vsel %vm2054, %v2732, %v2708
        %v2735 = vpack.c.bf16 %v2716, %v2715
        %v2736 = vpack.c.bf16 %v2722, %v2721
        %v2737 = vpack.c.bf16 %v2728, %v2727
        %v2738 = vpack.c.bf16 %v2734, %v2733
        %2739 = vmatpush.bf16.msra.mxu0 %v2217
        %2740 = vmatpush.bf16.msra.mxu0 %v2216
        %2741 = vmatpush.bf16.msra.mxu0 %v2215
        %2742 = vmatpush.bf16.msra.mxu0 %v2214
        %2743 = vmatpush.bf16.msra.mxu0 %v2213
        %2744 = vmatpush.bf16.msra.mxu0 %v2212
        %2745 = vmatpush.bf16.msra.mxu0 %v2211
        %2746 = vmatpush.bf16.msra.mxu0 %v2210
        %2747 = vmatmul.bf16.gmra.mxu0 %v2735
        %v2748 = vpop.f32.mrf.mxu0
        %v2749 = vadd.f32 %v2080, %v2748
        %v2750 = vpop.f32.mrf.mxu0
        %v2751 = vadd.f32 %v2080, %v2750
        %2752 = vdwg.mxu0
        %2753 = vmatpush.bf16.msra.mxu0 %v2225
        %2754 = vmatpush.bf16.msra.mxu0 %v2224
        %2755 = vmatpush.bf16.msra.mxu0 %v2223
        %2756 = vmatpush.bf16.msra.mxu0 %v2222
        %2757 = vmatpush.bf16.msra.mxu0 %v2221
        %2758 = vmatpush.bf16.msra.mxu0 %v2220
        %2759 = vmatpush.bf16.msra.mxu0 %v2219
        %2760 = vmatpush.bf16.msra.mxu0 %v2218
        %2761 = vmatmul.bf16.gmra.mxu0 %v2736
        %v2762 = vpop.f32.mrf.mxu0
        %v2763 = vadd.f32 %v2749, %v2762
        %v2764 = vpop.f32.mrf.mxu0
        %v2765 = vadd.f32 %v2751, %v2764
        %2766 = vdwg.mxu0
        %2767 = vmatpush.bf16.msra.mxu0 %v2233
        %2768 = vmatpush.bf16.msra.mxu0 %v2232
        %2769 = vmatpush.bf16.msra.mxu0 %v2231
        %2770 = vmatpush.bf16.msra.mxu0 %v2230
        %2771 = vmatpush.bf16.msra.mxu0 %v2229
        %2772 = vmatpush.bf16.msra.mxu0 %v2228
        %2773 = vmatpush.bf16.msra.mxu0 %v2227
        %2774 = vmatpush.bf16.msra.mxu0 %v2226
        %2775 = vmatmul.bf16.gmra.mxu0 %v2737
        %v2776 = vpop.f32.mrf.mxu0
        %v2777 = vadd.f32 %v2763, %v2776
        %v2778 = vpop.f32.mrf.mxu0
        %v2779 = vadd.f32 %v2765, %v2778
        %2780 = vdwg.mxu0
        %2781 = vmatpush.bf16.msra.mxu0 %v2241
        %2782 = vmatpush.bf16.msra.mxu0 %v2240
        %2783 = vmatpush.bf16.msra.mxu0 %v2239
        %2784 = vmatpush.bf16.msra.mxu0 %v2238
        %2785 = vmatpush.bf16.msra.mxu0 %v2237
        %2786 = vmatpush.bf16.msra.mxu0 %v2236
        %2787 = vmatpush.bf16.msra.mxu0 %v2235
        %2788 = vmatpush.bf16.msra.mxu0 %v2234
        %2789 = vmatmul.bf16.gmra.mxu0 %v2738
        %v2790 = vpop.f32.mrf.mxu0
        %v2791 = vadd.f32 %v2777, %v2790
        %v2792 = vpop.f32.mrf.mxu0
        %v2793 = vadd.f32 %v2779, %v2792
        %2794 = vdwg.mxu0
        %v2795 = vmax.f32 %v2791, 0.0
        %v2796 = vmax.f32 %v2793, 0.0
        %2797 = vst.msk [vmem:[#allocation3 + $0x12] sm:$0xff] %vm1098, %v2795
        %2798 = vst.msk [vmem:[#allocation3 + $0x1a] sm:$0x1] %vm2333, %v2796
        %v2799 = vld [vmem:[%s2583] ss:$2 sm:$0xff]
        %v2800 = vld [vmem:[%s2585] ss:$2 sm:$0x1]
        %v2801 = vld [vmem:[%s2587] ss:$2 sm:$0xff]
        %v2802 = vld [vmem:[%s2589] ss:$2 sm:$0x1]
        %v2803 = vld [vmem:[%s2591] ss:$2 sm:$0xff]
        %v2804 = vld [vmem:[%s2593] ss:$2 sm:$0x1]
        %v2805 = vld [vmem:[%s2595] ss:$2 sm:$0xff]
        %v2806 = vld [vmem:[%s2597] ss:$2 sm:$0x1]
        %v2807 = vld [vmem:[%s2599] ss:$2 sm:$0xff]
        %v2808 = vld [vmem:[%s2601] ss:$2 sm:$0x1]
        %v2809 = vld [vmem:[%s2603] ss:$2 sm:$0xff]
        %v2810 = vld [vmem:[%s2605] ss:$2 sm:$0x1]
        %v2811 = vld [vmem:[%s2607] ss:$2 sm:$0xff]
        %v2812 = vld [vmem:[%s2609] ss:$2 sm:$0x1]
        %v2813 = vld [vmem:[%s2611] ss:$2 sm:$0xff]
        %v2814 = vld [vmem:[%s2613] ss:$2 sm:$0x1]
        %s2815 = scalar_lea.vmem [#allocation2], 168
        %v2816 = vld [vmem:[%s2815] ss:$2 sm:$0xff]
        %s2817 = scalar_lea.vmem [#allocation2], 184
        %v2818 = vld [vmem:[%s2817] ss:$2 sm:$0x1]
        %s2819 = scalar_lea.vmem [#allocation2], 169
        %v2820 = vld [vmem:[%s2819] ss:$2 sm:$0xff]
        %s2821 = scalar_lea.vmem [#allocation2], 185
        %v2822 = vld [vmem:[%s2821] ss:$2 sm:$0x1]
        %s2823 = scalar_lea.vmem [#allocation2], 170
        %v2824 = vld [vmem:[%s2823] ss:$2 sm:$0xff]
        %s2825 = scalar_lea.vmem [#allocation2], 186
        %v2826 = vld [vmem:[%s2825] ss:$2 sm:$0x1]
        %s2827 = scalar_lea.vmem [#allocation2], 171
        %v2828 = vld [vmem:[%s2827] ss:$2 sm:$0xff]
        %s2829 = scalar_lea.vmem [#allocation2], 187
        %v2830 = vld [vmem:[%s2829] ss:$2 sm:$0x1]
        %s2831 = scalar_lea.vmem [#allocation2], 189
        %v2832 = vld [vmem:[%s2831] ss:$2 sm:$0xff]
        %s2833 = scalar_lea.vmem [#allocation2], 205
        %v2834 = vld [vmem:[%s2833] ss:$2 sm:$0x1]
        %s2835 = scalar_lea.vmem [#allocation2], 190
        %v2836 = vld [vmem:[%s2835] ss:$2 sm:$0xff]
        %s2837 = scalar_lea.vmem [#allocation2], 206
        %v2838 = vld [vmem:[%s2837] ss:$2 sm:$0x1]
        %s2839 = scalar_lea.vmem [#allocation2], 191
        %v2840 = vld [vmem:[%s2839] ss:$2 sm:$0xff]
        %s2841 = scalar_lea.vmem [#allocation2], 207
        %v2842 = vld [vmem:[%s2841] ss:$2 sm:$0x1]
        %s2843 = scalar_lea.vmem [#allocation2], 192
        %v2844 = vld [vmem:[%s2843] ss:$2 sm:$0xff]
        %s2845 = scalar_lea.vmem [#allocation2], 208
        %v2846 = vld [vmem:[%s2845] ss:$2 sm:$0x1]
        %2849 = vrot.lane.b32.xlu0 %v2801, 32
        %v2850 = vpop.permute.xlu0 %2849
        %2851 = vrot.lane.b32.xlu0 %v2802, 32
        %v2852 = vpop.permute.xlu0 %2851
        %2857 = vrot.lane.b32.xlu0 %v2803, 64
        %v2858 = vpop.permute.xlu0 %2857
        %2859 = vrot.lane.b32.xlu0 %v2804, 64
        %v2860 = vpop.permute.xlu0 %2859
        %2865 = vrot.lane.b32.xlu0 %v2805, 96
        %v2866 = vpop.permute.xlu0 %2865
        %2867 = vrot.lane.b32.xlu0 %v2806, 96
        %v2868 = vpop.permute.xlu0 %2867
        %2873 = vrot.lane.b32.xlu0 %v2809, 32
        %v2874 = vpop.permute.xlu0 %2873
        %2875 = vrot.lane.b32.xlu0 %v2810, 32
        %v2876 = vpop.permute.xlu0 %2875
        %2881 = vrot.lane.b32.xlu0 %v2811, 64
        %v2882 = vpop.permute.xlu0 %2881
        %2883 = vrot.lane.b32.xlu0 %v2812, 64
        %v2884 = vpop.permute.xlu0 %2883
        %2889 = vrot.lane.b32.xlu0 %v2813, 96
        %v2890 = vpop.permute.xlu0 %2889
        %2891 = vrot.lane.b32.xlu0 %v2814, 96
        %v2892 = vpop.permute.xlu0 %2891
        %2897 = vrot.lane.b32.xlu0 %v2820, 32
        %v2898 = vpop.permute.xlu0 %2897
        %2899 = vrot.lane.b32.xlu0 %v2822, 32
        %v2900 = vpop.permute.xlu0 %2899
        %2905 = vrot.lane.b32.xlu0 %v2824, 64
        %v2906 = vpop.permute.xlu0 %2905
        %2907 = vrot.lane.b32.xlu0 %v2826, 64
        %v2908 = vpop.permute.xlu0 %2907
        %2913 = vrot.lane.b32.xlu0 %v2828, 96
        %v2914 = vpop.permute.xlu0 %2913
        %2915 = vrot.lane.b32.xlu0 %v2830, 96
        %v2916 = vpop.permute.xlu0 %2915
        %2921 = vrot.lane.b32.xlu0 %v2836, 32
        %v2922 = vpop.permute.xlu0 %2921
        %2923 = vrot.lane.b32.xlu0 %v2838, 32
        %v2924 = vpop.permute.xlu0 %2923
        %2929 = vrot.lane.b32.xlu0 %v2840, 64
        %v2930 = vpop.permute.xlu0 %2929
        %2931 = vrot.lane.b32.xlu0 %v2842, 64
        %v2932 = vpop.permute.xlu0 %2931
        %2937 = vrot.lane.b32.xlu0 %v2844, 96
        %v2938 = vpop.permute.xlu0 %2937
        %2939 = vrot.lane.b32.xlu0 %v2846, 96
        %v2940 = vpop.permute.xlu0 %2939
        %v2943 = vsel %vm1760, %v2799, %v2850
        %v2944 = vsel %vm1760, %v2800, %v2852
        %v2945 = vsel %vm1098, %v2943, %v2858
        %v2946 = vsel %vm1098, %v2944, %v2860
        %v2947 = vsel %vm2054, %v2945, %v2866
        %v2948 = vsel %vm2054, %v2946, %v2868
        %v2949 = vsel %vm1760, %v2807, %v2874
        %v2950 = vsel %vm1760, %v2808, %v2876
        %v2951 = vsel %vm1098, %v2949, %v2882
        %v2952 = vsel %vm1098, %v2950, %v2884
        %v2953 = vsel %vm2054, %v2951, %v2890
        %v2954 = vsel %vm2054, %v2952, %v2892
        %v2955 = vsel %vm1760, %v2816, %v2898
        %v2956 = vsel %vm1760, %v2818, %v2900
        %v2957 = vsel %vm1098, %v2955, %v2906
        %v2958 = vsel %vm1098, %v2956, %v2908
        %v2959 = vsel %vm2054, %v2957, %v2914
        %v2960 = vsel %vm2054, %v2958, %v2916
        %v2961 = vsel %vm1760, %v2832, %v2922
        %v2962 = vsel %vm1760, %v2834, %v2924
        %v2963 = vsel %vm1098, %v2961, %v2930
        %v2964 = vsel %vm1098, %v2962, %v2932
        %v2965 = vsel %vm2054, %v2963, %v2938
        %v2966 = vsel %vm2054, %v2964, %v2940
        %v2967 = vpack.c.bf16 %v2948, %v2947
        %v2968 = vpack.c.bf16 %v2954, %v2953
        %v2969 = vpack.c.bf16 %v2960, %v2959
        %v2970 = vpack.c.bf16 %v2966, %v2965
        %2971 = vmatpush.bf16.msra.mxu0 %v2217
        %2972 = vmatpush.bf16.msra.mxu0 %v2216
        %2973 = vmatpush.bf16.msra.mxu0 %v2215
        %2974 = vmatpush.bf16.msra.mxu0 %v2214
        %2975 = vmatpush.bf16.msra.mxu0 %v2213
        %2976 = vmatpush.bf16.msra.mxu0 %v2212
        %2977 = vmatpush.bf16.msra.mxu0 %v2211
        %2978 = vmatpush.bf16.msra.mxu0 %v2210
        %2979 = vmatmul.bf16.gmra.mxu0 %v2967
        %v2980 = vpop.f32.mrf.mxu0
        %v2981 = vadd.f32 %v2080, %v2980
        %v2982 = vpop.f32.mrf.mxu0
        %v2983 = vadd.f32 %v2080, %v2982
        %2984 = vdwg.mxu0
        %2985 = vmatpush.bf16.msra.mxu0 %v2225
        %2986 = vmatpush.bf16.msra.mxu0 %v2224
        %2987 = vmatpush.bf16.msra.mxu0 %v2223
        %2988 = vmatpush.bf16.msra.mxu0 %v2222
        %2989 = vmatpush.bf16.msra.mxu0 %v2221
        %2990 = vmatpush.bf16.msra.mxu0 %v2220
        %2991 = vmatpush.bf16.msra.mxu0 %v2219
        %2992 = vmatpush.bf16.msra.mxu0 %v2218
        %2993 = vmatmul.bf16.gmra.mxu0 %v2968
        %v2994 = vpop.f32.mrf.mxu0
        %v2995 = vadd.f32 %v2981, %v2994
        %v2996 = vpop.f32.mrf.mxu0
        %v2997 = vadd.f32 %v2983, %v2996
        %2998 = vdwg.mxu0
        %2999 = vmatpush.bf16.msra.mxu0 %v2233
        %3000 = vmatpush.bf16.msra.mxu0 %v2232
        %3001 = vmatpush.bf16.msra.mxu0 %v2231
        %3002 = vmatpush.bf16.msra.mxu0 %v2230
        %3003 = vmatpush.bf16.msra.mxu0 %v2229
        %3004 = vmatpush.bf16.msra.mxu0 %v2228
        %3005 = vmatpush.bf16.msra.mxu0 %v2227
        %3006 = vmatpush.bf16.msra.mxu0 %v2226
        %3007 = vmatmul.bf16.gmra.mxu0 %v2969
        %v3008 = vpop.f32.mrf.mxu0
        %v3009 = vadd.f32 %v2995, %v3008
        %v3010 = vpop.f32.mrf.mxu0
        %v3011 = vadd.f32 %v2997, %v3010
        %3012 = vdwg.mxu0
        %3013 = vmatpush.bf16.msra.mxu0 %v2241
        %3014 = vmatpush.bf16.msra.mxu0 %v2240
        %3015 = vmatpush.bf16.msra.mxu0 %v2239
        %3016 = vmatpush.bf16.msra.mxu0 %v2238
        %3017 = vmatpush.bf16.msra.mxu0 %v2237
        %3018 = vmatpush.bf16.msra.mxu0 %v2236
        %3019 = vmatpush.bf16.msra.mxu0 %v2235
        %3020 = vmatpush.bf16.msra.mxu0 %v2234
        %3021 = vmatmul.bf16.gmra.mxu0 %v2970
        %v3022 = vpop.f32.mrf.mxu0
        %v3023 = vadd.f32 %v3009, %v3022
        %v3024 = vpop.f32.mrf.mxu0
        %v3025 = vadd.f32 %v3011, %v3024
        %3026 = vdwg.mxu0
        %v3027 = vmax.f32 %v3023, 0.0
        %v3028 = vmax.f32 %v3025, 0.0
        %3029 = vst.msk [vmem:[#allocation3 + $0x1b] sm:$0xff] %vm1098, %v3027
        %3030 = vst.msk [vmem:[#allocation3 + $0x23] sm:$0x1] %vm2333, %v3028
        %v3031 = vld [vmem:[%s2815] ss:$2 sm:$0xff]
        %v3032 = vld [vmem:[%s2817] ss:$2 sm:$0x1]
        %v3033 = vld [vmem:[%s2819] ss:$2 sm:$0xff]
        %v3034 = vld [vmem:[%s2821] ss:$2 sm:$0x1]
        %v3035 = vld [vmem:[%s2823] ss:$2 sm:$0xff]
        %v3036 = vld [vmem:[%s2825] ss:$2 sm:$0x1]
        %v3037 = vld [vmem:[%s2827] ss:$2 sm:$0xff]
        %v3038 = vld [vmem:[%s2829] ss:$2 sm:$0x1]
        %v3039 = vld [vmem:[%s2831] ss:$2 sm:$0xff]
        %v3040 = vld [vmem:[%s2833] ss:$2 sm:$0x1]
        %v3041 = vld [vmem:[%s2835] ss:$2 sm:$0xff]
        %v3042 = vld [vmem:[%s2837] ss:$2 sm:$0x1]
        %v3043 = vld [vmem:[%s2839] ss:$2 sm:$0xff]
        %v3044 = vld [vmem:[%s2841] ss:$2 sm:$0x1]
        %v3045 = vld [vmem:[%s2843] ss:$2 sm:$0xff]
        %v3046 = vld [vmem:[%s2845] ss:$2 sm:$0x1]
        %s3047 = scalar_lea.vmem [#allocation2], 210
        %v3048 = vld [vmem:[%s3047] ss:$2 sm:$0xff]
        %s3049 = scalar_lea.vmem [#allocation2], 226
        %v3050 = vld [vmem:[%s3049] ss:$2 sm:$0x1]
        %s3051 = scalar_lea.vmem [#allocation2], 211
        %v3052 = vld [vmem:[%s3051] ss:$2 sm:$0xff]
        %s3053 = scalar_lea.vmem [#allocation2], 227
        %v3054 = vld [vmem:[%s3053] ss:$2 sm:$0x1]
        %s3055 = scalar_lea.vmem [#allocation2], 212
        %v3056 = vld [vmem:[%s3055] ss:$2 sm:$0xff]
        %s3057 = scalar_lea.vmem [#allocation2], 228
        %v3058 = vld [vmem:[%s3057] ss:$2 sm:$0x1]
        %s3059 = scalar_lea.vmem [#allocation2], 213
        %v3060 = vld [vmem:[%s3059] ss:$2 sm:$0xff]
        %s3061 = scalar_lea.vmem [#allocation2], 229
        %v3062 = vld [vmem:[%s3061] ss:$2 sm:$0x1]
        %s3063 = scalar_lea.vmem [#allocation2], 231
        %v3064 = vld [vmem:[%s3063] ss:$2 sm:$0xff]
        %s3065 = scalar_lea.vmem [#allocation2], 247
        %v3066 = vld [vmem:[%s3065] ss:$2 sm:$0x1]
        %s3067 = scalar_lea.vmem [#allocation2], 232
        %v3068 = vld [vmem:[%s3067] ss:$2 sm:$0xff]
        %s3069 = scalar_lea.vmem [#allocation2], 248
        %v3070 = vld [vmem:[%s3069] ss:$2 sm:$0x1]
        %s3071 = scalar_lea.vmem [#allocation2], 233
        %v3072 = vld [vmem:[%s3071] ss:$2 sm:$0xff]
        %s3073 = scalar_lea.vmem [#allocation2], 249
        %v3074 = vld [vmem:[%s3073] ss:$2 sm:$0x1]
        %s3075 = scalar_lea.vmem [#allocation2], 234
        %v3076 = vld [vmem:[%s3075] ss:$2 sm:$0xff]
        %s3077 = scalar_lea.vmem [#allocation2], 250
        %v3078 = vld [vmem:[%s3077] ss:$2 sm:$0x1]
        %3081 = vrot.lane.b32.xlu0 %v3033, 32
        %v3082 = vpop.permute.xlu0 %3081
        %3083 = vrot.lane.b32.xlu0 %v3034, 32
        %v3084 = vpop.permute.xlu0 %3083
        %3089 = vrot.lane.b32.xlu0 %v3035, 64
        %v3090 = vpop.permute.xlu0 %3089
        %3091 = vrot.lane.b32.xlu0 %v3036, 64
        %v3092 = vpop.permute.xlu0 %3091
        %3097 = vrot.lane.b32.xlu0 %v3037, 96
        %v3098 = vpop.permute.xlu0 %3097
        %3099 = vrot.lane.b32.xlu0 %v3038, 96
        %v3100 = vpop.permute.xlu0 %3099
        %3105 = vrot.lane.b32.xlu0 %v3041, 32
        %v3106 = vpop.permute.xlu0 %3105
        %3107 = vrot.lane.b32.xlu0 %v3042, 32
        %v3108 = vpop.permute.xlu0 %3107
        %3113 = vrot.lane.b32.xlu0 %v3043, 64
        %v3114 = vpop.permute.xlu0 %3113
        %3115 = vrot.lane.b32.xlu0 %v3044, 64
        %v3116 = vpop.permute.xlu0 %3115
        %3121 = vrot.lane.b32.xlu0 %v3045, 96
        %v3122 = vpop.permute.xlu0 %3121
        %3123 = vrot.lane.b32.xlu0 %v3046, 96
        %v3124 = vpop.permute.xlu0 %3123
        %3129 = vrot.lane.b32.xlu0 %v3052, 32
        %v3130 = vpop.permute.xlu0 %3129
        %3131 = vrot.lane.b32.xlu0 %v3054, 32
        %v3132 = vpop.permute.xlu0 %3131
        %3137 = vrot.lane.b32.xlu0 %v3056, 64
        %v3138 = vpop.permute.xlu0 %3137
        %3139 = vrot.lane.b32.xlu0 %v3058, 64
        %v3140 = vpop.permute.xlu0 %3139
        %3145 = vrot.lane.b32.xlu0 %v3060, 96
        %v3146 = vpop.permute.xlu0 %3145
        %3147 = vrot.lane.b32.xlu0 %v3062, 96
        %v3148 = vpop.permute.xlu0 %3147
        %3153 = vrot.lane.b32.xlu0 %v3068, 32
        %v3154 = vpop.permute.xlu0 %3153
        %3155 = vrot.lane.b32.xlu0 %v3070, 32
        %v3156 = vpop.permute.xlu0 %3155
        %3161 = vrot.lane.b32.xlu0 %v3072, 64
        %v3162 = vpop.permute.xlu0 %3161
        %3163 = vrot.lane.b32.xlu0 %v3074, 64
        %v3164 = vpop.permute.xlu0 %3163
        %3169 = vrot.lane.b32.xlu0 %v3076, 96
        %v3170 = vpop.permute.xlu0 %3169
        %3171 = vrot.lane.b32.xlu0 %v3078, 96
        %v3172 = vpop.permute.xlu0 %3171
        %v3175 = vsel %vm1760, %v3031, %v3082
        %v3176 = vsel %vm1760, %v3032, %v3084
        %v3177 = vsel %vm1098, %v3175, %v3090
        %v3178 = vsel %vm1098, %v3176, %v3092
        %v3179 = vsel %vm2054, %v3177, %v3098
        %v3180 = vsel %vm2054, %v3178, %v3100
        %v3181 = vsel %vm1760, %v3039, %v3106
        %v3182 = vsel %vm1760, %v3040, %v3108
        %v3183 = vsel %vm1098, %v3181, %v3114
        %v3184 = vsel %vm1098, %v3182, %v3116
        %v3185 = vsel %vm2054, %v3183, %v3122
        %v3186 = vsel %vm2054, %v3184, %v3124
        %v3187 = vsel %vm1760, %v3048, %v3130
        %v3188 = vsel %vm1760, %v3050, %v3132
        %v3189 = vsel %vm1098, %v3187, %v3138
        %v3190 = vsel %vm1098, %v3188, %v3140
        %v3191 = vsel %vm2054, %v3189, %v3146
        %v3192 = vsel %vm2054, %v3190, %v3148
        %v3193 = vsel %vm1760, %v3064, %v3154
        %v3194 = vsel %vm1760, %v3066, %v3156
        %v3195 = vsel %vm1098, %v3193, %v3162
        %v3196 = vsel %vm1098, %v3194, %v3164
        %v3197 = vsel %vm2054, %v3195, %v3170
        %v3198 = vsel %vm2054, %v3196, %v3172
        %v3199 = vpack.c.bf16 %v3180, %v3179
        %v3200 = vpack.c.bf16 %v3186, %v3185
        %v3201 = vpack.c.bf16 %v3192, %v3191
        %v3202 = vpack.c.bf16 %v3198, %v3197
        %3203 = vmatpush.bf16.msra.mxu0 %v2217
        %3204 = vmatpush.bf16.msra.mxu0 %v2216
        %3205 = vmatpush.bf16.msra.mxu0 %v2215
        %3206 = vmatpush.bf16.msra.mxu0 %v2214
        %3207 = vmatpush.bf16.msra.mxu0 %v2213
        %3208 = vmatpush.bf16.msra.mxu0 %v2212
        %3209 = vmatpush.bf16.msra.mxu0 %v2211
        %3210 = vmatpush.bf16.msra.mxu0 %v2210
        %3211 = vmatmul.bf16.gmra.mxu0 %v3199
        %v3212 = vpop.f32.mrf.mxu0
        %v3213 = vadd.f32 %v2080, %v3212
        %v3214 = vpop.f32.mrf.mxu0
        %v3215 = vadd.f32 %v2080, %v3214
        %3216 = vdwg.mxu0
        %3217 = vmatpush.bf16.msra.mxu0 %v2225
        %3218 = vmatpush.bf16.msra.mxu0 %v2224
        %3219 = vmatpush.bf16.msra.mxu0 %v2223
        %3220 = vmatpush.bf16.msra.mxu0 %v2222
        %3221 = vmatpush.bf16.msra.mxu0 %v2221
        %3222 = vmatpush.bf16.msra.mxu0 %v2220
        %3223 = vmatpush.bf16.msra.mxu0 %v2219
        %3224 = vmatpush.bf16.msra.mxu0 %v2218
        %3225 = vmatmul.bf16.gmra.mxu0 %v3200
        %v3226 = vpop.f32.mrf.mxu0
        %v3227 = vadd.f32 %v3213, %v3226
        %v3228 = vpop.f32.mrf.mxu0
        %v3229 = vadd.f32 %v3215, %v3228
        %3230 = vdwg.mxu0
        %3231 = vmatpush.bf16.msra.mxu0 %v2233
        %3232 = vmatpush.bf16.msra.mxu0 %v2232
        %3233 = vmatpush.bf16.msra.mxu0 %v2231
        %3234 = vmatpush.bf16.msra.mxu0 %v2230
        %3235 = vmatpush.bf16.msra.mxu0 %v2229
        %3236 = vmatpush.bf16.msra.mxu0 %v2228
        %3237 = vmatpush.bf16.msra.mxu0 %v2227
        %3238 = vmatpush.bf16.msra.mxu0 %v2226
        %3239 = vmatmul.bf16.gmra.mxu0 %v3201
        %v3240 = vpop.f32.mrf.mxu0
        %v3241 = vadd.f32 %v3227, %v3240
        %v3242 = vpop.f32.mrf.mxu0
        %v3243 = vadd.f32 %v3229, %v3242
        %3244 = vdwg.mxu0
        %3245 = vmatpush.bf16.msra.mxu0 %v2241
        %3246 = vmatpush.bf16.msra.mxu0 %v2240
        %3247 = vmatpush.bf16.msra.mxu0 %v2239
        %3248 = vmatpush.bf16.msra.mxu0 %v2238
        %3249 = vmatpush.bf16.msra.mxu0 %v2237
        %3250 = vmatpush.bf16.msra.mxu0 %v2236
        %3251 = vmatpush.bf16.msra.mxu0 %v2235
        %3252 = vmatpush.bf16.msra.mxu0 %v2234
        %3253 = vmatmul.bf16.gmra.mxu0 %v3202
        %v3254 = vpop.f32.mrf.mxu0
        %v3255 = vadd.f32 %v3241, %v3254
        %v3256 = vpop.f32.mrf.mxu0
        %v3257 = vadd.f32 %v3243, %v3256
        %3258 = vdwg.mxu0
        %v3259 = vmax.f32 %v3255, 0.0
        %v3260 = vmax.f32 %v3257, 0.0
        %3261 = vst.msk [vmem:[#allocation3 + $0x24] sm:$0xff] %vm1098, %v3259
        %3262 = vst.msk [vmem:[#allocation3 + $0x2c] sm:$0x1] %vm2333, %v3260
        %v3263 = vld [vmem:[%s3047] ss:$2 sm:$0xff]
        %v3264 = vld [vmem:[%s3049] ss:$2 sm:$0x1]
        %v3265 = vld [vmem:[%s3051] ss:$2 sm:$0xff]
        %v3266 = vld [vmem:[%s3053] ss:$2 sm:$0x1]
        %v3267 = vld [vmem:[%s3055] ss:$2 sm:$0xff]
        %v3268 = vld [vmem:[%s3057] ss:$2 sm:$0x1]
        %v3269 = vld [vmem:[%s3059] ss:$2 sm:$0xff]
        %v3270 = vld [vmem:[%s3061] ss:$2 sm:$0x1]
        %v3271 = vld [vmem:[%s3063] ss:$2 sm:$0xff]
        %v3272 = vld [vmem:[%s3065] ss:$2 sm:$0x1]
        %v3273 = vld [vmem:[%s3067] ss:$2 sm:$0xff]
        %v3274 = vld [vmem:[%s3069] ss:$2 sm:$0x1]
        %v3275 = vld [vmem:[%s3071] ss:$2 sm:$0xff]
        %v3276 = vld [vmem:[%s3073] ss:$2 sm:$0x1]
        %v3277 = vld [vmem:[%s3075] ss:$2 sm:$0xff]
        %v3278 = vld [vmem:[%s3077] ss:$2 sm:$0x1]
        %s3279 = scalar_lea.vmem [#allocation2], 252
        %v3280 = vld [vmem:[%s3279] ss:$2 sm:$0xff]
        %s3281 = scalar_lea.vmem [#allocation2], 268
        %v3282 = vld [vmem:[%s3281] ss:$2 sm:$0x1]
        %s3283 = scalar_lea.vmem [#allocation2], 253
        %v3284 = vld [vmem:[%s3283] ss:$2 sm:$0xff]
        %s3285 = scalar_lea.vmem [#allocation2], 269
        %v3286 = vld [vmem:[%s3285] ss:$2 sm:$0x1]
        %s3287 = scalar_lea.vmem [#allocation2], 254
        %v3288 = vld [vmem:[%s3287] ss:$2 sm:$0xff]
        %s3289 = scalar_lea.vmem [#allocation2], 270
        %v3290 = vld [vmem:[%s3289] ss:$2 sm:$0x1]
        %s3291 = scalar_lea.vmem [#allocation2], 255
        %v3292 = vld [vmem:[%s3291] ss:$2 sm:$0xff]
        %s3293 = scalar_lea.vmem [#allocation2], 271
        %v3294 = vld [vmem:[%s3293] ss:$2 sm:$0x1]
        %s3295 = scalar_lea.vmem [#allocation2], 273
        %v3296 = vld [vmem:[%s3295] ss:$2 sm:$0xff]
        %s3297 = scalar_lea.vmem [#allocation2], 289
        %v3298 = vld [vmem:[%s3297] ss:$2 sm:$0x1]
        %s3299 = scalar_lea.vmem [#allocation2], 274
        %v3300 = vld [vmem:[%s3299] ss:$2 sm:$0xff]
        %s3301 = scalar_lea.vmem [#allocation2], 290
        %v3302 = vld [vmem:[%s3301] ss:$2 sm:$0x1]
        %s3303 = scalar_lea.vmem [#allocation2], 275
        %v3304 = vld [vmem:[%s3303] ss:$2 sm:$0xff]
        %s3305 = scalar_lea.vmem [#allocation2], 291
        %v3306 = vld [vmem:[%s3305] ss:$2 sm:$0x1]
        %s3307 = scalar_lea.vmem [#allocation2], 276
        %v3308 = vld [vmem:[%s3307] ss:$2 sm:$0xff]
        %s3309 = scalar_lea.vmem [#allocation2], 292
        %v3310 = vld [vmem:[%s3309] ss:$2 sm:$0x1]
        %3313 = vrot.lane.b32.xlu0 %v3265, 32
        %v3314 = vpop.permute.xlu0 %3313
        %3315 = vrot.lane.b32.xlu0 %v3266, 32
        %v3316 = vpop.permute.xlu0 %3315
        %3321 = vrot.lane.b32.xlu0 %v3267, 64
        %v3322 = vpop.permute.xlu0 %3321
        %3323 = vrot.lane.b32.xlu0 %v3268, 64
        %v3324 = vpop.permute.xlu0 %3323
        %3329 = vrot.lane.b32.xlu0 %v3269, 96
        %v3330 = vpop.permute.xlu0 %3329
        %3331 = vrot.lane.b32.xlu0 %v3270, 96
        %v3332 = vpop.permute.xlu0 %3331
        %3337 = vrot.lane.b32.xlu0 %v3273, 32
        %v3338 = vpop.permute.xlu0 %3337
        %3339 = vrot.lane.b32.xlu0 %v3274, 32
        %v3340 = vpop.permute.xlu0 %3339
        %3345 = vrot.lane.b32.xlu0 %v3275, 64
        %v3346 = vpop.permute.xlu0 %3345
        %3347 = vrot.lane.b32.xlu0 %v3276, 64
        %v3348 = vpop.permute.xlu0 %3347
        %3353 = vrot.lane.b32.xlu0 %v3277, 96
        %v3354 = vpop.permute.xlu0 %3353
        %3355 = vrot.lane.b32.xlu0 %v3278, 96
        %v3356 = vpop.permute.xlu0 %3355
        %3361 = vrot.lane.b32.xlu0 %v3284, 32
        %v3362 = vpop.permute.xlu0 %3361
        %3363 = vrot.lane.b32.xlu0 %v3286, 32
        %v3364 = vpop.permute.xlu0 %3363
        %3369 = vrot.lane.b32.xlu0 %v3288, 64
        %v3370 = vpop.permute.xlu0 %3369
        %3371 = vrot.lane.b32.xlu0 %v3290, 64
        %v3372 = vpop.permute.xlu0 %3371
        %3377 = vrot.lane.b32.xlu0 %v3292, 96
        %v3378 = vpop.permute.xlu0 %3377
        %3379 = vrot.lane.b32.xlu0 %v3294, 96
        %v3380 = vpop.permute.xlu0 %3379
        %3385 = vrot.lane.b32.xlu0 %v3300, 32
        %v3386 = vpop.permute.xlu0 %3385
        %3387 = vrot.lane.b32.xlu0 %v3302, 32
        %v3388 = vpop.permute.xlu0 %3387
        %3393 = vrot.lane.b32.xlu0 %v3304, 64
        %v3394 = vpop.permute.xlu0 %3393
        %3395 = vrot.lane.b32.xlu0 %v3306, 64
        %v3396 = vpop.permute.xlu0 %3395
        %3401 = vrot.lane.b32.xlu0 %v3308, 96
        %v3402 = vpop.permute.xlu0 %3401
        %3403 = vrot.lane.b32.xlu0 %v3310, 96
        %v3404 = vpop.permute.xlu0 %3403
        %v3407 = vsel %vm1760, %v3263, %v3314
        %v3408 = vsel %vm1760, %v3264, %v3316
        %v3409 = vsel %vm1098, %v3407, %v3322
        %v3410 = vsel %vm1098, %v3408, %v3324
        %v3411 = vsel %vm2054, %v3409, %v3330
        %v3412 = vsel %vm2054, %v3410, %v3332
        %v3413 = vsel %vm1760, %v3271, %v3338
        %v3414 = vsel %vm1760, %v3272, %v3340
        %v3415 = vsel %vm1098, %v3413, %v3346
        %v3416 = vsel %vm1098, %v3414, %v3348
        %v3417 = vsel %vm2054, %v3415, %v3354
        %v3418 = vsel %vm2054, %v3416, %v3356
        %v3419 = vsel %vm1760, %v3280, %v3362
        %v3420 = vsel %vm1760, %v3282, %v3364
        %v3421 = vsel %vm1098, %v3419, %v3370
        %v3422 = vsel %vm1098, %v3420, %v3372
        %v3423 = vsel %vm2054, %v3421, %v3378
        %v3424 = vsel %vm2054, %v3422, %v3380
        %v3425 = vsel %vm1760, %v3296, %v3386
        %v3426 = vsel %vm1760, %v3298, %v3388
        %v3427 = vsel %vm1098, %v3425, %v3394
        %v3428 = vsel %vm1098, %v3426, %v3396
        %v3429 = vsel %vm2054, %v3427, %v3402
        %v3430 = vsel %vm2054, %v3428, %v3404
        %v3431 = vpack.c.bf16 %v3412, %v3411
        %v3432 = vpack.c.bf16 %v3418, %v3417
        %v3433 = vpack.c.bf16 %v3424, %v3423
        %v3434 = vpack.c.bf16 %v3430, %v3429
        %3435 = vmatpush.bf16.msra.mxu0 %v2217
        %3436 = vmatpush.bf16.msra.mxu0 %v2216
        %3437 = vmatpush.bf16.msra.mxu0 %v2215
        %3438 = vmatpush.bf16.msra.mxu0 %v2214
        %3439 = vmatpush.bf16.msra.mxu0 %v2213
        %3440 = vmatpush.bf16.msra.mxu0 %v2212
        %3441 = vmatpush.bf16.msra.mxu0 %v2211
        %3442 = vmatpush.bf16.msra.mxu0 %v2210
        %3443 = vmatmul.bf16.gmra.mxu0 %v3431
        %v3444 = vpop.f32.mrf.mxu0
        %v3445 = vadd.f32 %v2080, %v3444
        %v3446 = vpop.f32.mrf.mxu0
        %v3447 = vadd.f32 %v2080, %v3446
        %3448 = vdwg.mxu0
        %3449 = vmatpush.bf16.msra.mxu0 %v2225
        %3450 = vmatpush.bf16.msra.mxu0 %v2224
        %3451 = vmatpush.bf16.msra.mxu0 %v2223
        %3452 = vmatpush.bf16.msra.mxu0 %v2222
        %3453 = vmatpush.bf16.msra.mxu0 %v2221
        %3454 = vmatpush.bf16.msra.mxu0 %v2220
        %3455 = vmatpush.bf16.msra.mxu0 %v2219
        %3456 = vmatpush.bf16.msra.mxu0 %v2218
        %3457 = vmatmul.bf16.gmra.mxu0 %v3432
        %v3458 = vpop.f32.mrf.mxu0
        %v3459 = vadd.f32 %v3445, %v3458
        %v3460 = vpop.f32.mrf.mxu0
        %v3461 = vadd.f32 %v3447, %v3460
        %3462 = vdwg.mxu0
        %3463 = vmatpush.bf16.msra.mxu0 %v2233
        %3464 = vmatpush.bf16.msra.mxu0 %v2232
        %3465 = vmatpush.bf16.msra.mxu0 %v2231
        %3466 = vmatpush.bf16.msra.mxu0 %v2230
        %3467 = vmatpush.bf16.msra.mxu0 %v2229
        %3468 = vmatpush.bf16.msra.mxu0 %v2228
        %3469 = vmatpush.bf16.msra.mxu0 %v2227
        %3470 = vmatpush.bf16.msra.mxu0 %v2226
        %3471 = vmatmul.bf16.gmra.mxu0 %v3433
        %v3472 = vpop.f32.mrf.mxu0
        %v3473 = vadd.f32 %v3459, %v3472
        %v3474 = vpop.f32.mrf.mxu0
        %v3475 = vadd.f32 %v3461, %v3474
        %3476 = vdwg.mxu0
        %3477 = vmatpush.bf16.msra.mxu0 %v2241
        %3478 = vmatpush.bf16.msra.mxu0 %v2240
        %3479 = vmatpush.bf16.msra.mxu0 %v2239
        %3480 = vmatpush.bf16.msra.mxu0 %v2238
        %3481 = vmatpush.bf16.msra.mxu0 %v2237
        %3482 = vmatpush.bf16.msra.mxu0 %v2236
        %3483 = vmatpush.bf16.msra.mxu0 %v2235
        %3484 = vmatpush.bf16.msra.mxu0 %v2234
        %3485 = vmatmul.bf16.gmra.mxu0 %v3434
        %v3486 = vpop.f32.mrf.mxu0
        %v3487 = vadd.f32 %v3473, %v3486
        %v3488 = vpop.f32.mrf.mxu0
        %v3489 = vadd.f32 %v3475, %v3488
        %3490 = vdwg.mxu0
        %v3491 = vmax.f32 %v3487, 0.0
        %v3492 = vmax.f32 %v3489, 0.0
        %3493 = vst.msk [vmem:[#allocation3 + $0x2d] sm:$0xff] %vm1098, %v3491
        %3494 = vst.msk [vmem:[#allocation3 + $0x35] sm:$0x1] %vm2333, %v3492
        %v3495 = vld [vmem:[%s3279] ss:$2 sm:$0xff]
        %v3496 = vld [vmem:[%s3281] ss:$2 sm:$0x1]
        %v3497 = vld [vmem:[%s3283] ss:$2 sm:$0xff]
        %v3498 = vld [vmem:[%s3285] ss:$2 sm:$0x1]
        %v3499 = vld [vmem:[%s3287] ss:$2 sm:$0xff]
        %v3500 = vld [vmem:[%s3289] ss:$2 sm:$0x1]
        %v3501 = vld [vmem:[%s3291] ss:$2 sm:$0xff]
        %v3502 = vld [vmem:[%s3293] ss:$2 sm:$0x1]
        %v3503 = vld [vmem:[%s3295] ss:$2 sm:$0xff]
        %v3504 = vld [vmem:[%s3297] ss:$2 sm:$0x1]
        %v3505 = vld [vmem:[%s3299] ss:$2 sm:$0xff]
        %v3506 = vld [vmem:[%s3301] ss:$2 sm:$0x1]
        %v3507 = vld [vmem:[%s3303] ss:$2 sm:$0xff]
        %v3508 = vld [vmem:[%s3305] ss:$2 sm:$0x1]
        %v3509 = vld [vmem:[%s3307] ss:$2 sm:$0xff]
        %v3510 = vld [vmem:[%s3309] ss:$2 sm:$0x1]
        %s3511 = scalar_lea.vmem [#allocation2], 294
        %v3512 = vld [vmem:[%s3511] ss:$2 sm:$0xff]
        %s3513 = scalar_lea.vmem [#allocation2], 310
        %v3514 = vld [vmem:[%s3513] ss:$2 sm:$0x1]
        %s3515 = scalar_lea.vmem [#allocation2], 295
        %v3516 = vld [vmem:[%s3515] ss:$2 sm:$0xff]
        %s3517 = scalar_lea.vmem [#allocation2], 311
        %v3518 = vld [vmem:[%s3517] ss:$2 sm:$0x1]
        %s3519 = scalar_lea.vmem [#allocation2], 296
        %v3520 = vld [vmem:[%s3519] ss:$2 sm:$0xff]
        %s3521 = scalar_lea.vmem [#allocation2], 312
        %v3522 = vld [vmem:[%s3521] ss:$2 sm:$0x1]
        %s3523 = scalar_lea.vmem [#allocation2], 297
        %v3524 = vld [vmem:[%s3523] ss:$2 sm:$0xff]
        %s3525 = scalar_lea.vmem [#allocation2], 313
        %v3526 = vld [vmem:[%s3525] ss:$2 sm:$0x1]
        %s3527 = scalar_lea.vmem [#allocation2], 315
        %v3528 = vld [vmem:[%s3527] ss:$2 sm:$0xff]
        %s3529 = scalar_lea.vmem [#allocation2], 331
        %v3530 = vld [vmem:[%s3529] ss:$2 sm:$0x1]
        %s3531 = scalar_lea.vmem [#allocation2], 316
        %v3532 = vld [vmem:[%s3531] ss:$2 sm:$0xff]
        %s3533 = scalar_lea.vmem [#allocation2], 332
        %v3534 = vld [vmem:[%s3533] ss:$2 sm:$0x1]
        %s3535 = scalar_lea.vmem [#allocation2], 317
        %v3536 = vld [vmem:[%s3535] ss:$2 sm:$0xff]
        %s3537 = scalar_lea.vmem [#allocation2], 333
        %v3538 = vld [vmem:[%s3537] ss:$2 sm:$0x1]
        %s3539 = scalar_lea.vmem [#allocation2], 318
        %v3540 = vld [vmem:[%s3539] ss:$2 sm:$0xff]
        %s3541 = scalar_lea.vmem [#allocation2], 334
        %v3542 = vld [vmem:[%s3541] ss:$2 sm:$0x1]
        %3545 = vrot.lane.b32.xlu0 %v3497, 32
        %v3546 = vpop.permute.xlu0 %3545
        %3547 = vrot.lane.b32.xlu0 %v3498, 32
        %v3548 = vpop.permute.xlu0 %3547
        %3553 = vrot.lane.b32.xlu0 %v3499, 64
        %v3554 = vpop.permute.xlu0 %3553
        %3555 = vrot.lane.b32.xlu0 %v3500, 64
        %v3556 = vpop.permute.xlu0 %3555
        %3561 = vrot.lane.b32.xlu0 %v3501, 96
        %v3562 = vpop.permute.xlu0 %3561
        %3563 = vrot.lane.b32.xlu0 %v3502, 96
        %v3564 = vpop.permute.xlu0 %3563
        %3569 = vrot.lane.b32.xlu0 %v3505, 32
        %v3570 = vpop.permute.xlu0 %3569
        %3571 = vrot.lane.b32.xlu0 %v3506, 32
        %v3572 = vpop.permute.xlu0 %3571
        %3577 = vrot.lane.b32.xlu0 %v3507, 64
        %v3578 = vpop.permute.xlu0 %3577
        %3579 = vrot.lane.b32.xlu0 %v3508, 64
        %v3580 = vpop.permute.xlu0 %3579
        %3585 = vrot.lane.b32.xlu0 %v3509, 96
        %v3586 = vpop.permute.xlu0 %3585
        %3587 = vrot.lane.b32.xlu0 %v3510, 96
        %v3588 = vpop.permute.xlu0 %3587
        %3593 = vrot.lane.b32.xlu0 %v3516, 32
        %v3594 = vpop.permute.xlu0 %3593
        %3595 = vrot.lane.b32.xlu0 %v3518, 32
        %v3596 = vpop.permute.xlu0 %3595
        %3601 = vrot.lane.b32.xlu0 %v3520, 64
        %v3602 = vpop.permute.xlu0 %3601
        %3603 = vrot.lane.b32.xlu0 %v3522, 64
        %v3604 = vpop.permute.xlu0 %3603
        %3609 = vrot.lane.b32.xlu0 %v3524, 96
        %v3610 = vpop.permute.xlu0 %3609
        %3611 = vrot.lane.b32.xlu0 %v3526, 96
        %v3612 = vpop.permute.xlu0 %3611
        %3617 = vrot.lane.b32.xlu0 %v3532, 32
        %v3618 = vpop.permute.xlu0 %3617
        %3619 = vrot.lane.b32.xlu0 %v3534, 32
        %v3620 = vpop.permute.xlu0 %3619
        %3625 = vrot.lane.b32.xlu0 %v3536, 64
        %v3626 = vpop.permute.xlu0 %3625
        %3627 = vrot.lane.b32.xlu0 %v3538, 64
        %v3628 = vpop.permute.xlu0 %3627
        %3633 = vrot.lane.b32.xlu0 %v3540, 96
        %v3634 = vpop.permute.xlu0 %3633
        %3635 = vrot.lane.b32.xlu0 %v3542, 96
        %v3636 = vpop.permute.xlu0 %3635
        %v3639 = vsel %vm1760, %v3495, %v3546
        %v3640 = vsel %vm1760, %v3496, %v3548
        %v3641 = vsel %vm1098, %v3639, %v3554
        %v3642 = vsel %vm1098, %v3640, %v3556
        %v3643 = vsel %vm2054, %v3641, %v3562
        %v3644 = vsel %vm2054, %v3642, %v3564
        %v3645 = vsel %vm1760, %v3503, %v3570
        %v3646 = vsel %vm1760, %v3504, %v3572
        %v3647 = vsel %vm1098, %v3645, %v3578
        %v3648 = vsel %vm1098, %v3646, %v3580
        %v3649 = vsel %vm2054, %v3647, %v3586
        %v3650 = vsel %vm2054, %v3648, %v3588
        %v3651 = vsel %vm1760, %v3512, %v3594
        %v3652 = vsel %vm1760, %v3514, %v3596
        %v3653 = vsel %vm1098, %v3651, %v3602
        %v3654 = vsel %vm1098, %v3652, %v3604
        %v3655 = vsel %vm2054, %v3653, %v3610
        %v3656 = vsel %vm2054, %v3654, %v3612
        %v3657 = vsel %vm1760, %v3528, %v3618
        %v3658 = vsel %vm1760, %v3530, %v3620
        %v3659 = vsel %vm1098, %v3657, %v3626
        %v3660 = vsel %vm1098, %v3658, %v3628
        %v3661 = vsel %vm2054, %v3659, %v3634
        %v3662 = vsel %vm2054, %v3660, %v3636
        %v3663 = vpack.c.bf16 %v3644, %v3643
        %v3664 = vpack.c.bf16 %v3650, %v3649
        %v3665 = vpack.c.bf16 %v3656, %v3655
        %v3666 = vpack.c.bf16 %v3662, %v3661
        %3667 = vmatpush.bf16.msra.mxu0 %v2217
        %3668 = vmatpush.bf16.msra.mxu0 %v2216
        %3669 = vmatpush.bf16.msra.mxu0 %v2215
        %3670 = vmatpush.bf16.msra.mxu0 %v2214
        %3671 = vmatpush.bf16.msra.mxu0 %v2213
        %3672 = vmatpush.bf16.msra.mxu0 %v2212
        %3673 = vmatpush.bf16.msra.mxu0 %v2211
        %3674 = vmatpush.bf16.msra.mxu0 %v2210
        %3675 = vmatmul.bf16.gmra.mxu0 %v3663
        %v3676 = vpop.f32.mrf.mxu0
        %v3677 = vadd.f32 %v2080, %v3676
        %v3678 = vpop.f32.mrf.mxu0
        %v3679 = vadd.f32 %v2080, %v3678
        %3680 = vdwg.mxu0
        %3681 = vmatpush.bf16.msra.mxu0 %v2225
        %3682 = vmatpush.bf16.msra.mxu0 %v2224
        %3683 = vmatpush.bf16.msra.mxu0 %v2223
        %3684 = vmatpush.bf16.msra.mxu0 %v2222
        %3685 = vmatpush.bf16.msra.mxu0 %v2221
        %3686 = vmatpush.bf16.msra.mxu0 %v2220
        %3687 = vmatpush.bf16.msra.mxu0 %v2219
        %3688 = vmatpush.bf16.msra.mxu0 %v2218
        %3689 = vmatmul.bf16.gmra.mxu0 %v3664
        %v3690 = vpop.f32.mrf.mxu0
        %v3691 = vadd.f32 %v3677, %v3690
        %v3692 = vpop.f32.mrf.mxu0
        %v3693 = vadd.f32 %v3679, %v3692
        %3694 = vdwg.mxu0
        %3695 = vmatpush.bf16.msra.mxu0 %v2233
        %3696 = vmatpush.bf16.msra.mxu0 %v2232
        %3697 = vmatpush.bf16.msra.mxu0 %v2231
        %3698 = vmatpush.bf16.msra.mxu0 %v2230
        %3699 = vmatpush.bf16.msra.mxu0 %v2229
        %3700 = vmatpush.bf16.msra.mxu0 %v2228
        %3701 = vmatpush.bf16.msra.mxu0 %v2227
        %3702 = vmatpush.bf16.msra.mxu0 %v2226
        %3703 = vmatmul.bf16.gmra.mxu0 %v3665
        %v3704 = vpop.f32.mrf.mxu0
        %v3705 = vadd.f32 %v3691, %v3704
        %v3706 = vpop.f32.mrf.mxu0
        %v3707 = vadd.f32 %v3693, %v3706
        %3708 = vdwg.mxu0
        %3709 = vmatpush.bf16.msra.mxu0 %v2241
        %3710 = vmatpush.bf16.msra.mxu0 %v2240
        %3711 = vmatpush.bf16.msra.mxu0 %v2239
        %3712 = vmatpush.bf16.msra.mxu0 %v2238
        %3713 = vmatpush.bf16.msra.mxu0 %v2237
        %3714 = vmatpush.bf16.msra.mxu0 %v2236
        %3715 = vmatpush.bf16.msra.mxu0 %v2235
        %3716 = vmatpush.bf16.msra.mxu0 %v2234
        %3717 = vmatmul.bf16.gmra.mxu0 %v3666
        %v3718 = vpop.f32.mrf.mxu0
        %v3719 = vadd.f32 %v3705, %v3718
        %v3720 = vpop.f32.mrf.mxu0
        %v3721 = vadd.f32 %v3707, %v3720
        %3722 = vdwg.mxu0
        %v3723 = vmax.f32 %v3719, 0.0
        %v3724 = vmax.f32 %v3721, 0.0
        %3725 = vst.msk [vmem:[#allocation3 + $0x36] sm:$0xff] %vm1098, %v3723
        %3726 = vst.msk [vmem:[#allocation3 + $0x3e] sm:$0x1] %vm2333, %v3724
        %v3727 = vld [vmem:[%s3511] ss:$2 sm:$0xff]
        %v3728 = vld [vmem:[%s3513] ss:$2 sm:$0x1]
        %v3729 = vld [vmem:[%s3515] ss:$2 sm:$0xff]
        %v3730 = vld [vmem:[%s3517] ss:$2 sm:$0x1]
        %v3731 = vld [vmem:[%s3519] ss:$2 sm:$0xff]
        %v3732 = vld [vmem:[%s3521] ss:$2 sm:$0x1]
        %v3733 = vld [vmem:[%s3523] ss:$2 sm:$0xff]
        %v3734 = vld [vmem:[%s3525] ss:$2 sm:$0x1]
        %v3735 = vld [vmem:[%s3527] ss:$2 sm:$0xff]
        %v3736 = vld [vmem:[%s3529] ss:$2 sm:$0x1]
        %v3737 = vld [vmem:[%s3531] ss:$2 sm:$0xff]
        %v3738 = vld [vmem:[%s3533] ss:$2 sm:$0x1]
        %v3739 = vld [vmem:[%s3535] ss:$2 sm:$0xff]
        %v3740 = vld [vmem:[%s3537] ss:$2 sm:$0x1]
        %v3741 = vld [vmem:[%s3539] ss:$2 sm:$0xff]
        %v3742 = vld [vmem:[%s3541] ss:$2 sm:$0x1]
        %s3743 = scalar_lea.vmem [#allocation2], 336
        %v3744 = vld [vmem:[%s3743] ss:$2 sm:$0xff]
        %s3745 = scalar_lea.vmem [#allocation2], 352
        %v3746 = vld [vmem:[%s3745] ss:$2 sm:$0x1]
        %s3747 = scalar_lea.vmem [#allocation2], 337
        %v3748 = vld [vmem:[%s3747] ss:$2 sm:$0xff]
        %s3749 = scalar_lea.vmem [#allocation2], 353
        %v3750 = vld [vmem:[%s3749] ss:$2 sm:$0x1]
        %s3751 = scalar_lea.vmem [#allocation2], 338
        %v3752 = vld [vmem:[%s3751] ss:$2 sm:$0xff]
        %s3753 = scalar_lea.vmem [#allocation2], 354
        %v3754 = vld [vmem:[%s3753] ss:$2 sm:$0x1]
        %s3755 = scalar_lea.vmem [#allocation2], 339
        %v3756 = vld [vmem:[%s3755] ss:$2 sm:$0xff]
        %s3757 = scalar_lea.vmem [#allocation2], 355
        %v3758 = vld [vmem:[%s3757] ss:$2 sm:$0x1]
        %s3759 = scalar_lea.vmem [#allocation2], 357
        %v3760 = vld [vmem:[%s3759] ss:$2 sm:$0xff]
        %s3761 = scalar_lea.vmem [#allocation2], 373
        %v3762 = vld [vmem:[%s3761] ss:$2 sm:$0x1]
        %s3763 = scalar_lea.vmem [#allocation2], 358
        %v3764 = vld [vmem:[%s3763] ss:$2 sm:$0xff]
        %s3765 = scalar_lea.vmem [#allocation2], 374
        %v3766 = vld [vmem:[%s3765] ss:$2 sm:$0x1]
        %s3767 = scalar_lea.vmem [#allocation2], 359
        %v3768 = vld [vmem:[%s3767] ss:$2 sm:$0xff]
        %s3769 = scalar_lea.vmem [#allocation2], 375
        %v3770 = vld [vmem:[%s3769] ss:$2 sm:$0x1]
        %s3771 = scalar_lea.vmem [#allocation2], 360
        %v3772 = vld [vmem:[%s3771] ss:$2 sm:$0xff]
        %s3773 = scalar_lea.vmem [#allocation2], 376
        %v3774 = vld [vmem:[%s3773] ss:$2 sm:$0x1]
        %3777 = vrot.lane.b32.xlu0 %v3729, 32
        %v3778 = vpop.permute.xlu0 %3777
        %3779 = vrot.lane.b32.xlu0 %v3730, 32
        %v3780 = vpop.permute.xlu0 %3779
        %3785 = vrot.lane.b32.xlu0 %v3731, 64
        %v3786 = vpop.permute.xlu0 %3785
        %3787 = vrot.lane.b32.xlu0 %v3732, 64
        %v3788 = vpop.permute.xlu0 %3787
        %3793 = vrot.lane.b32.xlu0 %v3733, 96
        %v3794 = vpop.permute.xlu0 %3793
        %3795 = vrot.lane.b32.xlu0 %v3734, 96
        %v3796 = vpop.permute.xlu0 %3795
        %3801 = vrot.lane.b32.xlu0 %v3737, 32
        %v3802 = vpop.permute.xlu0 %3801
        %3803 = vrot.lane.b32.xlu0 %v3738, 32
        %v3804 = vpop.permute.xlu0 %3803
        %3809 = vrot.lane.b32.xlu0 %v3739, 64
        %v3810 = vpop.permute.xlu0 %3809
        %3811 = vrot.lane.b32.xlu0 %v3740, 64
        %v3812 = vpop.permute.xlu0 %3811
        %3817 = vrot.lane.b32.xlu0 %v3741, 96
        %v3818 = vpop.permute.xlu0 %3817
        %3819 = vrot.lane.b32.xlu0 %v3742, 96
        %v3820 = vpop.permute.xlu0 %3819
        %3825 = vrot.lane.b32.xlu0 %v3748, 32
        %v3826 = vpop.permute.xlu0 %3825
        %3827 = vrot.lane.b32.xlu0 %v3750, 32
        %v3828 = vpop.permute.xlu0 %3827
        %3833 = vrot.lane.b32.xlu0 %v3752, 64
        %v3834 = vpop.permute.xlu0 %3833
        %3835 = vrot.lane.b32.xlu0 %v3754, 64
        %v3836 = vpop.permute.xlu0 %3835
        %3841 = vrot.lane.b32.xlu0 %v3756, 96
        %v3842 = vpop.permute.xlu0 %3841
        %3843 = vrot.lane.b32.xlu0 %v3758, 96
        %v3844 = vpop.permute.xlu0 %3843
        %3849 = vrot.lane.b32.xlu0 %v3764, 32
        %v3850 = vpop.permute.xlu0 %3849
        %3851 = vrot.lane.b32.xlu0 %v3766, 32
        %v3852 = vpop.permute.xlu0 %3851
        %3857 = vrot.lane.b32.xlu0 %v3768, 64
        %v3858 = vpop.permute.xlu0 %3857
        %3859 = vrot.lane.b32.xlu0 %v3770, 64
        %v3860 = vpop.permute.xlu0 %3859
        %3865 = vrot.lane.b32.xlu0 %v3772, 96
        %v3866 = vpop.permute.xlu0 %3865
        %3867 = vrot.lane.b32.xlu0 %v3774, 96
        %v3868 = vpop.permute.xlu0 %3867
        %v3871 = vsel %vm1760, %v3727, %v3778
        %v3872 = vsel %vm1760, %v3728, %v3780
        %v3873 = vsel %vm1098, %v3871, %v3786
        %v3874 = vsel %vm1098, %v3872, %v3788
        %v3875 = vsel %vm2054, %v3873, %v3794
        %v3876 = vsel %vm2054, %v3874, %v3796
        %v3877 = vsel %vm1760, %v3735, %v3802
        %v3878 = vsel %vm1760, %v3736, %v3804
        %v3879 = vsel %vm1098, %v3877, %v3810
        %v3880 = vsel %vm1098, %v3878, %v3812
        %v3881 = vsel %vm2054, %v3879, %v3818
        %v3882 = vsel %vm2054, %v3880, %v3820
        %v3883 = vsel %vm1760, %v3744, %v3826
        %v3884 = vsel %vm1760, %v3746, %v3828
        %v3885 = vsel %vm1098, %v3883, %v3834
        %v3886 = vsel %vm1098, %v3884, %v3836
        %v3887 = vsel %vm2054, %v3885, %v3842
        %v3888 = vsel %vm2054, %v3886, %v3844
        %v3889 = vsel %vm1760, %v3760, %v3850
        %v3890 = vsel %vm1760, %v3762, %v3852
        %v3891 = vsel %vm1098, %v3889, %v3858
        %v3892 = vsel %vm1098, %v3890, %v3860
        %v3893 = vsel %vm2054, %v3891, %v3866
        %v3894 = vsel %vm2054, %v3892, %v3868
        %v3895 = vpack.c.bf16 %v3876, %v3875
        %v3896 = vpack.c.bf16 %v3882, %v3881
        %v3897 = vpack.c.bf16 %v3888, %v3887
        %v3898 = vpack.c.bf16 %v3894, %v3893
        %3899 = vmatpush.bf16.msra.mxu0 %v2217
        %3900 = vmatpush.bf16.msra.mxu0 %v2216
        %3901 = vmatpush.bf16.msra.mxu0 %v2215
        %3902 = vmatpush.bf16.msra.mxu0 %v2214
        %3903 = vmatpush.bf16.msra.mxu0 %v2213
        %3904 = vmatpush.bf16.msra.mxu0 %v2212
        %3905 = vmatpush.bf16.msra.mxu0 %v2211
        %3906 = vmatpush.bf16.msra.mxu0 %v2210
        %3907 = vmatmul.bf16.gmra.mxu0 %v3895
        %v3908 = vpop.f32.mrf.mxu0
        %v3909 = vadd.f32 %v2080, %v3908
        %v3910 = vpop.f32.mrf.mxu0
        %v3911 = vadd.f32 %v2080, %v3910
        %3912 = vdwg.mxu0
        %3913 = vmatpush.bf16.msra.mxu0 %v2225
        %3914 = vmatpush.bf16.msra.mxu0 %v2224
        %3915 = vmatpush.bf16.msra.mxu0 %v2223
        %3916 = vmatpush.bf16.msra.mxu0 %v2222
        %3917 = vmatpush.bf16.msra.mxu0 %v2221
        %3918 = vmatpush.bf16.msra.mxu0 %v2220
        %3919 = vmatpush.bf16.msra.mxu0 %v2219
        %3920 = vmatpush.bf16.msra.mxu0 %v2218
        %3921 = vmatmul.bf16.gmra.mxu0 %v3896
        %v3922 = vpop.f32.mrf.mxu0
        %v3923 = vadd.f32 %v3909, %v3922
        %v3924 = vpop.f32.mrf.mxu0
        %v3925 = vadd.f32 %v3911, %v3924
        %3926 = vdwg.mxu0
        %3927 = vmatpush.bf16.msra.mxu0 %v2233
        %3928 = vmatpush.bf16.msra.mxu0 %v2232
        %3929 = vmatpush.bf16.msra.mxu0 %v2231
        %3930 = vmatpush.bf16.msra.mxu0 %v2230
        %3931 = vmatpush.bf16.msra.mxu0 %v2229
        %3932 = vmatpush.bf16.msra.mxu0 %v2228
        %3933 = vmatpush.bf16.msra.mxu0 %v2227
        %3934 = vmatpush.bf16.msra.mxu0 %v2226
        %3935 = vmatmul.bf16.gmra.mxu0 %v3897
        %v3936 = vpop.f32.mrf.mxu0
        %v3937 = vadd.f32 %v3923, %v3936
        %v3938 = vpop.f32.mrf.mxu0
        %v3939 = vadd.f32 %v3925, %v3938
        %3940 = vdwg.mxu0
        %3941 = vmatpush.bf16.msra.mxu0 %v2241
        %3942 = vmatpush.bf16.msra.mxu0 %v2240
        %3943 = vmatpush.bf16.msra.mxu0 %v2239
        %3944 = vmatpush.bf16.msra.mxu0 %v2238
        %3945 = vmatpush.bf16.msra.mxu0 %v2237
        %3946 = vmatpush.bf16.msra.mxu0 %v2236
        %3947 = vmatpush.bf16.msra.mxu0 %v2235
        %3948 = vmatpush.bf16.msra.mxu0 %v2234
        %3949 = vmatmul.bf16.gmra.mxu0 %v3898
        %v3950 = vpop.f32.mrf.mxu0
        %v3951 = vadd.f32 %v3937, %v3950
        %v3952 = vpop.f32.mrf.mxu0
        %v3953 = vadd.f32 %v3939, %v3952
        %3954 = vdwg.mxu0
        %v3955 = vmax.f32 %v3951, 0.0
        %v3956 = vmax.f32 %v3953, 0.0
        %3957 = vst.msk [vmem:[#allocation3 + $0x3f] sm:$0xff] %vm1098, %v3955
        %3958 = vst.msk [vmem:[#allocation3 + $0x47] sm:$0x1] %vm2333, %v3956
        %v3959 = vld [vmem:[%s3743] ss:$2 sm:$0xff]
        %v3960 = vld [vmem:[%s3745] ss:$2 sm:$0x1]
        %v3961 = vld [vmem:[%s3747] ss:$2 sm:$0xff]
        %v3962 = vld [vmem:[%s3749] ss:$2 sm:$0x1]
        %v3963 = vld [vmem:[%s3751] ss:$2 sm:$0xff]
        %v3964 = vld [vmem:[%s3753] ss:$2 sm:$0x1]
        %v3965 = vld [vmem:[%s3755] ss:$2 sm:$0xff]
        %v3966 = vld [vmem:[%s3757] ss:$2 sm:$0x1]
        %v3967 = vld [vmem:[%s3759] ss:$2 sm:$0xff]
        %v3968 = vld [vmem:[%s3761] ss:$2 sm:$0x1]
        %v3969 = vld [vmem:[%s3763] ss:$2 sm:$0xff]
        %v3970 = vld [vmem:[%s3765] ss:$2 sm:$0x1]
        %v3971 = vld [vmem:[%s3767] ss:$2 sm:$0xff]
        %v3972 = vld [vmem:[%s3769] ss:$2 sm:$0x1]
        %v3973 = vld [vmem:[%s3771] ss:$2 sm:$0xff]
        %v3974 = vld [vmem:[%s3773] ss:$2 sm:$0x1]
        %s3975 = scalar_lea.vmem [#allocation2], 378
        %v3976 = vld [vmem:[%s3975] ss:$2 sm:$0xff]
        %s3977 = scalar_lea.vmem [#allocation2], 394
        %v3978 = vld [vmem:[%s3977] ss:$2 sm:$0x1]
        %s3979 = scalar_lea.vmem [#allocation2], 379
        %v3980 = vld [vmem:[%s3979] ss:$2 sm:$0xff]
        %s3981 = scalar_lea.vmem [#allocation2], 395
        %v3982 = vld [vmem:[%s3981] ss:$2 sm:$0x1]
        %s3983 = scalar_lea.vmem [#allocation2], 380
        %v3984 = vld [vmem:[%s3983] ss:$2 sm:$0xff]
        %s3985 = scalar_lea.vmem [#allocation2], 396
        %v3986 = vld [vmem:[%s3985] ss:$2 sm:$0x1]
        %s3987 = scalar_lea.vmem [#allocation2], 381
        %v3988 = vld [vmem:[%s3987] ss:$2 sm:$0xff]
        %s3989 = scalar_lea.vmem [#allocation2], 397
        %v3990 = vld [vmem:[%s3989] ss:$2 sm:$0x1]
        %s3991 = scalar_lea.vmem [#allocation2], 399
        %v3992 = vld [vmem:[%s3991] ss:$2 sm:$0xff]
        %s3993 = scalar_lea.vmem [#allocation2], 415
        %v3994 = vld [vmem:[%s3993] ss:$2 sm:$0x1]
        %s3995 = scalar_lea.vmem [#allocation2], 400
        %v3996 = vld [vmem:[%s3995] ss:$2 sm:$0xff]
        %s3997 = scalar_lea.vmem [#allocation2], 416
        %v3998 = vld [vmem:[%s3997] ss:$2 sm:$0x1]
        %s3999 = scalar_lea.vmem [#allocation2], 401
        %v4000 = vld [vmem:[%s3999] ss:$2 sm:$0xff]
        %s4001 = scalar_lea.vmem [#allocation2], 417
        %v4002 = vld [vmem:[%s4001] ss:$2 sm:$0x1]
        %s4003 = scalar_lea.vmem [#allocation2], 402
        %v4004 = vld [vmem:[%s4003] ss:$2 sm:$0xff]
        %s4005 = scalar_lea.vmem [#allocation2], 418
        %v4006 = vld [vmem:[%s4005] ss:$2 sm:$0x1]
        %4009 = vrot.lane.b32.xlu0 %v3961, 32
        %v4010 = vpop.permute.xlu0 %4009
        %4011 = vrot.lane.b32.xlu0 %v3962, 32
        %v4012 = vpop.permute.xlu0 %4011
        %4017 = vrot.lane.b32.xlu0 %v3963, 64
        %v4018 = vpop.permute.xlu0 %4017
        %4019 = vrot.lane.b32.xlu0 %v3964, 64
        %v4020 = vpop.permute.xlu0 %4019
        %4025 = vrot.lane.b32.xlu0 %v3965, 96
        %v4026 = vpop.permute.xlu0 %4025
        %4027 = vrot.lane.b32.xlu0 %v3966, 96
        %v4028 = vpop.permute.xlu0 %4027
        %4033 = vrot.lane.b32.xlu0 %v3969, 32
        %v4034 = vpop.permute.xlu0 %4033
        %4035 = vrot.lane.b32.xlu0 %v3970, 32
        %v4036 = vpop.permute.xlu0 %4035
        %4041 = vrot.lane.b32.xlu0 %v3971, 64
        %v4042 = vpop.permute.xlu0 %4041
        %4043 = vrot.lane.b32.xlu0 %v3972, 64
        %v4044 = vpop.permute.xlu0 %4043
        %4049 = vrot.lane.b32.xlu0 %v3973, 96
        %v4050 = vpop.permute.xlu0 %4049
        %4051 = vrot.lane.b32.xlu0 %v3974, 96
        %v4052 = vpop.permute.xlu0 %4051
        %4057 = vrot.lane.b32.xlu0 %v3980, 32
        %v4058 = vpop.permute.xlu0 %4057
        %4059 = vrot.lane.b32.xlu0 %v3982, 32
        %v4060 = vpop.permute.xlu0 %4059
        %4065 = vrot.lane.b32.xlu0 %v3984, 64
        %v4066 = vpop.permute.xlu0 %4065
        %4067 = vrot.lane.b32.xlu0 %v3986, 64
        %v4068 = vpop.permute.xlu0 %4067
        %4073 = vrot.lane.b32.xlu0 %v3988, 96
        %v4074 = vpop.permute.xlu0 %4073
        %4075 = vrot.lane.b32.xlu0 %v3990, 96
        %v4076 = vpop.permute.xlu0 %4075
        %4081 = vrot.lane.b32.xlu0 %v3996, 32
        %v4082 = vpop.permute.xlu0 %4081
        %4083 = vrot.lane.b32.xlu0 %v3998, 32
        %v4084 = vpop.permute.xlu0 %4083
        %4089 = vrot.lane.b32.xlu0 %v4000, 64
        %v4090 = vpop.permute.xlu0 %4089
        %4091 = vrot.lane.b32.xlu0 %v4002, 64
        %v4092 = vpop.permute.xlu0 %4091
        %4097 = vrot.lane.b32.xlu0 %v4004, 96
        %v4098 = vpop.permute.xlu0 %4097
        %4099 = vrot.lane.b32.xlu0 %v4006, 96
        %v4100 = vpop.permute.xlu0 %4099
        %v4103 = vsel %vm1760, %v3959, %v4010
        %v4104 = vsel %vm1760, %v3960, %v4012
        %v4105 = vsel %vm1098, %v4103, %v4018
        %v4106 = vsel %vm1098, %v4104, %v4020
        %v4107 = vsel %vm2054, %v4105, %v4026
        %v4108 = vsel %vm2054, %v4106, %v4028
        %v4109 = vsel %vm1760, %v3967, %v4034
        %v4110 = vsel %vm1760, %v3968, %v4036
        %v4111 = vsel %vm1098, %v4109, %v4042
        %v4112 = vsel %vm1098, %v4110, %v4044
        %v4113 = vsel %vm2054, %v4111, %v4050
        %v4114 = vsel %vm2054, %v4112, %v4052
        %v4115 = vsel %vm1760, %v3976, %v4058
        %v4116 = vsel %vm1760, %v3978, %v4060
        %v4117 = vsel %vm1098, %v4115, %v4066
        %v4118 = vsel %vm1098, %v4116, %v4068
        %v4119 = vsel %vm2054, %v4117, %v4074
        %v4120 = vsel %vm2054, %v4118, %v4076
        %v4121 = vsel %vm1760, %v3992, %v4082
        %v4122 = vsel %vm1760, %v3994, %v4084
        %v4123 = vsel %vm1098, %v4121, %v4090
        %v4124 = vsel %vm1098, %v4122, %v4092
        %v4125 = vsel %vm2054, %v4123, %v4098
        %v4126 = vsel %vm2054, %v4124, %v4100
        %v4127 = vpack.c.bf16 %v4108, %v4107
        %v4128 = vpack.c.bf16 %v4114, %v4113
        %v4129 = vpack.c.bf16 %v4120, %v4119
        %v4130 = vpack.c.bf16 %v4126, %v4125
        %4131 = vmatpush.bf16.msra.mxu0 %v2217
        %4132 = vmatpush.bf16.msra.mxu0 %v2216
        %4133 = vmatpush.bf16.msra.mxu0 %v2215
        %4134 = vmatpush.bf16.msra.mxu0 %v2214
        %4135 = vmatpush.bf16.msra.mxu0 %v2213
        %4136 = vmatpush.bf16.msra.mxu0 %v2212
        %4137 = vmatpush.bf16.msra.mxu0 %v2211
        %4138 = vmatpush.bf16.msra.mxu0 %v2210
        %4139 = vmatmul.bf16.gmra.mxu0 %v4127
        %v4140 = vpop.f32.mrf.mxu0
        %v4141 = vadd.f32 %v2080, %v4140
        %v4142 = vpop.f32.mrf.mxu0
        %v4143 = vadd.f32 %v2080, %v4142
        %4144 = vdwg.mxu0
        %4145 = vmatpush.bf16.msra.mxu0 %v2225
        %4146 = vmatpush.bf16.msra.mxu0 %v2224
        %4147 = vmatpush.bf16.msra.mxu0 %v2223
        %4148 = vmatpush.bf16.msra.mxu0 %v2222
        %4149 = vmatpush.bf16.msra.mxu0 %v2221
        %4150 = vmatpush.bf16.msra.mxu0 %v2220
        %4151 = vmatpush.bf16.msra.mxu0 %v2219
        %4152 = vmatpush.bf16.msra.mxu0 %v2218
        %4153 = vmatmul.bf16.gmra.mxu0 %v4128
        %v4154 = vpop.f32.mrf.mxu0
        %v4155 = vadd.f32 %v4141, %v4154
        %v4156 = vpop.f32.mrf.mxu0
        %v4157 = vadd.f32 %v4143, %v4156
        %4158 = vdwg.mxu0
        %4159 = vmatpush.bf16.msra.mxu0 %v2233
        %4160 = vmatpush.bf16.msra.mxu0 %v2232
        %4161 = vmatpush.bf16.msra.mxu0 %v2231
        %4162 = vmatpush.bf16.msra.mxu0 %v2230
        %4163 = vmatpush.bf16.msra.mxu0 %v2229
        %4164 = vmatpush.bf16.msra.mxu0 %v2228
        %4165 = vmatpush.bf16.msra.mxu0 %v2227
        %4166 = vmatpush.bf16.msra.mxu0 %v2226
        %4167 = vmatmul.bf16.gmra.mxu0 %v4129
        %v4168 = vpop.f32.mrf.mxu0
        %v4169 = vadd.f32 %v4155, %v4168
        %v4170 = vpop.f32.mrf.mxu0
        %v4171 = vadd.f32 %v4157, %v4170
        %4172 = vdwg.mxu0
        %4173 = vmatpush.bf16.msra.mxu0 %v2241
        %4174 = vmatpush.bf16.msra.mxu0 %v2240
        %4175 = vmatpush.bf16.msra.mxu0 %v2239
        %4176 = vmatpush.bf16.msra.mxu0 %v2238
        %4177 = vmatpush.bf16.msra.mxu0 %v2237
        %4178 = vmatpush.bf16.msra.mxu0 %v2236
        %4179 = vmatpush.bf16.msra.mxu0 %v2235
        %4180 = vmatpush.bf16.msra.mxu0 %v2234
        %4181 = vmatmul.bf16.gmra.mxu0 %v4130
        %v4182 = vpop.f32.mrf.mxu0
        %v4183 = vadd.f32 %v4169, %v4182
        %v4184 = vpop.f32.mrf.mxu0
        %v4185 = vadd.f32 %v4171, %v4184
        %4186 = vdwg.mxu0
        %v4187 = vmax.f32 %v4183, 0.0
        %v4188 = vmax.f32 %v4185, 0.0
        %4189 = vst.msk [vmem:[#allocation3 + $0x48] sm:$0xff] %vm1098, %v4187
        %4190 = vst.msk [vmem:[#allocation3 + $0x50] sm:$0x1] %vm2333, %v4188
        %v4191 = vld [vmem:[#allocation3] sm:$0xff]
        %v4192 = vld [vmem:[#allocation3 + $0x8] sm:$0xff]
        %v4193 = vld [vmem:[#allocation3 + $0x10] sm:$0xff]
        %v4194 = vld [vmem:[#allocation3 + $0x18] sm:$0xff]
        %v4195 = vld [vmem:[#allocation3 + $0x20] sm:$0xff]
        %v4196 = vld [vmem:[#allocation3 + $0x28] sm:$0xff]
        %v4197 = vld [vmem:[#allocation3 + $0x30] sm:$0xff]
        %v4198 = vld [vmem:[#allocation3 + $0x38] sm:$0x7f]
        %v4199 = vld [vmem:[#allocation3 + $0x1] sm:$0xff]
        %v4200 = vld [vmem:[#allocation3 + $0x9] sm:$0xff]
        %v4201 = vld [vmem:[#allocation3 + $0x11] sm:$0xff]
        %v4202 = vld [vmem:[#allocation3 + $0x19] sm:$0xff]
        %v4203 = vld [vmem:[#allocation3 + $0x21] sm:$0xff]
        %v4204 = vld [vmem:[#allocation3 + $0x29] sm:$0xff]
        %v4205 = vld [vmem:[#allocation3 + $0x31] sm:$0xff]
        %v4206 = vld [vmem:[#allocation3 + $0x39] sm:$0x7f]
        %v4207 = vld [vmem:[#allocation3 + $0x2] sm:$0xff]
        %v4208 = vld [vmem:[#allocation3 + $0xa] sm:$0xff]
        %v4209 = vld [vmem:[#allocation3 + $0x12] sm:$0xff]
        %v4210 = vld [vmem:[#allocation3 + $0x1a] sm:$0xff]
        %v4211 = vld [vmem:[#allocation3 + $0x22] sm:$0xff]
        %v4212 = vld [vmem:[#allocation3 + $0x2a] sm:$0xff]
        %v4213 = vld [vmem:[#allocation3 + $0x32] sm:$0xff]
        %v4214 = vld [vmem:[#allocation3 + $0x3a] sm:$0x7f]
        %v4215 = vld [vmem:[#allocation3 + $0x39] sm:$0xff]
        %v4216 = vld [vmem:[#allocation3 + $0x41] sm:$0x7f]
        %v4217 = vld [vmem:[#allocation3 + $0x3a] sm:$0xff]
        %v4218 = vld [vmem:[#allocation3 + $0x42] sm:$0x7f]
        %v4219 = vld [vmem:[#allocation3 + $0xb] sm:$0xff]
        %v4220 = vld [vmem:[#allocation3 + $0x13] sm:$0xff]
        %v4221 = vld [vmem:[#allocation3 + $0x1b] sm:$0xff]
        %v4222 = vld [vmem:[#allocation3 + $0x23] sm:$0xff]
        %v4223 = vld [vmem:[#allocation3 + $0x2b] sm:$0xff]
        %v4224 = vld [vmem:[#allocation3 + $0x33] sm:$0xff]
        %v4225 = vld [vmem:[#allocation3 + $0x3b] sm:$0xff]
        %v4226 = vld [vmem:[#allocation3 + $0x43] sm:$0x7f]
        %v4227 = vld [vmem:[#allocation3 + $0x42] sm:$0xff]
        %v4228 = vld [vmem:[#allocation3 + $0x4a] sm:$0x7f]
        %v4229 = vld [vmem:[#allocation3 + $0x43] sm:$0xff]
        %v4230 = vld [vmem:[#allocation3 + $0x4b] sm:$0x7f]
        %v4231 = vld [vmem:[#allocation3 + $0x14] sm:$0xff]
        %v4232 = vld [vmem:[#allocation3 + $0x1c] sm:$0xff]
        %v4233 = vld [vmem:[#allocation3 + $0x24] sm:$0xff]
        %v4234 = vld [vmem:[#allocation3 + $0x2c] sm:$0xff]
        %v4235 = vld [vmem:[#allocation3 + $0x34] sm:$0xff]
        %v4236 = vld [vmem:[#allocation3 + $0x3c] sm:$0xff]
        %v4237 = vld [vmem:[#allocation3 + $0x44] sm:$0xff]
        %v4238 = vld [vmem:[#allocation3 + $0x4c] sm:$0x7f]
        %4247 = vrot.lane.b32.xlu0 %v4199, 64
        %v4248 = vpop.permute.xlu0 %4247
        %4249 = vrot.lane.b32.xlu0 %v4200, 64
        %v4250 = vpop.permute.xlu0 %4249
        %4251 = vrot.lane.b32.xlu0 %v4201, 64
        %v4252 = vpop.permute.xlu0 %4251
        %4253 = vrot.lane.b32.xlu0 %v4202, 64
        %v4254 = vpop.permute.xlu0 %4253
        %4255 = vrot.lane.b32.xlu0 %v4203, 64
        %v4256 = vpop.permute.xlu0 %4255
        %4257 = vrot.lane.b32.xlu0 %v4204, 64
        %v4258 = vpop.permute.xlu0 %4257
        %4259 = vrot.lane.b32.xlu0 %v4205, 64
        %v4260 = vpop.permute.xlu0 %4259
        %4261 = vrot.lane.b32.xlu0 %v4206, 64
        %v4262 = vpop.permute.xlu0 %4261
        %4273 = vrot.lane.b32.xlu0 %v4215, 64
        %v4274 = vpop.permute.xlu0 %4273
        %4275 = vrot.lane.b32.xlu0 %v4216, 64
        %v4276 = vpop.permute.xlu0 %4275
        %4287 = vrot.lane.b32.xlu0 %v4219, 64
        %v4288 = vpop.permute.xlu0 %4287
        %4289 = vrot.lane.b32.xlu0 %v4220, 64
        %v4290 = vpop.permute.xlu0 %4289
        %4291 = vrot.lane.b32.xlu0 %v4221, 64
        %v4292 = vpop.permute.xlu0 %4291
        %4293 = vrot.lane.b32.xlu0 %v4222, 64
        %v4294 = vpop.permute.xlu0 %4293
        %4295 = vrot.lane.b32.xlu0 %v4223, 64
        %v4296 = vpop.permute.xlu0 %4295
        %4297 = vrot.lane.b32.xlu0 %v4224, 64
        %v4298 = vpop.permute.xlu0 %4297
        %4299 = vrot.lane.b32.xlu0 %v4225, 64
        %v4300 = vpop.permute.xlu0 %4299
        %4301 = vrot.lane.b32.xlu0 %v4226, 64
        %v4302 = vpop.permute.xlu0 %4301
        %4313 = vrot.lane.b32.xlu0 %v4229, 64
        %v4314 = vpop.permute.xlu0 %4313
        %4315 = vrot.lane.b32.xlu0 %v4230, 64
        %v4316 = vpop.permute.xlu0 %4315
        %v4319 = vsel %vm1098, %v4191, %v4248
        %v4320 = vsel %vm1098, %v4192, %v4250
        %v4321 = vsel %vm1098, %v4193, %v4252
        %v4322 = vsel %vm1098, %v4194, %v4254
        %v4323 = vsel %vm1098, %v4195, %v4256
        %v4324 = vsel %vm1098, %v4196, %v4258
        %v4325 = vsel %vm1098, %v4197, %v4260
        %v4326 = vsel %vm1098, %v4198, %v4262
        %v4327 = vsel %vm1098, %v4207, %v4250
        %v4328 = vsel %vm1098, %v4208, %v4252
        %v4329 = vsel %vm1098, %v4209, %v4254
        %v4330 = vsel %vm1098, %v4210, %v4256
        %v4331 = vsel %vm1098, %v4211, %v4258
        %v4332 = vsel %vm1098, %v4212, %v4260
        %v4333 = vsel %vm1098, %v4213, %v4274
        %v4334 = vsel %vm1098, %v4214, %v4276
        %v4335 = vsel %vm1098, %v4208, %v4288
        %v4336 = vsel %vm1098, %v4209, %v4290
        %v4337 = vsel %vm1098, %v4210, %v4292
        %v4338 = vsel %vm1098, %v4211, %v4294
        %v4339 = vsel %vm1098, %v4212, %v4296
        %v4340 = vsel %vm1098, %v4213, %v4298
        %v4341 = vsel %vm1098, %v4217, %v4300
        %v4342 = vsel %vm1098, %v4218, %v4302
        %v4343 = vsel %vm1098, %v4227, %v4314
        %v4344 = vsel %vm1098, %v4228, %v4316
        %v4345 = vpack.c.bf16 %v4320, %v4319
        %v4346 = vpack.c.bf16 %v4328, %v4327
        %v4347 = vpack.c.bf16 %v4336, %v4335
        %v4348 = vpack.c.bf16 %v4337, %v4336
        %v4349 = vpack.c.bf16 %v4232, %v4231
        %v4350 = vpack.c.bf16 %v4322, %v4321
        %v4351 = vpack.c.bf16 %v4330, %v4329
        %v4352 = vpack.c.bf16 %v4338, %v4337
        %v4353 = vpack.c.bf16 %v4339, %v4338
        %v4354 = vpack.c.bf16 %v4234, %v4233
        %v4355 = vpack.c.bf16 %v4324, %v4323
        %v4356 = vpack.c.bf16 %v4332, %v4331
        %v4357 = vpack.c.bf16 %v4340, %v4339
        %v4358 = vpack.c.bf16 %v4341, %v4340
        %v4359 = vpack.c.bf16 %v4236, %v4235
        %v4360 = vpack.c.bf16 %v4326, %v4325
        %v4361 = vpack.c.bf16 %v4334, %v4333
        %v4362 = vpack.c.bf16 %v4342, %v4341
        %v4363 = vpack.c.bf16 %v4344, %v4343
        %v4364 = vpack.c.bf16 %v4238, %v4237
        %v4365 = vld [vmem:[%s5] sm:$0xf]
        %v4366 = vld [vmem:[%s5 + $0x4] sm:$0xf]
        %v4367 = vld [vmem:[%s5 + $0x8] sm:$0xf]
        %v4368 = vld [vmem:[%s5 + $0xc] sm:$0xf]
        %v4369 = vld [vmem:[%s5 + $0x10] sm:$0xf]
        %v4370 = vld [vmem:[%s5 + $0x14] sm:$0xf]
        %v4371 = vld [vmem:[%s5 + $0x18] sm:$0xf]
        %v4372 = vld [vmem:[%s5 + $0x1c] sm:$0xf]
        %v4373 = vld [vmem:[%s5 + $0x20] sm:$0xf]
        %v4374 = vld [vmem:[%s5 + $0x24] sm:$0xf]
        %v4375 = vld [vmem:[%s5 + $0x28] sm:$0xf]
        %v4376 = vld [vmem:[%s5 + $0x2c] sm:$0xf]
        %v4377 = vld [vmem:[%s5 + $0x30] sm:$0xf]
        %v4378 = vld [vmem:[%s5 + $0x34] sm:$0xf]
        %v4379 = vld [vmem:[%s5 + $0x38] sm:$0xf]
        %v4380 = vld [vmem:[%s5 + $0x3c] sm:$0xf]
        %v4381 = vld [vmem:[%s5 + $0x40] sm:$0xf]
        %v4382 = vld [vmem:[%s5 + $0x44] sm:$0xf]
        %v4383 = vld [vmem:[%s5 + $0x48] sm:$0xf]
        %v4384 = vld [vmem:[%s5 + $0x4c] sm:$0xf]
        %v4385 = vld [vmem:[%s5 + $0x50] sm:$0xf]
        %v4386 = vld [vmem:[%s5 + $0x54] sm:$0xf]
        %v4387 = vld [vmem:[%s5 + $0x58] sm:$0xf]
        %v4388 = vld [vmem:[%s5 + $0x5c] sm:$0xf]
        %v4389 = vld [vmem:[%s5 + $0x60] sm:$0xf]
        %v4390 = vld [vmem:[%s5 + $0x64] sm:$0xf]
        %v4391 = vld [vmem:[%s5 + $0x68] sm:$0xf]
        %v4392 = vld [vmem:[%s5 + $0x6c] sm:$0xf]
        %v4393 = vld [vmem:[%s5 + $0x70] sm:$0xf]
        %v4394 = vld [vmem:[%s5 + $0x74] sm:$0xf]
        %v4395 = vld [vmem:[%s5 + $0x78] sm:$0xf]
        %v4396 = vld [vmem:[%s5 + $0x7c] sm:$0xf]
        %v4397 = vld [vmem:[%s5 + $0x80] sm:$0xf]
        %v4398 = vld [vmem:[%s5 + $0x84] sm:$0xf]
        %v4399 = vld [vmem:[%s5 + $0x88] sm:$0xf]
        %v4400 = vld [vmem:[%s5 + $0x8c] sm:$0xf]
        %v4401 = vld [vmem:[%s5 + $0x90] sm:$0xf]
        %v4402 = vld [vmem:[%s5 + $0x94] sm:$0xf]
        %v4403 = vld [vmem:[%s5 + $0x98] sm:$0xf]
        %v4404 = vld [vmem:[%s5 + $0x9c] sm:$0xf]
        %v4405 = vld [vmem:[%s5 + $0xa0] sm:$0xf]
        %v4406 = vld [vmem:[%s5 + $0xa4] sm:$0xf]
        %v4407 = vld [vmem:[%s5 + $0xa8] sm:$0xf]
        %v4408 = vld [vmem:[%s5 + $0xac] sm:$0xf]
        %v4409 = vld [vmem:[%s5 + $0xb0] sm:$0xf]
        %v4410 = vld [vmem:[%s5 + $0xb4] sm:$0xf]
        %v4411 = vld [vmem:[%s5 + $0xb8] sm:$0xf]
        %v4412 = vld [vmem:[%s5 + $0xbc] sm:$0xf]
        %v4413 = vld [vmem:[%s5 + $0xc0] sm:$0xf]
        %v4414 = vld [vmem:[%s5 + $0xc4] sm:$0xf]
        %v4415 = vld [vmem:[%s5 + $0xc8] sm:$0xf]
        %v4416 = vld [vmem:[%s5 + $0xcc] sm:$0xf]
        %v4417 = vld [vmem:[%s5 + $0xd0] sm:$0xf]
        %v4418 = vld [vmem:[%s5 + $0xd4] sm:$0xf]
        %v4419 = vld [vmem:[%s5 + $0xd8] sm:$0xf]
        %v4420 = vld [vmem:[%s5 + $0xdc] sm:$0xf]
        %v4421 = vld [vmem:[%s5 + $0xe0] sm:$0xf]
        %v4422 = vld [vmem:[%s5 + $0xe4] sm:$0xf]
        %v4423 = vld [vmem:[%s5 + $0xe8] sm:$0xf]
        %v4424 = vld [vmem:[%s5 + $0xec] sm:$0xf]
        %v4425 = vld [vmem:[%s5 + $0xf0] sm:$0xf]
        %v4426 = vld [vmem:[%s5 + $0xf4] sm:$0xf]
        %v4427 = vld [vmem:[%s5 + $0xf8] sm:$0xf]
        %v4428 = vld [vmem:[%s5 + $0xfc] sm:$0xf]
        %v4429 = vld [vmem:[%s5 + $0x100] sm:$0xf]
        %v4430 = vld [vmem:[%s5 + $0x104] sm:$0xf]
        %v4431 = vld [vmem:[%s5 + $0x108] sm:$0xf]
        %v4432 = vld [vmem:[%s5 + $0x10c] sm:$0xf]
        %v4433 = vld [vmem:[%s5 + $0x110] sm:$0xf]
        %v4434 = vld [vmem:[%s5 + $0x114] sm:$0xf]
        %v4435 = vld [vmem:[%s5 + $0x118] sm:$0xf]
        %v4436 = vld [vmem:[%s5 + $0x11c] sm:$0xf]
        %v4437 = vld [vmem:[%s6] sm:$0x1]
        %v4439 = vperm.slane %v4437, 0
        %v4513 = vunpack.c.l.b16 %v4365
        %v4514 = vunpack.c.l.b16 %v4366
        %v4515 = vunpack.c.l.b16 %v4367
        %v4516 = vunpack.c.l.b16 %v4368
        %v4517 = vunpack.c.l.b16 %v4369
        %v4518 = vunpack.c.l.b16 %v4370
        %v4519 = vunpack.c.l.b16 %v4371
        %v4520 = vunpack.c.l.b16 %v4372
        %v4521 = vunpack.c.l.b16 %v4373
        %v4522 = vunpack.c.l.b16 %v4374
        %v4523 = vunpack.c.l.b16 %v4375
        %v4524 = vunpack.c.l.b16 %v4376
        %v4525 = vunpack.c.l.b16 %v4377
        %v4526 = vunpack.c.l.b16 %v4378
        %v4527 = vunpack.c.l.b16 %v4379
        %v4528 = vunpack.c.l.b16 %v4380
        %v4529 = vunpack.c.l.b16 %v4381
        %v4530 = vunpack.c.l.b16 %v4382
        %v4531 = vunpack.c.l.b16 %v4383
        %v4532 = vunpack.c.l.b16 %v4384
        %v4533 = vunpack.c.l.b16 %v4385
        %v4534 = vunpack.c.l.b16 %v4386
        %v4535 = vunpack.c.l.b16 %v4387
        %v4536 = vunpack.c.l.b16 %v4388
        %v4537 = vunpack.c.l.b16 %v4389
        %v4538 = vunpack.c.l.b16 %v4390
        %v4539 = vunpack.c.l.b16 %v4391
        %v4540 = vunpack.c.l.b16 %v4392
        %v4541 = vunpack.c.l.b16 %v4393
        %v4542 = vunpack.c.l.b16 %v4394
        %v4543 = vunpack.c.l.b16 %v4395
        %v4544 = vunpack.c.l.b16 %v4396
        %v4545 = vunpack.c.l.b16 %v4397
        %v4546 = vunpack.c.l.b16 %v4398
        %v4547 = vunpack.c.l.b16 %v4399
        %v4548 = vunpack.c.l.b16 %v4400
        %v4549 = vunpack.c.l.b16 %v4401
        %v4550 = vunpack.c.l.b16 %v4402
        %v4551 = vunpack.c.l.b16 %v4403
        %v4552 = vunpack.c.l.b16 %v4404
        %v4553 = vunpack.c.l.b16 %v4405
        %v4554 = vunpack.c.l.b16 %v4406
        %v4555 = vunpack.c.l.b16 %v4407
        %v4556 = vunpack.c.l.b16 %v4408
        %v4557 = vunpack.c.l.b16 %v4409
        %v4558 = vunpack.c.l.b16 %v4410
        %v4559 = vunpack.c.l.b16 %v4411
        %v4560 = vunpack.c.l.b16 %v4412
        %v4561 = vunpack.c.l.b16 %v4413
        %v4562 = vunpack.c.l.b16 %v4414
        %v4563 = vunpack.c.l.b16 %v4415
        %v4564 = vunpack.c.l.b16 %v4416
        %v4565 = vunpack.c.l.b16 %v4417
        %v4566 = vunpack.c.l.b16 %v4418
        %v4567 = vunpack.c.l.b16 %v4419
        %v4568 = vunpack.c.l.b16 %v4420
        %v4569 = vunpack.c.l.b16 %v4421
        %v4570 = vunpack.c.l.b16 %v4422
        %v4571 = vunpack.c.l.b16 %v4423
        %v4572 = vunpack.c.l.b16 %v4424
        %v4573 = vunpack.c.l.b16 %v4425
        %v4574 = vunpack.c.l.b16 %v4426
        %v4575 = vunpack.c.l.b16 %v4427
        %v4576 = vunpack.c.l.b16 %v4428
        %v4577 = vunpack.c.l.b16 %v4429
        %v4578 = vunpack.c.l.b16 %v4430
        %v4579 = vunpack.c.l.b16 %v4431
        %v4580 = vunpack.c.l.b16 %v4432
        %v4581 = vunpack.c.l.b16 %v4433
        %v4582 = vunpack.c.l.b16 %v4434
        %v4583 = vunpack.c.l.b16 %v4435
        %v4584 = vunpack.c.l.b16 %v4436
        %v4585 = vpack.c.b16 %v4514, %v4513
        %v4586 = vpack.c.b16 %v4516, %v4515
        %v4587 = vpack.c.b16 %v4518, %v4517
        %v4588 = vpack.c.b16 %v4520, %v4519
        %v4589 = vpack.c.b16 %v4522, %v4521
        %v4590 = vpack.c.b16 %v4524, %v4523
        %v4591 = vpack.c.b16 %v4526, %v4525
        %v4592 = vpack.c.b16 %v4528, %v4527
        %v4593 = vpack.c.b16 %v4530, %v4529
        %v4594 = vpack.c.b16 %v4532, %v4531
        %v4595 = vpack.c.b16 %v4534, %v4533
        %v4596 = vpack.c.b16 %v4536, %v4535
        %v4597 = vpack.c.b16 %v4538, %v4537
        %v4598 = vpack.c.b16 %v4540, %v4539
        %v4599 = vpack.c.b16 %v4542, %v4541
        %v4600 = vpack.c.b16 %v4544, %v4543
        %v4601 = vpack.c.b16 %v4546, %v4545
        %v4602 = vpack.c.b16 %v4548, %v4547
        %v4603 = vpack.c.b16 %v4550, %v4549
        %v4604 = vpack.c.b16 %v4552, %v4551
        %v4605 = vpack.c.b16 %v4554, %v4553
        %v4606 = vpack.c.b16 %v4556, %v4555
        %v4607 = vpack.c.b16 %v4558, %v4557
        %v4608 = vpack.c.b16 %v4560, %v4559
        %v4609 = vpack.c.b16 %v4562, %v4561
        %v4610 = vpack.c.b16 %v4564, %v4563
        %v4611 = vpack.c.b16 %v4566, %v4565
        %v4612 = vpack.c.b16 %v4568, %v4567
        %v4613 = vpack.c.b16 %v4570, %v4569
        %v4614 = vpack.c.b16 %v4572, %v4571
        %v4615 = vpack.c.b16 %v4574, %v4573
        %v4616 = vpack.c.b16 %v4576, %v4575
        %v4617 = vpack.c.b16 %v4578, %v4577
        %v4618 = vpack.c.b16 %v4580, %v4579
        %v4619 = vpack.c.b16 %v4582, %v4581
        %v4620 = vpack.c.b16 %v4584, %v4583
        %v4658 = vsel %vm1098, %v4349, 0
        %v4661 = vsel %vm1098, %v4354, 0
        %v4664 = vsel %vm1098, %v4359, 0
        %v4667 = vsel %vm1098, %v4364, 0
        %4669 = vmatpush.bf16.msra.mxu0 %v4592
        %4670 = vmatpush.bf16.msra.mxu0 %v4591
        %4671 = vmatpush.bf16.msra.mxu0 %v4590
        %4672 = vmatpush.bf16.msra.mxu0 %v4589
        %4673 = vmatpush.bf16.msra.mxu0 %v4588
        %4674 = vmatpush.bf16.msra.mxu0 %v4587
        %4675 = vmatpush.bf16.msra.mxu0 %v4586
        %4676 = vmatpush.bf16.msra.mxu0 %v4585
        %4677 = vmatmul.bf16.gmra.mxu0 %v4345
        %v4678 = vpop.f32.mrf.mxu0
        %v4679 = vadd.f32 %v4439, %v4678
        %v4680 = vpop.f32.mrf.mxu0
        %v4681 = vadd.f32 %v4439, %v4680
        %4682 = vmatmul.bf16.gmra.mxu0 %v4350
        %v4683 = vpop.f32.mrf.mxu0
        %v4684 = vadd.f32 %v4439, %v4683
        %v4685 = vpop.f32.mrf.mxu0
        %v4686 = vadd.f32 %v4439, %v4685
        %4687 = vmatmul.bf16.gmra.mxu0 %v4355
        %v4688 = vpop.f32.mrf.mxu0
        %v4689 = vadd.f32 %v4439, %v4688
        %v4690 = vpop.f32.mrf.mxu0
        %v4691 = vadd.f32 %v4439, %v4690
        %4692 = vmatmul.bf16.gmra.mxu0 %v4360
        %v4693 = vpop.f32.mrf.mxu0
        %v4694 = vadd.f32 %v4439, %v4693
        %v4695 = vpop.f32.mrf.mxu0
        %v4696 = vadd.f32 %v4439, %v4695
        %4697 = vdwg.mxu0
        %4698 = vmatpush.bf16.msra.mxu0 %v4600
        %4699 = vmatpush.bf16.msra.mxu0 %v4599
        %4700 = vmatpush.bf16.msra.mxu0 %v4598
        %4701 = vmatpush.bf16.msra.mxu0 %v4597
        %4702 = vmatpush.bf16.msra.mxu0 %v4596
        %4703 = vmatpush.bf16.msra.mxu0 %v4595
        %4704 = vmatpush.bf16.msra.mxu0 %v4594
        %4705 = vmatpush.bf16.msra.mxu0 %v4593
        %4706 = vmatmul.bf16.gmra.mxu0 %v4346
        %v4707 = vpop.f32.mrf.mxu0
        %v4708 = vadd.f32 %v4679, %v4707
        %v4709 = vpop.f32.mrf.mxu0
        %v4710 = vadd.f32 %v4681, %v4709
        %4711 = vmatmul.bf16.gmra.mxu0 %v4351
        %v4712 = vpop.f32.mrf.mxu0
        %v4713 = vadd.f32 %v4684, %v4712
        %v4714 = vpop.f32.mrf.mxu0
        %v4715 = vadd.f32 %v4686, %v4714
        %4716 = vmatmul.bf16.gmra.mxu0 %v4356
        %v4717 = vpop.f32.mrf.mxu0
        %v4718 = vadd.f32 %v4689, %v4717
        %v4719 = vpop.f32.mrf.mxu0
        %v4720 = vadd.f32 %v4691, %v4719
        %4721 = vmatmul.bf16.gmra.mxu0 %v4361
        %v4722 = vpop.f32.mrf.mxu0
        %v4723 = vadd.f32 %v4694, %v4722
        %v4724 = vpop.f32.mrf.mxu0
        %v4725 = vadd.f32 %v4696, %v4724
        %4726 = vdwg.mxu0
        %4727 = vmatpush.bf16.msra.mxu0 %v4608
        %4728 = vmatpush.bf16.msra.mxu0 %v4607
        %4729 = vmatpush.bf16.msra.mxu0 %v4606
        %4730 = vmatpush.bf16.msra.mxu0 %v4605
        %4731 = vmatpush.bf16.msra.mxu0 %v4604
        %4732 = vmatpush.bf16.msra.mxu0 %v4603
        %4733 = vmatpush.bf16.msra.mxu0 %v4602
        %4734 = vmatpush.bf16.msra.mxu0 %v4601
        %4735 = vmatmul.bf16.gmra.mxu0 %v4347
        %v4736 = vpop.f32.mrf.mxu0
        %v4737 = vadd.f32 %v4708, %v4736
        %v4738 = vpop.f32.mrf.mxu0
        %v4739 = vadd.f32 %v4710, %v4738
        %4740 = vmatmul.bf16.gmra.mxu0 %v4352
        %v4741 = vpop.f32.mrf.mxu0
        %v4742 = vadd.f32 %v4713, %v4741
        %v4743 = vpop.f32.mrf.mxu0
        %v4744 = vadd.f32 %v4715, %v4743
        %4745 = vmatmul.bf16.gmra.mxu0 %v4357
        %v4746 = vpop.f32.mrf.mxu0
        %v4747 = vadd.f32 %v4718, %v4746
        %v4748 = vpop.f32.mrf.mxu0
        %v4749 = vadd.f32 %v4720, %v4748
        %4750 = vmatmul.bf16.gmra.mxu0 %v4362
        %v4751 = vpop.f32.mrf.mxu0
        %v4752 = vadd.f32 %v4723, %v4751
        %v4753 = vpop.f32.mrf.mxu0
        %v4754 = vadd.f32 %v4725, %v4753
        %4755 = vdwg.mxu0
        %4756 = vmatpush.bf16.msra.mxu0 %v4616
        %4757 = vmatpush.bf16.msra.mxu0 %v4615
        %4758 = vmatpush.bf16.msra.mxu0 %v4614
        %4759 = vmatpush.bf16.msra.mxu0 %v4613
        %4760 = vmatpush.bf16.msra.mxu0 %v4612
        %4761 = vmatpush.bf16.msra.mxu0 %v4611
        %4762 = vmatpush.bf16.msra.mxu0 %v4610
        %4763 = vmatpush.bf16.msra.mxu0 %v4609
        %4764 = vmatmul.bf16.gmra.mxu0 %v4348
        %v4765 = vpop.f32.mrf.mxu0
        %v4766 = vadd.f32 %v4737, %v4765
        %v4767 = vpop.f32.mrf.mxu0
        %v4768 = vadd.f32 %v4739, %v4767
        %4769 = vmatmul.bf16.gmra.mxu0 %v4353
        %v4770 = vpop.f32.mrf.mxu0
        %v4771 = vadd.f32 %v4742, %v4770
        %v4772 = vpop.f32.mrf.mxu0
        %v4773 = vadd.f32 %v4744, %v4772
        %4774 = vmatmul.bf16.gmra.mxu0 %v4358
        %v4775 = vpop.f32.mrf.mxu0
        %v4776 = vadd.f32 %v4747, %v4775
        %v4777 = vpop.f32.mrf.mxu0
        %v4778 = vadd.f32 %v4749, %v4777
        %4779 = vmatmul.bf16.gmra.mxu0 %v4363
        %v4780 = vpop.f32.mrf.mxu0
        %v4781 = vadd.f32 %v4752, %v4780
        %v4782 = vpop.f32.mrf.mxu0
        %v4783 = vadd.f32 %v4754, %v4782
        %4784 = vdwg.mxu0
        %4785 = vmatpush.bf16.msra.mxu0 0
        %4786 = vmatpush.bf16.msra.mxu0 0
        %4787 = vmatpush.bf16.msra.mxu0 0
        %4788 = vmatpush.bf16.msra.mxu0 0
        %4789 = vmatpush.bf16.msra.mxu0 %v4620
        %4790 = vmatpush.bf16.msra.mxu0 %v4619
        %4791 = vmatpush.bf16.msra.mxu0 %v4618
        %4792 = vmatpush.bf16.msra.mxu0 %v4617
        %4793 = vmatmul.bf16.gmra.mxu0 %v4658
        %v4794 = vpop.f32.mrf.mxu0
        %v4795 = vadd.f32 %v4766, %v4794
        %v4796 = vpop.f32.mrf.mxu0
        %v4797 = vadd.f32 %v4768, %v4796
        %4798 = vmatmul.bf16.gmra.mxu0 %v4661
        %v4799 = vpop.f32.mrf.mxu0
        %v4800 = vadd.f32 %v4771, %v4799
        %v4801 = vpop.f32.mrf.mxu0
        %v4802 = vadd.f32 %v4773, %v4801
        %4803 = vmatmul.bf16.gmra.mxu0 %v4664
        %v4804 = vpop.f32.mrf.mxu0
        %v4805 = vadd.f32 %v4776, %v4804
        %v4806 = vpop.f32.mrf.mxu0
        %v4807 = vadd.f32 %v4778, %v4806
        %4808 = vmatmul.bf16.gmra.mxu0 %v4667
        %v4809 = vpop.f32.mrf.mxu0
        %v4810 = vadd.f32 %v4781, %v4809
        %v4811 = vpop.f32.mrf.mxu0
        %v4812 = vadd.f32 %v4783, %v4811
        %4813 = vdwg.mxu0
        %v4814 = vmax.f32 %v4795, 0.0
        %v4815 = vmax.f32 %v4797, 0.0
        %v4816 = vmax.f32 %v4800, 0.0
        %v4817 = vmax.f32 %v4802, 0.0
        %v4818 = vmax.f32 %v4805, 0.0
        %v4819 = vmax.f32 %v4807, 0.0
        %v4820 = vmax.f32 %v4810, 0.0
        %v4821 = vmax.f32 %v4812, 0.0
        %4822 = vst [vmem:[#allocation4] sm:$0xff] 0.0
        %4823 = vst [vmem:[#allocation4 + $0x8] sm:$0xff] 0.0
        %4824 = vst [vmem:[#allocation4 + $0x10] sm:$0xff] 0.0
        %v4825 = vlaneseq
        %vm4826 = vcmp.ge.s32.totalorder %v4825, 0
        %vm4827 = vcmp.lt.s32.totalorder %v4825, 128
        %vm4828 = vmand %vm4826, %vm4827
        %4829 = vst.msk [vmem:[#allocation4 + $0x18] sm:$0x1] %vm4828, 0.0
        %vm4830 = vcmp.lt.s32.totalorder %v4825, 64
        %vm4831 = vmand %vm4826, %vm4830
        %4832 = vst.msk [vmem:[#allocation4] sm:$0x1] %vm4831, %v4814
        %4834 = vst [vmem:[#allocation1] sm:$0xff] %v4814
        %s4835 = scalar_lea.vmem [#allocation1], 1
        %v4836 = vld [vmem:[%s4835] ss:$9 sm:$0xff]
        %4837 = vrot.lane.b32.xlu0 %v4836, 64
        %v4838 = vpop.permute.xlu0 %4837
        %vm4840 = vcmp.ge.s32.totalorder %v4825, 64
        %vm4841 = vmand %vm4840, %vm4827
        %4842 = vst.msk [vmem:[#allocation4] sm:$0x1] %vm4841, %v4838
        %4843 = vst [vmem:[#allocation1] sm:$0xff] %v4814
        %s4844 = scalar_lea.vmem [#allocation1], 2
        %v4845 = vld [vmem:[%s4844] ss:$9 sm:$0xff]
        %4847 = vst.msk [vmem:[#allocation4 + $0x1] sm:$0x1] %vm4831, %v4845
        %4848 = vst [vmem:[#allocation1] sm:$0xff] %v4814
        %s4849 = scalar_lea.vmem [#allocation1], 3
        %v4850 = vld [vmem:[%s4849] ss:$9 sm:$0xff]
        %4851 = vrot.lane.b32.xlu0 %v4850, 64
        %v4852 = vpop.permute.xlu0 %4851
        %4854 = vst.msk [vmem:[#allocation4 + $0x1] sm:$0x1] %vm4841, %v4852
        %4855 = vst [vmem:[#allocation1] sm:$0xff] %v4814
        %s4856 = scalar_lea.vmem [#allocation1], 4
        %v4857 = vld [vmem:[%s4856] ss:$9 sm:$0xff]
        %4859 = vst.msk [vmem:[#allocation4 + $0x2] sm:$0x1] %vm4831, %v4857
        %4860 = vst [vmem:[#allocation1] sm:$0xff] %v4814
        %s4861 = scalar_lea.vmem [#allocation1], 5
        %v4862 = vld [vmem:[%s4861] ss:$9 sm:$0xff]
        %4863 = vrot.lane.b32.xlu0 %v4862, 64
        %v4864 = vpop.permute.xlu0 %4863
        %4866 = vst.msk [vmem:[#allocation4 + $0x2] sm:$0x1] %vm4841, %v4864
        %4867 = vst [vmem:[#allocation1] sm:$0xff] %v4814
        %s4868 = scalar_lea.vmem [#allocation1], 6
        %v4869 = vld [vmem:[%s4868] ss:$9 sm:$0xff]
        %4871 = vst.msk [vmem:[#allocation4 + $0x3] sm:$0x1] %vm4831, %v4869
        %4873 = vst [vmem:[#allocation1] sm:$0xff] %v4815
        %s4874 = scalar_lea.vmem [#allocation1], 1
        %v4875 = vld [vmem:[%s4874] ss:$9 sm:$0xff]
        %4876 = vrot.lane.b32.xlu0 %v4875, 64
        %v4877 = vpop.permute.xlu0 %4876
        %4879 = vst.msk [vmem:[#allocation4 + $0x3] sm:$0x1] %vm4841, %v4877
        %4880 = vst [vmem:[#allocation1] sm:$0xff] %v4815
        %s4881 = scalar_lea.vmem [#allocation1], 2
        %v4882 = vld [vmem:[%s4881] ss:$9 sm:$0xff]
        %4884 = vst.msk [vmem:[#allocation4 + $0x4] sm:$0x1] %vm4831, %v4882
        %4885 = vst [vmem:[#allocation1] sm:$0xff] %v4815
        %s4886 = scalar_lea.vmem [#allocation1], 3
        %v4887 = vld [vmem:[%s4886] ss:$9 sm:$0xff]
        %4888 = vrot.lane.b32.xlu0 %v4887, 64
        %v4889 = vpop.permute.xlu0 %4888
        %4891 = vst.msk [vmem:[#allocation4 + $0x4] sm:$0x1] %vm4841, %v4889
        %4892 = vst [vmem:[#allocation1] sm:$0xff] %v4815
        %s4893 = scalar_lea.vmem [#allocation1], 4
        %v4894 = vld [vmem:[%s4893] ss:$9 sm:$0xff]
        %4896 = vst.msk [vmem:[#allocation4 + $0x5] sm:$0x1] %vm4831, %v4894
        %4897 = vst [vmem:[#allocation1] sm:$0xff] %v4815
        %s4898 = scalar_lea.vmem [#allocation1], 5
        %v4899 = vld [vmem:[%s4898] ss:$9 sm:$0xff]
        %4900 = vrot.lane.b32.xlu0 %v4899, 64
        %v4901 = vpop.permute.xlu0 %4900
        %4903 = vst.msk [vmem:[#allocation4 + $0x5] sm:$0x1] %vm4841, %v4901
        %4904 = vst [vmem:[#allocation1] sm:$0xff] %v4815
        %s4905 = scalar_lea.vmem [#allocation1], 6
        %v4906 = vld [vmem:[%s4905] ss:$9 sm:$0xff]
        %4908 = vst.msk [vmem:[#allocation4 + $0x6] sm:$0x1] %vm4831, %v4906
        %4909 = vst [vmem:[#allocation1] sm:$0xff] %v4815
        %s4910 = scalar_lea.vmem [#allocation1], 7
        %v4911 = vld [vmem:[%s4910] ss:$9 sm:$0xff]
        %4912 = vrot.lane.b32.xlu0 %v4911, 64
        %v4913 = vpop.permute.xlu0 %4912
        %4915 = vst.msk [vmem:[#allocation4 + $0x6] sm:$0x1] %vm4841, %v4913
        %4917 = vst [vmem:[#allocation1] sm:$0xff] %v4816
        %s4918 = scalar_lea.vmem [#allocation1], 2
        %v4919 = vld [vmem:[%s4918] ss:$9 sm:$0xff]
        %4921 = vst.msk [vmem:[#allocation4 + $0x7] sm:$0x1] %vm4831, %v4919
        %4922 = vst [vmem:[#allocation1] sm:$0xff] %v4816
        %s4923 = scalar_lea.vmem [#allocation1], 3
        %v4924 = vld [vmem:[%s4923] ss:$9 sm:$0xff]
        %4925 = vrot.lane.b32.xlu0 %v4924, 64
        %v4926 = vpop.permute.xlu0 %4925
        %4928 = vst.msk [vmem:[#allocation4 + $0x7] sm:$0x1] %vm4841, %v4926
        %4929 = vst [vmem:[#allocation1] sm:$0xff] %v4816
        %s4930 = scalar_lea.vmem [#allocation1], 4
        %v4931 = vld [vmem:[%s4930] ss:$9 sm:$0xff]
        %4933 = vst.msk [vmem:[#allocation4 + $0x8] sm:$0x1] %vm4831, %v4931
        %4934 = vst [vmem:[#allocation1] sm:$0xff] %v4816
        %s4935 = scalar_lea.vmem [#allocation1], 5
        %v4936 = vld [vmem:[%s4935] ss:$9 sm:$0xff]
        %4937 = vrot.lane.b32.xlu0 %v4936, 64
        %v4938 = vpop.permute.xlu0 %4937
        %4940 = vst.msk [vmem:[#allocation4 + $0x8] sm:$0x1] %vm4841, %v4938
        %4941 = vst [vmem:[#allocation1] sm:$0xff] %v4816
        %s4942 = scalar_lea.vmem [#allocation1], 6
        %v4943 = vld [vmem:[%s4942] ss:$9 sm:$0xff]
        %4945 = vst.msk [vmem:[#allocation4 + $0x9] sm:$0x1] %vm4831, %v4943
        %4946 = vst [vmem:[#allocation1] sm:$0xff] %v4816
        %s4947 = scalar_lea.vmem [#allocation1], 7
        %v4948 = vld [vmem:[%s4947] ss:$9 sm:$0xff]
        %4949 = vrot.lane.b32.xlu0 %v4948, 64
        %v4950 = vpop.permute.xlu0 %4949
        %4952 = vst.msk [vmem:[#allocation4 + $0x9] sm:$0x1] %vm4841, %v4950
        %4953 = vst.msk [vmem:[#allocation4 + $0xa] sm:$0x1] %vm4831, %v4817
        %4955 = vst [vmem:[#allocation1] sm:$0xff] %v4817
        %s4956 = scalar_lea.vmem [#allocation1], 3
        %v4957 = vld [vmem:[%s4956] ss:$9 sm:$0xff]
        %4958 = vrot.lane.b32.xlu0 %v4957, 64
        %v4959 = vpop.permute.xlu0 %4958
        %4961 = vst.msk [vmem:[#allocation4 + $0xa] sm:$0x1] %vm4841, %v4959
        %4962 = vst [vmem:[#allocation1] sm:$0xff] %v4817
        %s4963 = scalar_lea.vmem [#allocation1], 4
        %v4964 = vld [vmem:[%s4963] ss:$9 sm:$0xff]
        %4966 = vst.msk [vmem:[#allocation4 + $0xb] sm:$0x1] %vm4831, %v4964
        %4967 = vst [vmem:[#allocation1] sm:$0xff] %v4817
        %s4968 = scalar_lea.vmem [#allocation1], 5
        %v4969 = vld [vmem:[%s4968] ss:$9 sm:$0xff]
        %4970 = vrot.lane.b32.xlu0 %v4969, 64
        %v4971 = vpop.permute.xlu0 %4970
        %4973 = vst.msk [vmem:[#allocation4 + $0xb] sm:$0x1] %vm4841, %v4971
        %4974 = vst [vmem:[#allocation1] sm:$0xff] %v4817
        %s4975 = scalar_lea.vmem [#allocation1], 6
        %v4976 = vld [vmem:[%s4975] ss:$9 sm:$0xff]
        %4978 = vst.msk [vmem:[#allocation4 + $0xc] sm:$0x1] %vm4831, %v4976
        %4979 = vst [vmem:[#allocation1] sm:$0xff] %v4817
        %s4980 = scalar_lea.vmem [#allocation1], 7
        %v4981 = vld [vmem:[%s4980] ss:$9 sm:$0xff]
        %4982 = vrot.lane.b32.xlu0 %v4981, 64
        %v4983 = vpop.permute.xlu0 %4982
        %4985 = vst.msk [vmem:[#allocation4 + $0xc] sm:$0x1] %vm4841, %v4983
        %4986 = vst.msk [vmem:[#allocation4 + $0xd] sm:$0x1] %vm4831, %v4818
        %4988 = vst [vmem:[#allocation1] sm:$0xff] %v4818
        %s4989 = scalar_lea.vmem [#allocation1], 1
        %v4990 = vld [vmem:[%s4989] ss:$9 sm:$0xff]
        %4991 = vrot.lane.b32.xlu0 %v4990, 64
        %v4992 = vpop.permute.xlu0 %4991
        %4994 = vst.msk [vmem:[#allocation4 + $0xd] sm:$0x1] %vm4841, %v4992
        %4995 = vst [vmem:[#allocation1] sm:$0xff] %v4818
        %s4996 = scalar_lea.vmem [#allocation1], 4
        %v4997 = vld [vmem:[%s4996] ss:$9 sm:$0xff]
        %4999 = vst.msk [vmem:[#allocation4 + $0xe] sm:$0x1] %vm4831, %v4997
        %5000 = vst [vmem:[#allocation1] sm:$0xff] %v4818
        %s5001 = scalar_lea.vmem [#allocation1], 5
        %v5002 = vld [vmem:[%s5001] ss:$9 sm:$0xff]
        %5003 = vrot.lane.b32.xlu0 %v5002, 64
        %v5004 = vpop.permute.xlu0 %5003
        %5006 = vst.msk [vmem:[#allocation4 + $0xe] sm:$0x1] %vm4841, %v5004
        %5007 = vst [vmem:[#allocation1] sm:$0xff] %v4818
        %s5008 = scalar_lea.vmem [#allocation1], 6
        %v5009 = vld [vmem:[%s5008] ss:$9 sm:$0xff]
        %5011 = vst.msk [vmem:[#allocation4 + $0xf] sm:$0x1] %vm4831, %v5009
        %5012 = vst [vmem:[#allocation1] sm:$0xff] %v4818
        %s5013 = scalar_lea.vmem [#allocation1], 7
        %v5014 = vld [vmem:[%s5013] ss:$9 sm:$0xff]
        %5015 = vrot.lane.b32.xlu0 %v5014, 64
        %v5016 = vpop.permute.xlu0 %5015
        %5018 = vst.msk [vmem:[#allocation4 + $0xf] sm:$0x1] %vm4841, %v5016
        %5019 = vst.msk [vmem:[#allocation4 + $0x10] sm:$0x1] %vm4831, %v4819
        %5021 = vst [vmem:[#allocation1] sm:$0xff] %v4819
        %s5022 = scalar_lea.vmem [#allocation1], 1
        %v5023 = vld [vmem:[%s5022] ss:$9 sm:$0xff]
        %5024 = vrot.lane.b32.xlu0 %v5023, 64
        %v5025 = vpop.permute.xlu0 %5024
        %5027 = vst.msk [vmem:[#allocation4 + $0x10] sm:$0x1] %vm4841, %v5025
        %5028 = vst [vmem:[#allocation1] sm:$0xff] %v4819
        %s5029 = scalar_lea.vmem [#allocation1], 2
        %v5030 = vld [vmem:[%s5029] ss:$9 sm:$0xff]
        %5032 = vst.msk [vmem:[#allocation4 + $0x11] sm:$0x1] %vm4831, %v5030
        %5033 = vst [vmem:[#allocation1] sm:$0xff] %v4819
        %s5034 = scalar_lea.vmem [#allocation1], 5
        %v5035 = vld [vmem:[%s5034] ss:$9 sm:$0xff]
        %5036 = vrot.lane.b32.xlu0 %v5035, 64
        %v5037 = vpop.permute.xlu0 %5036
        %5039 = vst.msk [vmem:[#allocation4 + $0x11] sm:$0x1] %vm4841, %v5037
        %5040 = vst [vmem:[#allocation1] sm:$0xff] %v4819
        %s5041 = scalar_lea.vmem [#allocation1], 6
        %v5042 = vld [vmem:[%s5041] ss:$9 sm:$0xff]
        %5044 = vst.msk [vmem:[#allocation4 + $0x12] sm:$0x1] %vm4831, %v5042
        %5045 = vst [vmem:[#allocation1] sm:$0xff] %v4819
        %s5046 = scalar_lea.vmem [#allocation1], 7
        %v5047 = vld [vmem:[%s5046] ss:$9 sm:$0xff]
        %5048 = vrot.lane.b32.xlu0 %v5047, 64
        %v5049 = vpop.permute.xlu0 %5048
        %5051 = vst.msk [vmem:[#allocation4 + $0x12] sm:$0x1] %vm4841, %v5049
        %5052 = vst.msk [vmem:[#allocation4 + $0x13] sm:$0x1] %vm4831, %v4820
        %5054 = vst [vmem:[#allocation1] sm:$0xff] %v4820
        %s5055 = scalar_lea.vmem [#allocation1], 1
        %v5056 = vld [vmem:[%s5055] ss:$9 sm:$0xff]
        %5057 = vrot.lane.b32.xlu0 %v5056, 64
        %v5058 = vpop.permute.xlu0 %5057
        %5060 = vst.msk [vmem:[#allocation4 + $0x13] sm:$0x1] %vm4841, %v5058
        %5061 = vst [vmem:[#allocation1] sm:$0xff] %v4820
        %s5062 = scalar_lea.vmem [#allocation1], 2
        %v5063 = vld [vmem:[%s5062] ss:$9 sm:$0xff]
        %5065 = vst.msk [vmem:[#allocation4 + $0x14] sm:$0x1] %vm4831, %v5063
        %5066 = vst [vmem:[#allocation1] sm:$0xff] %v4820
        %s5067 = scalar_lea.vmem [#allocation1], 3
        %v5068 = vld [vmem:[%s5067] ss:$9 sm:$0xff]
        %5069 = vrot.lane.b32.xlu0 %v5068, 64
        %v5070 = vpop.permute.xlu0 %5069
        %5072 = vst.msk [vmem:[#allocation4 + $0x14] sm:$0x1] %vm4841, %v5070
        %5073 = vst [vmem:[#allocation1] sm:$0xff] %v4820
        %s5074 = scalar_lea.vmem [#allocation1], 6
        %v5075 = vld [vmem:[%s5074] ss:$9 sm:$0xff]
        %5077 = vst.msk [vmem:[#allocation4 + $0x15] sm:$0x1] %vm4831, %v5075
        %5078 = vst [vmem:[#allocation1] sm:$0xff] %v4820
        %s5079 = scalar_lea.vmem [#allocation1], 7
        %v5080 = vld [vmem:[%s5079] ss:$9 sm:$0xff]
        %5081 = vrot.lane.b32.xlu0 %v5080, 64
        %v5082 = vpop.permute.xlu0 %5081
        %5084 = vst.msk [vmem:[#allocation4 + $0x15] sm:$0x1] %vm4841, %v5082
        %5085 = vst.msk [vmem:[#allocation4 + $0x16] sm:$0x1] %vm4831, %v4821
        %5087 = vst [vmem:[#allocation1] sm:$0xff] %v4821
        %s5088 = scalar_lea.vmem [#allocation1], 1
        %v5089 = vld [vmem:[%s5088] ss:$9 sm:$0xff]
        %5090 = vrot.lane.b32.xlu0 %v5089, 64
        %v5091 = vpop.permute.xlu0 %5090
        %5093 = vst.msk [vmem:[#allocation4 + $0x16] sm:$0x1] %vm4841, %v5091
        %5094 = vst [vmem:[#allocation1] sm:$0xff] %v4821
        %s5095 = scalar_lea.vmem [#allocation1], 2
        %v5096 = vld [vmem:[%s5095] ss:$9 sm:$0xff]
        %5098 = vst.msk [vmem:[#allocation4 + $0x17] sm:$0x1] %vm4831, %v5096
        %5099 = vst [vmem:[#allocation1] sm:$0xff] %v4821
        %s5100 = scalar_lea.vmem [#allocation1], 3
        %v5101 = vld [vmem:[%s5100] ss:$9 sm:$0xff]
        %5102 = vrot.lane.b32.xlu0 %v5101, 64
        %v5103 = vpop.permute.xlu0 %5102
        %5105 = vst.msk [vmem:[#allocation4 + $0x17] sm:$0x1] %vm4841, %v5103
        %5106 = vst [vmem:[#allocation1] sm:$0xff] %v4821
        %s5107 = scalar_lea.vmem [#allocation1], 4
        %v5108 = vld [vmem:[%s5107] ss:$9 sm:$0xff]
        %5110 = vst.msk [vmem:[#allocation4 + $0x18] sm:$0x1] %vm4831, %v5108
        %v5111 = vld [vmem:[#allocation4] sm:$0xff]
        %v5112 = vld [vmem:[#allocation4 + $0x8] sm:$0xff]
        %v5113 = vld [vmem:[#allocation4 + $0x10] sm:$0xff]
        %v5114 = vld [vmem:[#allocation4 + $0x18] sm:$0x1]
        %v5119 = vperm.slane %v5111, 0
        %v5120 = vperm.slane %v5111, 1
        %v5121 = vperm.slane %v5111, 2
        %v5122 = vperm.slane %v5111, 3
        %v5123 = vperm.slane %v5111, 4
        %v5124 = vperm.slane %v5111, 5
        %v5125 = vperm.slane %v5111, 6
        %v5126 = vperm.slane %v5111, 7
        %v5127 = vperm.slane %v5112, 0
        %v5128 = vperm.slane %v5112, 1
        %v5129 = vperm.slane %v5112, 2
        %v5130 = vperm.slane %v5112, 3
        %v5131 = vperm.slane %v5112, 4
        %v5132 = vperm.slane %v5112, 5
        %v5133 = vperm.slane %v5112, 6
        %v5134 = vperm.slane %v5112, 7
        %v5135 = vperm.slane %v5113, 0
        %v5136 = vperm.slane %v5113, 1
        %v5137 = vperm.slane %v5113, 2
        %v5138 = vperm.slane %v5113, 3
        %v5139 = vperm.slane %v5113, 4
        %v5140 = vperm.slane %v5113, 5
        %v5141 = vperm.slane %v5113, 6
        %v5142 = vperm.slane %v5113, 7
        %v5143 = vperm.slane %v5114, 0
        %v5169 = vpack.c.bf16 %v5119, %v5119
        %v5170 = vpack.c.bf16 %v5120, %v5120
        %v5171 = vpack.c.bf16 %v5121, %v5121
        %v5172 = vpack.c.bf16 %v5122, %v5122
        %v5173 = vpack.c.bf16 %v5123, %v5123
        %v5174 = vpack.c.bf16 %v5124, %v5124
        %v5175 = vpack.c.bf16 %v5125, %v5125
        %v5176 = vpack.c.bf16 %v5126, %v5126
        %v5177 = vpack.c.bf16 %v5127, %v5127
        %v5178 = vpack.c.bf16 %v5128, %v5128
        %v5179 = vpack.c.bf16 %v5129, %v5129
        %v5180 = vpack.c.bf16 %v5130, %v5130
        %v5181 = vpack.c.bf16 %v5131, %v5131
        %v5182 = vpack.c.bf16 %v5132, %v5132
        %v5183 = vpack.c.bf16 %v5133, %v5133
        %v5184 = vpack.c.bf16 %v5134, %v5134
        %v5185 = vpack.c.bf16 %v5135, %v5135
        %v5186 = vpack.c.bf16 %v5136, %v5136
        %v5187 = vpack.c.bf16 %v5137, %v5137
        %v5188 = vpack.c.bf16 %v5138, %v5138
        %v5189 = vpack.c.bf16 %v5139, %v5139
        %v5190 = vpack.c.bf16 %v5140, %v5140
        %v5191 = vpack.c.bf16 %v5141, %v5141
        %v5192 = vpack.c.bf16 %v5142, %v5142
        %v5193 = vpack.c.bf16 %v5143, %v5143
        %v5194 = vld [vmem:[%s7] sm:$0xff]
        %v5195 = vld [vmem:[%s7 + $0x8] sm:$0xff]
        %v5196 = vld [vmem:[%s7 + $0x10] sm:$0xff]
        %v5197 = vld [vmem:[%s7 + $0x18] sm:$0xff]
        %v5198 = vld [vmem:[%s7 + $0x20] sm:$0xff]
        %v5199 = vld [vmem:[%s7 + $0x28] sm:$0xff]
        %v5200 = vld [vmem:[%s7 + $0x30] sm:$0xff]
        %v5201 = vld [vmem:[%s7 + $0x38] sm:$0xff]
        %v5202 = vld [vmem:[%s7 + $0x40] sm:$0xff]
        %v5203 = vld [vmem:[%s7 + $0x48] sm:$0xff]
        %v5204 = vld [vmem:[%s7 + $0x50] sm:$0xff]
        %v5205 = vld [vmem:[%s7 + $0x58] sm:$0xff]
        %v5206 = vld [vmem:[%s7 + $0x60] sm:$0xff]
        %v5207 = vld [vmem:[%s7 + $0x68] sm:$0xff]
        %v5208 = vld [vmem:[%s7 + $0x70] sm:$0xff]
        %v5209 = vld [vmem:[%s7 + $0x78] sm:$0xff]
        %v5210 = vld [vmem:[%s7 + $0x80] sm:$0xff]
        %v5211 = vld [vmem:[%s7 + $0x88] sm:$0xff]
        %v5212 = vld [vmem:[%s7 + $0x90] sm:$0xff]
        %v5213 = vld [vmem:[%s7 + $0x98] sm:$0xff]
        %v5214 = vld [vmem:[%s7 + $0xa0] sm:$0xff]
        %v5215 = vld [vmem:[%s7 + $0xa8] sm:$0xff]
        %v5216 = vld [vmem:[%s7 + $0xb0] sm:$0xff]
        %v5217 = vld [vmem:[%s7 + $0xb8] sm:$0xff]
        %v5218 = vld [vmem:[%s7 + $0xc0] sm:$0xff]
        %v5219 = vld [vmem:[%s7 + $0xc8] sm:$0xff]
        %v5220 = vld [vmem:[%s7 + $0xd0] sm:$0xff]
        %v5221 = vld [vmem:[%s7 + $0xd8] sm:$0xff]
        %v5222 = vld [vmem:[%s7 + $0xe0] sm:$0xff]
        %v5223 = vld [vmem:[%s7 + $0xe8] sm:$0xff]
        %v5224 = vld [vmem:[%s7 + $0xf0] sm:$0xff]
        %v5225 = vld [vmem:[%s7 + $0xf8] sm:$0xff]
        %v5226 = vld [vmem:[%s7 + $0x100] sm:$0xff]
        %v5227 = vld [vmem:[%s7 + $0x108] sm:$0xff]
        %v5228 = vld [vmem:[%s7 + $0x110] sm:$0xff]
        %v5229 = vld [vmem:[%s7 + $0x118] sm:$0xff]
        %v5230 = vld [vmem:[%s7 + $0x120] sm:$0xff]
        %v5231 = vld [vmem:[%s7 + $0x128] sm:$0xff]
        %v5232 = vld [vmem:[%s7 + $0x130] sm:$0xff]
        %v5233 = vld [vmem:[%s7 + $0x138] sm:$0xff]
        %v5234 = vld [vmem:[%s7 + $0x140] sm:$0xff]
        %v5235 = vld [vmem:[%s7 + $0x148] sm:$0xff]
        %v5236 = vld [vmem:[%s7 + $0x150] sm:$0xff]
        %v5237 = vld [vmem:[%s7 + $0x158] sm:$0xff]
        %v5238 = vld [vmem:[%s7 + $0x160] sm:$0xff]
        %v5239 = vld [vmem:[%s7 + $0x168] sm:$0xff]
        %v5240 = vld [vmem:[%s7 + $0x170] sm:$0xff]
        %v5241 = vld [vmem:[%s7 + $0x178] sm:$0xff]
        %v5242 = vld [vmem:[%s7 + $0x180] sm:$0xff]
        %v5243 = vld [vmem:[%s7 + $0x188] sm:$0xff]
        %v5244 = vld [vmem:[%s7 + $0x190] sm:$0xff]
        %v5245 = vld [vmem:[%s7 + $0x198] sm:$0xff]
        %v5246 = vld [vmem:[%s7 + $0x1a0] sm:$0xff]
        %v5247 = vld [vmem:[%s7 + $0x1a8] sm:$0xff]
        %v5248 = vld [vmem:[%s7 + $0x1b0] sm:$0xff]
        %v5249 = vld [vmem:[%s7 + $0x1b8] sm:$0xff]
        %v5250 = vld [vmem:[%s7 + $0x1c0] sm:$0xff]
        %v5251 = vld [vmem:[%s7 + $0x1c8] sm:$0xff]
        %v5252 = vld [vmem:[%s7 + $0x1d0] sm:$0xff]
        %v5253 = vld [vmem:[%s7 + $0x1d8] sm:$0xff]
        %v5254 = vld [vmem:[%s7 + $0x1e0] sm:$0xff]
        %v5255 = vld [vmem:[%s7 + $0x1e8] sm:$0xff]
        %v5256 = vld [vmem:[%s7 + $0x1f0] sm:$0xff]
        %v5257 = vld [vmem:[%s7 + $0x1f8] sm:$0xff]
        %v5258 = vld [vmem:[%s7 + $0x200] sm:$0xff]
        %v5259 = vld [vmem:[%s7 + $0x208] sm:$0xff]
        %v5260 = vld [vmem:[%s7 + $0x210] sm:$0xff]
        %v5261 = vld [vmem:[%s7 + $0x218] sm:$0xff]
        %v5262 = vld [vmem:[%s7 + $0x220] sm:$0xff]
        %v5263 = vld [vmem:[%s7 + $0x228] sm:$0xff]
        %v5264 = vld [vmem:[%s7 + $0x230] sm:$0xff]
        %v5265 = vld [vmem:[%s7 + $0x238] sm:$0xff]
        %v5266 = vld [vmem:[%s7 + $0x240] sm:$0xff]
        %v5267 = vld [vmem:[%s7 + $0x248] sm:$0xff]
        %v5268 = vld [vmem:[%s7 + $0x250] sm:$0xff]
        %v5269 = vld [vmem:[%s7 + $0x258] sm:$0xff]
        %v5270 = vld [vmem:[%s7 + $0x260] sm:$0xff]
        %v5271 = vld [vmem:[%s7 + $0x268] sm:$0xff]
        %v5272 = vld [vmem:[%s7 + $0x270] sm:$0xff]
        %v5273 = vld [vmem:[%s7 + $0x278] sm:$0xff]
        %v5274 = vld [vmem:[%s7 + $0x280] sm:$0xff]
        %v5275 = vld [vmem:[%s7 + $0x288] sm:$0xff]
        %v5276 = vld [vmem:[%s7 + $0x290] sm:$0xff]
        %v5277 = vld [vmem:[%s7 + $0x298] sm:$0xff]
        %v5278 = vld [vmem:[%s7 + $0x2a0] sm:$0xff]
        %v5279 = vld [vmem:[%s7 + $0x2a8] sm:$0xff]
        %v5280 = vld [vmem:[%s7 + $0x2b0] sm:$0xff]
        %v5281 = vld [vmem:[%s7 + $0x2b8] sm:$0xff]
        %v5282 = vld [vmem:[%s7 + $0x2c0] sm:$0xff]
        %v5283 = vld [vmem:[%s7 + $0x2c8] sm:$0xff]
        %v5284 = vld [vmem:[%s7 + $0x2d0] sm:$0xff]
        %v5285 = vld [vmem:[%s7 + $0x2d8] sm:$0xff]
        %v5286 = vld [vmem:[%s7 + $0x2e0] sm:$0xff]
        %v5287 = vld [vmem:[%s7 + $0x2e8] sm:$0xff]
        %v5288 = vld [vmem:[%s7 + $0x2f0] sm:$0xff]
        %v5289 = vld [vmem:[%s7 + $0x2f8] sm:$0xff]
        %v5290 = vld [vmem:[%s7 + $0x300] sm:$0xff]
        %v5291 = vld [vmem:[%s7 + $0x308] sm:$0xff]
        %v5292 = vld [vmem:[%s7 + $0x310] sm:$0xff]
        %v5293 = vld [vmem:[%s7 + $0x318] sm:$0xff]
        %v5294 = vld [vmem:[%s7 + $0x320] sm:$0xff]
        %v5295 = vld [vmem:[%s7 + $0x328] sm:$0xff]
        %v5296 = vld [vmem:[%s7 + $0x330] sm:$0xff]
        %v5297 = vld [vmem:[%s7 + $0x338] sm:$0xff]
        %v5298 = vld [vmem:[%s7 + $0x340] sm:$0xff]
        %v5299 = vld [vmem:[%s7 + $0x348] sm:$0xff]
        %v5300 = vld [vmem:[%s7 + $0x350] sm:$0xff]
        %v5301 = vld [vmem:[%s7 + $0x358] sm:$0xff]
        %v5302 = vld [vmem:[%s7 + $0x360] sm:$0xff]
        %v5303 = vld [vmem:[%s7 + $0x368] sm:$0xff]
        %v5304 = vld [vmem:[%s7 + $0x370] sm:$0xff]
        %v5305 = vld [vmem:[%s7 + $0x378] sm:$0xff]
        %v5306 = vld [vmem:[%s7 + $0x380] sm:$0xff]
        %v5307 = vld [vmem:[%s7 + $0x388] sm:$0xff]
        %v5308 = vld [vmem:[%s7 + $0x390] sm:$0xff]
        %v5309 = vld [vmem:[%s7 + $0x398] sm:$0xff]
        %v5310 = vld [vmem:[%s7 + $0x3a0] sm:$0xff]
        %v5311 = vld [vmem:[%s7 + $0x3a8] sm:$0xff]
        %v5312 = vld [vmem:[%s7 + $0x3b0] sm:$0xff]
        %v5313 = vld [vmem:[%s7 + $0x3b8] sm:$0xff]
        %v5314 = vld [vmem:[%s7 + $0x3c0] sm:$0xff]
        %v5315 = vld [vmem:[%s7 + $0x3c8] sm:$0xff]
        %v5316 = vld [vmem:[%s7 + $0x3d0] sm:$0xff]
        %v5317 = vld [vmem:[%s7 + $0x3d8] sm:$0xff]
        %v5318 = vld [vmem:[%s7 + $0x3e0] sm:$0xff]
        %v5319 = vld [vmem:[%s7 + $0x3e8] sm:$0xff]
        %v5320 = vld [vmem:[%s7 + $0x3f0] sm:$0xff]
        %v5321 = vld [vmem:[%s7 + $0x3f8] sm:$0xff]
        %v5322 = vld [vmem:[%s7 + $0x400] sm:$0xff]
        %v5323 = vld [vmem:[%s7 + $0x408] sm:$0xff]
        %v5324 = vld [vmem:[%s7 + $0x410] sm:$0xff]
        %v5325 = vld [vmem:[%s7 + $0x418] sm:$0xff]
        %v5326 = vld [vmem:[%s7 + $0x420] sm:$0xff]
        %v5327 = vld [vmem:[%s7 + $0x428] sm:$0xff]
        %v5328 = vld [vmem:[%s7 + $0x430] sm:$0xff]
        %v5329 = vld [vmem:[%s7 + $0x438] sm:$0xff]
        %v5330 = vld [vmem:[%s7 + $0x440] sm:$0xff]
        %v5331 = vld [vmem:[%s7 + $0x448] sm:$0xff]
        %v5332 = vld [vmem:[%s7 + $0x450] sm:$0xff]
        %v5333 = vld [vmem:[%s7 + $0x458] sm:$0xff]
        %v5334 = vld [vmem:[%s7 + $0x460] sm:$0xff]
        %v5335 = vld [vmem:[%s7 + $0x468] sm:$0xff]
        %v5336 = vld [vmem:[%s7 + $0x470] sm:$0xff]
        %v5337 = vld [vmem:[%s7 + $0x478] sm:$0xff]
        %v5338 = vld [vmem:[%s7 + $0x480] sm:$0xff]
        %v5339 = vld [vmem:[%s7 + $0x488] sm:$0xff]
        %v5340 = vld [vmem:[%s7 + $0x490] sm:$0xff]
        %v5341 = vld [vmem:[%s7 + $0x498] sm:$0xff]
        %v5342 = vld [vmem:[%s7 + $0x4a0] sm:$0xff]
        %v5343 = vld [vmem:[%s7 + $0x4a8] sm:$0xff]
        %v5344 = vld [vmem:[%s7 + $0x4b0] sm:$0xff]
        %v5345 = vld [vmem:[%s7 + $0x4b8] sm:$0xff]
        %v5346 = vld [vmem:[%s7 + $0x4c0] sm:$0xff]
        %v5347 = vld [vmem:[%s7 + $0x4c8] sm:$0xff]
        %v5348 = vld [vmem:[%s7 + $0x4d0] sm:$0xff]
        %v5349 = vld [vmem:[%s7 + $0x4d8] sm:$0xff]
        %v5350 = vld [vmem:[%s7 + $0x4e0] sm:$0xff]
        %v5351 = vld [vmem:[%s7 + $0x4e8] sm:$0xff]
        %v5352 = vld [vmem:[%s7 + $0x4f0] sm:$0xff]
        %v5353 = vld [vmem:[%s7 + $0x4f8] sm:$0xff]
        %v5354 = vld [vmem:[%s7 + $0x500] sm:$0xff]
        %v5355 = vld [vmem:[%s7 + $0x508] sm:$0xff]
        %v5356 = vld [vmem:[%s7 + $0x510] sm:$0xff]
        %v5357 = vld [vmem:[%s7 + $0x518] sm:$0xff]
        %v5358 = vld [vmem:[%s7 + $0x520] sm:$0xff]
        %v5359 = vld [vmem:[%s7 + $0x528] sm:$0xff]
        %v5360 = vld [vmem:[%s7 + $0x530] sm:$0xff]
        %v5361 = vld [vmem:[%s7 + $0x538] sm:$0xff]
        %v5362 = vld [vmem:[%s7 + $0x540] sm:$0xff]
        %v5363 = vld [vmem:[%s7 + $0x548] sm:$0xff]
        %v5364 = vld [vmem:[%s7 + $0x550] sm:$0xff]
        %v5365 = vld [vmem:[%s7 + $0x558] sm:$0xff]
        %v5366 = vld [vmem:[%s7 + $0x560] sm:$0xff]
        %v5367 = vld [vmem:[%s7 + $0x568] sm:$0xff]
        %v5368 = vld [vmem:[%s7 + $0x570] sm:$0xff]
        %v5369 = vld [vmem:[%s7 + $0x578] sm:$0xff]
        %v5370 = vld [vmem:[%s7 + $0x580] sm:$0xff]
        %v5371 = vld [vmem:[%s7 + $0x588] sm:$0xff]
        %v5372 = vld [vmem:[%s7 + $0x590] sm:$0xff]
        %v5373 = vld [vmem:[%s7 + $0x598] sm:$0xff]
        %v5374 = vld [vmem:[%s7 + $0x5a0] sm:$0xff]
        %v5375 = vld [vmem:[%s7 + $0x5a8] sm:$0xff]
        %v5376 = vld [vmem:[%s7 + $0x5b0] sm:$0xff]
        %v5377 = vld [vmem:[%s7 + $0x5b8] sm:$0xff]
        %v5378 = vld [vmem:[%s7 + $0x5c0] sm:$0xff]
        %v5379 = vld [vmem:[%s7 + $0x5c8] sm:$0xff]
        %v5380 = vld [vmem:[%s7 + $0x5d0] sm:$0xff]
        %v5381 = vld [vmem:[%s7 + $0x5d8] sm:$0xff]
        %v5382 = vld [vmem:[%s7 + $0x5e0] sm:$0xff]
        %v5383 = vld [vmem:[%s7 + $0x5e8] sm:$0xff]
        %v5384 = vld [vmem:[%s7 + $0x5f0] sm:$0xff]
        %v5385 = vld [vmem:[%s7 + $0x5f8] sm:$0xff]
        %v5386 = vld [vmem:[%s7 + $0x600] sm:$0xff]
        %v5387 = vld [vmem:[%s7 + $0x608] sm:$0xff]
        %v5388 = vld [vmem:[%s7 + $0x610] sm:$0xff]
        %v5389 = vld [vmem:[%s7 + $0x618] sm:$0xff]
        %v5390 = vld [vmem:[%s7 + $0x620] sm:$0xff]
        %v5391 = vld [vmem:[%s7 + $0x628] sm:$0xff]
        %v5392 = vld [vmem:[%s7 + $0x630] sm:$0xff]
        %v5393 = vld [vmem:[%s7 + $0x638] sm:$0xff]
        %v5394 = vld [vmem:[%s7 + $0x640] sm:$0xff]
        %v5395 = vld [vmem:[%s7 + $0x648] sm:$0xff]
        %v5396 = vld [vmem:[%s7 + $0x650] sm:$0xff]
        %v5397 = vld [vmem:[%s7 + $0x658] sm:$0xff]
        %v5398 = vld [vmem:[%s7 + $0x660] sm:$0xff]
        %v5399 = vld [vmem:[%s7 + $0x668] sm:$0xff]
        %v5400 = vld [vmem:[%s7 + $0x670] sm:$0xff]
        %v5401 = vld [vmem:[%s7 + $0x678] sm:$0xff]
        %v5402 = vld [vmem:[%s7 + $0x680] sm:$0xff]
        %v5403 = vld [vmem:[%s7 + $0x688] sm:$0xff]
        %v5404 = vld [vmem:[%s7 + $0x690] sm:$0xff]
        %v5405 = vld [vmem:[%s7 + $0x698] sm:$0xff]
        %v5406 = vld [vmem:[%s7 + $0x6a0] sm:$0xff]
        %v5407 = vld [vmem:[%s7 + $0x6a8] sm:$0xff]
        %v5408 = vld [vmem:[%s7 + $0x6b0] sm:$0xff]
        %v5409 = vld [vmem:[%s7 + $0x6b8] sm:$0xff]
        %v5410 = vld [vmem:[%s7 + $0x6c0] sm:$0xff]
        %v5411 = vld [vmem:[%s7 + $0x6c8] sm:$0xff]
        %v5412 = vld [vmem:[%s7 + $0x6d0] sm:$0xff]
        %v5413 = vld [vmem:[%s7 + $0x6d8] sm:$0xff]
        %v5414 = vld [vmem:[%s7 + $0x6e0] sm:$0xff]
        %v5415 = vld [vmem:[%s7 + $0x6e8] sm:$0xff]
        %v5416 = vld [vmem:[%s7 + $0x6f0] sm:$0xff]
        %v5417 = vld [vmem:[%s7 + $0x6f8] sm:$0xff]
        %v5418 = vld [vmem:[%s7 + $0x700] sm:$0xff]
        %v5419 = vld [vmem:[%s7 + $0x708] sm:$0xff]
        %v5420 = vld [vmem:[%s7 + $0x710] sm:$0xff]
        %v5421 = vld [vmem:[%s7 + $0x718] sm:$0xff]
        %v5422 = vld [vmem:[%s7 + $0x720] sm:$0xff]
        %v5423 = vld [vmem:[%s7 + $0x728] sm:$0xff]
        %v5424 = vld [vmem:[%s7 + $0x730] sm:$0xff]
        %v5425 = vld [vmem:[%s7 + $0x738] sm:$0xff]
        %v5426 = vld [vmem:[%s7 + $0x740] sm:$0xff]
        %v5427 = vld [vmem:[%s7 + $0x748] sm:$0xff]
        %v5428 = vld [vmem:[%s7 + $0x750] sm:$0xff]
        %v5429 = vld [vmem:[%s7 + $0x758] sm:$0xff]
        %v5430 = vld [vmem:[%s7 + $0x760] sm:$0xff]
        %v5431 = vld [vmem:[%s7 + $0x768] sm:$0xff]
        %v5432 = vld [vmem:[%s7 + $0x770] sm:$0xff]
        %v5433 = vld [vmem:[%s7 + $0x778] sm:$0xff]
        %v5434 = vld [vmem:[%s7 + $0x780] sm:$0xff]
        %v5435 = vld [vmem:[%s7 + $0x788] sm:$0xff]
        %v5436 = vld [vmem:[%s7 + $0x790] sm:$0xff]
        %v5437 = vld [vmem:[%s7 + $0x798] sm:$0xff]
        %v5438 = vld [vmem:[%s7 + $0x7a0] sm:$0xff]
        %v5439 = vld [vmem:[%s7 + $0x7a8] sm:$0xff]
        %v5440 = vld [vmem:[%s7 + $0x7b0] sm:$0xff]
        %v5441 = vld [vmem:[%s7 + $0x7b8] sm:$0xff]
        %v5442 = vld [vmem:[%s7 + $0x7c0] sm:$0xff]
        %v5443 = vld [vmem:[%s7 + $0x7c8] sm:$0xff]
        %v5444 = vld [vmem:[%s7 + $0x7d0] sm:$0xff]
        %v5445 = vld [vmem:[%s7 + $0x7d8] sm:$0xff]
        %v5446 = vld [vmem:[%s7 + $0x7e0] sm:$0xff]
        %v5447 = vld [vmem:[%s7 + $0x7e8] sm:$0xff]
        %v5448 = vld [vmem:[%s7 + $0x7f0] sm:$0xff]
        %v5449 = vld [vmem:[%s7 + $0x7f8] sm:$0xff]
        %v5450 = vld [vmem:[%s7 + $0x800] sm:$0xff]
        %v5451 = vld [vmem:[%s7 + $0x808] sm:$0xff]
        %v5452 = vld [vmem:[%s7 + $0x810] sm:$0xff]
        %v5453 = vld [vmem:[%s7 + $0x818] sm:$0xff]
        %v5454 = vld [vmem:[%s7 + $0x820] sm:$0xff]
        %v5455 = vld [vmem:[%s7 + $0x828] sm:$0xff]
        %v5456 = vld [vmem:[%s7 + $0x830] sm:$0xff]
        %v5457 = vld [vmem:[%s7 + $0x838] sm:$0xff]
        %v5458 = vld [vmem:[%s7 + $0x840] sm:$0xff]
        %v5459 = vld [vmem:[%s7 + $0x848] sm:$0xff]
        %v5460 = vld [vmem:[%s7 + $0x850] sm:$0xff]
        %v5461 = vld [vmem:[%s7 + $0x858] sm:$0xff]
        %v5462 = vld [vmem:[%s7 + $0x860] sm:$0xff]
        %v5463 = vld [vmem:[%s7 + $0x868] sm:$0xff]
        %v5464 = vld [vmem:[%s7 + $0x870] sm:$0xff]
        %v5465 = vld [vmem:[%s7 + $0x878] sm:$0xff]
        %v5466 = vld [vmem:[%s7 + $0x880] sm:$0xff]
        %v5467 = vld [vmem:[%s7 + $0x888] sm:$0xff]
        %v5468 = vld [vmem:[%s7 + $0x890] sm:$0xff]
        %v5469 = vld [vmem:[%s7 + $0x898] sm:$0xff]
        %v5470 = vld [vmem:[%s7 + $0x8a0] sm:$0xff]
        %v5471 = vld [vmem:[%s7 + $0x8a8] sm:$0xff]
        %v5472 = vld [vmem:[%s7 + $0x8b0] sm:$0xff]
        %v5473 = vld [vmem:[%s7 + $0x8b8] sm:$0xff]
        %v5474 = vld [vmem:[%s7 + $0x8c0] sm:$0xff]
        %v5475 = vld [vmem:[%s7 + $0x8c8] sm:$0xff]
        %v5476 = vld [vmem:[%s7 + $0x8d0] sm:$0xff]
        %v5477 = vld [vmem:[%s7 + $0x8d8] sm:$0xff]
        %v5478 = vld [vmem:[%s7 + $0x8e0] sm:$0xff]
        %v5479 = vld [vmem:[%s7 + $0x8e8] sm:$0xff]
        %v5480 = vld [vmem:[%s7 + $0x8f0] sm:$0xff]
        %v5481 = vld [vmem:[%s7 + $0x8f8] sm:$0xff]
        %v5482 = vld [vmem:[%s7 + $0x900] sm:$0xff]
        %v5483 = vld [vmem:[%s7 + $0x908] sm:$0xff]
        %v5484 = vld [vmem:[%s7 + $0x910] sm:$0xff]
        %v5485 = vld [vmem:[%s7 + $0x918] sm:$0xff]
        %v5486 = vld [vmem:[%s7 + $0x920] sm:$0xff]
        %v5487 = vld [vmem:[%s7 + $0x928] sm:$0xff]
        %v5488 = vld [vmem:[%s7 + $0x930] sm:$0xff]
        %v5489 = vld [vmem:[%s7 + $0x938] sm:$0xff]
        %v5490 = vld [vmem:[%s7 + $0x940] sm:$0xff]
        %v5491 = vld [vmem:[%s7 + $0x948] sm:$0xff]
        %v5492 = vld [vmem:[%s7 + $0x950] sm:$0xff]
        %v5493 = vld [vmem:[%s7 + $0x958] sm:$0xff]
        %v5494 = vld [vmem:[%s7 + $0x960] sm:$0xff]
        %v5495 = vld [vmem:[%s7 + $0x968] sm:$0xff]
        %v5496 = vld [vmem:[%s7 + $0x970] sm:$0xff]
        %v5497 = vld [vmem:[%s7 + $0x978] sm:$0xff]
        %v5498 = vld [vmem:[%s7 + $0x980] sm:$0xff]
        %v5499 = vld [vmem:[%s7 + $0x988] sm:$0xff]
        %v5500 = vld [vmem:[%s7 + $0x990] sm:$0xff]
        %v5501 = vld [vmem:[%s7 + $0x998] sm:$0xff]
        %v5502 = vld [vmem:[%s7 + $0x9a0] sm:$0xff]
        %v5503 = vld [vmem:[%s7 + $0x9a8] sm:$0xff]
        %v5504 = vld [vmem:[%s7 + $0x9b0] sm:$0xff]
        %v5505 = vld [vmem:[%s7 + $0x9b8] sm:$0xff]
        %v5506 = vld [vmem:[%s7 + $0x9c0] sm:$0xff]
        %v5507 = vld [vmem:[%s7 + $0x9c8] sm:$0xff]
        %v5508 = vld [vmem:[%s7 + $0x9d0] sm:$0xff]
        %v5509 = vld [vmem:[%s7 + $0x9d8] sm:$0xff]
        %v5510 = vld [vmem:[%s7 + $0x9e0] sm:$0xff]
        %v5511 = vld [vmem:[%s7 + $0x9e8] sm:$0xff]
        %v5512 = vld [vmem:[%s7 + $0x9f0] sm:$0xff]
        %v5513 = vld [vmem:[%s7 + $0x9f8] sm:$0xff]
        %v5514 = vld [vmem:[%s7 + $0xa00] sm:$0xff]
        %v5515 = vld [vmem:[%s7 + $0xa08] sm:$0xff]
        %v5516 = vld [vmem:[%s7 + $0xa10] sm:$0xff]
        %v5517 = vld [vmem:[%s7 + $0xa18] sm:$0xff]
        %v5518 = vld [vmem:[%s7 + $0xa20] sm:$0xff]
        %v5519 = vld [vmem:[%s7 + $0xa28] sm:$0xff]
        %v5520 = vld [vmem:[%s7 + $0xa30] sm:$0xff]
        %v5521 = vld [vmem:[%s7 + $0xa38] sm:$0xff]
        %v5522 = vld [vmem:[%s7 + $0xa40] sm:$0xff]
        %v5523 = vld [vmem:[%s7 + $0xa48] sm:$0xff]
        %v5524 = vld [vmem:[%s7 + $0xa50] sm:$0xff]
        %v5525 = vld [vmem:[%s7 + $0xa58] sm:$0xff]
        %v5526 = vld [vmem:[%s7 + $0xa60] sm:$0xff]
        %v5527 = vld [vmem:[%s7 + $0xa68] sm:$0xff]
        %v5528 = vld [vmem:[%s7 + $0xa70] sm:$0xff]
        %v5529 = vld [vmem:[%s7 + $0xa78] sm:$0xff]
        %v5530 = vld [vmem:[%s7 + $0xa80] sm:$0xff]
        %v5531 = vld [vmem:[%s7 + $0xa88] sm:$0xff]
        %v5532 = vld [vmem:[%s7 + $0xa90] sm:$0xff]
        %v5533 = vld [vmem:[%s7 + $0xa98] sm:$0xff]
        %v5534 = vld [vmem:[%s7 + $0xaa0] sm:$0xff]
        %v5535 = vld [vmem:[%s7 + $0xaa8] sm:$0xff]
        %v5536 = vld [vmem:[%s7 + $0xab0] sm:$0xff]
        %v5537 = vld [vmem:[%s7 + $0xab8] sm:$0xff]
        %v5538 = vld [vmem:[%s7 + $0xac0] sm:$0xff]
        %v5539 = vld [vmem:[%s7 + $0xac8] sm:$0xff]
        %v5540 = vld [vmem:[%s7 + $0xad0] sm:$0xff]
        %v5541 = vld [vmem:[%s7 + $0xad8] sm:$0xff]
        %v5542 = vld [vmem:[%s7 + $0xae0] sm:$0xff]
        %v5543 = vld [vmem:[%s7 + $0xae8] sm:$0xff]
        %v5544 = vld [vmem:[%s7 + $0xaf0] sm:$0xff]
        %v5545 = vld [vmem:[%s7 + $0xaf8] sm:$0xff]
        %v5546 = vld [vmem:[%s7 + $0xb00] sm:$0xff]
        %v5547 = vld [vmem:[%s7 + $0xb08] sm:$0xff]
        %v5548 = vld [vmem:[%s7 + $0xb10] sm:$0xff]
        %v5549 = vld [vmem:[%s7 + $0xb18] sm:$0xff]
        %v5550 = vld [vmem:[%s7 + $0xb20] sm:$0xff]
        %v5551 = vld [vmem:[%s7 + $0xb28] sm:$0xff]
        %v5552 = vld [vmem:[%s7 + $0xb30] sm:$0xff]
        %v5553 = vld [vmem:[%s7 + $0xb38] sm:$0xff]
        %v5554 = vld [vmem:[%s7 + $0xb40] sm:$0xff]
        %v5555 = vld [vmem:[%s7 + $0xb48] sm:$0xff]
        %v5556 = vld [vmem:[%s7 + $0xb50] sm:$0xff]
        %v5557 = vld [vmem:[%s7 + $0xb58] sm:$0xff]
        %v5558 = vld [vmem:[%s7 + $0xb60] sm:$0xff]
        %v5559 = vld [vmem:[%s7 + $0xb68] sm:$0xff]
        %v5560 = vld [vmem:[%s7 + $0xb70] sm:$0xff]
        %v5561 = vld [vmem:[%s7 + $0xb78] sm:$0xff]
        %v5562 = vld [vmem:[%s7 + $0xb80] sm:$0xff]
        %v5563 = vld [vmem:[%s7 + $0xb88] sm:$0xff]
        %v5564 = vld [vmem:[%s7 + $0xb90] sm:$0xff]
        %v5565 = vld [vmem:[%s7 + $0xb98] sm:$0xff]
        %v5566 = vld [vmem:[%s7 + $0xba0] sm:$0xff]
        %v5567 = vld [vmem:[%s7 + $0xba8] sm:$0xff]
        %v5568 = vld [vmem:[%s7 + $0xbb0] sm:$0xff]
        %v5569 = vld [vmem:[%s7 + $0xbb8] sm:$0xff]
        %v5570 = vld [vmem:[%s7 + $0xbc0] sm:$0xff]
        %v5571 = vld [vmem:[%s7 + $0xbc8] sm:$0xff]
        %v5572 = vld [vmem:[%s7 + $0xbd0] sm:$0xff]
        %v5573 = vld [vmem:[%s7 + $0xbd8] sm:$0xff]
        %v5574 = vld [vmem:[%s7 + $0xbe0] sm:$0xff]
        %v5575 = vld [vmem:[%s7 + $0xbe8] sm:$0xff]
        %v5576 = vld [vmem:[%s7 + $0xbf0] sm:$0xff]
        %v5577 = vld [vmem:[%s7 + $0xbf8] sm:$0xff]
        %v5578 = vld [vmem:[%s7 + $0xc00] sm:$0xff]
        %v5579 = vld [vmem:[%s7 + $0xc08] sm:$0xff]
        %v5580 = vld [vmem:[%s7 + $0xc10] sm:$0xff]
        %v5581 = vld [vmem:[%s7 + $0xc18] sm:$0xff]
        %v5582 = vld [vmem:[%s7 + $0xc20] sm:$0xff]
        %v5583 = vld [vmem:[%s7 + $0xc28] sm:$0xff]
        %v5584 = vld [vmem:[%s7 + $0xc30] sm:$0xff]
        %v5585 = vld [vmem:[%s7 + $0xc38] sm:$0xff]
        %v5586 = vld [vmem:[%s7 + $0xc40] sm:$0xff]
        %v5587 = vld [vmem:[%s7 + $0xc48] sm:$0xff]
        %v5588 = vld [vmem:[%s7 + $0xc50] sm:$0xff]
        %v5589 = vld [vmem:[%s7 + $0xc58] sm:$0xff]
        %v5590 = vld [vmem:[%s7 + $0xc60] sm:$0xff]
        %v5591 = vld [vmem:[%s7 + $0xc68] sm:$0xff]
        %v5592 = vld [vmem:[%s7 + $0xc70] sm:$0xff]
        %v5593 = vld [vmem:[%s7 + $0xc78] sm:$0xff]
        %v5594 = vld [vmem:[%s7 + $0xc80] sm:$0xff]
        %v5595 = vld [vmem:[%s7 + $0xc88] sm:$0xff]
        %v5596 = vld [vmem:[%s7 + $0xc90] sm:$0xff]
        %v5597 = vld [vmem:[%s7 + $0xc98] sm:$0xff]
        %v5598 = vld [vmem:[%s7 + $0xca0] sm:$0xff]
        %v5599 = vld [vmem:[%s7 + $0xca8] sm:$0xff]
        %v5600 = vld [vmem:[%s7 + $0xcb0] sm:$0xff]
        %v5601 = vld [vmem:[%s7 + $0xcb8] sm:$0xff]
        %v5602 = vld [vmem:[%s7 + $0xcc0] sm:$0xff]
        %v5603 = vld [vmem:[%s7 + $0xcc8] sm:$0xff]
        %v5604 = vld [vmem:[%s7 + $0xcd0] sm:$0xff]
        %v5605 = vld [vmem:[%s7 + $0xcd8] sm:$0xff]
        %v5606 = vld [vmem:[%s7 + $0xce0] sm:$0xff]
        %v5607 = vld [vmem:[%s7 + $0xce8] sm:$0xff]
        %v5608 = vld [vmem:[%s7 + $0xcf0] sm:$0xff]
        %v5609 = vld [vmem:[%s7 + $0xcf8] sm:$0xff]
        %v5610 = vld [vmem:[%s7 + $0xd00] sm:$0xff]
        %v5611 = vld [vmem:[%s7 + $0xd08] sm:$0xff]
        %v5612 = vld [vmem:[%s7 + $0xd10] sm:$0xff]
        %v5613 = vld [vmem:[%s7 + $0xd18] sm:$0xff]
        %v5614 = vld [vmem:[%s7 + $0xd20] sm:$0xff]
        %v5615 = vld [vmem:[%s7 + $0xd28] sm:$0xff]
        %v5616 = vld [vmem:[%s7 + $0xd30] sm:$0xff]
        %v5617 = vld [vmem:[%s7 + $0xd38] sm:$0xff]
        %v5618 = vld [vmem:[%s7 + $0xd40] sm:$0xff]
        %v5619 = vld [vmem:[%s7 + $0xd48] sm:$0xff]
        %v5620 = vld [vmem:[%s7 + $0xd50] sm:$0xff]
        %v5621 = vld [vmem:[%s7 + $0xd58] sm:$0xff]
        %v5622 = vld [vmem:[%s7 + $0xd60] sm:$0xff]
        %v5623 = vld [vmem:[%s7 + $0xd68] sm:$0xff]
        %v5624 = vld [vmem:[%s7 + $0xd70] sm:$0xff]
        %v5625 = vld [vmem:[%s7 + $0xd78] sm:$0xff]
        %v5626 = vld [vmem:[%s7 + $0xd80] sm:$0xff]
        %v5627 = vld [vmem:[%s7 + $0xd88] sm:$0xff]
        %v5628 = vld [vmem:[%s7 + $0xd90] sm:$0xff]
        %v5629 = vld [vmem:[%s7 + $0xd98] sm:$0xff]
        %v5630 = vld [vmem:[%s7 + $0xda0] sm:$0xff]
        %v5631 = vld [vmem:[%s7 + $0xda8] sm:$0xff]
        %v5632 = vld [vmem:[%s7 + $0xdb0] sm:$0xff]
        %v5633 = vld [vmem:[%s7 + $0xdb8] sm:$0xff]
        %v5634 = vld [vmem:[%s7 + $0xdc0] sm:$0xff]
        %v5635 = vld [vmem:[%s7 + $0xdc8] sm:$0xff]
        %v5636 = vld [vmem:[%s7 + $0xdd0] sm:$0xff]
        %v5637 = vld [vmem:[%s7 + $0xdd8] sm:$0xff]
        %v5638 = vld [vmem:[%s7 + $0xde0] sm:$0xff]
        %v5639 = vld [vmem:[%s7 + $0xde8] sm:$0xff]
        %v5640 = vld [vmem:[%s7 + $0xdf0] sm:$0xff]
        %v5641 = vld [vmem:[%s7 + $0xdf8] sm:$0xff]
        %v5642 = vld [vmem:[%s7 + $0xe00] sm:$0xff]
        %v5643 = vld [vmem:[%s7 + $0xe08] sm:$0xff]
        %v5644 = vld [vmem:[%s7 + $0xe10] sm:$0xff]
        %v5645 = vld [vmem:[%s7 + $0xe18] sm:$0xff]
        %v5646 = vld [vmem:[%s7 + $0xe20] sm:$0xff]
        %v5647 = vld [vmem:[%s7 + $0xe28] sm:$0xff]
        %v5648 = vld [vmem:[%s7 + $0xe30] sm:$0xff]
        %v5649 = vld [vmem:[%s7 + $0xe38] sm:$0xff]
        %v5650 = vld [vmem:[%s7 + $0xe40] sm:$0xff]
        %v5651 = vld [vmem:[%s7 + $0xe48] sm:$0xff]
        %v5652 = vld [vmem:[%s7 + $0xe50] sm:$0xff]
        %v5653 = vld [vmem:[%s7 + $0xe58] sm:$0xff]
        %v5654 = vld [vmem:[%s7 + $0xe60] sm:$0xff]
        %v5655 = vld [vmem:[%s7 + $0xe68] sm:$0xff]
        %v5656 = vld [vmem:[%s7 + $0xe70] sm:$0xff]
        %v5657 = vld [vmem:[%s7 + $0xe78] sm:$0xff]
        %v5658 = vld [vmem:[%s7 + $0xe80] sm:$0xff]
        %v5659 = vld [vmem:[%s7 + $0xe88] sm:$0xff]
        %v5660 = vld [vmem:[%s7 + $0xe90] sm:$0xff]
        %v5661 = vld [vmem:[%s7 + $0xe98] sm:$0xff]
        %v5662 = vld [vmem:[%s7 + $0xea0] sm:$0xff]
        %v5663 = vld [vmem:[%s7 + $0xea8] sm:$0xff]
        %v5664 = vld [vmem:[%s7 + $0xeb0] sm:$0xff]
        %v5665 = vld [vmem:[%s7 + $0xeb8] sm:$0xff]
        %v5666 = vld [vmem:[%s7 + $0xec0] sm:$0xff]
        %v5667 = vld [vmem:[%s7 + $0xec8] sm:$0xff]
        %v5668 = vld [vmem:[%s7 + $0xed0] sm:$0xff]
        %v5669 = vld [vmem:[%s7 + $0xed8] sm:$0xff]
        %v5670 = vld [vmem:[%s7 + $0xee0] sm:$0xff]
        %v5671 = vld [vmem:[%s7 + $0xee8] sm:$0xff]
        %v5672 = vld [vmem:[%s7 + $0xef0] sm:$0xff]
        %v5673 = vld [vmem:[%s7 + $0xef8] sm:$0xff]
        %v5674 = vld [vmem:[%s7 + $0xf00] sm:$0xff]
        %v5675 = vld [vmem:[%s7 + $0xf08] sm:$0xff]
        %v5676 = vld [vmem:[%s7 + $0xf10] sm:$0xff]
        %v5677 = vld [vmem:[%s7 + $0xf18] sm:$0xff]
        %v5678 = vld [vmem:[%s7 + $0xf20] sm:$0xff]
        %v5679 = vld [vmem:[%s7 + $0xf28] sm:$0xff]
        %v5680 = vld [vmem:[%s7 + $0xf30] sm:$0xff]
        %v5681 = vld [vmem:[%s7 + $0xf38] sm:$0xff]
        %v5682 = vld [vmem:[%s7 + $0xf40] sm:$0xff]
        %v5683 = vld [vmem:[%s7 + $0xf48] sm:$0xff]
        %v5684 = vld [vmem:[%s7 + $0xf50] sm:$0xff]
        %v5685 = vld [vmem:[%s7 + $0xf58] sm:$0xff]
        %v5686 = vld [vmem:[%s7 + $0xf60] sm:$0xff]
        %v5687 = vld [vmem:[%s7 + $0xf68] sm:$0xff]
        %v5688 = vld [vmem:[%s7 + $0xf70] sm:$0xff]
        %v5689 = vld [vmem:[%s7 + $0xf78] sm:$0xff]
        %v5690 = vld [vmem:[%s7 + $0xf80] sm:$0xff]
        %v5691 = vld [vmem:[%s7 + $0xf88] sm:$0xff]
        %v5692 = vld [vmem:[%s7 + $0xf90] sm:$0xff]
        %v5693 = vld [vmem:[%s7 + $0xf98] sm:$0xff]
        %v5694 = vld [vmem:[%s7 + $0xfa0] sm:$0xff]
        %v5695 = vld [vmem:[%s7 + $0xfa8] sm:$0xff]
        %v5696 = vld [vmem:[%s7 + $0xfb0] sm:$0xff]
        %v5697 = vld [vmem:[%s7 + $0xfb8] sm:$0xff]
        %v5698 = vld [vmem:[%s7 + $0xfc0] sm:$0xff]
        %v5699 = vld [vmem:[%s7 + $0xfc8] sm:$0xff]
        %v5700 = vld [vmem:[%s7 + $0xfd0] sm:$0xff]
        %v5701 = vld [vmem:[%s7 + $0xfd8] sm:$0xff]
        %v5702 = vld [vmem:[%s7 + $0xfe0] sm:$0xff]
        %v5703 = vld [vmem:[%s7 + $0xfe8] sm:$0xff]
        %v5704 = vld [vmem:[%s7 + $0xff0] sm:$0xff]
        %v5705 = vld [vmem:[%s7 + $0xff8] sm:$0xff]
        %v5706 = vld [vmem:[%s7 + $0x1000] sm:$0xff]
        %v5707 = vld [vmem:[%s7 + $0x1008] sm:$0xff]
        %v5708 = vld [vmem:[%s7 + $0x1010] sm:$0xff]
        %v5709 = vld [vmem:[%s7 + $0x1018] sm:$0xff]
        %v5710 = vld [vmem:[%s7 + $0x1020] sm:$0xff]
        %v5711 = vld [vmem:[%s7 + $0x1028] sm:$0xff]
        %v5712 = vld [vmem:[%s7 + $0x1030] sm:$0xff]
        %v5713 = vld [vmem:[%s7 + $0x1038] sm:$0xff]
        %v5714 = vld [vmem:[%s7 + $0x1040] sm:$0xff]
        %v5715 = vld [vmem:[%s7 + $0x1048] sm:$0xff]
        %v5716 = vld [vmem:[%s7 + $0x1050] sm:$0xff]
        %v5717 = vld [vmem:[%s7 + $0x1058] sm:$0xff]
        %v5718 = vld [vmem:[%s7 + $0x1060] sm:$0xff]
        %v5719 = vld [vmem:[%s7 + $0x1068] sm:$0xff]
        %v5720 = vld [vmem:[%s7 + $0x1070] sm:$0xff]
        %v5721 = vld [vmem:[%s7 + $0x1078] sm:$0xff]
        %v5722 = vld [vmem:[%s7 + $0x1080] sm:$0xff]
        %v5723 = vld [vmem:[%s7 + $0x1088] sm:$0xff]
        %v5724 = vld [vmem:[%s7 + $0x1090] sm:$0xff]
        %v5725 = vld [vmem:[%s7 + $0x1098] sm:$0xff]
        %v5726 = vld [vmem:[%s7 + $0x10a0] sm:$0xff]
        %v5727 = vld [vmem:[%s7 + $0x10a8] sm:$0xff]
        %v5728 = vld [vmem:[%s7 + $0x10b0] sm:$0xff]
        %v5729 = vld [vmem:[%s7 + $0x10b8] sm:$0xff]
        %v5730 = vld [vmem:[%s7 + $0x10c0] sm:$0xff]
        %v5731 = vld [vmem:[%s7 + $0x10c8] sm:$0xff]
        %v5732 = vld [vmem:[%s7 + $0x10d0] sm:$0xff]
        %v5733 = vld [vmem:[%s7 + $0x10d8] sm:$0xff]
        %v5734 = vld [vmem:[%s7 + $0x10e0] sm:$0xff]
        %v5735 = vld [vmem:[%s7 + $0x10e8] sm:$0xff]
        %v5736 = vld [vmem:[%s7 + $0x10f0] sm:$0xff]
        %v5737 = vld [vmem:[%s7 + $0x10f8] sm:$0xff]
        %v5738 = vld [vmem:[%s7 + $0x1100] sm:$0xff]
        %v5739 = vld [vmem:[%s7 + $0x1108] sm:$0xff]
        %v5740 = vld [vmem:[%s7 + $0x1110] sm:$0xff]
        %v5741 = vld [vmem:[%s7 + $0x1118] sm:$0xff]
        %v5742 = vld [vmem:[%s7 + $0x1120] sm:$0xff]
        %v5743 = vld [vmem:[%s7 + $0x1128] sm:$0xff]
        %v5744 = vld [vmem:[%s7 + $0x1130] sm:$0xff]
        %v5745 = vld [vmem:[%s7 + $0x1138] sm:$0xff]
        %v5746 = vld [vmem:[%s7 + $0x1140] sm:$0xff]
        %v5747 = vld [vmem:[%s7 + $0x1148] sm:$0xff]
        %v5748 = vld [vmem:[%s7 + $0x1150] sm:$0xff]
        %v5749 = vld [vmem:[%s7 + $0x1158] sm:$0xff]
        %v5750 = vld [vmem:[%s7 + $0x1160] sm:$0xff]
        %v5751 = vld [vmem:[%s7 + $0x1168] sm:$0xff]
        %v5752 = vld [vmem:[%s7 + $0x1170] sm:$0xff]
        %v5753 = vld [vmem:[%s7 + $0x1178] sm:$0xff]
        %v5754 = vld [vmem:[%s7 + $0x1180] sm:$0xff]
        %v5755 = vld [vmem:[%s7 + $0x1188] sm:$0xff]
        %v5756 = vld [vmem:[%s7 + $0x1190] sm:$0xff]
        %v5757 = vld [vmem:[%s7 + $0x1198] sm:$0xff]
        %v5758 = vld [vmem:[%s7 + $0x11a0] sm:$0xff]
        %v5759 = vld [vmem:[%s7 + $0x11a8] sm:$0xff]
        %v5760 = vld [vmem:[%s7 + $0x11b0] sm:$0xff]
        %v5761 = vld [vmem:[%s7 + $0x11b8] sm:$0xff]
        %v5762 = vld [vmem:[%s7 + $0x11c0] sm:$0xff]
        %v5763 = vld [vmem:[%s7 + $0x11c8] sm:$0xff]
        %v5764 = vld [vmem:[%s7 + $0x11d0] sm:$0xff]
        %v5765 = vld [vmem:[%s7 + $0x11d8] sm:$0xff]
        %v5766 = vld [vmem:[%s7 + $0x11e0] sm:$0xff]
        %v5767 = vld [vmem:[%s7 + $0x11e8] sm:$0xff]
        %v5768 = vld [vmem:[%s7 + $0x11f0] sm:$0xff]
        %v5769 = vld [vmem:[%s7 + $0x11f8] sm:$0xff]
        %v5770 = vld [vmem:[%s7 + $0x1200] sm:$0xff]
        %v5771 = vld [vmem:[%s7 + $0x1208] sm:$0xff]
        %v5772 = vld [vmem:[%s7 + $0x1210] sm:$0xff]
        %v5773 = vld [vmem:[%s7 + $0x1218] sm:$0xff]
        %v5774 = vld [vmem:[%s7 + $0x1220] sm:$0xff]
        %v5775 = vld [vmem:[%s7 + $0x1228] sm:$0xff]
        %v5776 = vld [vmem:[%s7 + $0x1230] sm:$0xff]
        %v5777 = vld [vmem:[%s7 + $0x1238] sm:$0xff]
        %v5778 = vld [vmem:[%s7 + $0x1240] sm:$0xff]
        %v5779 = vld [vmem:[%s7 + $0x1248] sm:$0xff]
        %v5780 = vld [vmem:[%s7 + $0x1250] sm:$0xff]
        %v5781 = vld [vmem:[%s7 + $0x1258] sm:$0xff]
        %v5782 = vld [vmem:[%s7 + $0x1260] sm:$0xff]
        %v5783 = vld [vmem:[%s7 + $0x1268] sm:$0xff]
        %v5784 = vld [vmem:[%s7 + $0x1270] sm:$0xff]
        %v5785 = vld [vmem:[%s7 + $0x1278] sm:$0xff]
        %v5786 = vld [vmem:[%s7 + $0x1280] sm:$0xff]
        %v5787 = vld [vmem:[%s7 + $0x1288] sm:$0xff]
        %v5788 = vld [vmem:[%s7 + $0x1290] sm:$0xff]
        %v5789 = vld [vmem:[%s7 + $0x1298] sm:$0xff]
        %v5790 = vld [vmem:[%s7 + $0x12a0] sm:$0xff]
        %v5791 = vld [vmem:[%s7 + $0x12a8] sm:$0xff]
        %v5792 = vld [vmem:[%s7 + $0x12b0] sm:$0xff]
        %v5793 = vld [vmem:[%s7 + $0x12b8] sm:$0xff]
        %v5794 = vld [vmem:[%s7 + $0x12c0] sm:$0xff]
        %v5795 = vld [vmem:[%s7 + $0x12c8] sm:$0xff]
        %v5796 = vld [vmem:[%s7 + $0x12d0] sm:$0xff]
        %v5797 = vld [vmem:[%s7 + $0x12d8] sm:$0xff]
        %v5798 = vld [vmem:[%s7 + $0x12e0] sm:$0xff]
        %v5799 = vld [vmem:[%s7 + $0x12e8] sm:$0xff]
        %v5800 = vld [vmem:[%s7 + $0x12f0] sm:$0xff]
        %v5801 = vld [vmem:[%s7 + $0x12f8] sm:$0xff]
        %v5802 = vld [vmem:[%s7 + $0x1300] sm:$0xff]
        %v5803 = vld [vmem:[%s7 + $0x1308] sm:$0xff]
        %v5804 = vld [vmem:[%s7 + $0x1310] sm:$0xff]
        %v5805 = vld [vmem:[%s7 + $0x1318] sm:$0xff]
        %v5806 = vld [vmem:[%s7 + $0x1320] sm:$0xff]
        %v5807 = vld [vmem:[%s7 + $0x1328] sm:$0xff]
        %v5808 = vld [vmem:[%s7 + $0x1330] sm:$0xff]
        %v5809 = vld [vmem:[%s7 + $0x1338] sm:$0xff]
        %v5810 = vld [vmem:[%s7 + $0x1340] sm:$0xff]
        %v5811 = vld [vmem:[%s7 + $0x1348] sm:$0xff]
        %v5812 = vld [vmem:[%s7 + $0x1350] sm:$0xff]
        %v5813 = vld [vmem:[%s7 + $0x1358] sm:$0xff]
        %v5814 = vld [vmem:[%s7 + $0x1360] sm:$0xff]
        %v5815 = vld [vmem:[%s7 + $0x1368] sm:$0xff]
        %v5816 = vld [vmem:[%s7 + $0x1370] sm:$0xff]
        %v5817 = vld [vmem:[%s7 + $0x1378] sm:$0xff]
        %v5818 = vld [vmem:[%s7 + $0x1380] sm:$0xff]
        %v5819 = vld [vmem:[%s7 + $0x1388] sm:$0xff]
        %v5820 = vld [vmem:[%s7 + $0x1390] sm:$0xff]
        %v5821 = vld [vmem:[%s7 + $0x1398] sm:$0xff]
        %v5822 = vld [vmem:[%s7 + $0x13a0] sm:$0xff]
        %v5823 = vld [vmem:[%s7 + $0x13a8] sm:$0xff]
        %v5824 = vld [vmem:[%s7 + $0x13b0] sm:$0xff]
        %v5825 = vld [vmem:[%s7 + $0x13b8] sm:$0xff]
        %v5826 = vld [vmem:[%s7 + $0x13c0] sm:$0xff]
        %v5827 = vld [vmem:[%s7 + $0x13c8] sm:$0xff]
        %v5828 = vld [vmem:[%s7 + $0x13d0] sm:$0xff]
        %v5829 = vld [vmem:[%s7 + $0x13d8] sm:$0xff]
        %v5830 = vld [vmem:[%s7 + $0x13e0] sm:$0xff]
        %v5831 = vld [vmem:[%s7 + $0x13e8] sm:$0xff]
        %v5832 = vld [vmem:[%s7 + $0x13f0] sm:$0xff]
        %v5833 = vld [vmem:[%s7 + $0x13f8] sm:$0xff]
        %v5834 = vld [vmem:[%s7 + $0x1400] sm:$0xff]
        %v5835 = vld [vmem:[%s7 + $0x1408] sm:$0xff]
        %v5836 = vld [vmem:[%s7 + $0x1410] sm:$0xff]
        %v5837 = vld [vmem:[%s7 + $0x1418] sm:$0xff]
        %v5838 = vld [vmem:[%s7 + $0x1420] sm:$0xff]
        %v5839 = vld [vmem:[%s7 + $0x1428] sm:$0xff]
        %v5840 = vld [vmem:[%s7 + $0x1430] sm:$0xff]
        %v5841 = vld [vmem:[%s7 + $0x1438] sm:$0xff]
        %v5842 = vld [vmem:[%s7 + $0x1440] sm:$0xff]
        %v5843 = vld [vmem:[%s7 + $0x1448] sm:$0xff]
        %v5844 = vld [vmem:[%s7 + $0x1450] sm:$0xff]
        %v5845 = vld [vmem:[%s7 + $0x1458] sm:$0xff]
        %v5846 = vld [vmem:[%s7 + $0x1460] sm:$0xff]
        %v5847 = vld [vmem:[%s7 + $0x1468] sm:$0xff]
        %v5848 = vld [vmem:[%s7 + $0x1470] sm:$0xff]
        %v5849 = vld [vmem:[%s7 + $0x1478] sm:$0xff]
        %v5850 = vld [vmem:[%s7 + $0x1480] sm:$0xff]
        %v5851 = vld [vmem:[%s7 + $0x1488] sm:$0xff]
        %v5852 = vld [vmem:[%s7 + $0x1490] sm:$0xff]
        %v5853 = vld [vmem:[%s7 + $0x1498] sm:$0xff]
        %v5854 = vld [vmem:[%s7 + $0x14a0] sm:$0xff]
        %v5855 = vld [vmem:[%s7 + $0x14a8] sm:$0xff]
        %v5856 = vld [vmem:[%s7 + $0x14b0] sm:$0xff]
        %v5857 = vld [vmem:[%s7 + $0x14b8] sm:$0xff]
        %v5858 = vld [vmem:[%s7 + $0x14c0] sm:$0xff]
        %v5859 = vld [vmem:[%s7 + $0x14c8] sm:$0xff]
        %v5860 = vld [vmem:[%s7 + $0x14d0] sm:$0xff]
        %v5861 = vld [vmem:[%s7 + $0x14d8] sm:$0xff]
        %v5862 = vld [vmem:[%s7 + $0x14e0] sm:$0xff]
        %v5863 = vld [vmem:[%s7 + $0x14e8] sm:$0xff]
        %v5864 = vld [vmem:[%s7 + $0x14f0] sm:$0xff]
        %v5865 = vld [vmem:[%s7 + $0x14f8] sm:$0xff]
        %v5866 = vld [vmem:[%s7 + $0x1500] sm:$0xff]
        %v5867 = vld [vmem:[%s7 + $0x1508] sm:$0xff]
        %v5868 = vld [vmem:[%s7 + $0x1510] sm:$0xff]
        %v5869 = vld [vmem:[%s7 + $0x1518] sm:$0xff]
        %v5870 = vld [vmem:[%s7 + $0x1520] sm:$0xff]
        %v5871 = vld [vmem:[%s7 + $0x1528] sm:$0xff]
        %v5872 = vld [vmem:[%s7 + $0x1530] sm:$0xff]
        %v5873 = vld [vmem:[%s7 + $0x1538] sm:$0xff]
        %v5874 = vld [vmem:[%s7 + $0x1540] sm:$0xff]
        %v5875 = vld [vmem:[%s7 + $0x1548] sm:$0xff]
        %v5876 = vld [vmem:[%s7 + $0x1550] sm:$0xff]
        %v5877 = vld [vmem:[%s7 + $0x1558] sm:$0xff]
        %v5878 = vld [vmem:[%s7 + $0x1560] sm:$0xff]
        %v5879 = vld [vmem:[%s7 + $0x1568] sm:$0xff]
        %v5880 = vld [vmem:[%s7 + $0x1570] sm:$0xff]
        %v5881 = vld [vmem:[%s7 + $0x1578] sm:$0xff]
        %v5882 = vld [vmem:[%s7 + $0x1580] sm:$0xff]
        %v5883 = vld [vmem:[%s7 + $0x1588] sm:$0xff]
        %v5884 = vld [vmem:[%s7 + $0x1590] sm:$0xff]
        %v5885 = vld [vmem:[%s7 + $0x1598] sm:$0xff]
        %v5886 = vld [vmem:[%s7 + $0x15a0] sm:$0xff]
        %v5887 = vld [vmem:[%s7 + $0x15a8] sm:$0xff]
        %v5888 = vld [vmem:[%s7 + $0x15b0] sm:$0xff]
        %v5889 = vld [vmem:[%s7 + $0x15b8] sm:$0xff]
        %v5890 = vld [vmem:[%s7 + $0x15c0] sm:$0xff]
        %v5891 = vld [vmem:[%s7 + $0x15c8] sm:$0xff]
        %v5892 = vld [vmem:[%s7 + $0x15d0] sm:$0xff]
        %v5893 = vld [vmem:[%s7 + $0x15d8] sm:$0xff]
        %v5894 = vld [vmem:[%s7 + $0x15e0] sm:$0xff]
        %v5895 = vld [vmem:[%s7 + $0x15e8] sm:$0xff]
        %v5896 = vld [vmem:[%s7 + $0x15f0] sm:$0xff]
        %v5897 = vld [vmem:[%s7 + $0x15f8] sm:$0xff]
        %v5898 = vld [vmem:[%s7 + $0x1600] sm:$0xff]
        %v5899 = vld [vmem:[%s7 + $0x1608] sm:$0xff]
        %v5900 = vld [vmem:[%s7 + $0x1610] sm:$0xff]
        %v5901 = vld [vmem:[%s7 + $0x1618] sm:$0xff]
        %v5902 = vld [vmem:[%s7 + $0x1620] sm:$0xff]
        %v5903 = vld [vmem:[%s7 + $0x1628] sm:$0xff]
        %v5904 = vld [vmem:[%s7 + $0x1630] sm:$0xff]
        %v5905 = vld [vmem:[%s7 + $0x1638] sm:$0xff]
        %v5906 = vld [vmem:[%s7 + $0x1640] sm:$0xff]
        %v5907 = vld [vmem:[%s7 + $0x1648] sm:$0xff]
        %v5908 = vld [vmem:[%s7 + $0x1650] sm:$0xff]
        %v5909 = vld [vmem:[%s7 + $0x1658] sm:$0xff]
        %v5910 = vld [vmem:[%s7 + $0x1660] sm:$0xff]
        %v5911 = vld [vmem:[%s7 + $0x1668] sm:$0xff]
        %v5912 = vld [vmem:[%s7 + $0x1670] sm:$0xff]
        %v5913 = vld [vmem:[%s7 + $0x1678] sm:$0xff]
        %v5914 = vld [vmem:[%s7 + $0x1680] sm:$0xff]
        %v5915 = vld [vmem:[%s7 + $0x1688] sm:$0xff]
        %v5916 = vld [vmem:[%s7 + $0x1690] sm:$0xff]
        %v5917 = vld [vmem:[%s7 + $0x1698] sm:$0xff]
        %v5918 = vld [vmem:[%s7 + $0x16a0] sm:$0xff]
        %v5919 = vld [vmem:[%s7 + $0x16a8] sm:$0xff]
        %v5920 = vld [vmem:[%s7 + $0x16b0] sm:$0xff]
        %v5921 = vld [vmem:[%s7 + $0x16b8] sm:$0xff]
        %v5922 = vld [vmem:[%s7 + $0x16c0] sm:$0xff]
        %v5923 = vld [vmem:[%s7 + $0x16c8] sm:$0xff]
        %v5924 = vld [vmem:[%s7 + $0x16d0] sm:$0xff]
        %v5925 = vld [vmem:[%s7 + $0x16d8] sm:$0xff]
        %v5926 = vld [vmem:[%s7 + $0x16e0] sm:$0xff]
        %v5927 = vld [vmem:[%s7 + $0x16e8] sm:$0xff]
        %v5928 = vld [vmem:[%s7 + $0x16f0] sm:$0xff]
        %v5929 = vld [vmem:[%s7 + $0x16f8] sm:$0xff]
        %v5930 = vld [vmem:[%s7 + $0x1700] sm:$0xff]
        %v5931 = vld [vmem:[%s7 + $0x1708] sm:$0xff]
        %v5932 = vld [vmem:[%s7 + $0x1710] sm:$0xff]
        %v5933 = vld [vmem:[%s7 + $0x1718] sm:$0xff]
        %v5934 = vld [vmem:[%s7 + $0x1720] sm:$0xff]
        %v5935 = vld [vmem:[%s7 + $0x1728] sm:$0xff]
        %v5936 = vld [vmem:[%s7 + $0x1730] sm:$0xff]
        %v5937 = vld [vmem:[%s7 + $0x1738] sm:$0xff]
        %v5938 = vld [vmem:[%s7 + $0x1740] sm:$0xff]
        %v5939 = vld [vmem:[%s7 + $0x1748] sm:$0xff]
        %v5940 = vld [vmem:[%s7 + $0x1750] sm:$0xff]
        %v5941 = vld [vmem:[%s7 + $0x1758] sm:$0xff]
        %v5942 = vld [vmem:[%s7 + $0x1760] sm:$0xff]
        %v5943 = vld [vmem:[%s7 + $0x1768] sm:$0xff]
        %v5944 = vld [vmem:[%s7 + $0x1770] sm:$0xff]
        %v5945 = vld [vmem:[%s7 + $0x1778] sm:$0xff]
        %v5946 = vld [vmem:[%s7 + $0x1780] sm:$0xff]
        %v5947 = vld [vmem:[%s7 + $0x1788] sm:$0xff]
        %v5948 = vld [vmem:[%s7 + $0x1790] sm:$0xff]
        %v5949 = vld [vmem:[%s7 + $0x1798] sm:$0xff]
        %v5950 = vld [vmem:[%s7 + $0x17a0] sm:$0xff]
        %v5951 = vld [vmem:[%s7 + $0x17a8] sm:$0xff]
        %v5952 = vld [vmem:[%s7 + $0x17b0] sm:$0xff]
        %v5953 = vld [vmem:[%s7 + $0x17b8] sm:$0xff]
        %v5954 = vld [vmem:[%s7 + $0x17c0] sm:$0xff]
        %v5955 = vld [vmem:[%s7 + $0x17c8] sm:$0xff]
        %v5956 = vld [vmem:[%s7 + $0x17d0] sm:$0xff]
        %v5957 = vld [vmem:[%s7 + $0x17d8] sm:$0xff]
        %v5958 = vld [vmem:[%s7 + $0x17e0] sm:$0xff]
        %v5959 = vld [vmem:[%s7 + $0x17e8] sm:$0xff]
        %v5960 = vld [vmem:[%s7 + $0x17f0] sm:$0xff]
        %v5961 = vld [vmem:[%s7 + $0x17f8] sm:$0xff]
        %v5962 = vld [vmem:[%s7 + $0x1800] sm:$0xff]
        %v5963 = vld [vmem:[%s7 + $0x1808] sm:$0xff]
        %v5964 = vld [vmem:[%s7 + $0x1810] sm:$0xff]
        %v5965 = vld [vmem:[%s7 + $0x1818] sm:$0xff]
        %v5966 = vld [vmem:[%s7 + $0x1820] sm:$0xff]
        %v5967 = vld [vmem:[%s7 + $0x1828] sm:$0xff]
        %v5968 = vld [vmem:[%s7 + $0x1830] sm:$0xff]
        %v5969 = vld [vmem:[%s7 + $0x1838] sm:$0xff]
        %v5970 = vld [vmem:[%s7 + $0x1840] sm:$0xff]
        %v5971 = vld [vmem:[%s7 + $0x1848] sm:$0xff]
        %v5972 = vld [vmem:[%s7 + $0x1850] sm:$0xff]
        %v5973 = vld [vmem:[%s7 + $0x1858] sm:$0xff]
        %v5974 = vld [vmem:[%s7 + $0x1860] sm:$0xff]
        %v5975 = vld [vmem:[%s7 + $0x1868] sm:$0xff]
        %v5976 = vld [vmem:[%s7 + $0x1870] sm:$0xff]
        %v5977 = vld [vmem:[%s7 + $0x1878] sm:$0xff]
        %v5978 = vld [vmem:[%s7 + $0x1880] sm:$0xff]
        %v5979 = vld [vmem:[%s7 + $0x1888] sm:$0xff]
        %v5980 = vld [vmem:[%s7 + $0x1890] sm:$0xff]
        %v5981 = vld [vmem:[%s7 + $0x1898] sm:$0xff]
        %v5982 = vld [vmem:[%s7 + $0x18a0] sm:$0xff]
        %v5983 = vld [vmem:[%s7 + $0x18a8] sm:$0xff]
        %v5984 = vld [vmem:[%s7 + $0x18b0] sm:$0xff]
        %v5985 = vld [vmem:[%s7 + $0x18b8] sm:$0xff]
        %v5986 = vld [vmem:[%s7 + $0x18c0] sm:$0xff]
        %v5987 = vld [vmem:[%s7 + $0x18c8] sm:$0xff]
        %v5988 = vld [vmem:[%s7 + $0x18d0] sm:$0xff]
        %v5989 = vld [vmem:[%s7 + $0x18d8] sm:$0xff]
        %v5990 = vld [vmem:[%s7 + $0x18e0] sm:$0xff]
        %v5991 = vld [vmem:[%s7 + $0x18e8] sm:$0xff]
        %v5992 = vld [vmem:[%s7 + $0x18f0] sm:$0xff]
        %v5993 = vld [vmem:[%s7 + $0x18f8] sm:$0xff]
        %v5994 = vld [vmem:[%s8] sm:$0xf]
        %v6795 = vunpack.c.l.b16 %v5194
        %v6796 = vunpack.c.h.b16 %v5194
        %v6797 = vunpack.c.l.b16 %v5195
        %v6798 = vunpack.c.h.b16 %v5195
        %v6799 = vunpack.c.l.b16 %v5196
        %v6800 = vunpack.c.h.b16 %v5196
        %v6801 = vunpack.c.l.b16 %v5197
        %v6802 = vunpack.c.h.b16 %v5197
        %v6803 = vunpack.c.l.b16 %v5198
        %v6804 = vunpack.c.h.b16 %v5198
        %v6805 = vunpack.c.l.b16 %v5199
        %v6806 = vunpack.c.h.b16 %v5199
        %v6807 = vunpack.c.l.b16 %v5200
        %v6808 = vunpack.c.h.b16 %v5200
        %v6809 = vunpack.c.l.b16 %v5201
        %v6810 = vunpack.c.h.b16 %v5201
        %v6811 = vunpack.c.l.b16 %v5202
        %v6812 = vunpack.c.h.b16 %v5202
        %v6813 = vunpack.c.l.b16 %v5203
        %v6814 = vunpack.c.h.b16 %v5203
        %v6815 = vunpack.c.l.b16 %v5204
        %v6816 = vunpack.c.h.b16 %v5204
        %v6817 = vunpack.c.l.b16 %v5205
        %v6818 = vunpack.c.h.b16 %v5205
        %v6819 = vunpack.c.l.b16 %v5206
        %v6820 = vunpack.c.h.b16 %v5206
        %v6821 = vunpack.c.l.b16 %v5207
        %v6822 = vunpack.c.h.b16 %v5207
        %v6823 = vunpack.c.l.b16 %v5208
        %v6824 = vunpack.c.h.b16 %v5208
        %v6825 = vunpack.c.l.b16 %v5209
        %v6826 = vunpack.c.h.b16 %v5209
        %v6827 = vunpack.c.l.b16 %v5210
        %v6828 = vunpack.c.h.b16 %v5210
        %v6829 = vunpack.c.l.b16 %v5211
        %v6830 = vunpack.c.h.b16 %v5211
        %v6831 = vunpack.c.l.b16 %v5212
        %v6832 = vunpack.c.h.b16 %v5212
        %v6833 = vunpack.c.l.b16 %v5213
        %v6834 = vunpack.c.h.b16 %v5213
        %v6835 = vunpack.c.l.b16 %v5214
        %v6836 = vunpack.c.h.b16 %v5214
        %v6837 = vunpack.c.l.b16 %v5215
        %v6838 = vunpack.c.h.b16 %v5215
        %v6839 = vunpack.c.l.b16 %v5216
        %v6840 = vunpack.c.h.b16 %v5216
        %v6841 = vunpack.c.l.b16 %v5217
        %v6842 = vunpack.c.h.b16 %v5217
        %v6843 = vunpack.c.l.b16 %v5218
        %v6844 = vunpack.c.h.b16 %v5218
        %v6845 = vunpack.c.l.b16 %v5219
        %v6846 = vunpack.c.h.b16 %v5219
        %v6847 = vunpack.c.l.b16 %v5220
        %v6848 = vunpack.c.h.b16 %v5220
        %v6849 = vunpack.c.l.b16 %v5221
        %v6850 = vunpack.c.h.b16 %v5221
        %v6851 = vunpack.c.l.b16 %v5222
        %v6852 = vunpack.c.h.b16 %v5222
        %v6853 = vunpack.c.l.b16 %v5223
        %v6854 = vunpack.c.h.b16 %v5223
        %v6855 = vunpack.c.l.b16 %v5224
        %v6856 = vunpack.c.h.b16 %v5224
        %v6857 = vunpack.c.l.b16 %v5225
        %v6858 = vunpack.c.h.b16 %v5225
        %v6859 = vunpack.c.l.b16 %v5226
        %v6860 = vunpack.c.h.b16 %v5226
        %v6861 = vunpack.c.l.b16 %v5227
        %v6862 = vunpack.c.h.b16 %v5227
        %v6863 = vunpack.c.l.b16 %v5228
        %v6864 = vunpack.c.h.b16 %v5228
        %v6865 = vunpack.c.l.b16 %v5229
        %v6866 = vunpack.c.h.b16 %v5229
        %v6867 = vunpack.c.l.b16 %v5230
        %v6868 = vunpack.c.h.b16 %v5230
        %v6869 = vunpack.c.l.b16 %v5231
        %v6870 = vunpack.c.h.b16 %v5231
        %v6871 = vunpack.c.l.b16 %v5232
        %v6872 = vunpack.c.h.b16 %v5232
        %v6873 = vunpack.c.l.b16 %v5233
        %v6874 = vunpack.c.h.b16 %v5233
        %v6875 = vunpack.c.l.b16 %v5234
        %v6876 = vunpack.c.h.b16 %v5234
        %v6877 = vunpack.c.l.b16 %v5235
        %v6878 = vunpack.c.h.b16 %v5235
        %v6879 = vunpack.c.l.b16 %v5236
        %v6880 = vunpack.c.h.b16 %v5236
        %v6881 = vunpack.c.l.b16 %v5237
        %v6882 = vunpack.c.h.b16 %v5237
        %v6883 = vunpack.c.l.b16 %v5238
        %v6884 = vunpack.c.h.b16 %v5238
        %v6885 = vunpack.c.l.b16 %v5239
        %v6886 = vunpack.c.h.b16 %v5239
        %v6887 = vunpack.c.l.b16 %v5240
        %v6888 = vunpack.c.h.b16 %v5240
        %v6889 = vunpack.c.l.b16 %v5241
        %v6890 = vunpack.c.h.b16 %v5241
        %v6891 = vunpack.c.l.b16 %v5242
        %v6892 = vunpack.c.h.b16 %v5242
        %v6893 = vunpack.c.l.b16 %v5243
        %v6894 = vunpack.c.h.b16 %v5243
        %v6895 = vunpack.c.l.b16 %v5244
        %v6896 = vunpack.c.h.b16 %v5244
        %v6897 = vunpack.c.l.b16 %v5245
        %v6898 = vunpack.c.h.b16 %v5245
        %v6899 = vunpack.c.l.b16 %v5246
        %v6900 = vunpack.c.h.b16 %v5246
        %v6901 = vunpack.c.l.b16 %v5247
        %v6902 = vunpack.c.h.b16 %v5247
        %v6903 = vunpack.c.l.b16 %v5248
        %v6904 = vunpack.c.h.b16 %v5248
        %v6905 = vunpack.c.l.b16 %v5249
        %v6906 = vunpack.c.h.b16 %v5249
        %v6907 = vunpack.c.l.b16 %v5250
        %v6908 = vunpack.c.h.b16 %v5250
        %v6909 = vunpack.c.l.b16 %v5251
        %v6910 = vunpack.c.h.b16 %v5251
        %v6911 = vunpack.c.l.b16 %v5252
        %v6912 = vunpack.c.h.b16 %v5252
        %v6913 = vunpack.c.l.b16 %v5253
        %v6914 = vunpack.c.h.b16 %v5253
        %v6915 = vunpack.c.l.b16 %v5254
        %v6916 = vunpack.c.h.b16 %v5254
        %v6917 = vunpack.c.l.b16 %v5255
        %v6918 = vunpack.c.h.b16 %v5255
        %v6919 = vunpack.c.l.b16 %v5256
        %v6920 = vunpack.c.h.b16 %v5256
        %v6921 = vunpack.c.l.b16 %v5257
        %v6922 = vunpack.c.h.b16 %v5257
        %v6923 = vunpack.c.l.b16 %v5258
        %v6924 = vunpack.c.h.b16 %v5258
        %v6925 = vunpack.c.l.b16 %v5259
        %v6926 = vunpack.c.h.b16 %v5259
        %v6927 = vunpack.c.l.b16 %v5260
        %v6928 = vunpack.c.h.b16 %v5260
        %v6929 = vunpack.c.l.b16 %v5261
        %v6930 = vunpack.c.h.b16 %v5261
        %v6931 = vunpack.c.l.b16 %v5262
        %v6932 = vunpack.c.h.b16 %v5262
        %v6933 = vunpack.c.l.b16 %v5263
        %v6934 = vunpack.c.h.b16 %v5263
        %v6935 = vunpack.c.l.b16 %v5264
        %v6936 = vunpack.c.h.b16 %v5264
        %v6937 = vunpack.c.l.b16 %v5265
        %v6938 = vunpack.c.h.b16 %v5265
        %v6939 = vunpack.c.l.b16 %v5266
        %v6940 = vunpack.c.h.b16 %v5266
        %v6941 = vunpack.c.l.b16 %v5267
        %v6942 = vunpack.c.h.b16 %v5267
        %v6943 = vunpack.c.l.b16 %v5268
        %v6944 = vunpack.c.h.b16 %v5268
        %v6945 = vunpack.c.l.b16 %v5269
        %v6946 = vunpack.c.h.b16 %v5269
        %v6947 = vunpack.c.l.b16 %v5270
        %v6948 = vunpack.c.h.b16 %v5270
        %v6949 = vunpack.c.l.b16 %v5271
        %v6950 = vunpack.c.h.b16 %v5271
        %v6951 = vunpack.c.l.b16 %v5272
        %v6952 = vunpack.c.h.b16 %v5272
        %v6953 = vunpack.c.l.b16 %v5273
        %v6954 = vunpack.c.h.b16 %v5273
        %v6955 = vunpack.c.l.b16 %v5274
        %v6956 = vunpack.c.h.b16 %v5274
        %v6957 = vunpack.c.l.b16 %v5275
        %v6958 = vunpack.c.h.b16 %v5275
        %v6959 = vunpack.c.l.b16 %v5276
        %v6960 = vunpack.c.h.b16 %v5276
        %v6961 = vunpack.c.l.b16 %v5277
        %v6962 = vunpack.c.h.b16 %v5277
        %v6963 = vunpack.c.l.b16 %v5278
        %v6964 = vunpack.c.h.b16 %v5278
        %v6965 = vunpack.c.l.b16 %v5279
        %v6966 = vunpack.c.h.b16 %v5279
        %v6967 = vunpack.c.l.b16 %v5280
        %v6968 = vunpack.c.h.b16 %v5280
        %v6969 = vunpack.c.l.b16 %v5281
        %v6970 = vunpack.c.h.b16 %v5281
        %v6971 = vunpack.c.l.b16 %v5282
        %v6972 = vunpack.c.h.b16 %v5282
        %v6973 = vunpack.c.l.b16 %v5283
        %v6974 = vunpack.c.h.b16 %v5283
        %v6975 = vunpack.c.l.b16 %v5284
        %v6976 = vunpack.c.h.b16 %v5284
        %v6977 = vunpack.c.l.b16 %v5285
        %v6978 = vunpack.c.h.b16 %v5285
        %v6979 = vunpack.c.l.b16 %v5286
        %v6980 = vunpack.c.h.b16 %v5286
        %v6981 = vunpack.c.l.b16 %v5287
        %v6982 = vunpack.c.h.b16 %v5287
        %v6983 = vunpack.c.l.b16 %v5288
        %v6984 = vunpack.c.h.b16 %v5288
        %v6985 = vunpack.c.l.b16 %v5289
        %v6986 = vunpack.c.h.b16 %v5289
        %v6987 = vunpack.c.l.b16 %v5290
        %v6988 = vunpack.c.h.b16 %v5290
        %v6989 = vunpack.c.l.b16 %v5291
        %v6990 = vunpack.c.h.b16 %v5291
        %v6991 = vunpack.c.l.b16 %v5292
        %v6992 = vunpack.c.h.b16 %v5292
        %v6993 = vunpack.c.l.b16 %v5293
        %v6994 = vunpack.c.h.b16 %v5293
        %v6995 = vunpack.c.l.b16 %v5294
        %v6996 = vunpack.c.h.b16 %v5294
        %v6997 = vunpack.c.l.b16 %v5295
        %v6998 = vunpack.c.h.b16 %v5295
        %v6999 = vunpack.c.l.b16 %v5296
        %v7000 = vunpack.c.h.b16 %v5296
        %v7001 = vunpack.c.l.b16 %v5297
        %v7002 = vunpack.c.h.b16 %v5297
        %v7003 = vunpack.c.l.b16 %v5298
        %v7004 = vunpack.c.h.b16 %v5298
        %v7005 = vunpack.c.l.b16 %v5299
        %v7006 = vunpack.c.h.b16 %v5299
        %v7007 = vunpack.c.l.b16 %v5300
        %v7008 = vunpack.c.h.b16 %v5300
        %v7009 = vunpack.c.l.b16 %v5301
        %v7010 = vunpack.c.h.b16 %v5301
        %v7011 = vunpack.c.l.b16 %v5302
        %v7012 = vunpack.c.h.b16 %v5302
        %v7013 = vunpack.c.l.b16 %v5303
        %v7014 = vunpack.c.h.b16 %v5303
        %v7015 = vunpack.c.l.b16 %v5304
        %v7016 = vunpack.c.h.b16 %v5304
        %v7017 = vunpack.c.l.b16 %v5305
        %v7018 = vunpack.c.h.b16 %v5305
        %v7019 = vunpack.c.l.b16 %v5306
        %v7020 = vunpack.c.h.b16 %v5306
        %v7021 = vunpack.c.l.b16 %v5307
        %v7022 = vunpack.c.h.b16 %v5307
        %v7023 = vunpack.c.l.b16 %v5308
        %v7024 = vunpack.c.h.b16 %v5308
        %v7025 = vunpack.c.l.b16 %v5309
        %v7026 = vunpack.c.h.b16 %v5309
        %v7027 = vunpack.c.l.b16 %v5310
        %v7028 = vunpack.c.h.b16 %v5310
        %v7029 = vunpack.c.l.b16 %v5311
        %v7030 = vunpack.c.h.b16 %v5311
        %v7031 = vunpack.c.l.b16 %v5312
        %v7032 = vunpack.c.h.b16 %v5312
        %v7033 = vunpack.c.l.b16 %v5313
        %v7034 = vunpack.c.h.b16 %v5313
        %v7035 = vunpack.c.l.b16 %v5314
        %v7036 = vunpack.c.h.b16 %v5314
        %v7037 = vunpack.c.l.b16 %v5315
        %v7038 = vunpack.c.h.b16 %v5315
        %v7039 = vunpack.c.l.b16 %v5316
        %v7040 = vunpack.c.h.b16 %v5316
        %v7041 = vunpack.c.l.b16 %v5317
        %v7042 = vunpack.c.h.b16 %v5317
        %v7043 = vunpack.c.l.b16 %v5318
        %v7044 = vunpack.c.h.b16 %v5318
        %v7045 = vunpack.c.l.b16 %v5319
        %v7046 = vunpack.c.h.b16 %v5319
        %v7047 = vunpack.c.l.b16 %v5320
        %v7048 = vunpack.c.h.b16 %v5320
        %v7049 = vunpack.c.l.b16 %v5321
        %v7050 = vunpack.c.h.b16 %v5321
        %v7051 = vunpack.c.l.b16 %v5322
        %v7052 = vunpack.c.h.b16 %v5322
        %v7053 = vunpack.c.l.b16 %v5323
        %v7054 = vunpack.c.h.b16 %v5323
        %v7055 = vunpack.c.l.b16 %v5324
        %v7056 = vunpack.c.h.b16 %v5324
        %v7057 = vunpack.c.l.b16 %v5325
        %v7058 = vunpack.c.h.b16 %v5325
        %v7059 = vunpack.c.l.b16 %v5326
        %v7060 = vunpack.c.h.b16 %v5326
        %v7061 = vunpack.c.l.b16 %v5327
        %v7062 = vunpack.c.h.b16 %v5327
        %v7063 = vunpack.c.l.b16 %v5328
        %v7064 = vunpack.c.h.b16 %v5328
        %v7065 = vunpack.c.l.b16 %v5329
        %v7066 = vunpack.c.h.b16 %v5329
        %v7067 = vunpack.c.l.b16 %v5330
        %v7068 = vunpack.c.h.b16 %v5330
        %v7069 = vunpack.c.l.b16 %v5331
        %v7070 = vunpack.c.h.b16 %v5331
        %v7071 = vunpack.c.l.b16 %v5332
        %v7072 = vunpack.c.h.b16 %v5332
        %v7073 = vunpack.c.l.b16 %v5333
        %v7074 = vunpack.c.h.b16 %v5333
        %v7075 = vunpack.c.l.b16 %v5334
        %v7076 = vunpack.c.h.b16 %v5334
        %v7077 = vunpack.c.l.b16 %v5335
        %v7078 = vunpack.c.h.b16 %v5335
        %v7079 = vunpack.c.l.b16 %v5336
        %v7080 = vunpack.c.h.b16 %v5336
        %v7081 = vunpack.c.l.b16 %v5337
        %v7082 = vunpack.c.h.b16 %v5337
        %v7083 = vunpack.c.l.b16 %v5338
        %v7084 = vunpack.c.h.b16 %v5338
        %v7085 = vunpack.c.l.b16 %v5339
        %v7086 = vunpack.c.h.b16 %v5339
        %v7087 = vunpack.c.l.b16 %v5340
        %v7088 = vunpack.c.h.b16 %v5340
        %v7089 = vunpack.c.l.b16 %v5341
        %v7090 = vunpack.c.h.b16 %v5341
        %v7091 = vunpack.c.l.b16 %v5342
        %v7092 = vunpack.c.h.b16 %v5342
        %v7093 = vunpack.c.l.b16 %v5343
        %v7094 = vunpack.c.h.b16 %v5343
        %v7095 = vunpack.c.l.b16 %v5344
        %v7096 = vunpack.c.h.b16 %v5344
        %v7097 = vunpack.c.l.b16 %v5345
        %v7098 = vunpack.c.h.b16 %v5345
        %v7099 = vunpack.c.l.b16 %v5346
        %v7100 = vunpack.c.h.b16 %v5346
        %v7101 = vunpack.c.l.b16 %v5347
        %v7102 = vunpack.c.h.b16 %v5347
        %v7103 = vunpack.c.l.b16 %v5348
        %v7104 = vunpack.c.h.b16 %v5348
        %v7105 = vunpack.c.l.b16 %v5349
        %v7106 = vunpack.c.h.b16 %v5349
        %v7107 = vunpack.c.l.b16 %v5350
        %v7108 = vunpack.c.h.b16 %v5350
        %v7109 = vunpack.c.l.b16 %v5351
        %v7110 = vunpack.c.h.b16 %v5351
        %v7111 = vunpack.c.l.b16 %v5352
        %v7112 = vunpack.c.h.b16 %v5352
        %v7113 = vunpack.c.l.b16 %v5353
        %v7114 = vunpack.c.h.b16 %v5353
        %v7115 = vunpack.c.l.b16 %v5354
        %v7116 = vunpack.c.h.b16 %v5354
        %v7117 = vunpack.c.l.b16 %v5355
        %v7118 = vunpack.c.h.b16 %v5355
        %v7119 = vunpack.c.l.b16 %v5356
        %v7120 = vunpack.c.h.b16 %v5356
        %v7121 = vunpack.c.l.b16 %v5357
        %v7122 = vunpack.c.h.b16 %v5357
        %v7123 = vunpack.c.l.b16 %v5358
        %v7124 = vunpack.c.h.b16 %v5358
        %v7125 = vunpack.c.l.b16 %v5359
        %v7126 = vunpack.c.h.b16 %v5359
        %v7127 = vunpack.c.l.b16 %v5360
        %v7128 = vunpack.c.h.b16 %v5360
        %v7129 = vunpack.c.l.b16 %v5361
        %v7130 = vunpack.c.h.b16 %v5361
        %v7131 = vunpack.c.l.b16 %v5362
        %v7132 = vunpack.c.h.b16 %v5362
        %v7133 = vunpack.c.l.b16 %v5363
        %v7134 = vunpack.c.h.b16 %v5363
        %v7135 = vunpack.c.l.b16 %v5364
        %v7136 = vunpack.c.h.b16 %v5364
        %v7137 = vunpack.c.l.b16 %v5365
        %v7138 = vunpack.c.h.b16 %v5365
        %v7139 = vunpack.c.l.b16 %v5366
        %v7140 = vunpack.c.h.b16 %v5366
        %v7141 = vunpack.c.l.b16 %v5367
        %v7142 = vunpack.c.h.b16 %v5367
        %v7143 = vunpack.c.l.b16 %v5368
        %v7144 = vunpack.c.h.b16 %v5368
        %v7145 = vunpack.c.l.b16 %v5369
        %v7146 = vunpack.c.h.b16 %v5369
        %v7147 = vunpack.c.l.b16 %v5370
        %v7148 = vunpack.c.h.b16 %v5370
        %v7149 = vunpack.c.l.b16 %v5371
        %v7150 = vunpack.c.h.b16 %v5371
        %v7151 = vunpack.c.l.b16 %v5372
        %v7152 = vunpack.c.h.b16 %v5372
        %v7153 = vunpack.c.l.b16 %v5373
        %v7154 = vunpack.c.h.b16 %v5373
        %v7155 = vunpack.c.l.b16 %v5374
        %v7156 = vunpack.c.h.b16 %v5374
        %v7157 = vunpack.c.l.b16 %v5375
        %v7158 = vunpack.c.h.b16 %v5375
        %v7159 = vunpack.c.l.b16 %v5376
        %v7160 = vunpack.c.h.b16 %v5376
        %v7161 = vunpack.c.l.b16 %v5377
        %v7162 = vunpack.c.h.b16 %v5377
        %v7163 = vunpack.c.l.b16 %v5378
        %v7164 = vunpack.c.h.b16 %v5378
        %v7165 = vunpack.c.l.b16 %v5379
        %v7166 = vunpack.c.h.b16 %v5379
        %v7167 = vunpack.c.l.b16 %v5380
        %v7168 = vunpack.c.h.b16 %v5380
        %v7169 = vunpack.c.l.b16 %v5381
        %v7170 = vunpack.c.h.b16 %v5381
        %v7171 = vunpack.c.l.b16 %v5382
        %v7172 = vunpack.c.h.b16 %v5382
        %v7173 = vunpack.c.l.b16 %v5383
        %v7174 = vunpack.c.h.b16 %v5383
        %v7175 = vunpack.c.l.b16 %v5384
        %v7176 = vunpack.c.h.b16 %v5384
        %v7177 = vunpack.c.l.b16 %v5385
        %v7178 = vunpack.c.h.b16 %v5385
        %v7179 = vunpack.c.l.b16 %v5386
        %v7180 = vunpack.c.h.b16 %v5386
        %v7181 = vunpack.c.l.b16 %v5387
        %v7182 = vunpack.c.h.b16 %v5387
        %v7183 = vunpack.c.l.b16 %v5388
        %v7184 = vunpack.c.h.b16 %v5388
        %v7185 = vunpack.c.l.b16 %v5389
        %v7186 = vunpack.c.h.b16 %v5389
        %v7187 = vunpack.c.l.b16 %v5390
        %v7188 = vunpack.c.h.b16 %v5390
        %v7189 = vunpack.c.l.b16 %v5391
        %v7190 = vunpack.c.h.b16 %v5391
        %v7191 = vunpack.c.l.b16 %v5392
        %v7192 = vunpack.c.h.b16 %v5392
        %v7193 = vunpack.c.l.b16 %v5393
        %v7194 = vunpack.c.h.b16 %v5393
        %v7195 = vunpack.c.l.b16 %v5394
        %v7196 = vunpack.c.h.b16 %v5394
        %v7197 = vunpack.c.l.b16 %v5395
        %v7198 = vunpack.c.h.b16 %v5395
        %v7199 = vunpack.c.l.b16 %v5396
        %v7200 = vunpack.c.h.b16 %v5396
        %v7201 = vunpack.c.l.b16 %v5397
        %v7202 = vunpack.c.h.b16 %v5397
        %v7203 = vunpack.c.l.b16 %v5398
        %v7204 = vunpack.c.h.b16 %v5398
        %v7205 = vunpack.c.l.b16 %v5399
        %v7206 = vunpack.c.h.b16 %v5399
        %v7207 = vunpack.c.l.b16 %v5400
        %v7208 = vunpack.c.h.b16 %v5400
        %v7209 = vunpack.c.l.b16 %v5401
        %v7210 = vunpack.c.h.b16 %v5401
        %v7211 = vunpack.c.l.b16 %v5402
        %v7212 = vunpack.c.h.b16 %v5402
        %v7213 = vunpack.c.l.b16 %v5403
        %v7214 = vunpack.c.h.b16 %v5403
        %v7215 = vunpack.c.l.b16 %v5404
        %v7216 = vunpack.c.h.b16 %v5404
        %v7217 = vunpack.c.l.b16 %v5405
        %v7218 = vunpack.c.h.b16 %v5405
        %v7219 = vunpack.c.l.b16 %v5406
        %v7220 = vunpack.c.h.b16 %v5406
        %v7221 = vunpack.c.l.b16 %v5407
        %v7222 = vunpack.c.h.b16 %v5407
        %v7223 = vunpack.c.l.b16 %v5408
        %v7224 = vunpack.c.h.b16 %v5408
        %v7225 = vunpack.c.l.b16 %v5409
        %v7226 = vunpack.c.h.b16 %v5409
        %v7227 = vunpack.c.l.b16 %v5410
        %v7228 = vunpack.c.h.b16 %v5410
        %v7229 = vunpack.c.l.b16 %v5411
        %v7230 = vunpack.c.h.b16 %v5411
        %v7231 = vunpack.c.l.b16 %v5412
        %v7232 = vunpack.c.h.b16 %v5412
        %v7233 = vunpack.c.l.b16 %v5413
        %v7234 = vunpack.c.h.b16 %v5413
        %v7235 = vunpack.c.l.b16 %v5414
        %v7236 = vunpack.c.h.b16 %v5414
        %v7237 = vunpack.c.l.b16 %v5415
        %v7238 = vunpack.c.h.b16 %v5415
        %v7239 = vunpack.c.l.b16 %v5416
        %v7240 = vunpack.c.h.b16 %v5416
        %v7241 = vunpack.c.l.b16 %v5417
        %v7242 = vunpack.c.h.b16 %v5417
        %v7243 = vunpack.c.l.b16 %v5418
        %v7244 = vunpack.c.h.b16 %v5418
        %v7245 = vunpack.c.l.b16 %v5419
        %v7246 = vunpack.c.h.b16 %v5419
        %v7247 = vunpack.c.l.b16 %v5420
        %v7248 = vunpack.c.h.b16 %v5420
        %v7249 = vunpack.c.l.b16 %v5421
        %v7250 = vunpack.c.h.b16 %v5421
        %v7251 = vunpack.c.l.b16 %v5422
        %v7252 = vunpack.c.h.b16 %v5422
        %v7253 = vunpack.c.l.b16 %v5423
        %v7254 = vunpack.c.h.b16 %v5423
        %v7255 = vunpack.c.l.b16 %v5424
        %v7256 = vunpack.c.h.b16 %v5424
        %v7257 = vunpack.c.l.b16 %v5425
        %v7258 = vunpack.c.h.b16 %v5425
        %v7259 = vunpack.c.l.b16 %v5426
        %v7260 = vunpack.c.h.b16 %v5426
        %v7261 = vunpack.c.l.b16 %v5427
        %v7262 = vunpack.c.h.b16 %v5427
        %v7263 = vunpack.c.l.b16 %v5428
        %v7264 = vunpack.c.h.b16 %v5428
        %v7265 = vunpack.c.l.b16 %v5429
        %v7266 = vunpack.c.h.b16 %v5429
        %v7267 = vunpack.c.l.b16 %v5430
        %v7268 = vunpack.c.h.b16 %v5430
        %v7269 = vunpack.c.l.b16 %v5431
        %v7270 = vunpack.c.h.b16 %v5431
        %v7271 = vunpack.c.l.b16 %v5432
        %v7272 = vunpack.c.h.b16 %v5432
        %v7273 = vunpack.c.l.b16 %v5433
        %v7274 = vunpack.c.h.b16 %v5433
        %v7275 = vunpack.c.l.b16 %v5434
        %v7276 = vunpack.c.h.b16 %v5434
        %v7277 = vunpack.c.l.b16 %v5435
        %v7278 = vunpack.c.h.b16 %v5435
        %v7279 = vunpack.c.l.b16 %v5436
        %v7280 = vunpack.c.h.b16 %v5436
        %v7281 = vunpack.c.l.b16 %v5437
        %v7282 = vunpack.c.h.b16 %v5437
        %v7283 = vunpack.c.l.b16 %v5438
        %v7284 = vunpack.c.h.b16 %v5438
        %v7285 = vunpack.c.l.b16 %v5439
        %v7286 = vunpack.c.h.b16 %v5439
        %v7287 = vunpack.c.l.b16 %v5440
        %v7288 = vunpack.c.h.b16 %v5440
        %v7289 = vunpack.c.l.b16 %v5441
        %v7290 = vunpack.c.h.b16 %v5441
        %v7291 = vunpack.c.l.b16 %v5442
        %v7292 = vunpack.c.h.b16 %v5442
        %v7293 = vunpack.c.l.b16 %v5443
        %v7294 = vunpack.c.h.b16 %v5443
        %v7295 = vunpack.c.l.b16 %v5444
        %v7296 = vunpack.c.h.b16 %v5444
        %v7297 = vunpack.c.l.b16 %v5445
        %v7298 = vunpack.c.h.b16 %v5445
        %v7299 = vunpack.c.l.b16 %v5446
        %v7300 = vunpack.c.h.b16 %v5446
        %v7301 = vunpack.c.l.b16 %v5447
        %v7302 = vunpack.c.h.b16 %v5447
        %v7303 = vunpack.c.l.b16 %v5448
        %v7304 = vunpack.c.h.b16 %v5448
        %v7305 = vunpack.c.l.b16 %v5449
        %v7306 = vunpack.c.h.b16 %v5449
        %v7307 = vunpack.c.l.b16 %v5450
        %v7308 = vunpack.c.h.b16 %v5450
        %v7309 = vunpack.c.l.b16 %v5451
        %v7310 = vunpack.c.h.b16 %v5451
        %v7311 = vunpack.c.l.b16 %v5452
        %v7312 = vunpack.c.h.b16 %v5452
        %v7313 = vunpack.c.l.b16 %v5453
        %v7314 = vunpack.c.h.b16 %v5453
        %v7315 = vunpack.c.l.b16 %v5454
        %v7316 = vunpack.c.h.b16 %v5454
        %v7317 = vunpack.c.l.b16 %v5455
        %v7318 = vunpack.c.h.b16 %v5455
        %v7319 = vunpack.c.l.b16 %v5456
        %v7320 = vunpack.c.h.b16 %v5456
        %v7321 = vunpack.c.l.b16 %v5457
        %v7322 = vunpack.c.h.b16 %v5457
        %v7323 = vunpack.c.l.b16 %v5458
        %v7324 = vunpack.c.h.b16 %v5458
        %v7325 = vunpack.c.l.b16 %v5459
        %v7326 = vunpack.c.h.b16 %v5459
        %v7327 = vunpack.c.l.b16 %v5460
        %v7328 = vunpack.c.h.b16 %v5460
        %v7329 = vunpack.c.l.b16 %v5461
        %v7330 = vunpack.c.h.b16 %v5461
        %v7331 = vunpack.c.l.b16 %v5462
        %v7332 = vunpack.c.h.b16 %v5462
        %v7333 = vunpack.c.l.b16 %v5463
        %v7334 = vunpack.c.h.b16 %v5463
        %v7335 = vunpack.c.l.b16 %v5464
        %v7336 = vunpack.c.h.b16 %v5464
        %v7337 = vunpack.c.l.b16 %v5465
        %v7338 = vunpack.c.h.b16 %v5465
        %v7339 = vunpack.c.l.b16 %v5466
        %v7340 = vunpack.c.h.b16 %v5466
        %v7341 = vunpack.c.l.b16 %v5467
        %v7342 = vunpack.c.h.b16 %v5467
        %v7343 = vunpack.c.l.b16 %v5468
        %v7344 = vunpack.c.h.b16 %v5468
        %v7345 = vunpack.c.l.b16 %v5469
        %v7346 = vunpack.c.h.b16 %v5469
        %v7347 = vunpack.c.l.b16 %v5470
        %v7348 = vunpack.c.h.b16 %v5470
        %v7349 = vunpack.c.l.b16 %v5471
        %v7350 = vunpack.c.h.b16 %v5471
        %v7351 = vunpack.c.l.b16 %v5472
        %v7352 = vunpack.c.h.b16 %v5472
        %v7353 = vunpack.c.l.b16 %v5473
        %v7354 = vunpack.c.h.b16 %v5473
        %v7355 = vunpack.c.l.b16 %v5474
        %v7356 = vunpack.c.h.b16 %v5474
        %v7357 = vunpack.c.l.b16 %v5475
        %v7358 = vunpack.c.h.b16 %v5475
        %v7359 = vunpack.c.l.b16 %v5476
        %v7360 = vunpack.c.h.b16 %v5476
        %v7361 = vunpack.c.l.b16 %v5477
        %v7362 = vunpack.c.h.b16 %v5477
        %v7363 = vunpack.c.l.b16 %v5478
        %v7364 = vunpack.c.h.b16 %v5478
        %v7365 = vunpack.c.l.b16 %v5479
        %v7366 = vunpack.c.h.b16 %v5479
        %v7367 = vunpack.c.l.b16 %v5480
        %v7368 = vunpack.c.h.b16 %v5480
        %v7369 = vunpack.c.l.b16 %v5481
        %v7370 = vunpack.c.h.b16 %v5481
        %v7371 = vunpack.c.l.b16 %v5482
        %v7372 = vunpack.c.h.b16 %v5482
        %v7373 = vunpack.c.l.b16 %v5483
        %v7374 = vunpack.c.h.b16 %v5483
        %v7375 = vunpack.c.l.b16 %v5484
        %v7376 = vunpack.c.h.b16 %v5484
        %v7377 = vunpack.c.l.b16 %v5485
        %v7378 = vunpack.c.h.b16 %v5485
        %v7379 = vunpack.c.l.b16 %v5486
        %v7380 = vunpack.c.h.b16 %v5486
        %v7381 = vunpack.c.l.b16 %v5487
        %v7382 = vunpack.c.h.b16 %v5487
        %v7383 = vunpack.c.l.b16 %v5488
        %v7384 = vunpack.c.h.b16 %v5488
        %v7385 = vunpack.c.l.b16 %v5489
        %v7386 = vunpack.c.h.b16 %v5489
        %v7387 = vunpack.c.l.b16 %v5490
        %v7388 = vunpack.c.h.b16 %v5490
        %v7389 = vunpack.c.l.b16 %v5491
        %v7390 = vunpack.c.h.b16 %v5491
        %v7391 = vunpack.c.l.b16 %v5492
        %v7392 = vunpack.c.h.b16 %v5492
        %v7393 = vunpack.c.l.b16 %v5493
        %v7394 = vunpack.c.h.b16 %v5493
        %v7395 = vunpack.c.l.b16 %v5494
        %v7396 = vunpack.c.h.b16 %v5494
        %v7397 = vunpack.c.l.b16 %v5495
        %v7398 = vunpack.c.h.b16 %v5495
        %v7399 = vunpack.c.l.b16 %v5496
        %v7400 = vunpack.c.h.b16 %v5496
        %v7401 = vunpack.c.l.b16 %v5497
        %v7402 = vunpack.c.h.b16 %v5497
        %v7403 = vunpack.c.l.b16 %v5498
        %v7404 = vunpack.c.h.b16 %v5498
        %v7405 = vunpack.c.l.b16 %v5499
        %v7406 = vunpack.c.h.b16 %v5499
        %v7407 = vunpack.c.l.b16 %v5500
        %v7408 = vunpack.c.h.b16 %v5500
        %v7409 = vunpack.c.l.b16 %v5501
        %v7410 = vunpack.c.h.b16 %v5501
        %v7411 = vunpack.c.l.b16 %v5502
        %v7412 = vunpack.c.h.b16 %v5502
        %v7413 = vunpack.c.l.b16 %v5503
        %v7414 = vunpack.c.h.b16 %v5503
        %v7415 = vunpack.c.l.b16 %v5504
        %v7416 = vunpack.c.h.b16 %v5504
        %v7417 = vunpack.c.l.b16 %v5505
        %v7418 = vunpack.c.h.b16 %v5505
        %v7419 = vunpack.c.l.b16 %v5506
        %v7420 = vunpack.c.h.b16 %v5506
        %v7421 = vunpack.c.l.b16 %v5507
        %v7422 = vunpack.c.h.b16 %v5507
        %v7423 = vunpack.c.l.b16 %v5508
        %v7424 = vunpack.c.h.b16 %v5508
        %v7425 = vunpack.c.l.b16 %v5509
        %v7426 = vunpack.c.h.b16 %v5509
        %v7427 = vunpack.c.l.b16 %v5510
        %v7428 = vunpack.c.h.b16 %v5510
        %v7429 = vunpack.c.l.b16 %v5511
        %v7430 = vunpack.c.h.b16 %v5511
        %v7431 = vunpack.c.l.b16 %v5512
        %v7432 = vunpack.c.h.b16 %v5512
        %v7433 = vunpack.c.l.b16 %v5513
        %v7434 = vunpack.c.h.b16 %v5513
        %v7435 = vunpack.c.l.b16 %v5514
        %v7436 = vunpack.c.h.b16 %v5514
        %v7437 = vunpack.c.l.b16 %v5515
        %v7438 = vunpack.c.h.b16 %v5515
        %v7439 = vunpack.c.l.b16 %v5516
        %v7440 = vunpack.c.h.b16 %v5516
        %v7441 = vunpack.c.l.b16 %v5517
        %v7442 = vunpack.c.h.b16 %v5517
        %v7443 = vunpack.c.l.b16 %v5518
        %v7444 = vunpack.c.h.b16 %v5518
        %v7445 = vunpack.c.l.b16 %v5519
        %v7446 = vunpack.c.h.b16 %v5519
        %v7447 = vunpack.c.l.b16 %v5520
        %v7448 = vunpack.c.h.b16 %v5520
        %v7449 = vunpack.c.l.b16 %v5521
        %v7450 = vunpack.c.h.b16 %v5521
        %v7451 = vunpack.c.l.b16 %v5522
        %v7452 = vunpack.c.h.b16 %v5522
        %v7453 = vunpack.c.l.b16 %v5523
        %v7454 = vunpack.c.h.b16 %v5523
        %v7455 = vunpack.c.l.b16 %v5524
        %v7456 = vunpack.c.h.b16 %v5524
        %v7457 = vunpack.c.l.b16 %v5525
        %v7458 = vunpack.c.h.b16 %v5525
        %v7459 = vunpack.c.l.b16 %v5526
        %v7460 = vunpack.c.h.b16 %v5526
        %v7461 = vunpack.c.l.b16 %v5527
        %v7462 = vunpack.c.h.b16 %v5527
        %v7463 = vunpack.c.l.b16 %v5528
        %v7464 = vunpack.c.h.b16 %v5528
        %v7465 = vunpack.c.l.b16 %v5529
        %v7466 = vunpack.c.h.b16 %v5529
        %v7467 = vunpack.c.l.b16 %v5530
        %v7468 = vunpack.c.h.b16 %v5530
        %v7469 = vunpack.c.l.b16 %v5531
        %v7470 = vunpack.c.h.b16 %v5531
        %v7471 = vunpack.c.l.b16 %v5532
        %v7472 = vunpack.c.h.b16 %v5532
        %v7473 = vunpack.c.l.b16 %v5533
        %v7474 = vunpack.c.h.b16 %v5533
        %v7475 = vunpack.c.l.b16 %v5534
        %v7476 = vunpack.c.h.b16 %v5534
        %v7477 = vunpack.c.l.b16 %v5535
        %v7478 = vunpack.c.h.b16 %v5535
        %v7479 = vunpack.c.l.b16 %v5536
        %v7480 = vunpack.c.h.b16 %v5536
        %v7481 = vunpack.c.l.b16 %v5537
        %v7482 = vunpack.c.h.b16 %v5537
        %v7483 = vunpack.c.l.b16 %v5538
        %v7484 = vunpack.c.h.b16 %v5538
        %v7485 = vunpack.c.l.b16 %v5539
        %v7486 = vunpack.c.h.b16 %v5539
        %v7487 = vunpack.c.l.b16 %v5540
        %v7488 = vunpack.c.h.b16 %v5540
        %v7489 = vunpack.c.l.b16 %v5541
        %v7490 = vunpack.c.h.b16 %v5541
        %v7491 = vunpack.c.l.b16 %v5542
        %v7492 = vunpack.c.h.b16 %v5542
        %v7493 = vunpack.c.l.b16 %v5543
        %v7494 = vunpack.c.h.b16 %v5543
        %v7495 = vunpack.c.l.b16 %v5544
        %v7496 = vunpack.c.h.b16 %v5544
        %v7497 = vunpack.c.l.b16 %v5545
        %v7498 = vunpack.c.h.b16 %v5545
        %v7499 = vunpack.c.l.b16 %v5546
        %v7500 = vunpack.c.h.b16 %v5546
        %v7501 = vunpack.c.l.b16 %v5547
        %v7502 = vunpack.c.h.b16 %v5547
        %v7503 = vunpack.c.l.b16 %v5548
        %v7504 = vunpack.c.h.b16 %v5548
        %v7505 = vunpack.c.l.b16 %v5549
        %v7506 = vunpack.c.h.b16 %v5549
        %v7507 = vunpack.c.l.b16 %v5550
        %v7508 = vunpack.c.h.b16 %v5550
        %v7509 = vunpack.c.l.b16 %v5551
        %v7510 = vunpack.c.h.b16 %v5551
        %v7511 = vunpack.c.l.b16 %v5552
        %v7512 = vunpack.c.h.b16 %v5552
        %v7513 = vunpack.c.l.b16 %v5553
        %v7514 = vunpack.c.h.b16 %v5553
        %v7515 = vunpack.c.l.b16 %v5554
        %v7516 = vunpack.c.h.b16 %v5554
        %v7517 = vunpack.c.l.b16 %v5555
        %v7518 = vunpack.c.h.b16 %v5555
        %v7519 = vunpack.c.l.b16 %v5556
        %v7520 = vunpack.c.h.b16 %v5556
        %v7521 = vunpack.c.l.b16 %v5557
        %v7522 = vunpack.c.h.b16 %v5557
        %v7523 = vunpack.c.l.b16 %v5558
        %v7524 = vunpack.c.h.b16 %v5558
        %v7525 = vunpack.c.l.b16 %v5559
        %v7526 = vunpack.c.h.b16 %v5559
        %v7527 = vunpack.c.l.b16 %v5560
        %v7528 = vunpack.c.h.b16 %v5560
        %v7529 = vunpack.c.l.b16 %v5561
        %v7530 = vunpack.c.h.b16 %v5561
        %v7531 = vunpack.c.l.b16 %v5562
        %v7532 = vunpack.c.h.b16 %v5562
        %v7533 = vunpack.c.l.b16 %v5563
        %v7534 = vunpack.c.h.b16 %v5563
        %v7535 = vunpack.c.l.b16 %v5564
        %v7536 = vunpack.c.h.b16 %v5564
        %v7537 = vunpack.c.l.b16 %v5565
        %v7538 = vunpack.c.h.b16 %v5565
        %v7539 = vunpack.c.l.b16 %v5566
        %v7540 = vunpack.c.h.b16 %v5566
        %v7541 = vunpack.c.l.b16 %v5567
        %v7542 = vunpack.c.h.b16 %v5567
        %v7543 = vunpack.c.l.b16 %v5568
        %v7544 = vunpack.c.h.b16 %v5568
        %v7545 = vunpack.c.l.b16 %v5569
        %v7546 = vunpack.c.h.b16 %v5569
        %v7547 = vunpack.c.l.b16 %v5570
        %v7548 = vunpack.c.h.b16 %v5570
        %v7549 = vunpack.c.l.b16 %v5571
        %v7550 = vunpack.c.h.b16 %v5571
        %v7551 = vunpack.c.l.b16 %v5572
        %v7552 = vunpack.c.h.b16 %v5572
        %v7553 = vunpack.c.l.b16 %v5573
        %v7554 = vunpack.c.h.b16 %v5573
        %v7555 = vunpack.c.l.b16 %v5574
        %v7556 = vunpack.c.h.b16 %v5574
        %v7557 = vunpack.c.l.b16 %v5575
        %v7558 = vunpack.c.h.b16 %v5575
        %v7559 = vunpack.c.l.b16 %v5576
        %v7560 = vunpack.c.h.b16 %v5576
        %v7561 = vunpack.c.l.b16 %v5577
        %v7562 = vunpack.c.h.b16 %v5577
        %v7563 = vunpack.c.l.b16 %v5578
        %v7564 = vunpack.c.h.b16 %v5578
        %v7565 = vunpack.c.l.b16 %v5579
        %v7566 = vunpack.c.h.b16 %v5579
        %v7567 = vunpack.c.l.b16 %v5580
        %v7568 = vunpack.c.h.b16 %v5580
        %v7569 = vunpack.c.l.b16 %v5581
        %v7570 = vunpack.c.h.b16 %v5581
        %v7571 = vunpack.c.l.b16 %v5582
        %v7572 = vunpack.c.h.b16 %v5582
        %v7573 = vunpack.c.l.b16 %v5583
        %v7574 = vunpack.c.h.b16 %v5583
        %v7575 = vunpack.c.l.b16 %v5584
        %v7576 = vunpack.c.h.b16 %v5584
        %v7577 = vunpack.c.l.b16 %v5585
        %v7578 = vunpack.c.h.b16 %v5585
        %v7579 = vunpack.c.l.b16 %v5586
        %v7580 = vunpack.c.h.b16 %v5586
        %v7581 = vunpack.c.l.b16 %v5587
        %v7582 = vunpack.c.h.b16 %v5587
        %v7583 = vunpack.c.l.b16 %v5588
        %v7584 = vunpack.c.h.b16 %v5588
        %v7585 = vunpack.c.l.b16 %v5589
        %v7586 = vunpack.c.h.b16 %v5589
        %v7587 = vunpack.c.l.b16 %v5590
        %v7588 = vunpack.c.h.b16 %v5590
        %v7589 = vunpack.c.l.b16 %v5591
        %v7590 = vunpack.c.h.b16 %v5591
        %v7591 = vunpack.c.l.b16 %v5592
        %v7592 = vunpack.c.h.b16 %v5592
        %v7593 = vunpack.c.l.b16 %v5593
        %v7594 = vunpack.c.h.b16 %v5593
        %v7595 = vunpack.c.l.b16 %v5594
        %v7596 = vunpack.c.h.b16 %v5594
        %v7597 = vunpack.c.l.b16 %v5595
        %v7598 = vunpack.c.h.b16 %v5595
        %v7599 = vunpack.c.l.b16 %v5596
        %v7600 = vunpack.c.h.b16 %v5596
        %v7601 = vunpack.c.l.b16 %v5597
        %v7602 = vunpack.c.h.b16 %v5597
        %v7603 = vunpack.c.l.b16 %v5598
        %v7604 = vunpack.c.h.b16 %v5598
        %v7605 = vunpack.c.l.b16 %v5599
        %v7606 = vunpack.c.h.b16 %v5599
        %v7607 = vunpack.c.l.b16 %v5600
        %v7608 = vunpack.c.h.b16 %v5600
        %v7609 = vunpack.c.l.b16 %v5601
        %v7610 = vunpack.c.h.b16 %v5601
        %v7611 = vunpack.c.l.b16 %v5602
        %v7612 = vunpack.c.h.b16 %v5602
        %v7613 = vunpack.c.l.b16 %v5603
        %v7614 = vunpack.c.h.b16 %v5603
        %v7615 = vunpack.c.l.b16 %v5604
        %v7616 = vunpack.c.h.b16 %v5604
        %v7617 = vunpack.c.l.b16 %v5605
        %v7618 = vunpack.c.h.b16 %v5605
        %v7619 = vunpack.c.l.b16 %v5606
        %v7620 = vunpack.c.h.b16 %v5606
        %v7621 = vunpack.c.l.b16 %v5607
        %v7622 = vunpack.c.h.b16 %v5607
        %v7623 = vunpack.c.l.b16 %v5608
        %v7624 = vunpack.c.h.b16 %v5608
        %v7625 = vunpack.c.l.b16 %v5609
        %v7626 = vunpack.c.h.b16 %v5609
        %v7627 = vunpack.c.l.b16 %v5610
        %v7628 = vunpack.c.h.b16 %v5610
        %v7629 = vunpack.c.l.b16 %v5611
        %v7630 = vunpack.c.h.b16 %v5611
        %v7631 = vunpack.c.l.b16 %v5612
        %v7632 = vunpack.c.h.b16 %v5612
        %v7633 = vunpack.c.l.b16 %v5613
        %v7634 = vunpack.c.h.b16 %v5613
        %v7635 = vunpack.c.l.b16 %v5614
        %v7636 = vunpack.c.h.b16 %v5614
        %v7637 = vunpack.c.l.b16 %v5615
        %v7638 = vunpack.c.h.b16 %v5615
        %v7639 = vunpack.c.l.b16 %v5616
        %v7640 = vunpack.c.h.b16 %v5616
        %v7641 = vunpack.c.l.b16 %v5617
        %v7642 = vunpack.c.h.b16 %v5617
        %v7643 = vunpack.c.l.b16 %v5618
        %v7644 = vunpack.c.h.b16 %v5618
        %v7645 = vunpack.c.l.b16 %v5619
        %v7646 = vunpack.c.h.b16 %v5619
        %v7647 = vunpack.c.l.b16 %v5620
        %v7648 = vunpack.c.h.b16 %v5620
        %v7649 = vunpack.c.l.b16 %v5621
        %v7650 = vunpack.c.h.b16 %v5621
        %v7651 = vunpack.c.l.b16 %v5622
        %v7652 = vunpack.c.h.b16 %v5622
        %v7653 = vunpack.c.l.b16 %v5623
        %v7654 = vunpack.c.h.b16 %v5623
        %v7655 = vunpack.c.l.b16 %v5624
        %v7656 = vunpack.c.h.b16 %v5624
        %v7657 = vunpack.c.l.b16 %v5625
        %v7658 = vunpack.c.h.b16 %v5625
        %v7659 = vunpack.c.l.b16 %v5626
        %v7660 = vunpack.c.h.b16 %v5626
        %v7661 = vunpack.c.l.b16 %v5627
        %v7662 = vunpack.c.h.b16 %v5627
        %v7663 = vunpack.c.l.b16 %v5628
        %v7664 = vunpack.c.h.b16 %v5628
        %v7665 = vunpack.c.l.b16 %v5629
        %v7666 = vunpack.c.h.b16 %v5629
        %v7667 = vunpack.c.l.b16 %v5630
        %v7668 = vunpack.c.h.b16 %v5630
        %v7669 = vunpack.c.l.b16 %v5631
        %v7670 = vunpack.c.h.b16 %v5631
        %v7671 = vunpack.c.l.b16 %v5632
        %v7672 = vunpack.c.h.b16 %v5632
        %v7673 = vunpack.c.l.b16 %v5633
        %v7674 = vunpack.c.h.b16 %v5633
        %v7675 = vunpack.c.l.b16 %v5634
        %v7676 = vunpack.c.h.b16 %v5634
        %v7677 = vunpack.c.l.b16 %v5635
        %v7678 = vunpack.c.h.b16 %v5635
        %v7679 = vunpack.c.l.b16 %v5636
        %v7680 = vunpack.c.h.b16 %v5636
        %v7681 = vunpack.c.l.b16 %v5637
        %v7682 = vunpack.c.h.b16 %v5637
        %v7683 = vunpack.c.l.b16 %v5638
        %v7684 = vunpack.c.h.b16 %v5638
        %v7685 = vunpack.c.l.b16 %v5639
        %v7686 = vunpack.c.h.b16 %v5639
        %v7687 = vunpack.c.l.b16 %v5640
        %v7688 = vunpack.c.h.b16 %v5640
        %v7689 = vunpack.c.l.b16 %v5641
        %v7690 = vunpack.c.h.b16 %v5641
        %v7691 = vunpack.c.l.b16 %v5642
        %v7692 = vunpack.c.h.b16 %v5642
        %v7693 = vunpack.c.l.b16 %v5643
        %v7694 = vunpack.c.h.b16 %v5643
        %v7695 = vunpack.c.l.b16 %v5644
        %v7696 = vunpack.c.h.b16 %v5644
        %v7697 = vunpack.c.l.b16 %v5645
        %v7698 = vunpack.c.h.b16 %v5645
        %v7699 = vunpack.c.l.b16 %v5646
        %v7700 = vunpack.c.h.b16 %v5646
        %v7701 = vunpack.c.l.b16 %v5647
        %v7702 = vunpack.c.h.b16 %v5647
        %v7703 = vunpack.c.l.b16 %v5648
        %v7704 = vunpack.c.h.b16 %v5648
        %v7705 = vunpack.c.l.b16 %v5649
        %v7706 = vunpack.c.h.b16 %v5649
        %v7707 = vunpack.c.l.b16 %v5650
        %v7708 = vunpack.c.h.b16 %v5650
        %v7709 = vunpack.c.l.b16 %v5651
        %v7710 = vunpack.c.h.b16 %v5651
        %v7711 = vunpack.c.l.b16 %v5652
        %v7712 = vunpack.c.h.b16 %v5652
        %v7713 = vunpack.c.l.b16 %v5653
        %v7714 = vunpack.c.h.b16 %v5653
        %v7715 = vunpack.c.l.b16 %v5654
        %v7716 = vunpack.c.h.b16 %v5654
        %v7717 = vunpack.c.l.b16 %v5655
        %v7718 = vunpack.c.h.b16 %v5655
        %v7719 = vunpack.c.l.b16 %v5656
        %v7720 = vunpack.c.h.b16 %v5656
        %v7721 = vunpack.c.l.b16 %v5657
        %v7722 = vunpack.c.h.b16 %v5657
        %v7723 = vunpack.c.l.b16 %v5658
        %v7724 = vunpack.c.h.b16 %v5658
        %v7725 = vunpack.c.l.b16 %v5659
        %v7726 = vunpack.c.h.b16 %v5659
        %v7727 = vunpack.c.l.b16 %v5660
        %v7728 = vunpack.c.h.b16 %v5660
        %v7729 = vunpack.c.l.b16 %v5661
        %v7730 = vunpack.c.h.b16 %v5661
        %v7731 = vunpack.c.l.b16 %v5662
        %v7732 = vunpack.c.h.b16 %v5662
        %v7733 = vunpack.c.l.b16 %v5663
        %v7734 = vunpack.c.h.b16 %v5663
        %v7735 = vunpack.c.l.b16 %v5664
        %v7736 = vunpack.c.h.b16 %v5664
        %v7737 = vunpack.c.l.b16 %v5665
        %v7738 = vunpack.c.h.b16 %v5665
        %v7739 = vunpack.c.l.b16 %v5666
        %v7740 = vunpack.c.h.b16 %v5666
        %v7741 = vunpack.c.l.b16 %v5667
        %v7742 = vunpack.c.h.b16 %v5667
        %v7743 = vunpack.c.l.b16 %v5668
        %v7744 = vunpack.c.h.b16 %v5668
        %v7745 = vunpack.c.l.b16 %v5669
        %v7746 = vunpack.c.h.b16 %v5669
        %v7747 = vunpack.c.l.b16 %v5670
        %v7748 = vunpack.c.h.b16 %v5670
        %v7749 = vunpack.c.l.b16 %v5671
        %v7750 = vunpack.c.h.b16 %v5671
        %v7751 = vunpack.c.l.b16 %v5672
        %v7752 = vunpack.c.h.b16 %v5672
        %v7753 = vunpack.c.l.b16 %v5673
        %v7754 = vunpack.c.h.b16 %v5673
        %v7755 = vunpack.c.l.b16 %v5674
        %v7756 = vunpack.c.h.b16 %v5674
        %v7757 = vunpack.c.l.b16 %v5675
        %v7758 = vunpack.c.h.b16 %v5675
        %v7759 = vunpack.c.l.b16 %v5676
        %v7760 = vunpack.c.h.b16 %v5676
        %v7761 = vunpack.c.l.b16 %v5677
        %v7762 = vunpack.c.h.b16 %v5677
        %v7763 = vunpack.c.l.b16 %v5678
        %v7764 = vunpack.c.h.b16 %v5678
        %v7765 = vunpack.c.l.b16 %v5679
        %v7766 = vunpack.c.h.b16 %v5679
        %v7767 = vunpack.c.l.b16 %v5680
        %v7768 = vunpack.c.h.b16 %v5680
        %v7769 = vunpack.c.l.b16 %v5681
        %v7770 = vunpack.c.h.b16 %v5681
        %v7771 = vunpack.c.l.b16 %v5682
        %v7772 = vunpack.c.h.b16 %v5682
        %v7773 = vunpack.c.l.b16 %v5683
        %v7774 = vunpack.c.h.b16 %v5683
        %v7775 = vunpack.c.l.b16 %v5684
        %v7776 = vunpack.c.h.b16 %v5684
        %v7777 = vunpack.c.l.b16 %v5685
        %v7778 = vunpack.c.h.b16 %v5685
        %v7779 = vunpack.c.l.b16 %v5686
        %v7780 = vunpack.c.h.b16 %v5686
        %v7781 = vunpack.c.l.b16 %v5687
        %v7782 = vunpack.c.h.b16 %v5687
        %v7783 = vunpack.c.l.b16 %v5688
        %v7784 = vunpack.c.h.b16 %v5688
        %v7785 = vunpack.c.l.b16 %v5689
        %v7786 = vunpack.c.h.b16 %v5689
        %v7787 = vunpack.c.l.b16 %v5690
        %v7788 = vunpack.c.h.b16 %v5690
        %v7789 = vunpack.c.l.b16 %v5691
        %v7790 = vunpack.c.h.b16 %v5691
        %v7791 = vunpack.c.l.b16 %v5692
        %v7792 = vunpack.c.h.b16 %v5692
        %v7793 = vunpack.c.l.b16 %v5693
        %v7794 = vunpack.c.h.b16 %v5693
        %v7795 = vunpack.c.l.b16 %v5694
        %v7796 = vunpack.c.h.b16 %v5694
        %v7797 = vunpack.c.l.b16 %v5695
        %v7798 = vunpack.c.h.b16 %v5695
        %v7799 = vunpack.c.l.b16 %v5696
        %v7800 = vunpack.c.h.b16 %v5696
        %v7801 = vunpack.c.l.b16 %v5697
        %v7802 = vunpack.c.h.b16 %v5697
        %v7803 = vunpack.c.l.b16 %v5698
        %v7804 = vunpack.c.h.b16 %v5698
        %v7805 = vunpack.c.l.b16 %v5699
        %v7806 = vunpack.c.h.b16 %v5699
        %v7807 = vunpack.c.l.b16 %v5700
        %v7808 = vunpack.c.h.b16 %v5700
        %v7809 = vunpack.c.l.b16 %v5701
        %v7810 = vunpack.c.h.b16 %v5701
        %v7811 = vunpack.c.l.b16 %v5702
        %v7812 = vunpack.c.h.b16 %v5702
        %v7813 = vunpack.c.l.b16 %v5703
        %v7814 = vunpack.c.h.b16 %v5703
        %v7815 = vunpack.c.l.b16 %v5704
        %v7816 = vunpack.c.h.b16 %v5704
        %v7817 = vunpack.c.l.b16 %v5705
        %v7818 = vunpack.c.h.b16 %v5705
        %v7819 = vunpack.c.l.b16 %v5706
        %v7820 = vunpack.c.h.b16 %v5706
        %v7821 = vunpack.c.l.b16 %v5707
        %v7822 = vunpack.c.h.b16 %v5707
        %v7823 = vunpack.c.l.b16 %v5708
        %v7824 = vunpack.c.h.b16 %v5708
        %v7825 = vunpack.c.l.b16 %v5709
        %v7826 = vunpack.c.h.b16 %v5709
        %v7827 = vunpack.c.l.b16 %v5710
        %v7828 = vunpack.c.h.b16 %v5710
        %v7829 = vunpack.c.l.b16 %v5711
        %v7830 = vunpack.c.h.b16 %v5711
        %v7831 = vunpack.c.l.b16 %v5712
        %v7832 = vunpack.c.h.b16 %v5712
        %v7833 = vunpack.c.l.b16 %v5713
        %v7834 = vunpack.c.h.b16 %v5713
        %v7835 = vunpack.c.l.b16 %v5714
        %v7836 = vunpack.c.h.b16 %v5714
        %v7837 = vunpack.c.l.b16 %v5715
        %v7838 = vunpack.c.h.b16 %v5715
        %v7839 = vunpack.c.l.b16 %v5716
        %v7840 = vunpack.c.h.b16 %v5716
        %v7841 = vunpack.c.l.b16 %v5717
        %v7842 = vunpack.c.h.b16 %v5717
        %v7843 = vunpack.c.l.b16 %v5718
        %v7844 = vunpack.c.h.b16 %v5718
        %v7845 = vunpack.c.l.b16 %v5719
        %v7846 = vunpack.c.h.b16 %v5719
        %v7847 = vunpack.c.l.b16 %v5720
        %v7848 = vunpack.c.h.b16 %v5720
        %v7849 = vunpack.c.l.b16 %v5721
        %v7850 = vunpack.c.h.b16 %v5721
        %v7851 = vunpack.c.l.b16 %v5722
        %v7852 = vunpack.c.h.b16 %v5722
        %v7853 = vunpack.c.l.b16 %v5723
        %v7854 = vunpack.c.h.b16 %v5723
        %v7855 = vunpack.c.l.b16 %v5724
        %v7856 = vunpack.c.h.b16 %v5724
        %v7857 = vunpack.c.l.b16 %v5725
        %v7858 = vunpack.c.h.b16 %v5725
        %v7859 = vunpack.c.l.b16 %v5726
        %v7860 = vunpack.c.h.b16 %v5726
        %v7861 = vunpack.c.l.b16 %v5727
        %v7862 = vunpack.c.h.b16 %v5727
        %v7863 = vunpack.c.l.b16 %v5728
        %v7864 = vunpack.c.h.b16 %v5728
        %v7865 = vunpack.c.l.b16 %v5729
        %v7866 = vunpack.c.h.b16 %v5729
        %v7867 = vunpack.c.l.b16 %v5730
        %v7868 = vunpack.c.h.b16 %v5730
        %v7869 = vunpack.c.l.b16 %v5731
        %v7870 = vunpack.c.h.b16 %v5731
        %v7871 = vunpack.c.l.b16 %v5732
        %v7872 = vunpack.c.h.b16 %v5732
        %v7873 = vunpack.c.l.b16 %v5733
        %v7874 = vunpack.c.h.b16 %v5733
        %v7875 = vunpack.c.l.b16 %v5734
        %v7876 = vunpack.c.h.b16 %v5734
        %v7877 = vunpack.c.l.b16 %v5735
        %v7878 = vunpack.c.h.b16 %v5735
        %v7879 = vunpack.c.l.b16 %v5736
        %v7880 = vunpack.c.h.b16 %v5736
        %v7881 = vunpack.c.l.b16 %v5737
        %v7882 = vunpack.c.h.b16 %v5737
        %v7883 = vunpack.c.l.b16 %v5738
        %v7884 = vunpack.c.h.b16 %v5738
        %v7885 = vunpack.c.l.b16 %v5739
        %v7886 = vunpack.c.h.b16 %v5739
        %v7887 = vunpack.c.l.b16 %v5740
        %v7888 = vunpack.c.h.b16 %v5740
        %v7889 = vunpack.c.l.b16 %v5741
        %v7890 = vunpack.c.h.b16 %v5741
        %v7891 = vunpack.c.l.b16 %v5742
        %v7892 = vunpack.c.h.b16 %v5742
        %v7893 = vunpack.c.l.b16 %v5743
        %v7894 = vunpack.c.h.b16 %v5743
        %v7895 = vunpack.c.l.b16 %v5744
        %v7896 = vunpack.c.h.b16 %v5744
        %v7897 = vunpack.c.l.b16 %v5745
        %v7898 = vunpack.c.h.b16 %v5745
        %v7899 = vunpack.c.l.b16 %v5746
        %v7900 = vunpack.c.h.b16 %v5746
        %v7901 = vunpack.c.l.b16 %v5747
        %v7902 = vunpack.c.h.b16 %v5747
        %v7903 = vunpack.c.l.b16 %v5748
        %v7904 = vunpack.c.h.b16 %v5748
        %v7905 = vunpack.c.l.b16 %v5749
        %v7906 = vunpack.c.h.b16 %v5749
        %v7907 = vunpack.c.l.b16 %v5750
        %v7908 = vunpack.c.h.b16 %v5750
        %v7909 = vunpack.c.l.b16 %v5751
        %v7910 = vunpack.c.h.b16 %v5751
        %v7911 = vunpack.c.l.b16 %v5752
        %v7912 = vunpack.c.h.b16 %v5752
        %v7913 = vunpack.c.l.b16 %v5753
        %v7914 = vunpack.c.h.b16 %v5753
        %v7915 = vunpack.c.l.b16 %v5754
        %v7916 = vunpack.c.h.b16 %v5754
        %v7917 = vunpack.c.l.b16 %v5755
        %v7918 = vunpack.c.h.b16 %v5755
        %v7919 = vunpack.c.l.b16 %v5756
        %v7920 = vunpack.c.h.b16 %v5756
        %v7921 = vunpack.c.l.b16 %v5757
        %v7922 = vunpack.c.h.b16 %v5757
        %v7923 = vunpack.c.l.b16 %v5758
        %v7924 = vunpack.c.h.b16 %v5758
        %v7925 = vunpack.c.l.b16 %v5759
        %v7926 = vunpack.c.h.b16 %v5759
        %v7927 = vunpack.c.l.b16 %v5760
        %v7928 = vunpack.c.h.b16 %v5760
        %v7929 = vunpack.c.l.b16 %v5761
        %v7930 = vunpack.c.h.b16 %v5761
        %v7931 = vunpack.c.l.b16 %v5762
        %v7932 = vunpack.c.h.b16 %v5762
        %v7933 = vunpack.c.l.b16 %v5763
        %v7934 = vunpack.c.h.b16 %v5763
        %v7935 = vunpack.c.l.b16 %v5764
        %v7936 = vunpack.c.h.b16 %v5764
        %v7937 = vunpack.c.l.b16 %v5765
        %v7938 = vunpack.c.h.b16 %v5765
        %v7939 = vunpack.c.l.b16 %v5766
        %v7940 = vunpack.c.h.b16 %v5766
        %v7941 = vunpack.c.l.b16 %v5767
        %v7942 = vunpack.c.h.b16 %v5767
        %v7943 = vunpack.c.l.b16 %v5768
        %v7944 = vunpack.c.h.b16 %v5768
        %v7945 = vunpack.c.l.b16 %v5769
        %v7946 = vunpack.c.h.b16 %v5769
        %v7947 = vunpack.c.l.b16 %v5770
        %v7948 = vunpack.c.h.b16 %v5770
        %v7949 = vunpack.c.l.b16 %v5771
        %v7950 = vunpack.c.h.b16 %v5771
        %v7951 = vunpack.c.l.b16 %v5772
        %v7952 = vunpack.c.h.b16 %v5772
        %v7953 = vunpack.c.l.b16 %v5773
        %v7954 = vunpack.c.h.b16 %v5773
        %v7955 = vunpack.c.l.b16 %v5774
        %v7956 = vunpack.c.h.b16 %v5774
        %v7957 = vunpack.c.l.b16 %v5775
        %v7958 = vunpack.c.h.b16 %v5775
        %v7959 = vunpack.c.l.b16 %v5776
        %v7960 = vunpack.c.h.b16 %v5776
        %v7961 = vunpack.c.l.b16 %v5777
        %v7962 = vunpack.c.h.b16 %v5777
        %v7963 = vunpack.c.l.b16 %v5778
        %v7964 = vunpack.c.h.b16 %v5778
        %v7965 = vunpack.c.l.b16 %v5779
        %v7966 = vunpack.c.h.b16 %v5779
        %v7967 = vunpack.c.l.b16 %v5780
        %v7968 = vunpack.c.h.b16 %v5780
        %v7969 = vunpack.c.l.b16 %v5781
        %v7970 = vunpack.c.h.b16 %v5781
        %v7971 = vunpack.c.l.b16 %v5782
        %v7972 = vunpack.c.h.b16 %v5782
        %v7973 = vunpack.c.l.b16 %v5783
        %v7974 = vunpack.c.h.b16 %v5783
        %v7975 = vunpack.c.l.b16 %v5784
        %v7976 = vunpack.c.h.b16 %v5784
        %v7977 = vunpack.c.l.b16 %v5785
        %v7978 = vunpack.c.h.b16 %v5785
        %v7979 = vunpack.c.l.b16 %v5786
        %v7980 = vunpack.c.h.b16 %v5786
        %v7981 = vunpack.c.l.b16 %v5787
        %v7982 = vunpack.c.h.b16 %v5787
        %v7983 = vunpack.c.l.b16 %v5788
        %v7984 = vunpack.c.h.b16 %v5788
        %v7985 = vunpack.c.l.b16 %v5789
        %v7986 = vunpack.c.h.b16 %v5789
        %v7987 = vunpack.c.l.b16 %v5790
        %v7988 = vunpack.c.h.b16 %v5790
        %v7989 = vunpack.c.l.b16 %v5791
        %v7990 = vunpack.c.h.b16 %v5791
        %v7991 = vunpack.c.l.b16 %v5792
        %v7992 = vunpack.c.h.b16 %v5792
        %v7993 = vunpack.c.l.b16 %v5793
        %v7994 = vunpack.c.h.b16 %v5793
        %v7995 = vunpack.c.l.b16 %v5794
        %v7996 = vunpack.c.h.b16 %v5794
        %v7997 = vunpack.c.l.b16 %v5795
        %v7998 = vunpack.c.h.b16 %v5795
        %v7999 = vunpack.c.l.b16 %v5796
        %v8000 = vunpack.c.h.b16 %v5796
        %v8001 = vunpack.c.l.b16 %v5797
        %v8002 = vunpack.c.h.b16 %v5797
        %v8003 = vunpack.c.l.b16 %v5798
        %v8004 = vunpack.c.h.b16 %v5798
        %v8005 = vunpack.c.l.b16 %v5799
        %v8006 = vunpack.c.h.b16 %v5799
        %v8007 = vunpack.c.l.b16 %v5800
        %v8008 = vunpack.c.h.b16 %v5800
        %v8009 = vunpack.c.l.b16 %v5801
        %v8010 = vunpack.c.h.b16 %v5801
        %v8011 = vunpack.c.l.b16 %v5802
        %v8012 = vunpack.c.h.b16 %v5802
        %v8013 = vunpack.c.l.b16 %v5803
        %v8014 = vunpack.c.h.b16 %v5803
        %v8015 = vunpack.c.l.b16 %v5804
        %v8016 = vunpack.c.h.b16 %v5804
        %v8017 = vunpack.c.l.b16 %v5805
        %v8018 = vunpack.c.h.b16 %v5805
        %v8019 = vunpack.c.l.b16 %v5806
        %v8020 = vunpack.c.h.b16 %v5806
        %v8021 = vunpack.c.l.b16 %v5807
        %v8022 = vunpack.c.h.b16 %v5807
        %v8023 = vunpack.c.l.b16 %v5808
        %v8024 = vunpack.c.h.b16 %v5808
        %v8025 = vunpack.c.l.b16 %v5809
        %v8026 = vunpack.c.h.b16 %v5809
        %v8027 = vunpack.c.l.b16 %v5810
        %v8028 = vunpack.c.h.b16 %v5810
        %v8029 = vunpack.c.l.b16 %v5811
        %v8030 = vunpack.c.h.b16 %v5811
        %v8031 = vunpack.c.l.b16 %v5812
        %v8032 = vunpack.c.h.b16 %v5812
        %v8033 = vunpack.c.l.b16 %v5813
        %v8034 = vunpack.c.h.b16 %v5813
        %v8035 = vunpack.c.l.b16 %v5814
        %v8036 = vunpack.c.h.b16 %v5814
        %v8037 = vunpack.c.l.b16 %v5815
        %v8038 = vunpack.c.h.b16 %v5815
        %v8039 = vunpack.c.l.b16 %v5816
        %v8040 = vunpack.c.h.b16 %v5816
        %v8041 = vunpack.c.l.b16 %v5817
        %v8042 = vunpack.c.h.b16 %v5817
        %v8043 = vunpack.c.l.b16 %v5818
        %v8044 = vunpack.c.h.b16 %v5818
        %v8045 = vunpack.c.l.b16 %v5819
        %v8046 = vunpack.c.h.b16 %v5819
        %v8047 = vunpack.c.l.b16 %v5820
        %v8048 = vunpack.c.h.b16 %v5820
        %v8049 = vunpack.c.l.b16 %v5821
        %v8050 = vunpack.c.h.b16 %v5821
        %v8051 = vunpack.c.l.b16 %v5822
        %v8052 = vunpack.c.h.b16 %v5822
        %v8053 = vunpack.c.l.b16 %v5823
        %v8054 = vunpack.c.h.b16 %v5823
        %v8055 = vunpack.c.l.b16 %v5824
        %v8056 = vunpack.c.h.b16 %v5824
        %v8057 = vunpack.c.l.b16 %v5825
        %v8058 = vunpack.c.h.b16 %v5825
        %v8059 = vunpack.c.l.b16 %v5826
        %v8060 = vunpack.c.h.b16 %v5826
        %v8061 = vunpack.c.l.b16 %v5827
        %v8062 = vunpack.c.h.b16 %v5827
        %v8063 = vunpack.c.l.b16 %v5828
        %v8064 = vunpack.c.h.b16 %v5828
        %v8065 = vunpack.c.l.b16 %v5829
        %v8066 = vunpack.c.h.b16 %v5829
        %v8067 = vunpack.c.l.b16 %v5830
        %v8068 = vunpack.c.h.b16 %v5830
        %v8069 = vunpack.c.l.b16 %v5831
        %v8070 = vunpack.c.h.b16 %v5831
        %v8071 = vunpack.c.l.b16 %v5832
        %v8072 = vunpack.c.h.b16 %v5832
        %v8073 = vunpack.c.l.b16 %v5833
        %v8074 = vunpack.c.h.b16 %v5833
        %v8075 = vunpack.c.l.b16 %v5834
        %v8076 = vunpack.c.h.b16 %v5834
        %v8077 = vunpack.c.l.b16 %v5835
        %v8078 = vunpack.c.h.b16 %v5835
        %v8079 = vunpack.c.l.b16 %v5836
        %v8080 = vunpack.c.h.b16 %v5836
        %v8081 = vunpack.c.l.b16 %v5837
        %v8082 = vunpack.c.h.b16 %v5837
        %v8083 = vunpack.c.l.b16 %v5838
        %v8084 = vunpack.c.h.b16 %v5838
        %v8085 = vunpack.c.l.b16 %v5839
        %v8086 = vunpack.c.h.b16 %v5839
        %v8087 = vunpack.c.l.b16 %v5840
        %v8088 = vunpack.c.h.b16 %v5840
        %v8089 = vunpack.c.l.b16 %v5841
        %v8090 = vunpack.c.h.b16 %v5841
        %v8091 = vunpack.c.l.b16 %v5842
        %v8092 = vunpack.c.h.b16 %v5842
        %v8093 = vunpack.c.l.b16 %v5843
        %v8094 = vunpack.c.h.b16 %v5843
        %v8095 = vunpack.c.l.b16 %v5844
        %v8096 = vunpack.c.h.b16 %v5844
        %v8097 = vunpack.c.l.b16 %v5845
        %v8098 = vunpack.c.h.b16 %v5845
        %v8099 = vunpack.c.l.b16 %v5846
        %v8100 = vunpack.c.h.b16 %v5846
        %v8101 = vunpack.c.l.b16 %v5847
        %v8102 = vunpack.c.h.b16 %v5847
        %v8103 = vunpack.c.l.b16 %v5848
        %v8104 = vunpack.c.h.b16 %v5848
        %v8105 = vunpack.c.l.b16 %v5849
        %v8106 = vunpack.c.h.b16 %v5849
        %v8107 = vunpack.c.l.b16 %v5850
        %v8108 = vunpack.c.h.b16 %v5850
        %v8109 = vunpack.c.l.b16 %v5851
        %v8110 = vunpack.c.h.b16 %v5851
        %v8111 = vunpack.c.l.b16 %v5852
        %v8112 = vunpack.c.h.b16 %v5852
        %v8113 = vunpack.c.l.b16 %v5853
        %v8114 = vunpack.c.h.b16 %v5853
        %v8115 = vunpack.c.l.b16 %v5854
        %v8116 = vunpack.c.h.b16 %v5854
        %v8117 = vunpack.c.l.b16 %v5855
        %v8118 = vunpack.c.h.b16 %v5855
        %v8119 = vunpack.c.l.b16 %v5856
        %v8120 = vunpack.c.h.b16 %v5856
        %v8121 = vunpack.c.l.b16 %v5857
        %v8122 = vunpack.c.h.b16 %v5857
        %v8123 = vunpack.c.l.b16 %v5858
        %v8124 = vunpack.c.h.b16 %v5858
        %v8125 = vunpack.c.l.b16 %v5859
        %v8126 = vunpack.c.h.b16 %v5859
        %v8127 = vunpack.c.l.b16 %v5860
        %v8128 = vunpack.c.h.b16 %v5860
        %v8129 = vunpack.c.l.b16 %v5861
        %v8130 = vunpack.c.h.b16 %v5861
        %v8131 = vunpack.c.l.b16 %v5862
        %v8132 = vunpack.c.h.b16 %v5862
        %v8133 = vunpack.c.l.b16 %v5863
        %v8134 = vunpack.c.h.b16 %v5863
        %v8135 = vunpack.c.l.b16 %v5864
        %v8136 = vunpack.c.h.b16 %v5864
        %v8137 = vunpack.c.l.b16 %v5865
        %v8138 = vunpack.c.h.b16 %v5865
        %v8139 = vunpack.c.l.b16 %v5866
        %v8140 = vunpack.c.h.b16 %v5866
        %v8141 = vunpack.c.l.b16 %v5867
        %v8142 = vunpack.c.h.b16 %v5867
        %v8143 = vunpack.c.l.b16 %v5868
        %v8144 = vunpack.c.h.b16 %v5868
        %v8145 = vunpack.c.l.b16 %v5869
        %v8146 = vunpack.c.h.b16 %v5869
        %v8147 = vunpack.c.l.b16 %v5870
        %v8148 = vunpack.c.h.b16 %v5870
        %v8149 = vunpack.c.l.b16 %v5871
        %v8150 = vunpack.c.h.b16 %v5871
        %v8151 = vunpack.c.l.b16 %v5872
        %v8152 = vunpack.c.h.b16 %v5872
        %v8153 = vunpack.c.l.b16 %v5873
        %v8154 = vunpack.c.h.b16 %v5873
        %v8155 = vunpack.c.l.b16 %v5874
        %v8156 = vunpack.c.h.b16 %v5874
        %v8157 = vunpack.c.l.b16 %v5875
        %v8158 = vunpack.c.h.b16 %v5875
        %v8159 = vunpack.c.l.b16 %v5876
        %v8160 = vunpack.c.h.b16 %v5876
        %v8161 = vunpack.c.l.b16 %v5877
        %v8162 = vunpack.c.h.b16 %v5877
        %v8163 = vunpack.c.l.b16 %v5878
        %v8164 = vunpack.c.h.b16 %v5878
        %v8165 = vunpack.c.l.b16 %v5879
        %v8166 = vunpack.c.h.b16 %v5879
        %v8167 = vunpack.c.l.b16 %v5880
        %v8168 = vunpack.c.h.b16 %v5880
        %v8169 = vunpack.c.l.b16 %v5881
        %v8170 = vunpack.c.h.b16 %v5881
        %v8171 = vunpack.c.l.b16 %v5882
        %v8172 = vunpack.c.h.b16 %v5882
        %v8173 = vunpack.c.l.b16 %v5883
        %v8174 = vunpack.c.h.b16 %v5883
        %v8175 = vunpack.c.l.b16 %v5884
        %v8176 = vunpack.c.h.b16 %v5884
        %v8177 = vunpack.c.l.b16 %v5885
        %v8178 = vunpack.c.h.b16 %v5885
        %v8179 = vunpack.c.l.b16 %v5886
        %v8180 = vunpack.c.h.b16 %v5886
        %v8181 = vunpack.c.l.b16 %v5887
        %v8182 = vunpack.c.h.b16 %v5887
        %v8183 = vunpack.c.l.b16 %v5888
        %v8184 = vunpack.c.h.b16 %v5888
        %v8185 = vunpack.c.l.b16 %v5889
        %v8186 = vunpack.c.h.b16 %v5889
        %v8187 = vunpack.c.l.b16 %v5890
        %v8188 = vunpack.c.h.b16 %v5890
        %v8189 = vunpack.c.l.b16 %v5891
        %v8190 = vunpack.c.h.b16 %v5891
        %v8191 = vunpack.c.l.b16 %v5892
        %v8192 = vunpack.c.h.b16 %v5892
        %v8193 = vunpack.c.l.b16 %v5893
        %v8194 = vunpack.c.h.b16 %v5893
        %v8195 = vunpack.c.l.b16 %v5894
        %v8196 = vunpack.c.h.b16 %v5894
        %v8197 = vunpack.c.l.b16 %v5895
        %v8198 = vunpack.c.h.b16 %v5895
        %v8199 = vunpack.c.l.b16 %v5896
        %v8200 = vunpack.c.h.b16 %v5896
        %v8201 = vunpack.c.l.b16 %v5897
        %v8202 = vunpack.c.h.b16 %v5897
        %v8203 = vunpack.c.l.b16 %v5898
        %v8204 = vunpack.c.h.b16 %v5898
        %v8205 = vunpack.c.l.b16 %v5899
        %v8206 = vunpack.c.h.b16 %v5899
        %v8207 = vunpack.c.l.b16 %v5900
        %v8208 = vunpack.c.h.b16 %v5900
        %v8209 = vunpack.c.l.b16 %v5901
        %v8210 = vunpack.c.h.b16 %v5901
        %v8211 = vunpack.c.l.b16 %v5902
        %v8212 = vunpack.c.h.b16 %v5902
        %v8213 = vunpack.c.l.b16 %v5903
        %v8214 = vunpack.c.h.b16 %v5903
        %v8215 = vunpack.c.l.b16 %v5904
        %v8216 = vunpack.c.h.b16 %v5904
        %v8217 = vunpack.c.l.b16 %v5905
        %v8218 = vunpack.c.h.b16 %v5905
        %v8219 = vunpack.c.l.b16 %v5906
        %v8220 = vunpack.c.h.b16 %v5906
        %v8221 = vunpack.c.l.b16 %v5907
        %v8222 = vunpack.c.h.b16 %v5907
        %v8223 = vunpack.c.l.b16 %v5908
        %v8224 = vunpack.c.h.b16 %v5908
        %v8225 = vunpack.c.l.b16 %v5909
        %v8226 = vunpack.c.h.b16 %v5909
        %v8227 = vunpack.c.l.b16 %v5910
        %v8228 = vunpack.c.h.b16 %v5910
        %v8229 = vunpack.c.l.b16 %v5911
        %v8230 = vunpack.c.h.b16 %v5911
        %v8231 = vunpack.c.l.b16 %v5912
        %v8232 = vunpack.c.h.b16 %v5912
        %v8233 = vunpack.c.l.b16 %v5913
        %v8234 = vunpack.c.h.b16 %v5913
        %v8235 = vunpack.c.l.b16 %v5914
        %v8236 = vunpack.c.h.b16 %v5914
        %v8237 = vunpack.c.l.b16 %v5915
        %v8238 = vunpack.c.h.b16 %v5915
        %v8239 = vunpack.c.l.b16 %v5916
        %v8240 = vunpack.c.h.b16 %v5916
        %v8241 = vunpack.c.l.b16 %v5917
        %v8242 = vunpack.c.h.b16 %v5917
        %v8243 = vunpack.c.l.b16 %v5918
        %v8244 = vunpack.c.h.b16 %v5918
        %v8245 = vunpack.c.l.b16 %v5919
        %v8246 = vunpack.c.h.b16 %v5919
        %v8247 = vunpack.c.l.b16 %v5920
        %v8248 = vunpack.c.h.b16 %v5920
        %v8249 = vunpack.c.l.b16 %v5921
        %v8250 = vunpack.c.h.b16 %v5921
        %v8251 = vunpack.c.l.b16 %v5922
        %v8252 = vunpack.c.h.b16 %v5922
        %v8253 = vunpack.c.l.b16 %v5923
        %v8254 = vunpack.c.h.b16 %v5923
        %v8255 = vunpack.c.l.b16 %v5924
        %v8256 = vunpack.c.h.b16 %v5924
        %v8257 = vunpack.c.l.b16 %v5925
        %v8258 = vunpack.c.h.b16 %v5925
        %v8259 = vunpack.c.l.b16 %v5926
        %v8260 = vunpack.c.h.b16 %v5926
        %v8261 = vunpack.c.l.b16 %v5927
        %v8262 = vunpack.c.h.b16 %v5927
        %v8263 = vunpack.c.l.b16 %v5928
        %v8264 = vunpack.c.h.b16 %v5928
        %v8265 = vunpack.c.l.b16 %v5929
        %v8266 = vunpack.c.h.b16 %v5929
        %v8267 = vunpack.c.l.b16 %v5930
        %v8268 = vunpack.c.h.b16 %v5930
        %v8269 = vunpack.c.l.b16 %v5931
        %v8270 = vunpack.c.h.b16 %v5931
        %v8271 = vunpack.c.l.b16 %v5932
        %v8272 = vunpack.c.h.b16 %v5932
        %v8273 = vunpack.c.l.b16 %v5933
        %v8274 = vunpack.c.h.b16 %v5933
        %v8275 = vunpack.c.l.b16 %v5934
        %v8276 = vunpack.c.h.b16 %v5934
        %v8277 = vunpack.c.l.b16 %v5935
        %v8278 = vunpack.c.h.b16 %v5935
        %v8279 = vunpack.c.l.b16 %v5936
        %v8280 = vunpack.c.h.b16 %v5936
        %v8281 = vunpack.c.l.b16 %v5937
        %v8282 = vunpack.c.h.b16 %v5937
        %v8283 = vunpack.c.l.b16 %v5938
        %v8284 = vunpack.c.h.b16 %v5938
        %v8285 = vunpack.c.l.b16 %v5939
        %v8286 = vunpack.c.h.b16 %v5939
        %v8287 = vunpack.c.l.b16 %v5940
        %v8288 = vunpack.c.h.b16 %v5940
        %v8289 = vunpack.c.l.b16 %v5941
        %v8290 = vunpack.c.h.b16 %v5941
        %v8291 = vunpack.c.l.b16 %v5942
        %v8292 = vunpack.c.h.b16 %v5942
        %v8293 = vunpack.c.l.b16 %v5943
        %v8294 = vunpack.c.h.b16 %v5943
        %v8295 = vunpack.c.l.b16 %v5944
        %v8296 = vunpack.c.h.b16 %v5944
        %v8297 = vunpack.c.l.b16 %v5945
        %v8298 = vunpack.c.h.b16 %v5945
        %v8299 = vunpack.c.l.b16 %v5946
        %v8300 = vunpack.c.h.b16 %v5946
        %v8301 = vunpack.c.l.b16 %v5947
        %v8302 = vunpack.c.h.b16 %v5947
        %v8303 = vunpack.c.l.b16 %v5948
        %v8304 = vunpack.c.h.b16 %v5948
        %v8305 = vunpack.c.l.b16 %v5949
        %v8306 = vunpack.c.h.b16 %v5949
        %v8307 = vunpack.c.l.b16 %v5950
        %v8308 = vunpack.c.h.b16 %v5950
        %v8309 = vunpack.c.l.b16 %v5951
        %v8310 = vunpack.c.h.b16 %v5951
        %v8311 = vunpack.c.l.b16 %v5952
        %v8312 = vunpack.c.h.b16 %v5952
        %v8313 = vunpack.c.l.b16 %v5953
        %v8314 = vunpack.c.h.b16 %v5953
        %v8315 = vunpack.c.l.b16 %v5954
        %v8316 = vunpack.c.h.b16 %v5954
        %v8317 = vunpack.c.l.b16 %v5955
        %v8318 = vunpack.c.h.b16 %v5955
        %v8319 = vunpack.c.l.b16 %v5956
        %v8320 = vunpack.c.h.b16 %v5956
        %v8321 = vunpack.c.l.b16 %v5957
        %v8322 = vunpack.c.h.b16 %v5957
        %v8323 = vunpack.c.l.b16 %v5958
        %v8324 = vunpack.c.h.b16 %v5958
        %v8325 = vunpack.c.l.b16 %v5959
        %v8326 = vunpack.c.h.b16 %v5959
        %v8327 = vunpack.c.l.b16 %v5960
        %v8328 = vunpack.c.h.b16 %v5960
        %v8329 = vunpack.c.l.b16 %v5961
        %v8330 = vunpack.c.h.b16 %v5961
        %v8331 = vunpack.c.l.b16 %v5962
        %v8332 = vunpack.c.h.b16 %v5962
        %v8333 = vunpack.c.l.b16 %v5963
        %v8334 = vunpack.c.h.b16 %v5963
        %v8335 = vunpack.c.l.b16 %v5964
        %v8336 = vunpack.c.h.b16 %v5964
        %v8337 = vunpack.c.l.b16 %v5965
        %v8338 = vunpack.c.h.b16 %v5965
        %v8339 = vunpack.c.l.b16 %v5966
        %v8340 = vunpack.c.h.b16 %v5966
        %v8341 = vunpack.c.l.b16 %v5967
        %v8342 = vunpack.c.h.b16 %v5967
        %v8343 = vunpack.c.l.b16 %v5968
        %v8344 = vunpack.c.h.b16 %v5968
        %v8345 = vunpack.c.l.b16 %v5969
        %v8346 = vunpack.c.h.b16 %v5969
        %v8347 = vunpack.c.l.b16 %v5970
        %v8348 = vunpack.c.h.b16 %v5970
        %v8349 = vunpack.c.l.b16 %v5971
        %v8350 = vunpack.c.h.b16 %v5971
        %v8351 = vunpack.c.l.b16 %v5972
        %v8352 = vunpack.c.h.b16 %v5972
        %v8353 = vunpack.c.l.b16 %v5973
        %v8354 = vunpack.c.h.b16 %v5973
        %v8355 = vunpack.c.l.b16 %v5974
        %v8356 = vunpack.c.h.b16 %v5974
        %v8357 = vunpack.c.l.b16 %v5975
        %v8358 = vunpack.c.h.b16 %v5975
        %v8359 = vunpack.c.l.b16 %v5976
        %v8360 = vunpack.c.h.b16 %v5976
        %v8361 = vunpack.c.l.b16 %v5977
        %v8362 = vunpack.c.h.b16 %v5977
        %v8363 = vunpack.c.l.b16 %v5978
        %v8364 = vunpack.c.h.b16 %v5978
        %v8365 = vunpack.c.l.b16 %v5979
        %v8366 = vunpack.c.h.b16 %v5979
        %v8367 = vunpack.c.l.b16 %v5980
        %v8368 = vunpack.c.h.b16 %v5980
        %v8369 = vunpack.c.l.b16 %v5981
        %v8370 = vunpack.c.h.b16 %v5981
        %v8371 = vunpack.c.l.b16 %v5982
        %v8372 = vunpack.c.h.b16 %v5982
        %v8373 = vunpack.c.l.b16 %v5983
        %v8374 = vunpack.c.h.b16 %v5983
        %v8375 = vunpack.c.l.b16 %v5984
        %v8376 = vunpack.c.h.b16 %v5984
        %v8377 = vunpack.c.l.b16 %v5985
        %v8378 = vunpack.c.h.b16 %v5985
        %v8379 = vunpack.c.l.b16 %v5986
        %v8380 = vunpack.c.h.b16 %v5986
        %v8381 = vunpack.c.l.b16 %v5987
        %v8382 = vunpack.c.h.b16 %v5987
        %v8383 = vunpack.c.l.b16 %v5988
        %v8384 = vunpack.c.h.b16 %v5988
        %v8385 = vunpack.c.l.b16 %v5989
        %v8386 = vunpack.c.h.b16 %v5989
        %v8387 = vunpack.c.l.b16 %v5990
        %v8388 = vunpack.c.h.b16 %v5990
        %v8389 = vunpack.c.l.b16 %v5991
        %v8390 = vunpack.c.h.b16 %v5991
        %v8391 = vunpack.c.l.b16 %v5992
        %v8392 = vunpack.c.h.b16 %v5992
        %v8393 = vunpack.c.l.b16 %v5993
        %v8394 = vunpack.c.h.b16 %v5993
        %v8395 = vpack.c.b16 %v6799, %v6795
        %v8396 = vpack.c.b16 %v6800, %v6796
        %v8397 = vpack.c.b16 %v6801, %v6797
        %v8398 = vpack.c.b16 %v6802, %v6798
        %v8399 = vpack.c.b16 %v6807, %v6803
        %v8400 = vpack.c.b16 %v6808, %v6804
        %v8401 = vpack.c.b16 %v6809, %v6805
        %v8402 = vpack.c.b16 %v6810, %v6806
        %v8403 = vpack.c.b16 %v6815, %v6811
        %v8404 = vpack.c.b16 %v6816, %v6812
        %v8405 = vpack.c.b16 %v6817, %v6813
        %v8406 = vpack.c.b16 %v6818, %v6814
        %v8407 = vpack.c.b16 %v6823, %v6819
        %v8408 = vpack.c.b16 %v6824, %v6820
        %v8409 = vpack.c.b16 %v6825, %v6821
        %v8410 = vpack.c.b16 %v6826, %v6822
        %v8411 = vpack.c.b16 %v6831, %v6827
        %v8412 = vpack.c.b16 %v6832, %v6828
        %v8413 = vpack.c.b16 %v6833, %v6829
        %v8414 = vpack.c.b16 %v6834, %v6830
        %v8415 = vpack.c.b16 %v6839, %v6835
        %v8416 = vpack.c.b16 %v6840, %v6836
        %v8417 = vpack.c.b16 %v6841, %v6837
        %v8418 = vpack.c.b16 %v6842, %v6838
        %v8419 = vpack.c.b16 %v6847, %v6843
        %v8420 = vpack.c.b16 %v6848, %v6844
        %v8421 = vpack.c.b16 %v6849, %v6845
        %v8422 = vpack.c.b16 %v6850, %v6846
        %v8423 = vpack.c.b16 %v6855, %v6851
        %v8424 = vpack.c.b16 %v6856, %v6852
        %v8425 = vpack.c.b16 %v6857, %v6853
        %v8426 = vpack.c.b16 %v6858, %v6854
        %v8427 = vpack.c.b16 %v6863, %v6859
        %v8428 = vpack.c.b16 %v6864, %v6860
        %v8429 = vpack.c.b16 %v6865, %v6861
        %v8430 = vpack.c.b16 %v6866, %v6862
        %v8431 = vpack.c.b16 %v6871, %v6867
        %v8432 = vpack.c.b16 %v6872, %v6868
        %v8433 = vpack.c.b16 %v6873, %v6869
        %v8434 = vpack.c.b16 %v6874, %v6870
        %v8435 = vpack.c.b16 %v6879, %v6875
        %v8436 = vpack.c.b16 %v6880, %v6876
        %v8437 = vpack.c.b16 %v6881, %v6877
        %v8438 = vpack.c.b16 %v6882, %v6878
        %v8439 = vpack.c.b16 %v6887, %v6883
        %v8440 = vpack.c.b16 %v6888, %v6884
        %v8441 = vpack.c.b16 %v6889, %v6885
        %v8442 = vpack.c.b16 %v6890, %v6886
        %v8443 = vpack.c.b16 %v6895, %v6891
        %v8444 = vpack.c.b16 %v6896, %v6892
        %v8445 = vpack.c.b16 %v6897, %v6893
        %v8446 = vpack.c.b16 %v6898, %v6894
        %v8447 = vpack.c.b16 %v6903, %v6899
        %v8448 = vpack.c.b16 %v6904, %v6900
        %v8449 = vpack.c.b16 %v6905, %v6901
        %v8450 = vpack.c.b16 %v6906, %v6902
        %v8451 = vpack.c.b16 %v6911, %v6907
        %v8452 = vpack.c.b16 %v6912, %v6908
        %v8453 = vpack.c.b16 %v6913, %v6909
        %v8454 = vpack.c.b16 %v6914, %v6910
        %v8455 = vpack.c.b16 %v6919, %v6915
        %v8456 = vpack.c.b16 %v6920, %v6916
        %v8457 = vpack.c.b16 %v6921, %v6917
        %v8458 = vpack.c.b16 %v6922, %v6918
        %v8459 = vpack.c.b16 %v6927, %v6923
        %v8460 = vpack.c.b16 %v6928, %v6924
        %v8461 = vpack.c.b16 %v6929, %v6925
        %v8462 = vpack.c.b16 %v6930, %v6926
        %v8463 = vpack.c.b16 %v6935, %v6931
        %v8464 = vpack.c.b16 %v6936, %v6932
        %v8465 = vpack.c.b16 %v6937, %v6933
        %v8466 = vpack.c.b16 %v6938, %v6934
        %v8467 = vpack.c.b16 %v6943, %v6939
        %v8468 = vpack.c.b16 %v6944, %v6940
        %v8469 = vpack.c.b16 %v6945, %v6941
        %v8470 = vpack.c.b16 %v6946, %v6942
        %v8471 = vpack.c.b16 %v6951, %v6947
        %v8472 = vpack.c.b16 %v6952, %v6948
        %v8473 = vpack.c.b16 %v6953, %v6949
        %v8474 = vpack.c.b16 %v6954, %v6950
        %v8475 = vpack.c.b16 %v6959, %v6955
        %v8476 = vpack.c.b16 %v6960, %v6956
        %v8477 = vpack.c.b16 %v6961, %v6957
        %v8478 = vpack.c.b16 %v6962, %v6958
        %v8479 = vpack.c.b16 %v6967, %v6963
        %v8480 = vpack.c.b16 %v6968, %v6964
        %v8481 = vpack.c.b16 %v6969, %v6965
        %v8482 = vpack.c.b16 %v6970, %v6966
        %v8483 = vpack.c.b16 %v6975, %v6971
        %v8484 = vpack.c.b16 %v6976, %v6972
        %v8485 = vpack.c.b16 %v6977, %v6973
        %v8486 = vpack.c.b16 %v6978, %v6974
        %v8487 = vpack.c.b16 %v6983, %v6979
        %v8488 = vpack.c.b16 %v6984, %v6980
        %v8489 = vpack.c.b16 %v6985, %v6981
        %v8490 = vpack.c.b16 %v6986, %v6982
        %v8491 = vpack.c.b16 %v6991, %v6987
        %v8492 = vpack.c.b16 %v6992, %v6988
        %v8493 = vpack.c.b16 %v6993, %v6989
        %v8494 = vpack.c.b16 %v6994, %v6990
        %v8495 = vpack.c.b16 %v6999, %v6995
        %v8496 = vpack.c.b16 %v7000, %v6996
        %v8497 = vpack.c.b16 %v7001, %v6997
        %v8498 = vpack.c.b16 %v7002, %v6998
        %v8499 = vpack.c.b16 %v7007, %v7003
        %v8500 = vpack.c.b16 %v7008, %v7004
        %v8501 = vpack.c.b16 %v7009, %v7005
        %v8502 = vpack.c.b16 %v7010, %v7006
        %v8503 = vpack.c.b16 %v7015, %v7011
        %v8504 = vpack.c.b16 %v7016, %v7012
        %v8505 = vpack.c.b16 %v7017, %v7013
        %v8506 = vpack.c.b16 %v7018, %v7014
        %v8507 = vpack.c.b16 %v7023, %v7019
        %v8508 = vpack.c.b16 %v7024, %v7020
        %v8509 = vpack.c.b16 %v7025, %v7021
        %v8510 = vpack.c.b16 %v7026, %v7022
        %v8511 = vpack.c.b16 %v7031, %v7027
        %v8512 = vpack.c.b16 %v7032, %v7028
        %v8513 = vpack.c.b16 %v7033, %v7029
        %v8514 = vpack.c.b16 %v7034, %v7030
        %v8515 = vpack.c.b16 %v7039, %v7035
        %v8516 = vpack.c.b16 %v7040, %v7036
        %v8517 = vpack.c.b16 %v7041, %v7037
        %v8518 = vpack.c.b16 %v7042, %v7038
        %v8519 = vpack.c.b16 %v7047, %v7043
        %v8520 = vpack.c.b16 %v7048, %v7044
        %v8521 = vpack.c.b16 %v7049, %v7045
        %v8522 = vpack.c.b16 %v7050, %v7046
        %v8523 = vpack.c.b16 %v7055, %v7051
        %v8524 = vpack.c.b16 %v7056, %v7052
        %v8525 = vpack.c.b16 %v7057, %v7053
        %v8526 = vpack.c.b16 %v7058, %v7054
        %v8527 = vpack.c.b16 %v7063, %v7059
        %v8528 = vpack.c.b16 %v7064, %v7060
        %v8529 = vpack.c.b16 %v7065, %v7061
        %v8530 = vpack.c.b16 %v7066, %v7062
        %v8531 = vpack.c.b16 %v7071, %v7067
        %v8532 = vpack.c.b16 %v7072, %v7068
        %v8533 = vpack.c.b16 %v7073, %v7069
        %v8534 = vpack.c.b16 %v7074, %v7070
        %v8535 = vpack.c.b16 %v7079, %v7075
        %v8536 = vpack.c.b16 %v7080, %v7076
        %v8537 = vpack.c.b16 %v7081, %v7077
        %v8538 = vpack.c.b16 %v7082, %v7078
        %v8539 = vpack.c.b16 %v7087, %v7083
        %v8540 = vpack.c.b16 %v7088, %v7084
        %v8541 = vpack.c.b16 %v7089, %v7085
        %v8542 = vpack.c.b16 %v7090, %v7086
        %v8543 = vpack.c.b16 %v7095, %v7091
        %v8544 = vpack.c.b16 %v7096, %v7092
        %v8545 = vpack.c.b16 %v7097, %v7093
        %v8546 = vpack.c.b16 %v7098, %v7094
        %v8547 = vpack.c.b16 %v7103, %v7099
        %v8548 = vpack.c.b16 %v7104, %v7100
        %v8549 = vpack.c.b16 %v7105, %v7101
        %v8550 = vpack.c.b16 %v7106, %v7102
        %v8551 = vpack.c.b16 %v7111, %v7107
        %v8552 = vpack.c.b16 %v7112, %v7108
        %v8553 = vpack.c.b16 %v7113, %v7109
        %v8554 = vpack.c.b16 %v7114, %v7110
        %v8555 = vpack.c.b16 %v7119, %v7115
        %v8556 = vpack.c.b16 %v7120, %v7116
        %v8557 = vpack.c.b16 %v7121, %v7117
        %v8558 = vpack.c.b16 %v7122, %v7118
        %v8559 = vpack.c.b16 %v7127, %v7123
        %v8560 = vpack.c.b16 %v7128, %v7124
        %v8561 = vpack.c.b16 %v7129, %v7125
        %v8562 = vpack.c.b16 %v7130, %v7126
        %v8563 = vpack.c.b16 %v7135, %v7131
        %v8564 = vpack.c.b16 %v7136, %v7132
        %v8565 = vpack.c.b16 %v7137, %v7133
        %v8566 = vpack.c.b16 %v7138, %v7134
        %v8567 = vpack.c.b16 %v7143, %v7139
        %v8568 = vpack.c.b16 %v7144, %v7140
        %v8569 = vpack.c.b16 %v7145, %v7141
        %v8570 = vpack.c.b16 %v7146, %v7142
        %v8571 = vpack.c.b16 %v7151, %v7147
        %v8572 = vpack.c.b16 %v7152, %v7148
        %v8573 = vpack.c.b16 %v7153, %v7149
        %v8574 = vpack.c.b16 %v7154, %v7150
        %v8575 = vpack.c.b16 %v7159, %v7155
        %v8576 = vpack.c.b16 %v7160, %v7156
        %v8577 = vpack.c.b16 %v7161, %v7157
        %v8578 = vpack.c.b16 %v7162, %v7158
        %v8579 = vpack.c.b16 %v7167, %v7163
        %v8580 = vpack.c.b16 %v7168, %v7164
        %v8581 = vpack.c.b16 %v7169, %v7165
        %v8582 = vpack.c.b16 %v7170, %v7166
        %v8583 = vpack.c.b16 %v7175, %v7171
        %v8584 = vpack.c.b16 %v7176, %v7172
        %v8585 = vpack.c.b16 %v7177, %v7173
        %v8586 = vpack.c.b16 %v7178, %v7174
        %v8587 = vpack.c.b16 %v7183, %v7179
        %v8588 = vpack.c.b16 %v7184, %v7180
        %v8589 = vpack.c.b16 %v7185, %v7181
        %v8590 = vpack.c.b16 %v7186, %v7182
        %v8591 = vpack.c.b16 %v7191, %v7187
        %v8592 = vpack.c.b16 %v7192, %v7188
        %v8593 = vpack.c.b16 %v7193, %v7189
        %v8594 = vpack.c.b16 %v7194, %v7190
        %v8595 = vpack.c.b16 %v7199, %v7195
        %v8596 = vpack.c.b16 %v7200, %v7196
        %v8597 = vpack.c.b16 %v7201, %v7197
        %v8598 = vpack.c.b16 %v7202, %v7198
        %v8599 = vpack.c.b16 %v7207, %v7203
        %v8600 = vpack.c.b16 %v7208, %v7204
        %v8601 = vpack.c.b16 %v7209, %v7205
        %v8602 = vpack.c.b16 %v7210, %v7206
        %v8603 = vpack.c.b16 %v7215, %v7211
        %v8604 = vpack.c.b16 %v7216, %v7212
        %v8605 = vpack.c.b16 %v7217, %v7213
        %v8606 = vpack.c.b16 %v7218, %v7214
        %v8607 = vpack.c.b16 %v7223, %v7219
        %v8608 = vpack.c.b16 %v7224, %v7220
        %v8609 = vpack.c.b16 %v7225, %v7221
        %v8610 = vpack.c.b16 %v7226, %v7222
        %v8611 = vpack.c.b16 %v7231, %v7227
        %v8612 = vpack.c.b16 %v7232, %v7228
        %v8613 = vpack.c.b16 %v7233, %v7229
        %v8614 = vpack.c.b16 %v7234, %v7230
        %v8615 = vpack.c.b16 %v7239, %v7235
        %v8616 = vpack.c.b16 %v7240, %v7236
        %v8617 = vpack.c.b16 %v7241, %v7237
        %v8618 = vpack.c.b16 %v7242, %v7238
        %v8619 = vpack.c.b16 %v7247, %v7243
        %v8620 = vpack.c.b16 %v7248, %v7244
        %v8621 = vpack.c.b16 %v7249, %v7245
        %v8622 = vpack.c.b16 %v7250, %v7246
        %v8623 = vpack.c.b16 %v7255, %v7251
        %v8624 = vpack.c.b16 %v7256, %v7252
        %v8625 = vpack.c.b16 %v7257, %v7253
        %v8626 = vpack.c.b16 %v7258, %v7254
        %v8627 = vpack.c.b16 %v7263, %v7259
        %v8628 = vpack.c.b16 %v7264, %v7260
        %v8629 = vpack.c.b16 %v7265, %v7261
        %v8630 = vpack.c.b16 %v7266, %v7262
        %v8631 = vpack.c.b16 %v7271, %v7267
        %v8632 = vpack.c.b16 %v7272, %v7268
        %v8633 = vpack.c.b16 %v7273, %v7269
        %v8634 = vpack.c.b16 %v7274, %v7270
        %v8635 = vpack.c.b16 %v7279, %v7275
        %v8636 = vpack.c.b16 %v7280, %v7276
        %v8637 = vpack.c.b16 %v7281, %v7277
        %v8638 = vpack.c.b16 %v7282, %v7278
        %v8639 = vpack.c.b16 %v7287, %v7283
        %v8640 = vpack.c.b16 %v7288, %v7284
        %v8641 = vpack.c.b16 %v7289, %v7285
        %v8642 = vpack.c.b16 %v7290, %v7286
        %v8643 = vpack.c.b16 %v7295, %v7291
        %v8644 = vpack.c.b16 %v7296, %v7292
        %v8645 = vpack.c.b16 %v7297, %v7293
        %v8646 = vpack.c.b16 %v7298, %v7294
        %v8647 = vpack.c.b16 %v7303, %v7299
        %v8648 = vpack.c.b16 %v7304, %v7300
        %v8649 = vpack.c.b16 %v7305, %v7301
        %v8650 = vpack.c.b16 %v7306, %v7302
        %v8651 = vpack.c.b16 %v7311, %v7307
        %v8652 = vpack.c.b16 %v7312, %v7308
        %v8653 = vpack.c.b16 %v7313, %v7309
        %v8654 = vpack.c.b16 %v7314, %v7310
        %v8655 = vpack.c.b16 %v7319, %v7315
        %v8656 = vpack.c.b16 %v7320, %v7316
        %v8657 = vpack.c.b16 %v7321, %v7317
        %v8658 = vpack.c.b16 %v7322, %v7318
        %v8659 = vpack.c.b16 %v7327, %v7323
        %v8660 = vpack.c.b16 %v7328, %v7324
        %v8661 = vpack.c.b16 %v7329, %v7325
        %v8662 = vpack.c.b16 %v7330, %v7326
        %v8663 = vpack.c.b16 %v7335, %v7331
        %v8664 = vpack.c.b16 %v7336, %v7332
        %v8665 = vpack.c.b16 %v7337, %v7333
        %v8666 = vpack.c.b16 %v7338, %v7334
        %v8667 = vpack.c.b16 %v7343, %v7339
        %v8668 = vpack.c.b16 %v7344, %v7340
        %v8669 = vpack.c.b16 %v7345, %v7341
        %v8670 = vpack.c.b16 %v7346, %v7342
        %v8671 = vpack.c.b16 %v7351, %v7347
        %v8672 = vpack.c.b16 %v7352, %v7348
        %v8673 = vpack.c.b16 %v7353, %v7349
        %v8674 = vpack.c.b16 %v7354, %v7350
        %v8675 = vpack.c.b16 %v7359, %v7355
        %v8676 = vpack.c.b16 %v7360, %v7356
        %v8677 = vpack.c.b16 %v7361, %v7357
        %v8678 = vpack.c.b16 %v7362, %v7358
        %v8679 = vpack.c.b16 %v7367, %v7363
        %v8680 = vpack.c.b16 %v7368, %v7364
        %v8681 = vpack.c.b16 %v7369, %v7365
        %v8682 = vpack.c.b16 %v7370, %v7366
        %v8683 = vpack.c.b16 %v7375, %v7371
        %v8684 = vpack.c.b16 %v7376, %v7372
        %v8685 = vpack.c.b16 %v7377, %v7373
        %v8686 = vpack.c.b16 %v7378, %v7374
        %v8687 = vpack.c.b16 %v7383, %v7379
        %v8688 = vpack.c.b16 %v7384, %v7380
        %v8689 = vpack.c.b16 %v7385, %v7381
        %v8690 = vpack.c.b16 %v7386, %v7382
        %v8691 = vpack.c.b16 %v7391, %v7387
        %v8692 = vpack.c.b16 %v7392, %v7388
        %v8693 = vpack.c.b16 %v7393, %v7389
        %v8694 = vpack.c.b16 %v7394, %v7390
        %v8695 = vpack.c.b16 %v7399, %v7395
        %v8696 = vpack.c.b16 %v7400, %v7396
        %v8697 = vpack.c.b16 %v7401, %v7397
        %v8698 = vpack.c.b16 %v7402, %v7398
        %v8699 = vpack.c.b16 %v7407, %v7403
        %v8700 = vpack.c.b16 %v7408, %v7404
        %v8701 = vpack.c.b16 %v7409, %v7405
        %v8702 = vpack.c.b16 %v7410, %v7406
        %v8703 = vpack.c.b16 %v7415, %v7411
        %v8704 = vpack.c.b16 %v7416, %v7412
        %v8705 = vpack.c.b16 %v7417, %v7413
        %v8706 = vpack.c.b16 %v7418, %v7414
        %v8707 = vpack.c.b16 %v7423, %v7419
        %v8708 = vpack.c.b16 %v7424, %v7420
        %v8709 = vpack.c.b16 %v7425, %v7421
        %v8710 = vpack.c.b16 %v7426, %v7422
        %v8711 = vpack.c.b16 %v7431, %v7427
        %v8712 = vpack.c.b16 %v7432, %v7428
        %v8713 = vpack.c.b16 %v7433, %v7429
        %v8714 = vpack.c.b16 %v7434, %v7430
        %v8715 = vpack.c.b16 %v7439, %v7435
        %v8716 = vpack.c.b16 %v7440, %v7436
        %v8717 = vpack.c.b16 %v7441, %v7437
        %v8718 = vpack.c.b16 %v7442, %v7438
        %v8719 = vpack.c.b16 %v7447, %v7443
        %v8720 = vpack.c.b16 %v7448, %v7444
        %v8721 = vpack.c.b16 %v7449, %v7445
        %v8722 = vpack.c.b16 %v7450, %v7446
        %v8723 = vpack.c.b16 %v7455, %v7451
        %v8724 = vpack.c.b16 %v7456, %v7452
        %v8725 = vpack.c.b16 %v7457, %v7453
        %v8726 = vpack.c.b16 %v7458, %v7454
        %v8727 = vpack.c.b16 %v7463, %v7459
        %v8728 = vpack.c.b16 %v7464, %v7460
        %v8729 = vpack.c.b16 %v7465, %v7461
        %v8730 = vpack.c.b16 %v7466, %v7462
        %v8731 = vpack.c.b16 %v7471, %v7467
        %v8732 = vpack.c.b16 %v7472, %v7468
        %v8733 = vpack.c.b16 %v7473, %v7469
        %v8734 = vpack.c.b16 %v7474, %v7470
        %v8735 = vpack.c.b16 %v7479, %v7475
        %v8736 = vpack.c.b16 %v7480, %v7476
        %v8737 = vpack.c.b16 %v7481, %v7477
        %v8738 = vpack.c.b16 %v7482, %v7478
        %v8739 = vpack.c.b16 %v7487, %v7483
        %v8740 = vpack.c.b16 %v7488, %v7484
        %v8741 = vpack.c.b16 %v7489, %v7485
        %v8742 = vpack.c.b16 %v7490, %v7486
        %v8743 = vpack.c.b16 %v7495, %v7491
        %v8744 = vpack.c.b16 %v7496, %v7492
        %v8745 = vpack.c.b16 %v7497, %v7493
        %v8746 = vpack.c.b16 %v7498, %v7494
        %v8747 = vpack.c.b16 %v7503, %v7499
        %v8748 = vpack.c.b16 %v7504, %v7500
        %v8749 = vpack.c.b16 %v7505, %v7501
        %v8750 = vpack.c.b16 %v7506, %v7502
        %v8751 = vpack.c.b16 %v7511, %v7507
        %v8752 = vpack.c.b16 %v7512, %v7508
        %v8753 = vpack.c.b16 %v7513, %v7509
        %v8754 = vpack.c.b16 %v7514, %v7510
        %v8755 = vpack.c.b16 %v7519, %v7515
        %v8756 = vpack.c.b16 %v7520, %v7516
        %v8757 = vpack.c.b16 %v7521, %v7517
        %v8758 = vpack.c.b16 %v7522, %v7518
        %v8759 = vpack.c.b16 %v7527, %v7523
        %v8760 = vpack.c.b16 %v7528, %v7524
        %v8761 = vpack.c.b16 %v7529, %v7525
        %v8762 = vpack.c.b16 %v7530, %v7526
        %v8763 = vpack.c.b16 %v7535, %v7531
        %v8764 = vpack.c.b16 %v7536, %v7532
        %v8765 = vpack.c.b16 %v7537, %v7533
        %v8766 = vpack.c.b16 %v7538, %v7534
        %v8767 = vpack.c.b16 %v7543, %v7539
        %v8768 = vpack.c.b16 %v7544, %v7540
        %v8769 = vpack.c.b16 %v7545, %v7541
        %v8770 = vpack.c.b16 %v7546, %v7542
        %v8771 = vpack.c.b16 %v7551, %v7547
        %v8772 = vpack.c.b16 %v7552, %v7548
        %v8773 = vpack.c.b16 %v7553, %v7549
        %v8774 = vpack.c.b16 %v7554, %v7550
        %v8775 = vpack.c.b16 %v7559, %v7555
        %v8776 = vpack.c.b16 %v7560, %v7556
        %v8777 = vpack.c.b16 %v7561, %v7557
        %v8778 = vpack.c.b16 %v7562, %v7558
        %v8779 = vpack.c.b16 %v7567, %v7563
        %v8780 = vpack.c.b16 %v7568, %v7564
        %v8781 = vpack.c.b16 %v7569, %v7565
        %v8782 = vpack.c.b16 %v7570, %v7566
        %v8783 = vpack.c.b16 %v7575, %v7571
        %v8784 = vpack.c.b16 %v7576, %v7572
        %v8785 = vpack.c.b16 %v7577, %v7573
        %v8786 = vpack.c.b16 %v7578, %v7574
        %v8787 = vpack.c.b16 %v7583, %v7579
        %v8788 = vpack.c.b16 %v7584, %v7580
        %v8789 = vpack.c.b16 %v7585, %v7581
        %v8790 = vpack.c.b16 %v7586, %v7582
        %v8791 = vpack.c.b16 %v7591, %v7587
        %v8792 = vpack.c.b16 %v7592, %v7588
        %v8793 = vpack.c.b16 %v7593, %v7589
        %v8794 = vpack.c.b16 %v7594, %v7590
        %v8795 = vpack.c.b16 %v7599, %v7595
        %v8796 = vpack.c.b16 %v7600, %v7596
        %v8797 = vpack.c.b16 %v7601, %v7597
        %v8798 = vpack.c.b16 %v7602, %v7598
        %v8799 = vpack.c.b16 %v7607, %v7603
        %v8800 = vpack.c.b16 %v7608, %v7604
        %v8801 = vpack.c.b16 %v7609, %v7605
        %v8802 = vpack.c.b16 %v7610, %v7606
        %v8803 = vpack.c.b16 %v7615, %v7611
        %v8804 = vpack.c.b16 %v7616, %v7612
        %v8805 = vpack.c.b16 %v7617, %v7613
        %v8806 = vpack.c.b16 %v7618, %v7614
        %v8807 = vpack.c.b16 %v7623, %v7619
        %v8808 = vpack.c.b16 %v7624, %v7620
        %v8809 = vpack.c.b16 %v7625, %v7621
        %v8810 = vpack.c.b16 %v7626, %v7622
        %v8811 = vpack.c.b16 %v7631, %v7627
        %v8812 = vpack.c.b16 %v7632, %v7628
        %v8813 = vpack.c.b16 %v7633, %v7629
        %v8814 = vpack.c.b16 %v7634, %v7630
        %v8815 = vpack.c.b16 %v7639, %v7635
        %v8816 = vpack.c.b16 %v7640, %v7636
        %v8817 = vpack.c.b16 %v7641, %v7637
        %v8818 = vpack.c.b16 %v7642, %v7638
        %v8819 = vpack.c.b16 %v7647, %v7643
        %v8820 = vpack.c.b16 %v7648, %v7644
        %v8821 = vpack.c.b16 %v7649, %v7645
        %v8822 = vpack.c.b16 %v7650, %v7646
        %v8823 = vpack.c.b16 %v7655, %v7651
        %v8824 = vpack.c.b16 %v7656, %v7652
        %v8825 = vpack.c.b16 %v7657, %v7653
        %v8826 = vpack.c.b16 %v7658, %v7654
        %v8827 = vpack.c.b16 %v7663, %v7659
        %v8828 = vpack.c.b16 %v7664, %v7660
        %v8829 = vpack.c.b16 %v7665, %v7661
        %v8830 = vpack.c.b16 %v7666, %v7662
        %v8831 = vpack.c.b16 %v7671, %v7667
        %v8832 = vpack.c.b16 %v7672, %v7668
        %v8833 = vpack.c.b16 %v7673, %v7669
        %v8834 = vpack.c.b16 %v7674, %v7670
        %v8835 = vpack.c.b16 %v7679, %v7675
        %v8836 = vpack.c.b16 %v7680, %v7676
        %v8837 = vpack.c.b16 %v7681, %v7677
        %v8838 = vpack.c.b16 %v7682, %v7678
        %v8839 = vpack.c.b16 %v7687, %v7683
        %v8840 = vpack.c.b16 %v7688, %v7684
        %v8841 = vpack.c.b16 %v7689, %v7685
        %v8842 = vpack.c.b16 %v7690, %v7686
        %v8843 = vpack.c.b16 %v7695, %v7691
        %v8844 = vpack.c.b16 %v7696, %v7692
        %v8845 = vpack.c.b16 %v7697, %v7693
        %v8846 = vpack.c.b16 %v7698, %v7694
        %v8847 = vpack.c.b16 %v7703, %v7699
        %v8848 = vpack.c.b16 %v7704, %v7700
        %v8849 = vpack.c.b16 %v7705, %v7701
        %v8850 = vpack.c.b16 %v7706, %v7702
        %v8851 = vpack.c.b16 %v7711, %v7707
        %v8852 = vpack.c.b16 %v7712, %v7708
        %v8853 = vpack.c.b16 %v7713, %v7709
        %v8854 = vpack.c.b16 %v7714, %v7710
        %v8855 = vpack.c.b16 %v7719, %v7715
        %v8856 = vpack.c.b16 %v7720, %v7716
        %v8857 = vpack.c.b16 %v7721, %v7717
        %v8858 = vpack.c.b16 %v7722, %v7718
        %v8859 = vpack.c.b16 %v7727, %v7723
        %v8860 = vpack.c.b16 %v7728, %v7724
        %v8861 = vpack.c.b16 %v7729, %v7725
        %v8862 = vpack.c.b16 %v7730, %v7726
        %v8863 = vpack.c.b16 %v7735, %v7731
        %v8864 = vpack.c.b16 %v7736, %v7732
        %v8865 = vpack.c.b16 %v7737, %v7733
        %v8866 = vpack.c.b16 %v7738, %v7734
        %v8867 = vpack.c.b16 %v7743, %v7739
        %v8868 = vpack.c.b16 %v7744, %v7740
        %v8869 = vpack.c.b16 %v7745, %v7741
        %v8870 = vpack.c.b16 %v7746, %v7742
        %v8871 = vpack.c.b16 %v7751, %v7747
        %v8872 = vpack.c.b16 %v7752, %v7748
        %v8873 = vpack.c.b16 %v7753, %v7749
        %v8874 = vpack.c.b16 %v7754, %v7750
        %v8875 = vpack.c.b16 %v7759, %v7755
        %v8876 = vpack.c.b16 %v7760, %v7756
        %v8877 = vpack.c.b16 %v7761, %v7757
        %v8878 = vpack.c.b16 %v7762, %v7758
        %v8879 = vpack.c.b16 %v7767, %v7763
        %v8880 = vpack.c.b16 %v7768, %v7764
        %v8881 = vpack.c.b16 %v7769, %v7765
        %v8882 = vpack.c.b16 %v7770, %v7766
        %v8883 = vpack.c.b16 %v7775, %v7771
        %v8884 = vpack.c.b16 %v7776, %v7772
        %v8885 = vpack.c.b16 %v7777, %v7773
        %v8886 = vpack.c.b16 %v7778, %v7774
        %v8887 = vpack.c.b16 %v7783, %v7779
        %v8888 = vpack.c.b16 %v7784, %v7780
        %v8889 = vpack.c.b16 %v7785, %v7781
        %v8890 = vpack.c.b16 %v7786, %v7782
        %v8891 = vpack.c.b16 %v7791, %v7787
        %v8892 = vpack.c.b16 %v7792, %v7788
        %v8893 = vpack.c.b16 %v7793, %v7789
        %v8894 = vpack.c.b16 %v7794, %v7790
        %v8895 = vpack.c.b16 %v7799, %v7795
        %v8896 = vpack.c.b16 %v7800, %v7796
        %v8897 = vpack.c.b16 %v7801, %v7797
        %v8898 = vpack.c.b16 %v7802, %v7798
        %v8899 = vpack.c.b16 %v7807, %v7803
        %v8900 = vpack.c.b16 %v7808, %v7804
        %v8901 = vpack.c.b16 %v7809, %v7805
        %v8902 = vpack.c.b16 %v7810, %v7806
        %v8903 = vpack.c.b16 %v7815, %v7811
        %v8904 = vpack.c.b16 %v7816, %v7812
        %v8905 = vpack.c.b16 %v7817, %v7813
        %v8906 = vpack.c.b16 %v7818, %v7814
        %v8907 = vpack.c.b16 %v7823, %v7819
        %v8908 = vpack.c.b16 %v7824, %v7820
        %v8909 = vpack.c.b16 %v7825, %v7821
        %v8910 = vpack.c.b16 %v7826, %v7822
        %v8911 = vpack.c.b16 %v7831, %v7827
        %v8912 = vpack.c.b16 %v7832, %v7828
        %v8913 = vpack.c.b16 %v7833, %v7829
        %v8914 = vpack.c.b16 %v7834, %v7830
        %v8915 = vpack.c.b16 %v7839, %v7835
        %v8916 = vpack.c.b16 %v7840, %v7836
        %v8917 = vpack.c.b16 %v7841, %v7837
        %v8918 = vpack.c.b16 %v7842, %v7838
        %v8919 = vpack.c.b16 %v7847, %v7843
        %v8920 = vpack.c.b16 %v7848, %v7844
        %v8921 = vpack.c.b16 %v7849, %v7845
        %v8922 = vpack.c.b16 %v7850, %v7846
        %v8923 = vpack.c.b16 %v7855, %v7851
        %v8924 = vpack.c.b16 %v7856, %v7852
        %v8925 = vpack.c.b16 %v7857, %v7853
        %v8926 = vpack.c.b16 %v7858, %v7854
        %v8927 = vpack.c.b16 %v7863, %v7859
        %v8928 = vpack.c.b16 %v7864, %v7860
        %v8929 = vpack.c.b16 %v7865, %v7861
        %v8930 = vpack.c.b16 %v7866, %v7862
        %v8931 = vpack.c.b16 %v7871, %v7867
        %v8932 = vpack.c.b16 %v7872, %v7868
        %v8933 = vpack.c.b16 %v7873, %v7869
        %v8934 = vpack.c.b16 %v7874, %v7870
        %v8935 = vpack.c.b16 %v7879, %v7875
        %v8936 = vpack.c.b16 %v7880, %v7876
        %v8937 = vpack.c.b16 %v7881, %v7877
        %v8938 = vpack.c.b16 %v7882, %v7878
        %v8939 = vpack.c.b16 %v7887, %v7883
        %v8940 = vpack.c.b16 %v7888, %v7884
        %v8941 = vpack.c.b16 %v7889, %v7885
        %v8942 = vpack.c.b16 %v7890, %v7886
        %v8943 = vpack.c.b16 %v7895, %v7891
        %v8944 = vpack.c.b16 %v7896, %v7892
        %v8945 = vpack.c.b16 %v7897, %v7893
        %v8946 = vpack.c.b16 %v7898, %v7894
        %v8947 = vpack.c.b16 %v7903, %v7899
        %v8948 = vpack.c.b16 %v7904, %v7900
        %v8949 = vpack.c.b16 %v7905, %v7901
        %v8950 = vpack.c.b16 %v7906, %v7902
        %v8951 = vpack.c.b16 %v7911, %v7907
        %v8952 = vpack.c.b16 %v7912, %v7908
        %v8953 = vpack.c.b16 %v7913, %v7909
        %v8954 = vpack.c.b16 %v7914, %v7910
        %v8955 = vpack.c.b16 %v7919, %v7915
        %v8956 = vpack.c.b16 %v7920, %v7916
        %v8957 = vpack.c.b16 %v7921, %v7917
        %v8958 = vpack.c.b16 %v7922, %v7918
        %v8959 = vpack.c.b16 %v7927, %v7923
        %v8960 = vpack.c.b16 %v7928, %v7924
        %v8961 = vpack.c.b16 %v7929, %v7925
        %v8962 = vpack.c.b16 %v7930, %v7926
        %v8963 = vpack.c.b16 %v7935, %v7931
        %v8964 = vpack.c.b16 %v7936, %v7932
        %v8965 = vpack.c.b16 %v7937, %v7933
        %v8966 = vpack.c.b16 %v7938, %v7934
        %v8967 = vpack.c.b16 %v7943, %v7939
        %v8968 = vpack.c.b16 %v7944, %v7940
        %v8969 = vpack.c.b16 %v7945, %v7941
        %v8970 = vpack.c.b16 %v7946, %v7942
        %v8971 = vpack.c.b16 %v7951, %v7947
        %v8972 = vpack.c.b16 %v7952, %v7948
        %v8973 = vpack.c.b16 %v7953, %v7949
        %v8974 = vpack.c.b16 %v7954, %v7950
        %v8975 = vpack.c.b16 %v7959, %v7955
        %v8976 = vpack.c.b16 %v7960, %v7956
        %v8977 = vpack.c.b16 %v7961, %v7957
        %v8978 = vpack.c.b16 %v7962, %v7958
        %v8979 = vpack.c.b16 %v7967, %v7963
        %v8980 = vpack.c.b16 %v7968, %v7964
        %v8981 = vpack.c.b16 %v7969, %v7965
        %v8982 = vpack.c.b16 %v7970, %v7966
        %v8983 = vpack.c.b16 %v7975, %v7971
        %v8984 = vpack.c.b16 %v7976, %v7972
        %v8985 = vpack.c.b16 %v7977, %v7973
        %v8986 = vpack.c.b16 %v7978, %v7974
        %v8987 = vpack.c.b16 %v7983, %v7979
        %v8988 = vpack.c.b16 %v7984, %v7980
        %v8989 = vpack.c.b16 %v7985, %v7981
        %v8990 = vpack.c.b16 %v7986, %v7982
        %v8991 = vpack.c.b16 %v7991, %v7987
        %v8992 = vpack.c.b16 %v7992, %v7988
        %v8993 = vpack.c.b16 %v7993, %v7989
        %v8994 = vpack.c.b16 %v7994, %v7990
        %v8995 = vpack.c.b16 %v7999, %v7995
        %v8996 = vpack.c.b16 %v8000, %v7996
        %v8997 = vpack.c.b16 %v8001, %v7997
        %v8998 = vpack.c.b16 %v8002, %v7998
        %v8999 = vpack.c.b16 %v8007, %v8003
        %v9000 = vpack.c.b16 %v8008, %v8004
        %v9001 = vpack.c.b16 %v8009, %v8005
        %v9002 = vpack.c.b16 %v8010, %v8006
        %v9003 = vpack.c.b16 %v8015, %v8011
        %v9004 = vpack.c.b16 %v8016, %v8012
        %v9005 = vpack.c.b16 %v8017, %v8013
        %v9006 = vpack.c.b16 %v8018, %v8014
        %v9007 = vpack.c.b16 %v8023, %v8019
        %v9008 = vpack.c.b16 %v8024, %v8020
        %v9009 = vpack.c.b16 %v8025, %v8021
        %v9010 = vpack.c.b16 %v8026, %v8022
        %v9011 = vpack.c.b16 %v8031, %v8027
        %v9012 = vpack.c.b16 %v8032, %v8028
        %v9013 = vpack.c.b16 %v8033, %v8029
        %v9014 = vpack.c.b16 %v8034, %v8030
        %v9015 = vpack.c.b16 %v8039, %v8035
        %v9016 = vpack.c.b16 %v8040, %v8036
        %v9017 = vpack.c.b16 %v8041, %v8037
        %v9018 = vpack.c.b16 %v8042, %v8038
        %v9019 = vpack.c.b16 %v8047, %v8043
        %v9020 = vpack.c.b16 %v8048, %v8044
        %v9021 = vpack.c.b16 %v8049, %v8045
        %v9022 = vpack.c.b16 %v8050, %v8046
        %v9023 = vpack.c.b16 %v8055, %v8051
        %v9024 = vpack.c.b16 %v8056, %v8052
        %v9025 = vpack.c.b16 %v8057, %v8053
        %v9026 = vpack.c.b16 %v8058, %v8054
        %v9027 = vpack.c.b16 %v8063, %v8059
        %v9028 = vpack.c.b16 %v8064, %v8060
        %v9029 = vpack.c.b16 %v8065, %v8061
        %v9030 = vpack.c.b16 %v8066, %v8062
        %v9031 = vpack.c.b16 %v8071, %v8067
        %v9032 = vpack.c.b16 %v8072, %v8068
        %v9033 = vpack.c.b16 %v8073, %v8069
        %v9034 = vpack.c.b16 %v8074, %v8070
        %v9035 = vpack.c.b16 %v8079, %v8075
        %v9036 = vpack.c.b16 %v8080, %v8076
        %v9037 = vpack.c.b16 %v8081, %v8077
        %v9038 = vpack.c.b16 %v8082, %v8078
        %v9039 = vpack.c.b16 %v8087, %v8083
        %v9040 = vpack.c.b16 %v8088, %v8084
        %v9041 = vpack.c.b16 %v8089, %v8085
        %v9042 = vpack.c.b16 %v8090, %v8086
        %v9043 = vpack.c.b16 %v8095, %v8091
        %v9044 = vpack.c.b16 %v8096, %v8092
        %v9045 = vpack.c.b16 %v8097, %v8093
        %v9046 = vpack.c.b16 %v8098, %v8094
        %v9047 = vpack.c.b16 %v8103, %v8099
        %v9048 = vpack.c.b16 %v8104, %v8100
        %v9049 = vpack.c.b16 %v8105, %v8101
        %v9050 = vpack.c.b16 %v8106, %v8102
        %v9051 = vpack.c.b16 %v8111, %v8107
        %v9052 = vpack.c.b16 %v8112, %v8108
        %v9053 = vpack.c.b16 %v8113, %v8109
        %v9054 = vpack.c.b16 %v8114, %v8110
        %v9055 = vpack.c.b16 %v8119, %v8115
        %v9056 = vpack.c.b16 %v8120, %v8116
        %v9057 = vpack.c.b16 %v8121, %v8117
        %v9058 = vpack.c.b16 %v8122, %v8118
        %v9059 = vpack.c.b16 %v8127, %v8123
        %v9060 = vpack.c.b16 %v8128, %v8124
        %v9061 = vpack.c.b16 %v8129, %v8125
        %v9062 = vpack.c.b16 %v8130, %v8126
        %v9063 = vpack.c.b16 %v8135, %v8131
        %v9064 = vpack.c.b16 %v8136, %v8132
        %v9065 = vpack.c.b16 %v8137, %v8133
        %v9066 = vpack.c.b16 %v8138, %v8134
        %v9067 = vpack.c.b16 %v8143, %v8139
        %v9068 = vpack.c.b16 %v8144, %v8140
        %v9069 = vpack.c.b16 %v8145, %v8141
        %v9070 = vpack.c.b16 %v8146, %v8142
        %v9071 = vpack.c.b16 %v8151, %v8147
        %v9072 = vpack.c.b16 %v8152, %v8148
        %v9073 = vpack.c.b16 %v8153, %v8149
        %v9074 = vpack.c.b16 %v8154, %v8150
        %v9075 = vpack.c.b16 %v8159, %v8155
        %v9076 = vpack.c.b16 %v8160, %v8156
        %v9077 = vpack.c.b16 %v8161, %v8157
        %v9078 = vpack.c.b16 %v8162, %v8158
        %v9079 = vpack.c.b16 %v8167, %v8163
        %v9080 = vpack.c.b16 %v8168, %v8164
        %v9081 = vpack.c.b16 %v8169, %v8165
        %v9082 = vpack.c.b16 %v8170, %v8166
        %v9083 = vpack.c.b16 %v8175, %v8171
        %v9084 = vpack.c.b16 %v8176, %v8172
        %v9085 = vpack.c.b16 %v8177, %v8173
        %v9086 = vpack.c.b16 %v8178, %v8174
        %v9087 = vpack.c.b16 %v8183, %v8179
        %v9088 = vpack.c.b16 %v8184, %v8180
        %v9089 = vpack.c.b16 %v8185, %v8181
        %v9090 = vpack.c.b16 %v8186, %v8182
        %v9091 = vpack.c.b16 %v8191, %v8187
        %v9092 = vpack.c.b16 %v8192, %v8188
        %v9093 = vpack.c.b16 %v8193, %v8189
        %v9094 = vpack.c.b16 %v8194, %v8190
        %v9095 = vpack.c.b16 %v8199, %v8195
        %v9096 = vpack.c.b16 %v8200, %v8196
        %v9097 = vpack.c.b16 %v8201, %v8197
        %v9098 = vpack.c.b16 %v8202, %v8198
        %v9099 = vpack.c.b16 %v8207, %v8203
        %v9100 = vpack.c.b16 %v8208, %v8204
        %v9101 = vpack.c.b16 %v8209, %v8205
        %v9102 = vpack.c.b16 %v8210, %v8206
        %v9103 = vpack.c.b16 %v8215, %v8211
        %v9104 = vpack.c.b16 %v8216, %v8212
        %v9105 = vpack.c.b16 %v8217, %v8213
        %v9106 = vpack.c.b16 %v8218, %v8214
        %v9107 = vpack.c.b16 %v8223, %v8219
        %v9108 = vpack.c.b16 %v8224, %v8220
        %v9109 = vpack.c.b16 %v8225, %v8221
        %v9110 = vpack.c.b16 %v8226, %v8222
        %v9111 = vpack.c.b16 %v8231, %v8227
        %v9112 = vpack.c.b16 %v8232, %v8228
        %v9113 = vpack.c.b16 %v8233, %v8229
        %v9114 = vpack.c.b16 %v8234, %v8230
        %v9115 = vpack.c.b16 %v8239, %v8235
        %v9116 = vpack.c.b16 %v8240, %v8236
        %v9117 = vpack.c.b16 %v8241, %v8237
        %v9118 = vpack.c.b16 %v8242, %v8238
        %v9119 = vpack.c.b16 %v8247, %v8243
        %v9120 = vpack.c.b16 %v8248, %v8244
        %v9121 = vpack.c.b16 %v8249, %v8245
        %v9122 = vpack.c.b16 %v8250, %v8246
        %v9123 = vpack.c.b16 %v8255, %v8251
        %v9124 = vpack.c.b16 %v8256, %v8252
        %v9125 = vpack.c.b16 %v8257, %v8253
        %v9126 = vpack.c.b16 %v8258, %v8254
        %v9127 = vpack.c.b16 %v8263, %v8259
        %v9128 = vpack.c.b16 %v8264, %v8260
        %v9129 = vpack.c.b16 %v8265, %v8261
        %v9130 = vpack.c.b16 %v8266, %v8262
        %v9131 = vpack.c.b16 %v8271, %v8267
        %v9132 = vpack.c.b16 %v8272, %v8268
        %v9133 = vpack.c.b16 %v8273, %v8269
        %v9134 = vpack.c.b16 %v8274, %v8270
        %v9135 = vpack.c.b16 %v8279, %v8275
        %v9136 = vpack.c.b16 %v8280, %v8276
        %v9137 = vpack.c.b16 %v8281, %v8277
        %v9138 = vpack.c.b16 %v8282, %v8278
        %v9139 = vpack.c.b16 %v8287, %v8283
        %v9140 = vpack.c.b16 %v8288, %v8284
        %v9141 = vpack.c.b16 %v8289, %v8285
        %v9142 = vpack.c.b16 %v8290, %v8286
        %v9143 = vpack.c.b16 %v8295, %v8291
        %v9144 = vpack.c.b16 %v8296, %v8292
        %v9145 = vpack.c.b16 %v8297, %v8293
        %v9146 = vpack.c.b16 %v8298, %v8294
        %v9147 = vpack.c.b16 %v8303, %v8299
        %v9148 = vpack.c.b16 %v8304, %v8300
        %v9149 = vpack.c.b16 %v8305, %v8301
        %v9150 = vpack.c.b16 %v8306, %v8302
        %v9151 = vpack.c.b16 %v8311, %v8307
        %v9152 = vpack.c.b16 %v8312, %v8308
        %v9153 = vpack.c.b16 %v8313, %v8309
        %v9154 = vpack.c.b16 %v8314, %v8310
        %v9155 = vpack.c.b16 %v8319, %v8315
        %v9156 = vpack.c.b16 %v8320, %v8316
        %v9157 = vpack.c.b16 %v8321, %v8317
        %v9158 = vpack.c.b16 %v8322, %v8318
        %v9159 = vpack.c.b16 %v8327, %v8323
        %v9160 = vpack.c.b16 %v8328, %v8324
        %v9161 = vpack.c.b16 %v8329, %v8325
        %v9162 = vpack.c.b16 %v8330, %v8326
        %v9163 = vpack.c.b16 %v8335, %v8331
        %v9164 = vpack.c.b16 %v8336, %v8332
        %v9165 = vpack.c.b16 %v8337, %v8333
        %v9166 = vpack.c.b16 %v8338, %v8334
        %v9167 = vpack.c.b16 %v8343, %v8339
        %v9168 = vpack.c.b16 %v8344, %v8340
        %v9169 = vpack.c.b16 %v8345, %v8341
        %v9170 = vpack.c.b16 %v8346, %v8342
        %v9171 = vpack.c.b16 %v8351, %v8347
        %v9172 = vpack.c.b16 %v8352, %v8348
        %v9173 = vpack.c.b16 %v8353, %v8349
        %v9174 = vpack.c.b16 %v8354, %v8350
        %v9175 = vpack.c.b16 %v8359, %v8355
        %v9176 = vpack.c.b16 %v8360, %v8356
        %v9177 = vpack.c.b16 %v8361, %v8357
        %v9178 = vpack.c.b16 %v8362, %v8358
        %v9179 = vpack.c.b16 %v8367, %v8363
        %v9180 = vpack.c.b16 %v8368, %v8364
        %v9181 = vpack.c.b16 %v8369, %v8365
        %v9182 = vpack.c.b16 %v8370, %v8366
        %v9183 = vpack.c.b16 %v8375, %v8371
        %v9184 = vpack.c.b16 %v8376, %v8372
        %v9185 = vpack.c.b16 %v8377, %v8373
        %v9186 = vpack.c.b16 %v8378, %v8374
        %v9187 = vpack.c.b16 %v8383, %v8379
        %v9188 = vpack.c.b16 %v8384, %v8380
        %v9189 = vpack.c.b16 %v8385, %v8381
        %v9190 = vpack.c.b16 %v8386, %v8382
        %v9191 = vpack.c.b16 %v8391, %v8387
        %v9192 = vpack.c.b16 %v8392, %v8388
        %v9193 = vpack.c.b16 %v8393, %v8389
        %v9194 = vpack.c.b16 %v8394, %v8390
        %v9996 = vperm.slane %v5994, 0
        %v9997 = vperm.slane %v5994, 1
        %v9998 = vperm.slane %v5994, 2
        %v9999 = vperm.slane %v5994, 3
        %10004 = vmatpush.bf16.msra.mxu0 %v8423
        %10005 = vmatpush.bf16.msra.mxu0 %v8419
        %10006 = vmatpush.bf16.msra.mxu0 %v8415
        %10007 = vmatpush.bf16.msra.mxu0 %v8411
        %10008 = vmatpush.bf16.msra.mxu0 %v8407
        %10009 = vmatpush.bf16.msra.mxu0 %v8403
        %10010 = vmatpush.bf16.msra.mxu0 %v8399
        %10011 = vmatpush.bf16.msra.mxu0 %v8395
        %10012 = vmatmul.bf16.gmra.mxu0 %v5169
        %v10013 = vpop.f32.mrf.mxu0
        %v10014 = vadd.f32 %v9996, %v10013
        %v10015 = vpop.f32.mrf.mxu0
        %10016 = vdwg.mxu0
        %10017 = vmatpush.bf16.msra.mxu0 %v8455
        %10018 = vmatpush.bf16.msra.mxu0 %v8451
        %10019 = vmatpush.bf16.msra.mxu0 %v8447
        %10020 = vmatpush.bf16.msra.mxu0 %v8443
        %10021 = vmatpush.bf16.msra.mxu0 %v8439
        %10022 = vmatpush.bf16.msra.mxu0 %v8435
        %10023 = vmatpush.bf16.msra.mxu0 %v8431
        %10024 = vmatpush.bf16.msra.mxu0 %v8427
        %10025 = vmatmul.bf16.gmra.mxu0 %v5170
        %v10026 = vpop.f32.mrf.mxu0
        %v10027 = vadd.f32 %v10014, %v10026
        %v10028 = vpop.f32.mrf.mxu0
        %10029 = vdwg.mxu0
        %10030 = vmatpush.bf16.msra.mxu0 %v8487
        %10031 = vmatpush.bf16.msra.mxu0 %v8483
        %10032 = vmatpush.bf16.msra.mxu0 %v8479
        %10033 = vmatpush.bf16.msra.mxu0 %v8475
        %10034 = vmatpush.bf16.msra.mxu0 %v8471
        %10035 = vmatpush.bf16.msra.mxu0 %v8467
        %10036 = vmatpush.bf16.msra.mxu0 %v8463
        %10037 = vmatpush.bf16.msra.mxu0 %v8459
        %10038 = vmatmul.bf16.gmra.mxu0 %v5171
        %v10039 = vpop.f32.mrf.mxu0
        %v10040 = vadd.f32 %v10027, %v10039
        %v10041 = vpop.f32.mrf.mxu0
        %10042 = vdwg.mxu0
        %10043 = vmatpush.bf16.msra.mxu0 %v8519
        %10044 = vmatpush.bf16.msra.mxu0 %v8515
        %10045 = vmatpush.bf16.msra.mxu0 %v8511
        %10046 = vmatpush.bf16.msra.mxu0 %v8507
        %10047 = vmatpush.bf16.msra.mxu0 %v8503
        %10048 = vmatpush.bf16.msra.mxu0 %v8499
        %10049 = vmatpush.bf16.msra.mxu0 %v8495
        %10050 = vmatpush.bf16.msra.mxu0 %v8491
        %10051 = vmatmul.bf16.gmra.mxu0 %v5172
        %v10052 = vpop.f32.mrf.mxu0
        %v10053 = vadd.f32 %v10040, %v10052
        %v10054 = vpop.f32.mrf.mxu0
        %10055 = vdwg.mxu0
        %10056 = vmatpush.bf16.msra.mxu0 %v8551
        %10057 = vmatpush.bf16.msra.mxu0 %v8547
        %10058 = vmatpush.bf16.msra.mxu0 %v8543
        %10059 = vmatpush.bf16.msra.mxu0 %v8539
        %10060 = vmatpush.bf16.msra.mxu0 %v8535
        %10061 = vmatpush.bf16.msra.mxu0 %v8531
        %10062 = vmatpush.bf16.msra.mxu0 %v8527
        %10063 = vmatpush.bf16.msra.mxu0 %v8523
        %10064 = vmatmul.bf16.gmra.mxu0 %v5173
        %v10065 = vpop.f32.mrf.mxu0
        %v10066 = vadd.f32 %v10053, %v10065
        %v10067 = vpop.f32.mrf.mxu0
        %10068 = vdwg.mxu0
        %10069 = vmatpush.bf16.msra.mxu0 %v8583
        %10070 = vmatpush.bf16.msra.mxu0 %v8579
        %10071 = vmatpush.bf16.msra.mxu0 %v8575
        %10072 = vmatpush.bf16.msra.mxu0 %v8571
        %10073 = vmatpush.bf16.msra.mxu0 %v8567
        %10074 = vmatpush.bf16.msra.mxu0 %v8563
        %10075 = vmatpush.bf16.msra.mxu0 %v8559
        %10076 = vmatpush.bf16.msra.mxu0 %v8555
        %10077 = vmatmul.bf16.gmra.mxu0 %v5174
        %v10078 = vpop.f32.mrf.mxu0
        %v10079 = vadd.f32 %v10066, %v10078
        %v10080 = vpop.f32.mrf.mxu0
        %10081 = vdwg.mxu0
        %10082 = vmatpush.bf16.msra.mxu0 %v8615
        %10083 = vmatpush.bf16.msra.mxu0 %v8611
        %10084 = vmatpush.bf16.msra.mxu0 %v8607
        %10085 = vmatpush.bf16.msra.mxu0 %v8603
        %10086 = vmatpush.bf16.msra.mxu0 %v8599
        %10087 = vmatpush.bf16.msra.mxu0 %v8595
        %10088 = vmatpush.bf16.msra.mxu0 %v8591
        %10089 = vmatpush.bf16.msra.mxu0 %v8587
        %10090 = vmatmul.bf16.gmra.mxu0 %v5175
        %v10091 = vpop.f32.mrf.mxu0
        %v10092 = vadd.f32 %v10079, %v10091
        %v10093 = vpop.f32.mrf.mxu0
        %10094 = vdwg.mxu0
        %10095 = vmatpush.bf16.msra.mxu0 %v8647
        %10096 = vmatpush.bf16.msra.mxu0 %v8643
        %10097 = vmatpush.bf16.msra.mxu0 %v8639
        %10098 = vmatpush.bf16.msra.mxu0 %v8635
        %10099 = vmatpush.bf16.msra.mxu0 %v8631
        %10100 = vmatpush.bf16.msra.mxu0 %v8627
        %10101 = vmatpush.bf16.msra.mxu0 %v8623
        %10102 = vmatpush.bf16.msra.mxu0 %v8619
        %10103 = vmatmul.bf16.gmra.mxu0 %v5176
        %v10104 = vpop.f32.mrf.mxu0
        %v10105 = vadd.f32 %v10092, %v10104
        %v10106 = vpop.f32.mrf.mxu0
        %10107 = vdwg.mxu0
        %10108 = vmatpush.bf16.msra.mxu0 %v8679
        %10109 = vmatpush.bf16.msra.mxu0 %v8675
        %10110 = vmatpush.bf16.msra.mxu0 %v8671
        %10111 = vmatpush.bf16.msra.mxu0 %v8667
        %10112 = vmatpush.bf16.msra.mxu0 %v8663
        %10113 = vmatpush.bf16.msra.mxu0 %v8659
        %10114 = vmatpush.bf16.msra.mxu0 %v8655
        %10115 = vmatpush.bf16.msra.mxu0 %v8651
        %10116 = vmatmul.bf16.gmra.mxu0 %v5177
        %v10117 = vpop.f32.mrf.mxu0
        %v10118 = vadd.f32 %v10105, %v10117
        %v10119 = vpop.f32.mrf.mxu0
        %10120 = vdwg.mxu0
        %10121 = vmatpush.bf16.msra.mxu0 %v8711
        %10122 = vmatpush.bf16.msra.mxu0 %v8707
        %10123 = vmatpush.bf16.msra.mxu0 %v8703
        %10124 = vmatpush.bf16.msra.mxu0 %v8699
        %10125 = vmatpush.bf16.msra.mxu0 %v8695
        %10126 = vmatpush.bf16.msra.mxu0 %v8691
        %10127 = vmatpush.bf16.msra.mxu0 %v8687
        %10128 = vmatpush.bf16.msra.mxu0 %v8683
        %10129 = vmatmul.bf16.gmra.mxu0 %v5178
        %v10130 = vpop.f32.mrf.mxu0
        %v10131 = vadd.f32 %v10118, %v10130
        %v10132 = vpop.f32.mrf.mxu0
        %10133 = vdwg.mxu0
        %10134 = vmatpush.bf16.msra.mxu0 %v8743
        %10135 = vmatpush.bf16.msra.mxu0 %v8739
        %10136 = vmatpush.bf16.msra.mxu0 %v8735
        %10137 = vmatpush.bf16.msra.mxu0 %v8731
        %10138 = vmatpush.bf16.msra.mxu0 %v8727
        %10139 = vmatpush.bf16.msra.mxu0 %v8723
        %10140 = vmatpush.bf16.msra.mxu0 %v8719
        %10141 = vmatpush.bf16.msra.mxu0 %v8715
        %10142 = vmatmul.bf16.gmra.mxu0 %v5179
        %v10143 = vpop.f32.mrf.mxu0
        %v10144 = vadd.f32 %v10131, %v10143
        %v10145 = vpop.f32.mrf.mxu0
        %10146 = vdwg.mxu0
        %10147 = vmatpush.bf16.msra.mxu0 %v8775
        %10148 = vmatpush.bf16.msra.mxu0 %v8771
        %10149 = vmatpush.bf16.msra.mxu0 %v8767
        %10150 = vmatpush.bf16.msra.mxu0 %v8763
        %10151 = vmatpush.bf16.msra.mxu0 %v8759
        %10152 = vmatpush.bf16.msra.mxu0 %v8755
        %10153 = vmatpush.bf16.msra.mxu0 %v8751
        %10154 = vmatpush.bf16.msra.mxu0 %v8747
        %10155 = vmatmul.bf16.gmra.mxu0 %v5180
        %v10156 = vpop.f32.mrf.mxu0
        %v10157 = vadd.f32 %v10144, %v10156
        %v10158 = vpop.f32.mrf.mxu0
        %10159 = vdwg.mxu0
        %10160 = vmatpush.bf16.msra.mxu0 %v8807
        %10161 = vmatpush.bf16.msra.mxu0 %v8803
        %10162 = vmatpush.bf16.msra.mxu0 %v8799
        %10163 = vmatpush.bf16.msra.mxu0 %v8795
        %10164 = vmatpush.bf16.msra.mxu0 %v8791
        %10165 = vmatpush.bf16.msra.mxu0 %v8787
        %10166 = vmatpush.bf16.msra.mxu0 %v8783
        %10167 = vmatpush.bf16.msra.mxu0 %v8779
        %10168 = vmatmul.bf16.gmra.mxu0 %v5181
        %v10169 = vpop.f32.mrf.mxu0
        %v10170 = vadd.f32 %v10157, %v10169
        %v10171 = vpop.f32.mrf.mxu0
        %10172 = vdwg.mxu0
        %10173 = vmatpush.bf16.msra.mxu0 %v8839
        %10174 = vmatpush.bf16.msra.mxu0 %v8835
        %10175 = vmatpush.bf16.msra.mxu0 %v8831
        %10176 = vmatpush.bf16.msra.mxu0 %v8827
        %10177 = vmatpush.bf16.msra.mxu0 %v8823
        %10178 = vmatpush.bf16.msra.mxu0 %v8819
        %10179 = vmatpush.bf16.msra.mxu0 %v8815
        %10180 = vmatpush.bf16.msra.mxu0 %v8811
        %10181 = vmatmul.bf16.gmra.mxu0 %v5182
        %v10182 = vpop.f32.mrf.mxu0
        %v10183 = vadd.f32 %v10170, %v10182
        %v10184 = vpop.f32.mrf.mxu0
        %10185 = vdwg.mxu0
        %10186 = vmatpush.bf16.msra.mxu0 %v8871
        %10187 = vmatpush.bf16.msra.mxu0 %v8867
        %10188 = vmatpush.bf16.msra.mxu0 %v8863
        %10189 = vmatpush.bf16.msra.mxu0 %v8859
        %10190 = vmatpush.bf16.msra.mxu0 %v8855
        %10191 = vmatpush.bf16.msra.mxu0 %v8851
        %10192 = vmatpush.bf16.msra.mxu0 %v8847
        %10193 = vmatpush.bf16.msra.mxu0 %v8843
        %10194 = vmatmul.bf16.gmra.mxu0 %v5183
        %v10195 = vpop.f32.mrf.mxu0
        %v10196 = vadd.f32 %v10183, %v10195
        %v10197 = vpop.f32.mrf.mxu0
        %10198 = vdwg.mxu0
        %10199 = vmatpush.bf16.msra.mxu0 %v8903
        %10200 = vmatpush.bf16.msra.mxu0 %v8899
        %10201 = vmatpush.bf16.msra.mxu0 %v8895
        %10202 = vmatpush.bf16.msra.mxu0 %v8891
        %10203 = vmatpush.bf16.msra.mxu0 %v8887
        %10204 = vmatpush.bf16.msra.mxu0 %v8883
        %10205 = vmatpush.bf16.msra.mxu0 %v8879
        %10206 = vmatpush.bf16.msra.mxu0 %v8875
        %10207 = vmatmul.bf16.gmra.mxu0 %v5184
        %v10208 = vpop.f32.mrf.mxu0
        %v10209 = vadd.f32 %v10196, %v10208
        %v10210 = vpop.f32.mrf.mxu0
        %10211 = vdwg.mxu0
        %10212 = vmatpush.bf16.msra.mxu0 %v8935
        %10213 = vmatpush.bf16.msra.mxu0 %v8931
        %10214 = vmatpush.bf16.msra.mxu0 %v8927
        %10215 = vmatpush.bf16.msra.mxu0 %v8923
        %10216 = vmatpush.bf16.msra.mxu0 %v8919
        %10217 = vmatpush.bf16.msra.mxu0 %v8915
        %10218 = vmatpush.bf16.msra.mxu0 %v8911
        %10219 = vmatpush.bf16.msra.mxu0 %v8907
        %10220 = vmatmul.bf16.gmra.mxu0 %v5185
        %v10221 = vpop.f32.mrf.mxu0
        %v10222 = vadd.f32 %v10209, %v10221
        %v10223 = vpop.f32.mrf.mxu0
        %10224 = vdwg.mxu0
        %10225 = vmatpush.bf16.msra.mxu0 %v8967
        %10226 = vmatpush.bf16.msra.mxu0 %v8963
        %10227 = vmatpush.bf16.msra.mxu0 %v8959
        %10228 = vmatpush.bf16.msra.mxu0 %v8955
        %10229 = vmatpush.bf16.msra.mxu0 %v8951
        %10230 = vmatpush.bf16.msra.mxu0 %v8947
        %10231 = vmatpush.bf16.msra.mxu0 %v8943
        %10232 = vmatpush.bf16.msra.mxu0 %v8939
        %10233 = vmatmul.bf16.gmra.mxu0 %v5186
        %v10234 = vpop.f32.mrf.mxu0
        %v10235 = vadd.f32 %v10222, %v10234
        %v10236 = vpop.f32.mrf.mxu0
        %10237 = vdwg.mxu0
        %10238 = vmatpush.bf16.msra.mxu0 %v8999
        %10239 = vmatpush.bf16.msra.mxu0 %v8995
        %10240 = vmatpush.bf16.msra.mxu0 %v8991
        %10241 = vmatpush.bf16.msra.mxu0 %v8987
        %10242 = vmatpush.bf16.msra.mxu0 %v8983
        %10243 = vmatpush.bf16.msra.mxu0 %v8979
        %10244 = vmatpush.bf16.msra.mxu0 %v8975
        %10245 = vmatpush.bf16.msra.mxu0 %v8971
        %10246 = vmatmul.bf16.gmra.mxu0 %v5187
        %v10247 = vpop.f32.mrf.mxu0
        %v10248 = vadd.f32 %v10235, %v10247
        %v10249 = vpop.f32.mrf.mxu0
        %10250 = vdwg.mxu0
        %10251 = vmatpush.bf16.msra.mxu0 %v9031
        %10252 = vmatpush.bf16.msra.mxu0 %v9027
        %10253 = vmatpush.bf16.msra.mxu0 %v9023
        %10254 = vmatpush.bf16.msra.mxu0 %v9019
        %10255 = vmatpush.bf16.msra.mxu0 %v9015
        %10256 = vmatpush.bf16.msra.mxu0 %v9011
        %10257 = vmatpush.bf16.msra.mxu0 %v9007
        %10258 = vmatpush.bf16.msra.mxu0 %v9003
        %10259 = vmatmul.bf16.gmra.mxu0 %v5188
        %v10260 = vpop.f32.mrf.mxu0
        %v10261 = vadd.f32 %v10248, %v10260
        %v10262 = vpop.f32.mrf.mxu0
        %10263 = vdwg.mxu0
        %10264 = vmatpush.bf16.msra.mxu0 %v9063
        %10265 = vmatpush.bf16.msra.mxu0 %v9059
        %10266 = vmatpush.bf16.msra.mxu0 %v9055
        %10267 = vmatpush.bf16.msra.mxu0 %v9051
        %10268 = vmatpush.bf16.msra.mxu0 %v9047
        %10269 = vmatpush.bf16.msra.mxu0 %v9043
        %10270 = vmatpush.bf16.msra.mxu0 %v9039
        %10271 = vmatpush.bf16.msra.mxu0 %v9035
        %10272 = vmatmul.bf16.gmra.mxu0 %v5189
        %v10273 = vpop.f32.mrf.mxu0
        %v10274 = vadd.f32 %v10261, %v10273
        %v10275 = vpop.f32.mrf.mxu0
        %10276 = vdwg.mxu0
        %10277 = vmatpush.bf16.msra.mxu0 %v9095
        %10278 = vmatpush.bf16.msra.mxu0 %v9091
        %10279 = vmatpush.bf16.msra.mxu0 %v9087
        %10280 = vmatpush.bf16.msra.mxu0 %v9083
        %10281 = vmatpush.bf16.msra.mxu0 %v9079
        %10282 = vmatpush.bf16.msra.mxu0 %v9075
        %10283 = vmatpush.bf16.msra.mxu0 %v9071
        %10284 = vmatpush.bf16.msra.mxu0 %v9067
        %10285 = vmatmul.bf16.gmra.mxu0 %v5190
        %v10286 = vpop.f32.mrf.mxu0
        %v10287 = vadd.f32 %v10274, %v10286
        %v10288 = vpop.f32.mrf.mxu0
        %10289 = vdwg.mxu0
        %10290 = vmatpush.bf16.msra.mxu0 %v9127
        %10291 = vmatpush.bf16.msra.mxu0 %v9123
        %10292 = vmatpush.bf16.msra.mxu0 %v9119
        %10293 = vmatpush.bf16.msra.mxu0 %v9115
        %10294 = vmatpush.bf16.msra.mxu0 %v9111
        %10295 = vmatpush.bf16.msra.mxu0 %v9107
        %10296 = vmatpush.bf16.msra.mxu0 %v9103
        %10297 = vmatpush.bf16.msra.mxu0 %v9099
        %10298 = vmatmul.bf16.gmra.mxu0 %v5191
        %v10299 = vpop.f32.mrf.mxu0
        %v10300 = vadd.f32 %v10287, %v10299
        %v10301 = vpop.f32.mrf.mxu0
        %10302 = vdwg.mxu0
        %10303 = vmatpush.bf16.msra.mxu0 %v9159
        %10304 = vmatpush.bf16.msra.mxu0 %v9155
        %10305 = vmatpush.bf16.msra.mxu0 %v9151
        %10306 = vmatpush.bf16.msra.mxu0 %v9147
        %10307 = vmatpush.bf16.msra.mxu0 %v9143
        %10308 = vmatpush.bf16.msra.mxu0 %v9139
        %10309 = vmatpush.bf16.msra.mxu0 %v9135
        %10310 = vmatpush.bf16.msra.mxu0 %v9131
        %10311 = vmatmul.bf16.gmra.mxu0 %v5192
        %v10312 = vpop.f32.mrf.mxu0
        %v10313 = vadd.f32 %v10300, %v10312
        %v10314 = vpop.f32.mrf.mxu0
        %10315 = vdwg.mxu0
        %10316 = vmatpush.bf16.msra.mxu0 %v9191
        %10317 = vmatpush.bf16.msra.mxu0 %v9187
        %10318 = vmatpush.bf16.msra.mxu0 %v9183
        %10319 = vmatpush.bf16.msra.mxu0 %v9179
        %10320 = vmatpush.bf16.msra.mxu0 %v9175
        %10321 = vmatpush.bf16.msra.mxu0 %v9171
        %10322 = vmatpush.bf16.msra.mxu0 %v9167
        %10323 = vmatpush.bf16.msra.mxu0 %v9163
        %10324 = vmatmul.bf16.gmra.mxu0 %v5193
        %v10325 = vpop.f32.mrf.mxu0
        %v10326 = vadd.f32 %v10313, %v10325
        %v10327 = vpop.f32.mrf.mxu0
        %10328 = vdwg.mxu0
        %10329 = vmatpush.bf16.msra.mxu0 %v8424
        %10330 = vmatpush.bf16.msra.mxu0 %v8420
        %10331 = vmatpush.bf16.msra.mxu0 %v8416
        %10332 = vmatpush.bf16.msra.mxu0 %v8412
        %10333 = vmatpush.bf16.msra.mxu0 %v8408
        %10334 = vmatpush.bf16.msra.mxu0 %v8404
        %10335 = vmatpush.bf16.msra.mxu0 %v8400
        %10336 = vmatpush.bf16.msra.mxu0 %v8396
        %10337 = vmatmul.bf16.gmra.mxu0 %v5169
        %v10338 = vpop.f32.mrf.mxu0
        %v10339 = vadd.f32 %v9997, %v10338
        %v10340 = vpop.f32.mrf.mxu0
        %10341 = vdwg.mxu0
        %10342 = vmatpush.bf16.msra.mxu0 %v8456
        %10343 = vmatpush.bf16.msra.mxu0 %v8452
        %10344 = vmatpush.bf16.msra.mxu0 %v8448
        %10345 = vmatpush.bf16.msra.mxu0 %v8444
        %10346 = vmatpush.bf16.msra.mxu0 %v8440
        %10347 = vmatpush.bf16.msra.mxu0 %v8436
        %10348 = vmatpush.bf16.msra.mxu0 %v8432
        %10349 = vmatpush.bf16.msra.mxu0 %v8428
        %10350 = vmatmul.bf16.gmra.mxu0 %v5170
        %v10351 = vpop.f32.mrf.mxu0
        %v10352 = vadd.f32 %v10339, %v10351
        %v10353 = vpop.f32.mrf.mxu0
        %10354 = vdwg.mxu0
        %10355 = vmatpush.bf16.msra.mxu0 %v8488
        %10356 = vmatpush.bf16.msra.mxu0 %v8484
        %10357 = vmatpush.bf16.msra.mxu0 %v8480
        %10358 = vmatpush.bf16.msra.mxu0 %v8476
        %10359 = vmatpush.bf16.msra.mxu0 %v8472
        %10360 = vmatpush.bf16.msra.mxu0 %v8468
        %10361 = vmatpush.bf16.msra.mxu0 %v8464
        %10362 = vmatpush.bf16.msra.mxu0 %v8460
        %10363 = vmatmul.bf16.gmra.mxu0 %v5171
        %v10364 = vpop.f32.mrf.mxu0
        %v10365 = vadd.f32 %v10352, %v10364
        %v10366 = vpop.f32.mrf.mxu0
        %10367 = vdwg.mxu0
        %10368 = vmatpush.bf16.msra.mxu0 %v8520
        %10369 = vmatpush.bf16.msra.mxu0 %v8516
        %10370 = vmatpush.bf16.msra.mxu0 %v8512
        %10371 = vmatpush.bf16.msra.mxu0 %v8508
        %10372 = vmatpush.bf16.msra.mxu0 %v8504
        %10373 = vmatpush.bf16.msra.mxu0 %v8500
        %10374 = vmatpush.bf16.msra.mxu0 %v8496
        %10375 = vmatpush.bf16.msra.mxu0 %v8492
        %10376 = vmatmul.bf16.gmra.mxu0 %v5172
        %v10377 = vpop.f32.mrf.mxu0
        %v10378 = vadd.f32 %v10365, %v10377
        %v10379 = vpop.f32.mrf.mxu0
        %10380 = vdwg.mxu0
        %10381 = vmatpush.bf16.msra.mxu0 %v8552
        %10382 = vmatpush.bf16.msra.mxu0 %v8548
        %10383 = vmatpush.bf16.msra.mxu0 %v8544
        %10384 = vmatpush.bf16.msra.mxu0 %v8540
        %10385 = vmatpush.bf16.msra.mxu0 %v8536
        %10386 = vmatpush.bf16.msra.mxu0 %v8532
        %10387 = vmatpush.bf16.msra.mxu0 %v8528
        %10388 = vmatpush.bf16.msra.mxu0 %v8524
        %10389 = vmatmul.bf16.gmra.mxu0 %v5173
        %v10390 = vpop.f32.mrf.mxu0
        %v10391 = vadd.f32 %v10378, %v10390
        %v10392 = vpop.f32.mrf.mxu0
        %10393 = vdwg.mxu0
        %10394 = vmatpush.bf16.msra.mxu0 %v8584
        %10395 = vmatpush.bf16.msra.mxu0 %v8580
        %10396 = vmatpush.bf16.msra.mxu0 %v8576
        %10397 = vmatpush.bf16.msra.mxu0 %v8572
        %10398 = vmatpush.bf16.msra.mxu0 %v8568
        %10399 = vmatpush.bf16.msra.mxu0 %v8564
        %10400 = vmatpush.bf16.msra.mxu0 %v8560
        %10401 = vmatpush.bf16.msra.mxu0 %v8556
        %10402 = vmatmul.bf16.gmra.mxu0 %v5174
        %v10403 = vpop.f32.mrf.mxu0
        %v10404 = vadd.f32 %v10391, %v10403
        %v10405 = vpop.f32.mrf.mxu0
        %10406 = vdwg.mxu0
        %10407 = vmatpush.bf16.msra.mxu0 %v8616
        %10408 = vmatpush.bf16.msra.mxu0 %v8612
        %10409 = vmatpush.bf16.msra.mxu0 %v8608
        %10410 = vmatpush.bf16.msra.mxu0 %v8604
        %10411 = vmatpush.bf16.msra.mxu0 %v8600
        %10412 = vmatpush.bf16.msra.mxu0 %v8596
        %10413 = vmatpush.bf16.msra.mxu0 %v8592
        %10414 = vmatpush.bf16.msra.mxu0 %v8588
        %10415 = vmatmul.bf16.gmra.mxu0 %v5175
        %v10416 = vpop.f32.mrf.mxu0
        %v10417 = vadd.f32 %v10404, %v10416
        %v10418 = vpop.f32.mrf.mxu0
        %10419 = vdwg.mxu0
        %10420 = vmatpush.bf16.msra.mxu0 %v8648
        %10421 = vmatpush.bf16.msra.mxu0 %v8644
        %10422 = vmatpush.bf16.msra.mxu0 %v8640
        %10423 = vmatpush.bf16.msra.mxu0 %v8636
        %10424 = vmatpush.bf16.msra.mxu0 %v8632
        %10425 = vmatpush.bf16.msra.mxu0 %v8628
        %10426 = vmatpush.bf16.msra.mxu0 %v8624
        %10427 = vmatpush.bf16.msra.mxu0 %v8620
        %10428 = vmatmul.bf16.gmra.mxu0 %v5176
        %v10429 = vpop.f32.mrf.mxu0
        %v10430 = vadd.f32 %v10417, %v10429
        %v10431 = vpop.f32.mrf.mxu0
        %10432 = vdwg.mxu0
        %10433 = vmatpush.bf16.msra.mxu0 %v8680
        %10434 = vmatpush.bf16.msra.mxu0 %v8676
        %10435 = vmatpush.bf16.msra.mxu0 %v8672
        %10436 = vmatpush.bf16.msra.mxu0 %v8668
        %10437 = vmatpush.bf16.msra.mxu0 %v8664
        %10438 = vmatpush.bf16.msra.mxu0 %v8660
        %10439 = vmatpush.bf16.msra.mxu0 %v8656
        %10440 = vmatpush.bf16.msra.mxu0 %v8652
        %10441 = vmatmul.bf16.gmra.mxu0 %v5177
        %v10442 = vpop.f32.mrf.mxu0
        %v10443 = vadd.f32 %v10430, %v10442
        %v10444 = vpop.f32.mrf.mxu0
        %10445 = vdwg.mxu0
        %10446 = vmatpush.bf16.msra.mxu0 %v8712
        %10447 = vmatpush.bf16.msra.mxu0 %v8708
        %10448 = vmatpush.bf16.msra.mxu0 %v8704
        %10449 = vmatpush.bf16.msra.mxu0 %v8700
        %10450 = vmatpush.bf16.msra.mxu0 %v8696
        %10451 = vmatpush.bf16.msra.mxu0 %v8692
        %10452 = vmatpush.bf16.msra.mxu0 %v8688
        %10453 = vmatpush.bf16.msra.mxu0 %v8684
        %10454 = vmatmul.bf16.gmra.mxu0 %v5178
        %v10455 = vpop.f32.mrf.mxu0
        %v10456 = vadd.f32 %v10443, %v10455
        %v10457 = vpop.f32.mrf.mxu0
        %10458 = vdwg.mxu0
        %10459 = vmatpush.bf16.msra.mxu0 %v8744
        %10460 = vmatpush.bf16.msra.mxu0 %v8740
        %10461 = vmatpush.bf16.msra.mxu0 %v8736
        %10462 = vmatpush.bf16.msra.mxu0 %v8732
        %10463 = vmatpush.bf16.msra.mxu0 %v8728
        %10464 = vmatpush.bf16.msra.mxu0 %v8724
        %10465 = vmatpush.bf16.msra.mxu0 %v8720
        %10466 = vmatpush.bf16.msra.mxu0 %v8716
        %10467 = vmatmul.bf16.gmra.mxu0 %v5179
        %v10468 = vpop.f32.mrf.mxu0
        %v10469 = vadd.f32 %v10456, %v10468
        %v10470 = vpop.f32.mrf.mxu0
        %10471 = vdwg.mxu0
        %10472 = vmatpush.bf16.msra.mxu0 %v8776
        %10473 = vmatpush.bf16.msra.mxu0 %v8772
        %10474 = vmatpush.bf16.msra.mxu0 %v8768
        %10475 = vmatpush.bf16.msra.mxu0 %v8764
        %10476 = vmatpush.bf16.msra.mxu0 %v8760
        %10477 = vmatpush.bf16.msra.mxu0 %v8756
        %10478 = vmatpush.bf16.msra.mxu0 %v8752
        %10479 = vmatpush.bf16.msra.mxu0 %v8748
        %10480 = vmatmul.bf16.gmra.mxu0 %v5180
        %v10481 = vpop.f32.mrf.mxu0
        %v10482 = vadd.f32 %v10469, %v10481
        %v10483 = vpop.f32.mrf.mxu0
        %10484 = vdwg.mxu0
        %10485 = vmatpush.bf16.msra.mxu0 %v8808
        %10486 = vmatpush.bf16.msra.mxu0 %v8804
        %10487 = vmatpush.bf16.msra.mxu0 %v8800
        %10488 = vmatpush.bf16.msra.mxu0 %v8796
        %10489 = vmatpush.bf16.msra.mxu0 %v8792
        %10490 = vmatpush.bf16.msra.mxu0 %v8788
        %10491 = vmatpush.bf16.msra.mxu0 %v8784
        %10492 = vmatpush.bf16.msra.mxu0 %v8780
        %10493 = vmatmul.bf16.gmra.mxu0 %v5181
        %v10494 = vpop.f32.mrf.mxu0
        %v10495 = vadd.f32 %v10482, %v10494
        %v10496 = vpop.f32.mrf.mxu0
        %10497 = vdwg.mxu0
        %10498 = vmatpush.bf16.msra.mxu0 %v8840
        %10499 = vmatpush.bf16.msra.mxu0 %v8836
        %10500 = vmatpush.bf16.msra.mxu0 %v8832
        %10501 = vmatpush.bf16.msra.mxu0 %v8828
        %10502 = vmatpush.bf16.msra.mxu0 %v8824
        %10503 = vmatpush.bf16.msra.mxu0 %v8820
        %10504 = vmatpush.bf16.msra.mxu0 %v8816
        %10505 = vmatpush.bf16.msra.mxu0 %v8812
        %10506 = vmatmul.bf16.gmra.mxu0 %v5182
        %v10507 = vpop.f32.mrf.mxu0
        %v10508 = vadd.f32 %v10495, %v10507
        %v10509 = vpop.f32.mrf.mxu0
        %10510 = vdwg.mxu0
        %10511 = vmatpush.bf16.msra.mxu0 %v8872
        %10512 = vmatpush.bf16.msra.mxu0 %v8868
        %10513 = vmatpush.bf16.msra.mxu0 %v8864
        %10514 = vmatpush.bf16.msra.mxu0 %v8860
        %10515 = vmatpush.bf16.msra.mxu0 %v8856
        %10516 = vmatpush.bf16.msra.mxu0 %v8852
        %10517 = vmatpush.bf16.msra.mxu0 %v8848
        %10518 = vmatpush.bf16.msra.mxu0 %v8844
        %10519 = vmatmul.bf16.gmra.mxu0 %v5183
        %v10520 = vpop.f32.mrf.mxu0
        %v10521 = vadd.f32 %v10508, %v10520
        %v10522 = vpop.f32.mrf.mxu0
        %10523 = vdwg.mxu0
        %10524 = vmatpush.bf16.msra.mxu0 %v8904
        %10525 = vmatpush.bf16.msra.mxu0 %v8900
        %10526 = vmatpush.bf16.msra.mxu0 %v8896
        %10527 = vmatpush.bf16.msra.mxu0 %v8892
        %10528 = vmatpush.bf16.msra.mxu0 %v8888
        %10529 = vmatpush.bf16.msra.mxu0 %v8884
        %10530 = vmatpush.bf16.msra.mxu0 %v8880
        %10531 = vmatpush.bf16.msra.mxu0 %v8876
        %10532 = vmatmul.bf16.gmra.mxu0 %v5184
        %v10533 = vpop.f32.mrf.mxu0
        %v10534 = vadd.f32 %v10521, %v10533
        %v10535 = vpop.f32.mrf.mxu0
        %10536 = vdwg.mxu0
        %10537 = vmatpush.bf16.msra.mxu0 %v8936
        %10538 = vmatpush.bf16.msra.mxu0 %v8932
        %10539 = vmatpush.bf16.msra.mxu0 %v8928
        %10540 = vmatpush.bf16.msra.mxu0 %v8924
        %10541 = vmatpush.bf16.msra.mxu0 %v8920
        %10542 = vmatpush.bf16.msra.mxu0 %v8916
        %10543 = vmatpush.bf16.msra.mxu0 %v8912
        %10544 = vmatpush.bf16.msra.mxu0 %v8908
        %10545 = vmatmul.bf16.gmra.mxu0 %v5185
        %v10546 = vpop.f32.mrf.mxu0
        %v10547 = vadd.f32 %v10534, %v10546
        %v10548 = vpop.f32.mrf.mxu0
        %10549 = vdwg.mxu0
        %10550 = vmatpush.bf16.msra.mxu0 %v8968
        %10551 = vmatpush.bf16.msra.mxu0 %v8964
        %10552 = vmatpush.bf16.msra.mxu0 %v8960
        %10553 = vmatpush.bf16.msra.mxu0 %v8956
        %10554 = vmatpush.bf16.msra.mxu0 %v8952
        %10555 = vmatpush.bf16.msra.mxu0 %v8948
        %10556 = vmatpush.bf16.msra.mxu0 %v8944
        %10557 = vmatpush.bf16.msra.mxu0 %v8940
        %10558 = vmatmul.bf16.gmra.mxu0 %v5186
        %v10559 = vpop.f32.mrf.mxu0
        %v10560 = vadd.f32 %v10547, %v10559
        %v10561 = vpop.f32.mrf.mxu0
        %10562 = vdwg.mxu0
        %10563 = vmatpush.bf16.msra.mxu0 %v9000
        %10564 = vmatpush.bf16.msra.mxu0 %v8996
        %10565 = vmatpush.bf16.msra.mxu0 %v8992
        %10566 = vmatpush.bf16.msra.mxu0 %v8988
        %10567 = vmatpush.bf16.msra.mxu0 %v8984
        %10568 = vmatpush.bf16.msra.mxu0 %v8980
        %10569 = vmatpush.bf16.msra.mxu0 %v8976
        %10570 = vmatpush.bf16.msra.mxu0 %v8972
        %10571 = vmatmul.bf16.gmra.mxu0 %v5187
        %v10572 = vpop.f32.mrf.mxu0
        %v10573 = vadd.f32 %v10560, %v10572
        %v10574 = vpop.f32.mrf.mxu0
        %10575 = vdwg.mxu0
        %10576 = vmatpush.bf16.msra.mxu0 %v9032
        %10577 = vmatpush.bf16.msra.mxu0 %v9028
        %10578 = vmatpush.bf16.msra.mxu0 %v9024
        %10579 = vmatpush.bf16.msra.mxu0 %v9020
        %10580 = vmatpush.bf16.msra.mxu0 %v9016
        %10581 = vmatpush.bf16.msra.mxu0 %v9012
        %10582 = vmatpush.bf16.msra.mxu0 %v9008
        %10583 = vmatpush.bf16.msra.mxu0 %v9004
        %10584 = vmatmul.bf16.gmra.mxu0 %v5188
        %v10585 = vpop.f32.mrf.mxu0
        %v10586 = vadd.f32 %v10573, %v10585
        %v10587 = vpop.f32.mrf.mxu0
        %10588 = vdwg.mxu0
        %10589 = vmatpush.bf16.msra.mxu0 %v9064
        %10590 = vmatpush.bf16.msra.mxu0 %v9060
        %10591 = vmatpush.bf16.msra.mxu0 %v9056
        %10592 = vmatpush.bf16.msra.mxu0 %v9052
        %10593 = vmatpush.bf16.msra.mxu0 %v9048
        %10594 = vmatpush.bf16.msra.mxu0 %v9044
        %10595 = vmatpush.bf16.msra.mxu0 %v9040
        %10596 = vmatpush.bf16.msra.mxu0 %v9036
        %10597 = vmatmul.bf16.gmra.mxu0 %v5189
        %v10598 = vpop.f32.mrf.mxu0
        %v10599 = vadd.f32 %v10586, %v10598
        %v10600 = vpop.f32.mrf.mxu0
        %10601 = vdwg.mxu0
        %10602 = vmatpush.bf16.msra.mxu0 %v9096
        %10603 = vmatpush.bf16.msra.mxu0 %v9092
        %10604 = vmatpush.bf16.msra.mxu0 %v9088
        %10605 = vmatpush.bf16.msra.mxu0 %v9084
        %10606 = vmatpush.bf16.msra.mxu0 %v9080
        %10607 = vmatpush.bf16.msra.mxu0 %v9076
        %10608 = vmatpush.bf16.msra.mxu0 %v9072
        %10609 = vmatpush.bf16.msra.mxu0 %v9068
        %10610 = vmatmul.bf16.gmra.mxu0 %v5190
        %v10611 = vpop.f32.mrf.mxu0
        %v10612 = vadd.f32 %v10599, %v10611
        %v10613 = vpop.f32.mrf.mxu0
        %10614 = vdwg.mxu0
        %10615 = vmatpush.bf16.msra.mxu0 %v9128
        %10616 = vmatpush.bf16.msra.mxu0 %v9124
        %10617 = vmatpush.bf16.msra.mxu0 %v9120
        %10618 = vmatpush.bf16.msra.mxu0 %v9116
        %10619 = vmatpush.bf16.msra.mxu0 %v9112
        %10620 = vmatpush.bf16.msra.mxu0 %v9108
        %10621 = vmatpush.bf16.msra.mxu0 %v9104
        %10622 = vmatpush.bf16.msra.mxu0 %v9100
        %10623 = vmatmul.bf16.gmra.mxu0 %v5191
        %v10624 = vpop.f32.mrf.mxu0
        %v10625 = vadd.f32 %v10612, %v10624
        %v10626 = vpop.f32.mrf.mxu0
        %10627 = vdwg.mxu0
        %10628 = vmatpush.bf16.msra.mxu0 %v9160
        %10629 = vmatpush.bf16.msra.mxu0 %v9156
        %10630 = vmatpush.bf16.msra.mxu0 %v9152
        %10631 = vmatpush.bf16.msra.mxu0 %v9148
        %10632 = vmatpush.bf16.msra.mxu0 %v9144
        %10633 = vmatpush.bf16.msra.mxu0 %v9140
        %10634 = vmatpush.bf16.msra.mxu0 %v9136
        %10635 = vmatpush.bf16.msra.mxu0 %v9132
        %10636 = vmatmul.bf16.gmra.mxu0 %v5192
        %v10637 = vpop.f32.mrf.mxu0
        %v10638 = vadd.f32 %v10625, %v10637
        %v10639 = vpop.f32.mrf.mxu0
        %10640 = vdwg.mxu0
        %10641 = vmatpush.bf16.msra.mxu0 %v9192
        %10642 = vmatpush.bf16.msra.mxu0 %v9188
        %10643 = vmatpush.bf16.msra.mxu0 %v9184
        %10644 = vmatpush.bf16.msra.mxu0 %v9180
        %10645 = vmatpush.bf16.msra.mxu0 %v9176
        %10646 = vmatpush.bf16.msra.mxu0 %v9172
        %10647 = vmatpush.bf16.msra.mxu0 %v9168
        %10648 = vmatpush.bf16.msra.mxu0 %v9164
        %10649 = vmatmul.bf16.gmra.mxu0 %v5193
        %v10650 = vpop.f32.mrf.mxu0
        %v10651 = vadd.f32 %v10638, %v10650
        %v10652 = vpop.f32.mrf.mxu0
        %10653 = vdwg.mxu0
        %10654 = vmatpush.bf16.msra.mxu0 %v8425
        %10655 = vmatpush.bf16.msra.mxu0 %v8421
        %10656 = vmatpush.bf16.msra.mxu0 %v8417
        %10657 = vmatpush.bf16.msra.mxu0 %v8413
        %10658 = vmatpush.bf16.msra.mxu0 %v8409
        %10659 = vmatpush.bf16.msra.mxu0 %v8405
        %10660 = vmatpush.bf16.msra.mxu0 %v8401
        %10661 = vmatpush.bf16.msra.mxu0 %v8397
        %10662 = vmatmul.bf16.gmra.mxu0 %v5169
        %v10663 = vpop.f32.mrf.mxu0
        %v10664 = vadd.f32 %v9998, %v10663
        %v10665 = vpop.f32.mrf.mxu0
        %10666 = vdwg.mxu0
        %10667 = vmatpush.bf16.msra.mxu0 %v8457
        %10668 = vmatpush.bf16.msra.mxu0 %v8453
        %10669 = vmatpush.bf16.msra.mxu0 %v8449
        %10670 = vmatpush.bf16.msra.mxu0 %v8445
        %10671 = vmatpush.bf16.msra.mxu0 %v8441
        %10672 = vmatpush.bf16.msra.mxu0 %v8437
        %10673 = vmatpush.bf16.msra.mxu0 %v8433
        %10674 = vmatpush.bf16.msra.mxu0 %v8429
        %10675 = vmatmul.bf16.gmra.mxu0 %v5170
        %v10676 = vpop.f32.mrf.mxu0
        %v10677 = vadd.f32 %v10664, %v10676
        %v10678 = vpop.f32.mrf.mxu0
        %10679 = vdwg.mxu0
        %10680 = vmatpush.bf16.msra.mxu0 %v8489
        %10681 = vmatpush.bf16.msra.mxu0 %v8485
        %10682 = vmatpush.bf16.msra.mxu0 %v8481
        %10683 = vmatpush.bf16.msra.mxu0 %v8477
        %10684 = vmatpush.bf16.msra.mxu0 %v8473
        %10685 = vmatpush.bf16.msra.mxu0 %v8469
        %10686 = vmatpush.bf16.msra.mxu0 %v8465
        %10687 = vmatpush.bf16.msra.mxu0 %v8461
        %10688 = vmatmul.bf16.gmra.mxu0 %v5171
        %v10689 = vpop.f32.mrf.mxu0
        %v10690 = vadd.f32 %v10677, %v10689
        %v10691 = vpop.f32.mrf.mxu0
        %10692 = vdwg.mxu0
        %10693 = vmatpush.bf16.msra.mxu0 %v8521
        %10694 = vmatpush.bf16.msra.mxu0 %v8517
        %10695 = vmatpush.bf16.msra.mxu0 %v8513
        %10696 = vmatpush.bf16.msra.mxu0 %v8509
        %10697 = vmatpush.bf16.msra.mxu0 %v8505
        %10698 = vmatpush.bf16.msra.mxu0 %v8501
        %10699 = vmatpush.bf16.msra.mxu0 %v8497
        %10700 = vmatpush.bf16.msra.mxu0 %v8493
        %10701 = vmatmul.bf16.gmra.mxu0 %v5172
        %v10702 = vpop.f32.mrf.mxu0
        %v10703 = vadd.f32 %v10690, %v10702
        %v10704 = vpop.f32.mrf.mxu0
        %10705 = vdwg.mxu0
        %10706 = vmatpush.bf16.msra.mxu0 %v8553
        %10707 = vmatpush.bf16.msra.mxu0 %v8549
        %10708 = vmatpush.bf16.msra.mxu0 %v8545
        %10709 = vmatpush.bf16.msra.mxu0 %v8541
        %10710 = vmatpush.bf16.msra.mxu0 %v8537
        %10711 = vmatpush.bf16.msra.mxu0 %v8533
        %10712 = vmatpush.bf16.msra.mxu0 %v8529
        %10713 = vmatpush.bf16.msra.mxu0 %v8525
        %10714 = vmatmul.bf16.gmra.mxu0 %v5173
        %v10715 = vpop.f32.mrf.mxu0
        %v10716 = vadd.f32 %v10703, %v10715
        %v10717 = vpop.f32.mrf.mxu0
        %10718 = vdwg.mxu0
        %10719 = vmatpush.bf16.msra.mxu0 %v8585
        %10720 = vmatpush.bf16.msra.mxu0 %v8581
        %10721 = vmatpush.bf16.msra.mxu0 %v8577
        %10722 = vmatpush.bf16.msra.mxu0 %v8573
        %10723 = vmatpush.bf16.msra.mxu0 %v8569
        %10724 = vmatpush.bf16.msra.mxu0 %v8565
        %10725 = vmatpush.bf16.msra.mxu0 %v8561
        %10726 = vmatpush.bf16.msra.mxu0 %v8557
        %10727 = vmatmul.bf16.gmra.mxu0 %v5174
        %v10728 = vpop.f32.mrf.mxu0
        %v10729 = vadd.f32 %v10716, %v10728
        %v10730 = vpop.f32.mrf.mxu0
        %10731 = vdwg.mxu0
        %10732 = vmatpush.bf16.msra.mxu0 %v8617
        %10733 = vmatpush.bf16.msra.mxu0 %v8613
        %10734 = vmatpush.bf16.msra.mxu0 %v8609
        %10735 = vmatpush.bf16.msra.mxu0 %v8605
        %10736 = vmatpush.bf16.msra.mxu0 %v8601
        %10737 = vmatpush.bf16.msra.mxu0 %v8597
        %10738 = vmatpush.bf16.msra.mxu0 %v8593
        %10739 = vmatpush.bf16.msra.mxu0 %v8589
        %10740 = vmatmul.bf16.gmra.mxu0 %v5175
        %v10741 = vpop.f32.mrf.mxu0
        %v10742 = vadd.f32 %v10729, %v10741
        %v10743 = vpop.f32.mrf.mxu0
        %10744 = vdwg.mxu0
        %10745 = vmatpush.bf16.msra.mxu0 %v8649
        %10746 = vmatpush.bf16.msra.mxu0 %v8645
        %10747 = vmatpush.bf16.msra.mxu0 %v8641
        %10748 = vmatpush.bf16.msra.mxu0 %v8637
        %10749 = vmatpush.bf16.msra.mxu0 %v8633
        %10750 = vmatpush.bf16.msra.mxu0 %v8629
        %10751 = vmatpush.bf16.msra.mxu0 %v8625
        %10752 = vmatpush.bf16.msra.mxu0 %v8621
        %10753 = vmatmul.bf16.gmra.mxu0 %v5176
        %v10754 = vpop.f32.mrf.mxu0
        %v10755 = vadd.f32 %v10742, %v10754
        %v10756 = vpop.f32.mrf.mxu0
        %10757 = vdwg.mxu0
        %10758 = vmatpush.bf16.msra.mxu0 %v8681
        %10759 = vmatpush.bf16.msra.mxu0 %v8677
        %10760 = vmatpush.bf16.msra.mxu0 %v8673
        %10761 = vmatpush.bf16.msra.mxu0 %v8669
        %10762 = vmatpush.bf16.msra.mxu0 %v8665
        %10763 = vmatpush.bf16.msra.mxu0 %v8661
        %10764 = vmatpush.bf16.msra.mxu0 %v8657
        %10765 = vmatpush.bf16.msra.mxu0 %v8653
        %10766 = vmatmul.bf16.gmra.mxu0 %v5177
        %v10767 = vpop.f32.mrf.mxu0
        %v10768 = vadd.f32 %v10755, %v10767
        %v10769 = vpop.f32.mrf.mxu0
        %10770 = vdwg.mxu0
        %10771 = vmatpush.bf16.msra.mxu0 %v8713
        %10772 = vmatpush.bf16.msra.mxu0 %v8709
        %10773 = vmatpush.bf16.msra.mxu0 %v8705
        %10774 = vmatpush.bf16.msra.mxu0 %v8701
        %10775 = vmatpush.bf16.msra.mxu0 %v8697
        %10776 = vmatpush.bf16.msra.mxu0 %v8693
        %10777 = vmatpush.bf16.msra.mxu0 %v8689
        %10778 = vmatpush.bf16.msra.mxu0 %v8685
        %10779 = vmatmul.bf16.gmra.mxu0 %v5178
        %v10780 = vpop.f32.mrf.mxu0
        %v10781 = vadd.f32 %v10768, %v10780
        %v10782 = vpop.f32.mrf.mxu0
        %10783 = vdwg.mxu0
        %10784 = vmatpush.bf16.msra.mxu0 %v8745
        %10785 = vmatpush.bf16.msra.mxu0 %v8741
        %10786 = vmatpush.bf16.msra.mxu0 %v8737
        %10787 = vmatpush.bf16.msra.mxu0 %v8733
        %10788 = vmatpush.bf16.msra.mxu0 %v8729
        %10789 = vmatpush.bf16.msra.mxu0 %v8725
        %10790 = vmatpush.bf16.msra.mxu0 %v8721
        %10791 = vmatpush.bf16.msra.mxu0 %v8717
        %10792 = vmatmul.bf16.gmra.mxu0 %v5179
        %v10793 = vpop.f32.mrf.mxu0
        %v10794 = vadd.f32 %v10781, %v10793
        %v10795 = vpop.f32.mrf.mxu0
        %10796 = vdwg.mxu0
        %10797 = vmatpush.bf16.msra.mxu0 %v8777
        %10798 = vmatpush.bf16.msra.mxu0 %v8773
        %10799 = vmatpush.bf16.msra.mxu0 %v8769
        %10800 = vmatpush.bf16.msra.mxu0 %v8765
        %10801 = vmatpush.bf16.msra.mxu0 %v8761
        %10802 = vmatpush.bf16.msra.mxu0 %v8757
        %10803 = vmatpush.bf16.msra.mxu0 %v8753
        %10804 = vmatpush.bf16.msra.mxu0 %v8749
        %10805 = vmatmul.bf16.gmra.mxu0 %v5180
        %v10806 = vpop.f32.mrf.mxu0
        %v10807 = vadd.f32 %v10794, %v10806
        %v10808 = vpop.f32.mrf.mxu0
        %10809 = vdwg.mxu0
        %10810 = vmatpush.bf16.msra.mxu0 %v8809
        %10811 = vmatpush.bf16.msra.mxu0 %v8805
        %10812 = vmatpush.bf16.msra.mxu0 %v8801
        %10813 = vmatpush.bf16.msra.mxu0 %v8797
        %10814 = vmatpush.bf16.msra.mxu0 %v8793
        %10815 = vmatpush.bf16.msra.mxu0 %v8789
        %10816 = vmatpush.bf16.msra.mxu0 %v8785
        %10817 = vmatpush.bf16.msra.mxu0 %v8781
        %10818 = vmatmul.bf16.gmra.mxu0 %v5181
        %v10819 = vpop.f32.mrf.mxu0
        %v10820 = vadd.f32 %v10807, %v10819
        %v10821 = vpop.f32.mrf.mxu0
        %10822 = vdwg.mxu0
        %10823 = vmatpush.bf16.msra.mxu0 %v8841
        %10824 = vmatpush.bf16.msra.mxu0 %v8837
        %10825 = vmatpush.bf16.msra.mxu0 %v8833
        %10826 = vmatpush.bf16.msra.mxu0 %v8829
        %10827 = vmatpush.bf16.msra.mxu0 %v8825
        %10828 = vmatpush.bf16.msra.mxu0 %v8821
        %10829 = vmatpush.bf16.msra.mxu0 %v8817
        %10830 = vmatpush.bf16.msra.mxu0 %v8813
        %10831 = vmatmul.bf16.gmra.mxu0 %v5182
        %v10832 = vpop.f32.mrf.mxu0
        %v10833 = vadd.f32 %v10820, %v10832
        %v10834 = vpop.f32.mrf.mxu0
        %10835 = vdwg.mxu0
        %10836 = vmatpush.bf16.msra.mxu0 %v8873
        %10837 = vmatpush.bf16.msra.mxu0 %v8869
        %10838 = vmatpush.bf16.msra.mxu0 %v8865
        %10839 = vmatpush.bf16.msra.mxu0 %v8861
        %10840 = vmatpush.bf16.msra.mxu0 %v8857
        %10841 = vmatpush.bf16.msra.mxu0 %v8853
        %10842 = vmatpush.bf16.msra.mxu0 %v8849
        %10843 = vmatpush.bf16.msra.mxu0 %v8845
        %10844 = vmatmul.bf16.gmra.mxu0 %v5183
        %v10845 = vpop.f32.mrf.mxu0
        %v10846 = vadd.f32 %v10833, %v10845
        %v10847 = vpop.f32.mrf.mxu0
        %10848 = vdwg.mxu0
        %10849 = vmatpush.bf16.msra.mxu0 %v8905
        %10850 = vmatpush.bf16.msra.mxu0 %v8901
        %10851 = vmatpush.bf16.msra.mxu0 %v8897
        %10852 = vmatpush.bf16.msra.mxu0 %v8893
        %10853 = vmatpush.bf16.msra.mxu0 %v8889
        %10854 = vmatpush.bf16.msra.mxu0 %v8885
        %10855 = vmatpush.bf16.msra.mxu0 %v8881
        %10856 = vmatpush.bf16.msra.mxu0 %v8877
        %10857 = vmatmul.bf16.gmra.mxu0 %v5184
        %v10858 = vpop.f32.mrf.mxu0
        %v10859 = vadd.f32 %v10846, %v10858
        %v10860 = vpop.f32.mrf.mxu0
        %10861 = vdwg.mxu0
        %10862 = vmatpush.bf16.msra.mxu0 %v8937
        %10863 = vmatpush.bf16.msra.mxu0 %v8933
        %10864 = vmatpush.bf16.msra.mxu0 %v8929
        %10865 = vmatpush.bf16.msra.mxu0 %v8925
        %10866 = vmatpush.bf16.msra.mxu0 %v8921
        %10867 = vmatpush.bf16.msra.mxu0 %v8917
        %10868 = vmatpush.bf16.msra.mxu0 %v8913
        %10869 = vmatpush.bf16.msra.mxu0 %v8909
        %10870 = vmatmul.bf16.gmra.mxu0 %v5185
        %v10871 = vpop.f32.mrf.mxu0
        %v10872 = vadd.f32 %v10859, %v10871
        %v10873 = vpop.f32.mrf.mxu0
        %10874 = vdwg.mxu0
        %10875 = vmatpush.bf16.msra.mxu0 %v8969
        %10876 = vmatpush.bf16.msra.mxu0 %v8965
        %10877 = vmatpush.bf16.msra.mxu0 %v8961
        %10878 = vmatpush.bf16.msra.mxu0 %v8957
        %10879 = vmatpush.bf16.msra.mxu0 %v8953
        %10880 = vmatpush.bf16.msra.mxu0 %v8949
        %10881 = vmatpush.bf16.msra.mxu0 %v8945
        %10882 = vmatpush.bf16.msra.mxu0 %v8941
        %10883 = vmatmul.bf16.gmra.mxu0 %v5186
        %v10884 = vpop.f32.mrf.mxu0
        %v10885 = vadd.f32 %v10872, %v10884
        %v10886 = vpop.f32.mrf.mxu0
        %10887 = vdwg.mxu0
        %10888 = vmatpush.bf16.msra.mxu0 %v9001
        %10889 = vmatpush.bf16.msra.mxu0 %v8997
        %10890 = vmatpush.bf16.msra.mxu0 %v8993
        %10891 = vmatpush.bf16.msra.mxu0 %v8989
        %10892 = vmatpush.bf16.msra.mxu0 %v8985
        %10893 = vmatpush.bf16.msra.mxu0 %v8981
        %10894 = vmatpush.bf16.msra.mxu0 %v8977
        %10895 = vmatpush.bf16.msra.mxu0 %v8973
        %10896 = vmatmul.bf16.gmra.mxu0 %v5187
        %v10897 = vpop.f32.mrf.mxu0
        %v10898 = vadd.f32 %v10885, %v10897
        %v10899 = vpop.f32.mrf.mxu0
        %10900 = vdwg.mxu0
        %10901 = vmatpush.bf16.msra.mxu0 %v9033
        %10902 = vmatpush.bf16.msra.mxu0 %v9029
        %10903 = vmatpush.bf16.msra.mxu0 %v9025
        %10904 = vmatpush.bf16.msra.mxu0 %v9021
        %10905 = vmatpush.bf16.msra.mxu0 %v9017
        %10906 = vmatpush.bf16.msra.mxu0 %v9013
        %10907 = vmatpush.bf16.msra.mxu0 %v9009
        %10908 = vmatpush.bf16.msra.mxu0 %v9005
        %10909 = vmatmul.bf16.gmra.mxu0 %v5188
        %v10910 = vpop.f32.mrf.mxu0
        %v10911 = vadd.f32 %v10898, %v10910
        %v10912 = vpop.f32.mrf.mxu0
        %10913 = vdwg.mxu0
        %10914 = vmatpush.bf16.msra.mxu0 %v9065
        %10915 = vmatpush.bf16.msra.mxu0 %v9061
        %10916 = vmatpush.bf16.msra.mxu0 %v9057
        %10917 = vmatpush.bf16.msra.mxu0 %v9053
        %10918 = vmatpush.bf16.msra.mxu0 %v9049
        %10919 = vmatpush.bf16.msra.mxu0 %v9045
        %10920 = vmatpush.bf16.msra.mxu0 %v9041
        %10921 = vmatpush.bf16.msra.mxu0 %v9037
        %10922 = vmatmul.bf16.gmra.mxu0 %v5189
        %v10923 = vpop.f32.mrf.mxu0
        %v10924 = vadd.f32 %v10911, %v10923
        %v10925 = vpop.f32.mrf.mxu0
        %10926 = vdwg.mxu0
        %10927 = vmatpush.bf16.msra.mxu0 %v9097
        %10928 = vmatpush.bf16.msra.mxu0 %v9093
        %10929 = vmatpush.bf16.msra.mxu0 %v9089
        %10930 = vmatpush.bf16.msra.mxu0 %v9085
        %10931 = vmatpush.bf16.msra.mxu0 %v9081
        %10932 = vmatpush.bf16.msra.mxu0 %v9077
        %10933 = vmatpush.bf16.msra.mxu0 %v9073
        %10934 = vmatpush.bf16.msra.mxu0 %v9069
        %10935 = vmatmul.bf16.gmra.mxu0 %v5190
        %v10936 = vpop.f32.mrf.mxu0
        %v10937 = vadd.f32 %v10924, %v10936
        %v10938 = vpop.f32.mrf.mxu0
        %10939 = vdwg.mxu0
        %10940 = vmatpush.bf16.msra.mxu0 %v9129
        %10941 = vmatpush.bf16.msra.mxu0 %v9125
        %10942 = vmatpush.bf16.msra.mxu0 %v9121
        %10943 = vmatpush.bf16.msra.mxu0 %v9117
        %10944 = vmatpush.bf16.msra.mxu0 %v9113
        %10945 = vmatpush.bf16.msra.mxu0 %v9109
        %10946 = vmatpush.bf16.msra.mxu0 %v9105
        %10947 = vmatpush.bf16.msra.mxu0 %v9101
        %10948 = vmatmul.bf16.gmra.mxu0 %v5191
        %v10949 = vpop.f32.mrf.mxu0
        %v10950 = vadd.f32 %v10937, %v10949
        %v10951 = vpop.f32.mrf.mxu0
        %10952 = vdwg.mxu0
        %10953 = vmatpush.bf16.msra.mxu0 %v9161
        %10954 = vmatpush.bf16.msra.mxu0 %v9157
        %10955 = vmatpush.bf16.msra.mxu0 %v9153
        %10956 = vmatpush.bf16.msra.mxu0 %v9149
        %10957 = vmatpush.bf16.msra.mxu0 %v9145
        %10958 = vmatpush.bf16.msra.mxu0 %v9141
        %10959 = vmatpush.bf16.msra.mxu0 %v9137
        %10960 = vmatpush.bf16.msra.mxu0 %v9133
        %10961 = vmatmul.bf16.gmra.mxu0 %v5192
        %v10962 = vpop.f32.mrf.mxu0
        %v10963 = vadd.f32 %v10950, %v10962
        %v10964 = vpop.f32.mrf.mxu0
        %10965 = vdwg.mxu0
        %10966 = vmatpush.bf16.msra.mxu0 %v9193
        %10967 = vmatpush.bf16.msra.mxu0 %v9189
        %10968 = vmatpush.bf16.msra.mxu0 %v9185
        %10969 = vmatpush.bf16.msra.mxu0 %v9181
        %10970 = vmatpush.bf16.msra.mxu0 %v9177
        %10971 = vmatpush.bf16.msra.mxu0 %v9173
        %10972 = vmatpush.bf16.msra.mxu0 %v9169
        %10973 = vmatpush.bf16.msra.mxu0 %v9165
        %10974 = vmatmul.bf16.gmra.mxu0 %v5193
        %v10975 = vpop.f32.mrf.mxu0
        %v10976 = vadd.f32 %v10963, %v10975
        %v10977 = vpop.f32.mrf.mxu0
        %10978 = vdwg.mxu0
        %10979 = vmatpush.bf16.msra.mxu0 %v8426
        %10980 = vmatpush.bf16.msra.mxu0 %v8422
        %10981 = vmatpush.bf16.msra.mxu0 %v8418
        %10982 = vmatpush.bf16.msra.mxu0 %v8414
        %10983 = vmatpush.bf16.msra.mxu0 %v8410
        %10984 = vmatpush.bf16.msra.mxu0 %v8406
        %10985 = vmatpush.bf16.msra.mxu0 %v8402
        %10986 = vmatpush.bf16.msra.mxu0 %v8398
        %10987 = vmatmul.bf16.gmra.mxu0 %v5169
        %v10988 = vpop.f32.mrf.mxu0
        %v10989 = vadd.f32 %v9999, %v10988
        %v10990 = vpop.f32.mrf.mxu0
        %10991 = vdwg.mxu0
        %10992 = vmatpush.bf16.msra.mxu0 %v8458
        %10993 = vmatpush.bf16.msra.mxu0 %v8454
        %10994 = vmatpush.bf16.msra.mxu0 %v8450
        %10995 = vmatpush.bf16.msra.mxu0 %v8446
        %10996 = vmatpush.bf16.msra.mxu0 %v8442
        %10997 = vmatpush.bf16.msra.mxu0 %v8438
        %10998 = vmatpush.bf16.msra.mxu0 %v8434
        %10999 = vmatpush.bf16.msra.mxu0 %v8430
        %11000 = vmatmul.bf16.gmra.mxu0 %v5170
        %v11001 = vpop.f32.mrf.mxu0
        %v11002 = vadd.f32 %v10989, %v11001
        %v11003 = vpop.f32.mrf.mxu0
        %11004 = vdwg.mxu0
        %11005 = vmatpush.bf16.msra.mxu0 %v8490
        %11006 = vmatpush.bf16.msra.mxu0 %v8486
        %11007 = vmatpush.bf16.msra.mxu0 %v8482
        %11008 = vmatpush.bf16.msra.mxu0 %v8478
        %11009 = vmatpush.bf16.msra.mxu0 %v8474
        %11010 = vmatpush.bf16.msra.mxu0 %v8470
        %11011 = vmatpush.bf16.msra.mxu0 %v8466
        %11012 = vmatpush.bf16.msra.mxu0 %v8462
        %11013 = vmatmul.bf16.gmra.mxu0 %v5171
        %v11014 = vpop.f32.mrf.mxu0
        %v11015 = vadd.f32 %v11002, %v11014
        %v11016 = vpop.f32.mrf.mxu0
        %11017 = vdwg.mxu0
        %11018 = vmatpush.bf16.msra.mxu0 %v8522
        %11019 = vmatpush.bf16.msra.mxu0 %v8518
        %11020 = vmatpush.bf16.msra.mxu0 %v8514
        %11021 = vmatpush.bf16.msra.mxu0 %v8510
        %11022 = vmatpush.bf16.msra.mxu0 %v8506
        %11023 = vmatpush.bf16.msra.mxu0 %v8502
        %11024 = vmatpush.bf16.msra.mxu0 %v8498
        %11025 = vmatpush.bf16.msra.mxu0 %v8494
        %11026 = vmatmul.bf16.gmra.mxu0 %v5172
        %v11027 = vpop.f32.mrf.mxu0
        %v11028 = vadd.f32 %v11015, %v11027
        %v11029 = vpop.f32.mrf.mxu0
        %11030 = vdwg.mxu0
        %11031 = vmatpush.bf16.msra.mxu0 %v8554
        %11032 = vmatpush.bf16.msra.mxu0 %v8550
        %11033 = vmatpush.bf16.msra.mxu0 %v8546
        %11034 = vmatpush.bf16.msra.mxu0 %v8542
        %11035 = vmatpush.bf16.msra.mxu0 %v8538
        %11036 = vmatpush.bf16.msra.mxu0 %v8534
        %11037 = vmatpush.bf16.msra.mxu0 %v8530
        %11038 = vmatpush.bf16.msra.mxu0 %v8526
        %11039 = vmatmul.bf16.gmra.mxu0 %v5173
        %v11040 = vpop.f32.mrf.mxu0
        %v11041 = vadd.f32 %v11028, %v11040
        %v11042 = vpop.f32.mrf.mxu0
        %11043 = vdwg.mxu0
        %11044 = vmatpush.bf16.msra.mxu0 %v8586
        %11045 = vmatpush.bf16.msra.mxu0 %v8582
        %11046 = vmatpush.bf16.msra.mxu0 %v8578
        %11047 = vmatpush.bf16.msra.mxu0 %v8574
        %11048 = vmatpush.bf16.msra.mxu0 %v8570
        %11049 = vmatpush.bf16.msra.mxu0 %v8566
        %11050 = vmatpush.bf16.msra.mxu0 %v8562
        %11051 = vmatpush.bf16.msra.mxu0 %v8558
        %11052 = vmatmul.bf16.gmra.mxu0 %v5174
        %v11053 = vpop.f32.mrf.mxu0
        %v11054 = vadd.f32 %v11041, %v11053
        %v11055 = vpop.f32.mrf.mxu0
        %11056 = vdwg.mxu0
        %11057 = vmatpush.bf16.msra.mxu0 %v8618
        %11058 = vmatpush.bf16.msra.mxu0 %v8614
        %11059 = vmatpush.bf16.msra.mxu0 %v8610
        %11060 = vmatpush.bf16.msra.mxu0 %v8606
        %11061 = vmatpush.bf16.msra.mxu0 %v8602
        %11062 = vmatpush.bf16.msra.mxu0 %v8598
        %11063 = vmatpush.bf16.msra.mxu0 %v8594
        %11064 = vmatpush.bf16.msra.mxu0 %v8590
        %11065 = vmatmul.bf16.gmra.mxu0 %v5175
        %v11066 = vpop.f32.mrf.mxu0
        %v11067 = vadd.f32 %v11054, %v11066
        %v11068 = vpop.f32.mrf.mxu0
        %11069 = vdwg.mxu0
        %11070 = vmatpush.bf16.msra.mxu0 %v8650
        %11071 = vmatpush.bf16.msra.mxu0 %v8646
        %11072 = vmatpush.bf16.msra.mxu0 %v8642
        %11073 = vmatpush.bf16.msra.mxu0 %v8638
        %11074 = vmatpush.bf16.msra.mxu0 %v8634
        %11075 = vmatpush.bf16.msra.mxu0 %v8630
        %11076 = vmatpush.bf16.msra.mxu0 %v8626
        %11077 = vmatpush.bf16.msra.mxu0 %v8622
        %11078 = vmatmul.bf16.gmra.mxu0 %v5176
        %v11079 = vpop.f32.mrf.mxu0
        %v11080 = vadd.f32 %v11067, %v11079
        %v11081 = vpop.f32.mrf.mxu0
        %11082 = vdwg.mxu0
        %11083 = vmatpush.bf16.msra.mxu0 %v8682
        %11084 = vmatpush.bf16.msra.mxu0 %v8678
        %11085 = vmatpush.bf16.msra.mxu0 %v8674
        %11086 = vmatpush.bf16.msra.mxu0 %v8670
        %11087 = vmatpush.bf16.msra.mxu0 %v8666
        %11088 = vmatpush.bf16.msra.mxu0 %v8662
        %11089 = vmatpush.bf16.msra.mxu0 %v8658
        %11090 = vmatpush.bf16.msra.mxu0 %v8654
        %11091 = vmatmul.bf16.gmra.mxu0 %v5177
        %v11092 = vpop.f32.mrf.mxu0
        %v11093 = vadd.f32 %v11080, %v11092
        %v11094 = vpop.f32.mrf.mxu0
        %11095 = vdwg.mxu0
        %11096 = vmatpush.bf16.msra.mxu0 %v8714
        %11097 = vmatpush.bf16.msra.mxu0 %v8710
        %11098 = vmatpush.bf16.msra.mxu0 %v8706
        %11099 = vmatpush.bf16.msra.mxu0 %v8702
        %11100 = vmatpush.bf16.msra.mxu0 %v8698
        %11101 = vmatpush.bf16.msra.mxu0 %v8694
        %11102 = vmatpush.bf16.msra.mxu0 %v8690
        %11103 = vmatpush.bf16.msra.mxu0 %v8686
        %11104 = vmatmul.bf16.gmra.mxu0 %v5178
        %v11105 = vpop.f32.mrf.mxu0
        %v11106 = vadd.f32 %v11093, %v11105
        %v11107 = vpop.f32.mrf.mxu0
        %11108 = vdwg.mxu0
        %11109 = vmatpush.bf16.msra.mxu0 %v8746
        %11110 = vmatpush.bf16.msra.mxu0 %v8742
        %11111 = vmatpush.bf16.msra.mxu0 %v8738
        %11112 = vmatpush.bf16.msra.mxu0 %v8734
        %11113 = vmatpush.bf16.msra.mxu0 %v8730
        %11114 = vmatpush.bf16.msra.mxu0 %v8726
        %11115 = vmatpush.bf16.msra.mxu0 %v8722
        %11116 = vmatpush.bf16.msra.mxu0 %v8718
        %11117 = vmatmul.bf16.gmra.mxu0 %v5179
        %v11118 = vpop.f32.mrf.mxu0
        %v11119 = vadd.f32 %v11106, %v11118
        %v11120 = vpop.f32.mrf.mxu0
        %11121 = vdwg.mxu0
        %11122 = vmatpush.bf16.msra.mxu0 %v8778
        %11123 = vmatpush.bf16.msra.mxu0 %v8774
        %11124 = vmatpush.bf16.msra.mxu0 %v8770
        %11125 = vmatpush.bf16.msra.mxu0 %v8766
        %11126 = vmatpush.bf16.msra.mxu0 %v8762
        %11127 = vmatpush.bf16.msra.mxu0 %v8758
        %11128 = vmatpush.bf16.msra.mxu0 %v8754
        %11129 = vmatpush.bf16.msra.mxu0 %v8750
        %11130 = vmatmul.bf16.gmra.mxu0 %v5180
        %v11131 = vpop.f32.mrf.mxu0
        %v11132 = vadd.f32 %v11119, %v11131
        %v11133 = vpop.f32.mrf.mxu0
        %11134 = vdwg.mxu0
        %11135 = vmatpush.bf16.msra.mxu0 %v8810
        %11136 = vmatpush.bf16.msra.mxu0 %v8806
        %11137 = vmatpush.bf16.msra.mxu0 %v8802
        %11138 = vmatpush.bf16.msra.mxu0 %v8798
        %11139 = vmatpush.bf16.msra.mxu0 %v8794
        %11140 = vmatpush.bf16.msra.mxu0 %v8790
        %11141 = vmatpush.bf16.msra.mxu0 %v8786
        %11142 = vmatpush.bf16.msra.mxu0 %v8782
        %11143 = vmatmul.bf16.gmra.mxu0 %v5181
        %v11144 = vpop.f32.mrf.mxu0
        %v11145 = vadd.f32 %v11132, %v11144
        %v11146 = vpop.f32.mrf.mxu0
        %11147 = vdwg.mxu0
        %11148 = vmatpush.bf16.msra.mxu0 %v8842
        %11149 = vmatpush.bf16.msra.mxu0 %v8838
        %11150 = vmatpush.bf16.msra.mxu0 %v8834
        %11151 = vmatpush.bf16.msra.mxu0 %v8830
        %11152 = vmatpush.bf16.msra.mxu0 %v8826
        %11153 = vmatpush.bf16.msra.mxu0 %v8822
        %11154 = vmatpush.bf16.msra.mxu0 %v8818
        %11155 = vmatpush.bf16.msra.mxu0 %v8814
        %11156 = vmatmul.bf16.gmra.mxu0 %v5182
        %v11157 = vpop.f32.mrf.mxu0
        %v11158 = vadd.f32 %v11145, %v11157
        %v11159 = vpop.f32.mrf.mxu0
        %11160 = vdwg.mxu0
        %11161 = vmatpush.bf16.msra.mxu0 %v8874
        %11162 = vmatpush.bf16.msra.mxu0 %v8870
        %11163 = vmatpush.bf16.msra.mxu0 %v8866
        %11164 = vmatpush.bf16.msra.mxu0 %v8862
        %11165 = vmatpush.bf16.msra.mxu0 %v8858
        %11166 = vmatpush.bf16.msra.mxu0 %v8854
        %11167 = vmatpush.bf16.msra.mxu0 %v8850
        %11168 = vmatpush.bf16.msra.mxu0 %v8846
        %11169 = vmatmul.bf16.gmra.mxu0 %v5183
        %v11170 = vpop.f32.mrf.mxu0
        %v11171 = vadd.f32 %v11158, %v11170
        %v11172 = vpop.f32.mrf.mxu0
        %11173 = vdwg.mxu0
        %11174 = vmatpush.bf16.msra.mxu0 %v8906
        %11175 = vmatpush.bf16.msra.mxu0 %v8902
        %11176 = vmatpush.bf16.msra.mxu0 %v8898
        %11177 = vmatpush.bf16.msra.mxu0 %v8894
        %11178 = vmatpush.bf16.msra.mxu0 %v8890
        %11179 = vmatpush.bf16.msra.mxu0 %v8886
        %11180 = vmatpush.bf16.msra.mxu0 %v8882
        %11181 = vmatpush.bf16.msra.mxu0 %v8878
        %11182 = vmatmul.bf16.gmra.mxu0 %v5184
        %v11183 = vpop.f32.mrf.mxu0
        %v11184 = vadd.f32 %v11171, %v11183
        %v11185 = vpop.f32.mrf.mxu0
        %11186 = vdwg.mxu0
        %11187 = vmatpush.bf16.msra.mxu0 %v8938
        %11188 = vmatpush.bf16.msra.mxu0 %v8934
        %11189 = vmatpush.bf16.msra.mxu0 %v8930
        %11190 = vmatpush.bf16.msra.mxu0 %v8926
        %11191 = vmatpush.bf16.msra.mxu0 %v8922
        %11192 = vmatpush.bf16.msra.mxu0 %v8918
        %11193 = vmatpush.bf16.msra.mxu0 %v8914
        %11194 = vmatpush.bf16.msra.mxu0 %v8910
        %11195 = vmatmul.bf16.gmra.mxu0 %v5185
        %v11196 = vpop.f32.mrf.mxu0
        %v11197 = vadd.f32 %v11184, %v11196
        %v11198 = vpop.f32.mrf.mxu0
        %11199 = vdwg.mxu0
        %11200 = vmatpush.bf16.msra.mxu0 %v8970
        %11201 = vmatpush.bf16.msra.mxu0 %v8966
        %11202 = vmatpush.bf16.msra.mxu0 %v8962
        %11203 = vmatpush.bf16.msra.mxu0 %v8958
        %11204 = vmatpush.bf16.msra.mxu0 %v8954
        %11205 = vmatpush.bf16.msra.mxu0 %v8950
        %11206 = vmatpush.bf16.msra.mxu0 %v8946
        %11207 = vmatpush.bf16.msra.mxu0 %v8942
        %11208 = vmatmul.bf16.gmra.mxu0 %v5186
        %v11209 = vpop.f32.mrf.mxu0
        %v11210 = vadd.f32 %v11197, %v11209
        %v11211 = vpop.f32.mrf.mxu0
        %11212 = vdwg.mxu0
        %11213 = vmatpush.bf16.msra.mxu0 %v9002
        %11214 = vmatpush.bf16.msra.mxu0 %v8998
        %11215 = vmatpush.bf16.msra.mxu0 %v8994
        %11216 = vmatpush.bf16.msra.mxu0 %v8990
        %11217 = vmatpush.bf16.msra.mxu0 %v8986
        %11218 = vmatpush.bf16.msra.mxu0 %v8982
        %11219 = vmatpush.bf16.msra.mxu0 %v8978
        %11220 = vmatpush.bf16.msra.mxu0 %v8974
        %11221 = vmatmul.bf16.gmra.mxu0 %v5187
        %v11222 = vpop.f32.mrf.mxu0
        %v11223 = vadd.f32 %v11210, %v11222
        %v11224 = vpop.f32.mrf.mxu0
        %11225 = vdwg.mxu0
        %11226 = vmatpush.bf16.msra.mxu0 %v9034
        %11227 = vmatpush.bf16.msra.mxu0 %v9030
        %11228 = vmatpush.bf16.msra.mxu0 %v9026
        %11229 = vmatpush.bf16.msra.mxu0 %v9022
        %11230 = vmatpush.bf16.msra.mxu0 %v9018
        %11231 = vmatpush.bf16.msra.mxu0 %v9014
        %11232 = vmatpush.bf16.msra.mxu0 %v9010
        %11233 = vmatpush.bf16.msra.mxu0 %v9006
        %11234 = vmatmul.bf16.gmra.mxu0 %v5188
        %v11235 = vpop.f32.mrf.mxu0
        %v11236 = vadd.f32 %v11223, %v11235
        %v11237 = vpop.f32.mrf.mxu0
        %11238 = vdwg.mxu0
        %11239 = vmatpush.bf16.msra.mxu0 %v9066
        %11240 = vmatpush.bf16.msra.mxu0 %v9062
        %11241 = vmatpush.bf16.msra.mxu0 %v9058
        %11242 = vmatpush.bf16.msra.mxu0 %v9054
        %11243 = vmatpush.bf16.msra.mxu0 %v9050
        %11244 = vmatpush.bf16.msra.mxu0 %v9046
        %11245 = vmatpush.bf16.msra.mxu0 %v9042
        %11246 = vmatpush.bf16.msra.mxu0 %v9038
        %11247 = vmatmul.bf16.gmra.mxu0 %v5189
        %v11248 = vpop.f32.mrf.mxu0
        %v11249 = vadd.f32 %v11236, %v11248
        %v11250 = vpop.f32.mrf.mxu0
        %11251 = vdwg.mxu0
        %11252 = vmatpush.bf16.msra.mxu0 %v9098
        %11253 = vmatpush.bf16.msra.mxu0 %v9094
        %11254 = vmatpush.bf16.msra.mxu0 %v9090
        %11255 = vmatpush.bf16.msra.mxu0 %v9086
        %11256 = vmatpush.bf16.msra.mxu0 %v9082
        %11257 = vmatpush.bf16.msra.mxu0 %v9078
        %11258 = vmatpush.bf16.msra.mxu0 %v9074
        %11259 = vmatpush.bf16.msra.mxu0 %v9070
        %11260 = vmatmul.bf16.gmra.mxu0 %v5190
        %v11261 = vpop.f32.mrf.mxu0
        %v11262 = vadd.f32 %v11249, %v11261
        %v11263 = vpop.f32.mrf.mxu0
        %11264 = vdwg.mxu0
        %11265 = vmatpush.bf16.msra.mxu0 %v9130
        %11266 = vmatpush.bf16.msra.mxu0 %v9126
        %11267 = vmatpush.bf16.msra.mxu0 %v9122
        %11268 = vmatpush.bf16.msra.mxu0 %v9118
        %11269 = vmatpush.bf16.msra.mxu0 %v9114
        %11270 = vmatpush.bf16.msra.mxu0 %v9110
        %11271 = vmatpush.bf16.msra.mxu0 %v9106
        %11272 = vmatpush.bf16.msra.mxu0 %v9102
        %11273 = vmatmul.bf16.gmra.mxu0 %v5191
        %v11274 = vpop.f32.mrf.mxu0
        %v11275 = vadd.f32 %v11262, %v11274
        %v11276 = vpop.f32.mrf.mxu0
        %11277 = vdwg.mxu0
        %11278 = vmatpush.bf16.msra.mxu0 %v9162
        %11279 = vmatpush.bf16.msra.mxu0 %v9158
        %11280 = vmatpush.bf16.msra.mxu0 %v9154
        %11281 = vmatpush.bf16.msra.mxu0 %v9150
        %11282 = vmatpush.bf16.msra.mxu0 %v9146
        %11283 = vmatpush.bf16.msra.mxu0 %v9142
        %11284 = vmatpush.bf16.msra.mxu0 %v9138
        %11285 = vmatpush.bf16.msra.mxu0 %v9134
        %11286 = vmatmul.bf16.gmra.mxu0 %v5192
        %v11287 = vpop.f32.mrf.mxu0
        %v11288 = vadd.f32 %v11275, %v11287
        %v11289 = vpop.f32.mrf.mxu0
        %11290 = vdwg.mxu0
        %11291 = vmatpush.bf16.msra.mxu0 %v9194
        %11292 = vmatpush.bf16.msra.mxu0 %v9190
        %11293 = vmatpush.bf16.msra.mxu0 %v9186
        %11294 = vmatpush.bf16.msra.mxu0 %v9182
        %11295 = vmatpush.bf16.msra.mxu0 %v9178
        %11296 = vmatpush.bf16.msra.mxu0 %v9174
        %11297 = vmatpush.bf16.msra.mxu0 %v9170
        %11298 = vmatpush.bf16.msra.mxu0 %v9166
        %11299 = vmatmul.bf16.gmra.mxu0 %v5193
        %v11300 = vpop.f32.mrf.mxu0
        %v11301 = vadd.f32 %v11288, %v11300
        %v11302 = vpop.f32.mrf.mxu0
        %11303 = vdwg.mxu0
        %v11304 = vmax.f32 %v10326, 0.0
        %v11305 = vmax.f32 %v10651, 0.0
        %v11306 = vmax.f32 %v10976, 0.0
        %v11307 = vmax.f32 %v11301, 0.0
        %v11308 = vpack.c.bf16 %v11304, %v11304
        %v11309 = vpack.c.bf16 %v11305, %v11305
        %v11310 = vpack.c.bf16 %v11306, %v11306
        %v11311 = vpack.c.bf16 %v11307, %v11307
        %v11312 = vld [vmem:[%s9] sm:$0xf]
        %v11313 = vld [vmem:[%s9 + $0x4] sm:$0xf]
        %v11314 = vld [vmem:[%s9 + $0x8] sm:$0xf]
        %v11315 = vld [vmem:[%s9 + $0xc] sm:$0xf]
        %v11316 = vld [vmem:[%s9 + $0x10] sm:$0xf]
        %v11317 = vld [vmem:[%s9 + $0x14] sm:$0xf]
        %v11318 = vld [vmem:[%s9 + $0x18] sm:$0xf]
        %v11319 = vld [vmem:[%s9 + $0x1c] sm:$0xf]
        %v11320 = vld [vmem:[%s9 + $0x20] sm:$0xf]
        %v11321 = vld [vmem:[%s9 + $0x24] sm:$0xf]
        %v11322 = vld [vmem:[%s9 + $0x28] sm:$0xf]
        %v11323 = vld [vmem:[%s9 + $0x2c] sm:$0xf]
        %v11324 = vld [vmem:[%s9 + $0x30] sm:$0xf]
        %v11325 = vld [vmem:[%s9 + $0x34] sm:$0xf]
        %v11326 = vld [vmem:[%s9 + $0x38] sm:$0xf]
        %v11327 = vld [vmem:[%s9 + $0x3c] sm:$0xf]
        %v11328 = vld [vmem:[%s9 + $0x40] sm:$0xf]
        %v11329 = vld [vmem:[%s9 + $0x44] sm:$0xf]
        %v11330 = vld [vmem:[%s9 + $0x48] sm:$0xf]
        %v11331 = vld [vmem:[%s9 + $0x4c] sm:$0xf]
        %v11332 = vld [vmem:[%s9 + $0x50] sm:$0xf]
        %v11333 = vld [vmem:[%s9 + $0x54] sm:$0xf]
        %v11334 = vld [vmem:[%s9 + $0x58] sm:$0xf]
        %v11335 = vld [vmem:[%s9 + $0x5c] sm:$0xf]
        %v11336 = vld [vmem:[%s9 + $0x60] sm:$0xf]
        %v11337 = vld [vmem:[%s9 + $0x64] sm:$0xf]
        %v11338 = vld [vmem:[%s9 + $0x68] sm:$0xf]
        %v11339 = vld [vmem:[%s9 + $0x6c] sm:$0xf]
        %v11340 = vld [vmem:[%s9 + $0x70] sm:$0xf]
        %v11341 = vld [vmem:[%s9 + $0x74] sm:$0xf]
        %v11342 = vld [vmem:[%s9 + $0x78] sm:$0xf]
        %v11343 = vld [vmem:[%s9 + $0x7c] sm:$0xf]
        %v11344 = vld [vmem:[%s9 + $0x80] sm:$0xf]
        %v11345 = vld [vmem:[%s9 + $0x84] sm:$0xf]
        %v11346 = vld [vmem:[%s9 + $0x88] sm:$0xf]
        %v11347 = vld [vmem:[%s9 + $0x8c] sm:$0xf]
        %v11348 = vld [vmem:[%s9 + $0x90] sm:$0xf]
        %v11349 = vld [vmem:[%s9 + $0x94] sm:$0xf]
        %v11350 = vld [vmem:[%s9 + $0x98] sm:$0xf]
        %v11351 = vld [vmem:[%s9 + $0x9c] sm:$0xf]
        %v11352 = vld [vmem:[%s9 + $0xa0] sm:$0xf]
        %v11353 = vld [vmem:[%s9 + $0xa4] sm:$0xf]
        %v11354 = vld [vmem:[%s9 + $0xa8] sm:$0xf]
        %v11355 = vld [vmem:[%s9 + $0xac] sm:$0xf]
        %v11356 = vld [vmem:[%s9 + $0xb0] sm:$0xf]
        %v11357 = vld [vmem:[%s9 + $0xb4] sm:$0xf]
        %v11358 = vld [vmem:[%s9 + $0xb8] sm:$0xf]
        %v11359 = vld [vmem:[%s9 + $0xbc] sm:$0xf]
        %v11360 = vld [vmem:[%s9 + $0xc0] sm:$0xf]
        %v11361 = vld [vmem:[%s9 + $0xc4] sm:$0xf]
        %v11362 = vld [vmem:[%s9 + $0xc8] sm:$0xf]
        %v11363 = vld [vmem:[%s9 + $0xcc] sm:$0xf]
        %v11364 = vld [vmem:[%s9 + $0xd0] sm:$0xf]
        %v11365 = vld [vmem:[%s9 + $0xd4] sm:$0xf]
        %v11366 = vld [vmem:[%s9 + $0xd8] sm:$0xf]
        %v11367 = vld [vmem:[%s9 + $0xdc] sm:$0xf]
        %v11368 = vld [vmem:[%s9 + $0xe0] sm:$0xf]
        %v11369 = vld [vmem:[%s9 + $0xe4] sm:$0xf]
        %v11370 = vld [vmem:[%s9 + $0xe8] sm:$0xf]
        %v11371 = vld [vmem:[%s9 + $0xec] sm:$0xf]
        %v11372 = vld [vmem:[%s9 + $0xf0] sm:$0xf]
        %v11373 = vld [vmem:[%s9 + $0xf4] sm:$0xf]
        %v11374 = vld [vmem:[%s9 + $0xf8] sm:$0xf]
        %v11375 = vld [vmem:[%s9 + $0xfc] sm:$0xf]
        %v11376 = vld [vmem:[%s10] sm:$0x1]
        %v11441 = vunpack.c.l.b16 %v11312
        %v11442 = vunpack.c.l.b16 %v11313
        %v11443 = vunpack.c.l.b16 %v11314
        %v11444 = vunpack.c.l.b16 %v11315
        %v11445 = vunpack.c.l.b16 %v11316
        %v11446 = vunpack.c.l.b16 %v11317
        %v11447 = vunpack.c.l.b16 %v11318
        %v11448 = vunpack.c.l.b16 %v11319
        %v11449 = vunpack.c.l.b16 %v11320
        %v11450 = vunpack.c.l.b16 %v11321
        %v11451 = vunpack.c.l.b16 %v11322
        %v11452 = vunpack.c.l.b16 %v11323
        %v11453 = vunpack.c.l.b16 %v11324
        %v11454 = vunpack.c.l.b16 %v11325
        %v11455 = vunpack.c.l.b16 %v11326
        %v11456 = vunpack.c.l.b16 %v11327
        %v11457 = vunpack.c.l.b16 %v11328
        %v11458 = vunpack.c.l.b16 %v11329
        %v11459 = vunpack.c.l.b16 %v11330
        %v11460 = vunpack.c.l.b16 %v11331
        %v11461 = vunpack.c.l.b16 %v11332
        %v11462 = vunpack.c.l.b16 %v11333
        %v11463 = vunpack.c.l.b16 %v11334
        %v11464 = vunpack.c.l.b16 %v11335
        %v11465 = vunpack.c.l.b16 %v11336
        %v11466 = vunpack.c.l.b16 %v11337
        %v11467 = vunpack.c.l.b16 %v11338
        %v11468 = vunpack.c.l.b16 %v11339
        %v11469 = vunpack.c.l.b16 %v11340
        %v11470 = vunpack.c.l.b16 %v11341
        %v11471 = vunpack.c.l.b16 %v11342
        %v11472 = vunpack.c.l.b16 %v11343
        %v11473 = vunpack.c.l.b16 %v11344
        %v11474 = vunpack.c.l.b16 %v11345
        %v11475 = vunpack.c.l.b16 %v11346
        %v11476 = vunpack.c.l.b16 %v11347
        %v11477 = vunpack.c.l.b16 %v11348
        %v11478 = vunpack.c.l.b16 %v11349
        %v11479 = vunpack.c.l.b16 %v11350
        %v11480 = vunpack.c.l.b16 %v11351
        %v11481 = vunpack.c.l.b16 %v11352
        %v11482 = vunpack.c.l.b16 %v11353
        %v11483 = vunpack.c.l.b16 %v11354
        %v11484 = vunpack.c.l.b16 %v11355
        %v11485 = vunpack.c.l.b16 %v11356
        %v11486 = vunpack.c.l.b16 %v11357
        %v11487 = vunpack.c.l.b16 %v11358
        %v11488 = vunpack.c.l.b16 %v11359
        %v11489 = vunpack.c.l.b16 %v11360
        %v11490 = vunpack.c.l.b16 %v11361
        %v11491 = vunpack.c.l.b16 %v11362
        %v11492 = vunpack.c.l.b16 %v11363
        %v11493 = vunpack.c.l.b16 %v11364
        %v11494 = vunpack.c.l.b16 %v11365
        %v11495 = vunpack.c.l.b16 %v11366
        %v11496 = vunpack.c.l.b16 %v11367
        %v11497 = vunpack.c.l.b16 %v11368
        %v11498 = vunpack.c.l.b16 %v11369
        %v11499 = vunpack.c.l.b16 %v11370
        %v11500 = vunpack.c.l.b16 %v11371
        %v11501 = vunpack.c.l.b16 %v11372
        %v11502 = vunpack.c.l.b16 %v11373
        %v11503 = vunpack.c.l.b16 %v11374
        %v11504 = vunpack.c.l.b16 %v11375
        %v11505 = vpack.c.b16 %v11442, %v11441
        %v11506 = vpack.c.b16 %v11444, %v11443
        %v11507 = vpack.c.b16 %v11446, %v11445
        %v11508 = vpack.c.b16 %v11448, %v11447
        %v11509 = vpack.c.b16 %v11450, %v11449
        %v11510 = vpack.c.b16 %v11452, %v11451
        %v11511 = vpack.c.b16 %v11454, %v11453
        %v11512 = vpack.c.b16 %v11456, %v11455
        %v11513 = vpack.c.b16 %v11458, %v11457
        %v11514 = vpack.c.b16 %v11460, %v11459
        %v11515 = vpack.c.b16 %v11462, %v11461
        %v11516 = vpack.c.b16 %v11464, %v11463
        %v11517 = vpack.c.b16 %v11466, %v11465
        %v11518 = vpack.c.b16 %v11468, %v11467
        %v11519 = vpack.c.b16 %v11470, %v11469
        %v11520 = vpack.c.b16 %v11472, %v11471
        %v11521 = vpack.c.b16 %v11474, %v11473
        %v11522 = vpack.c.b16 %v11476, %v11475
        %v11523 = vpack.c.b16 %v11478, %v11477
        %v11524 = vpack.c.b16 %v11480, %v11479
        %v11525 = vpack.c.b16 %v11482, %v11481
        %v11526 = vpack.c.b16 %v11484, %v11483
        %v11527 = vpack.c.b16 %v11486, %v11485
        %v11528 = vpack.c.b16 %v11488, %v11487
        %v11529 = vpack.c.b16 %v11490, %v11489
        %v11530 = vpack.c.b16 %v11492, %v11491
        %v11531 = vpack.c.b16 %v11494, %v11493
        %v11532 = vpack.c.b16 %v11496, %v11495
        %v11533 = vpack.c.b16 %v11498, %v11497
        %v11534 = vpack.c.b16 %v11500, %v11499
        %v11535 = vpack.c.b16 %v11502, %v11501
        %v11536 = vpack.c.b16 %v11504, %v11503
        %11569 = vmatpush.bf16.msra.mxu0 %v11512
        %11570 = vmatpush.bf16.msra.mxu0 %v11511
        %11571 = vmatpush.bf16.msra.mxu0 %v11510
        %11572 = vmatpush.bf16.msra.mxu0 %v11509
        %11573 = vmatpush.bf16.msra.mxu0 %v11508
        %11574 = vmatpush.bf16.msra.mxu0 %v11507
        %11575 = vmatpush.bf16.msra.mxu0 %v11506
        %11576 = vmatpush.bf16.msra.mxu0 %v11505
        %11577 = vmatmul.bf16.gmra.mxu0 %v11308
        %v11578 = vpop.f32.mrf.mxu0
        %v11579 = vadd.f32 %v11376, %v11578
        %v11580 = vpop.f32.mrf.mxu0
        %11581 = vdwg.mxu0
        %11582 = vmatpush.bf16.msra.mxu0 %v11520
        %11583 = vmatpush.bf16.msra.mxu0 %v11519
        %11584 = vmatpush.bf16.msra.mxu0 %v11518
        %11585 = vmatpush.bf16.msra.mxu0 %v11517
        %11586 = vmatpush.bf16.msra.mxu0 %v11516
        %11587 = vmatpush.bf16.msra.mxu0 %v11515
        %11588 = vmatpush.bf16.msra.mxu0 %v11514
        %11589 = vmatpush.bf16.msra.mxu0 %v11513
        %11590 = vmatmul.bf16.gmra.mxu0 %v11309
        %v11591 = vpop.f32.mrf.mxu0
        %v11592 = vadd.f32 %v11579, %v11591
        %v11593 = vpop.f32.mrf.mxu0
        %11594 = vdwg.mxu0
        %11595 = vmatpush.bf16.msra.mxu0 %v11528
        %11596 = vmatpush.bf16.msra.mxu0 %v11527
        %11597 = vmatpush.bf16.msra.mxu0 %v11526
        %11598 = vmatpush.bf16.msra.mxu0 %v11525
        %11599 = vmatpush.bf16.msra.mxu0 %v11524
        %11600 = vmatpush.bf16.msra.mxu0 %v11523
        %11601 = vmatpush.bf16.msra.mxu0 %v11522
        %11602 = vmatpush.bf16.msra.mxu0 %v11521
        %11603 = vmatmul.bf16.gmra.mxu0 %v11310
        %v11604 = vpop.f32.mrf.mxu0
        %v11605 = vadd.f32 %v11592, %v11604
        %v11606 = vpop.f32.mrf.mxu0
        %11607 = vdwg.mxu0
        %11608 = vmatpush.bf16.msra.mxu0 %v11536
        %11609 = vmatpush.bf16.msra.mxu0 %v11535
        %11610 = vmatpush.bf16.msra.mxu0 %v11534
        %11611 = vmatpush.bf16.msra.mxu0 %v11533
        %11612 = vmatpush.bf16.msra.mxu0 %v11532
        %11613 = vmatpush.bf16.msra.mxu0 %v11531
        %11614 = vmatpush.bf16.msra.mxu0 %v11530
        %11615 = vmatpush.bf16.msra.mxu0 %v11529
        %11616 = vmatmul.bf16.gmra.mxu0 %v11311
        %v11617 = vpop.f32.mrf.mxu0
        %v11618 = vadd.f32 %v11605, %v11617
        %v11619 = vpop.f32.mrf.mxu0
        %11620 = vdwg.mxu0
        %11621 = vst [vmem:[%s378] sm:$0x1] %v11618
        %s11622 = sand.u32 %s269, 1
        %s11623 = scalar_lea.sflag [#allocation6], %s11622
        %s11624 = sand.u32 %s269, 1
        %s11625 = scalar_lea.vmem [#allocation5], %s11624
        // Predicated region
        $region65: #{dqn_forward.1} parent=63 // pred_check
          %p11626 = pneg %p279
        $region66: #{dqn_forward.1} parent=63 // pred_check_branch
          %11628 = sbr.rel (%p11626) target = $region68
        $region67: #{dqn_forward.1} parent=63 // pred_region
          %11630 = vsyncadd %s11623, 0
          %s11631 = scalar_lea.hbm %s11, %s25
          %s11633 = sshll.u32 %s11625, 4
          %s11634 = int_to_ptr.vmem [resolvable:$true] %s11633
          %s11635 = sshll.u32 %s11631, 4
          %s11636 = int_to_ptr.hbm [resolvable:$true] %s11635
          %11638 = dma.vmem_to_hbm [thread:$0]  %s11634, 16, %s11636, %s11623
        $region68: #{dqn_forward.1} parent=63 // pred_fallthru
          _
      $region64: #{dqn_forward.1} parent=5 // pred_fallthru
        _
      %p11639 = scmp.le.s32.totalorder 2, %s20
      // Predicated region
      $region69: #{dqn_forward.1} parent=5 // pred_check
        %p11640 = pneg %p11639
      $region70: #{dqn_forward.1} parent=5 // pred_check_branch
        %11642 = sbr.rel (%p11640) target = $region72
      $region71: #{dqn_forward.1} parent=5 // pred_region
        %s11643 = ssub.s32 %s20, 2
        // Predicated region
        $region73: #{dqn_forward.1} parent=71 // pred_check
          %p11644 = pneg %p285
        $region74: #{dqn_forward.1} parent=71 // pred_check_branch
          %11646 = sbr.rel (%p11644) target = $region76
        $region75: #{dqn_forward.1} parent=71 // pred_region
          %s11647 = sand.u32 %s270, 1
          %s11648 = scalar_lea.sflag [#allocation6], %s11647
          %s11649 = sand.u32 %s270, 1
          %s11650 = scalar_lea.vmem [#allocation5], %s11649
          %11652 = dma.done %s11648, 16
        $region76: #{dqn_forward.1} parent=71 // pred_fallthru
          _
      $region72: #{dqn_forward.1} parent=5 // pred_fallthru
        _
    $region6: #{dqn_forward.1} parent=1 // loop_footer
      %s24 = sadd.s32 1, %s20
    $region7: #{dqn_forward.1} parent=1 // loop_footer_branch
      %19 = sbr.rel target = $region3
    $region8: #{dqn_forward.1} parent=1 // loop_exit
      _
    %11653 = vsyncpa [#allocation6], 1
    %s11654 = scalar_lea.sflag [#allocation6], 1
    %11655 = vsyncpa %s11654, 1

</llo_original>
